<compile_context>
chip_gen: v6e
topology: v6e:2x2x1
jax: 0.10.0
libtpu: 0.0.40
codegen_flags: <defaults>
</compile_context>

<pallas_src>
import jax
import jax.numpy as jnp
from jax.experimental import pallas as pl
from jax.experimental.pallas import tpu as pltpu

EPS = 1e-5


def conv_bn_relu_kernel(x_ref, w_ref, gb_ref, o_ref):
    # x_ref:  (Cin, HW)        bf16 flattened pixels, lane axis = HW
    # w_ref:  (block_co, Cin)  bf16 1x1 conv weight block (PyTorch [Cout, Cin] layout)
    # gb_ref: (block_co, 2)    f32; column 0 = BN gamma, column 1 = BN beta
    # o_ref:  (block_co, HW)   f32
    #
    # bf16 x bf16 -> f32 accumulate on the MXU.
    y = jnp.dot(w_ref[...], x_ref[...], preferred_element_type=jnp.float32)

    # One-pass train-mode BN stats per output channel (sublane axis):
    #   mean = E[y],  var = E[y^2] - mean^2   (biased var, matching PyTorch's
    #   normalization path).  Lane-axis reductions in f32, no extra slab.
    inv_hw = 1.0 / y.shape[1]
    mean = jnp.sum(y, axis=1, keepdims=True) * inv_hw
    mean_sq = jnp.sum(y * y, axis=1, keepdims=True) * inv_hw
    var = mean_sq - mean * mean
    inv_std = jax.lax.rsqrt(var + EPS)

    # Fold gamma/beta/mean/inv_std into per-channel a, b so the hot elementwise
    # path is a single FMA + max per vreg.
    gb = gb_ref[...]
    gamma = gb[:, 0:1]
    beta = gb[:, 1:2]
    a = gamma * inv_std
    b = beta - mean * a
    o_ref[...] = jnp.maximum(y * a + b, 0.0).astype(o_ref.dtype)


def _num_tensorcores_per_device() -> int:
    """How many TensorCores a single pallas_call can shard a 'parallel' axis over."""
    try:
        info = pltpu.get_tpu_info()
        for name in ("num_cores", "core_count", "tensorcore_count", "num_tensorcores"):
            v = getattr(info, name, None)
            if v is not None:
                v = int(v)
                if v >= 1:
                    return v
    except Exception:
        pass
    try:
        kind = jax.devices()[0].device_kind.lower()
    except Exception:
        return 1
    # Dual-TensorCore parts (v7x, and megacore v4/v5p); v5e/v6e are 1 TC/device.
    if "v7" in kind or "v4" in kind or "v5p" in kind:
        return 2
    return 1


def conv_bn_relu(x_nchw, w_oi, gamma, beta):
    """x_nchw: [N, Cin, H, W], w_oi: [Cout, Cin] (1x1 conv weight), gamma/beta: [Cout]."""
    n, cin, h, w = x_nchw.shape
    cout = w_oi.shape[0]
    m = n * h * w

    # NCHW -> [Cin, N*H*W].  For N == 1 (this module) this is a pure reshape —
    # no transpose, no extra HBM round-trip.
    x3d = x_nchw.reshape(n, cin, h * w)
    if n == 1:
        x2d = x3d[0]
    else:
        x2d = jnp.moveaxis(x3d, 1, 0).reshape(cin, m)

    # bf16 operands for the MXU; accumulation stays f32 inside the kernel.
    x_bf = x2d.astype(jnp.bfloat16)
    w_bf = w_oi.astype(jnp.bfloat16)

    # gamma/beta merged into one (Cout, 2) slab -> single small DMA.
    gb = jnp.stack([gamma, beta], axis=1).astype(jnp.float32)

    # Channel-parallel grid: split Cout into 2 blocks only when a second
    # TensorCore exists (exact split for BN since stats are per output channel).
    num_tc = _num_tensorcores_per_device()
    num_blocks = 2 if (num_tc >= 2 and cout % 16 == 0) else 1
    block_co = cout // num_blocks

    cost = pl.CostEstimate(
        flops=2 * cout * cin * m + 8 * cout * m,      # matmul + BN/ReLU elementwise
        transcendentals=cout,                          # rsqrt per channel
        bytes_accessed=(cin * m * 2) + (cout * cin * 2) + (cout * 2 * 4) + (cout * m * 4),
    )

    out2d = pl.pallas_call(
        conv_bn_relu_kernel,
        out_shape=jax.ShapeDtypeStruct((cout, m), x_nchw.dtype),
        grid=(num_blocks,),
        in_specs=[
            pl.BlockSpec((cin, m), lambda i: (0, 0)),          # X reused by every block
            pl.BlockSpec((block_co, cin), lambda i: (i, 0)),   # W block
            pl.BlockSpec((block_co, 2), lambda i: (i, 0)),     # [gamma | beta] block
        ],
        out_specs=pl.BlockSpec((block_co, m), lambda i: (i, 0)),
        compiler_params=pltpu.CompilerParams(
            dimension_semantics=("parallel",),
        ),
        cost_estimate=cost,
    )(x_bf, w_bf, gb)

    # [Cout, N*H*W] -> NCHW.  Pure reshape for N == 1.
    if n == 1:
        return out2d.reshape(1, cout, h, w)
    return jnp.moveaxis(out2d.reshape(cout, n, h, w), 0, 1)


def reference(x_nchw, w_oi, gamma, beta, matmul_dtype=jnp.float32):
    # Pure-JAX reference of the same forward pass (train-mode BN).  Optionally
    # casts the matmul operands to bf16 (f32 accumulate) to match the kernel's
    # MXU precision for a tight check of the fused BN/ReLU logic.
    y = jnp.einsum(
        "nchw,oc->nohw",
        x_nchw.astype(matmul_dtype),
        w_oi.astype(matmul_dtype),
        preferred_element_type=jnp.float32,
    ).astype(jnp.float32)
    mean = jnp.mean(y, axis=(0, 2, 3), keepdims=True)
    var = jnp.mean((y - mean) ** 2, axis=(0, 2, 3), keepdims=True)
    normed = (y - mean) * jax.lax.rsqrt(var + EPS)
    normed = normed * gamma[None, :, None, None] + beta[None, :, None, None]
    return jnp.maximum(normed, 0.0)


if __name__ == "__main__":
    key = jax.random.PRNGKey(0)
    k_x, k_w, k_g, k_b = jax.random.split(key, 4)

    # Shapes from the module: Conv2d(448, 448, 1x1), input [1, 448, 28, 28].
    N, C, H, W = 1, 448, 28, 28
    x = jax.random.normal(k_x, (N, C, H, W), dtype=jnp.float32)
    w = jax.random.normal(k_w, (C, C), dtype=jnp.float32) * 0.05           # conv2d18 weight (Cout, Cin)
    gamma = 1.0 + 0.1 * jax.random.normal(k_g, (C,), dtype=jnp.float32)    # BN weight
    beta = 0.1 * jax.random.normal(k_b, (C,), dtype=jnp.float32)           # BN bias

    # TODO(synk): BatchNorm2d running_mean/running_var momentum updates are stateful
    # side effects and are not produced here; only the forward output is computed.
    out = conv_bn_relu(x, w, gamma, beta)
    jax.block_until_ready(out)
    assert out.shape == (N, C, H, W)

    # Tight check against a reference that uses the same bf16-operand / f32-accumulate
    # matmul precision as the kernel (validates the fused BN/ReLU math).
    ref_bf16 = reference(x, w, gamma, beta, matmul_dtype=jnp.bfloat16)
    assert jnp.allclose(out, ref_bf16, atol=1e-3, rtol=1e-3), "mismatch vs bf16-matmul reference"

    # Looser check against the full-f32 reference: the only difference is bf16
    # rounding of the matmul operands (per review, accepted for the MXU speedup).
    ref_f32 = reference(x, w, gamma, beta, matmul_dtype=jnp.float32)
    assert jnp.allclose(out, ref_f32, atol=3e-2, rtol=3e-2), "mismatch vs f32 reference"

    print("KERNEL_OK")
</pallas_src>

<mosaic_0001>
module attributes {stable_mosaic.version = 11 : i64} {
  func.func @conv_bn_relu_kernel(%arg0: i32, %arg1: memref<448x784xbf16, #tpu.memory_space<vmem>>, %arg2: memref<448x448xbf16, #tpu.memory_space<vmem>>, %arg3: memref<448x2xf32, #tpu.memory_space<vmem>>, %arg4: memref<448x784xf32, #tpu.memory_space<vmem>>) attributes {dimension_semantics = [#tpu.dimension_semantics<parallel>], iteration_bounds = array<i64: 1>, scalar_prefetch = 0 : i64, scratch_operands = 0 : i64, tpu.core_type = #tpu.core_type<tc>, window_params = [{pipeline_mode = #tpu.pipeline_mode<synchronous>, transform_indices = @transform_0, window_bounds = array<i64: 448, 784>}, {transform_indices = @transform_1, window_bounds = array<i64: 448, 448>}, {transform_indices = @transform_2, window_bounds = array<i64: 448, 2>}, {transform_indices = @transform_3, window_bounds = array<i64: 448, 784>}]} {
    %c0 = arith.constant 0 : index
    %c0_0 = arith.constant 0 : index
    %0 = vector.load %arg2[%c0, %c0_0] : memref<448x448xbf16, #tpu.memory_space<vmem>>, vector<448x448xbf16>
    %c0_1 = arith.constant 0 : index
    %c0_2 = arith.constant 0 : index
    %1 = vector.load %arg1[%c0_1, %c0_2] : memref<448x784xbf16, #tpu.memory_space<vmem>>, vector<448x784xbf16>
    %cst = arith.constant dense<0.000000e+00> : vector<448x784xf32>
    %2 = tpu.matmul %0, %1, %cst {dimension_numbers = #tpu.dot_dimension_numbers<[1], [0], [0], [1], [0, 0, 1, 1], [], []>} : vector<448x448xbf16>, vector<448x784xbf16>, vector<448x784xf32> -> vector<448x784xf32>
    %cst_3 = arith.constant dense<0.000000e+00> : vector<448xf32>
    %3 = vector.multi_reduction <add>, %2, %cst_3 [1] : vector<448x784xf32> to vector<448xf32>
    %4 = vector.shape_cast %3 : vector<448xf32> to vector<448x1xf32>
    %cst_4 = arith.constant 0.00127551018 : f32
    %5 = vector.broadcast %cst_4 : f32 to vector<448x1xf32>
    %6 = arith.mulf %4, %5 : vector<448x1xf32>
    %7 = arith.mulf %2, %2 : vector<448x784xf32>
    %cst_5 = arith.constant dense<0.000000e+00> : vector<448xf32>
    %8 = vector.multi_reduction <add>, %7, %cst_5 [1] : vector<448x784xf32> to vector<448xf32>
    %9 = vector.shape_cast %8 : vector<448xf32> to vector<448x1xf32>
    %cst_6 = arith.constant 0.00127551018 : f32
    %10 = vector.broadcast %cst_6 : f32 to vector<448x1xf32>
    %11 = arith.mulf %9, %10 : vector<448x1xf32>
    %12 = arith.mulf %6, %6 : vector<448x1xf32>
    %13 = arith.subf %11, %12 : vector<448x1xf32>
    %cst_7 = arith.constant 9.99999974E-6 : f32
    %14 = vector.broadcast %cst_7 : f32 to vector<448x1xf32>
    %15 = arith.addf %13, %14 : vector<448x1xf32>
    %16 = math.rsqrt %15 : vector<448x1xf32>
    %c0_8 = arith.constant 0 : index
    %c0_9 = arith.constant 0 : index
    %17 = vector.load %arg3[%c0_8, %c0_9] : memref<448x2xf32, #tpu.memory_space<vmem>>, vector<448x2xf32>
    %18 = vector.extract_strided_slice %17 {offsets = [0, 0], sizes = [448, 1], strides = [1, 1]} : vector<448x2xf32> to vector<448x1xf32>
    %19 = vector.extract_strided_slice %17 {offsets = [0, 1], sizes = [448, 1], strides = [1, 1]} : vector<448x2xf32> to vector<448x1xf32>
    %20 = arith.mulf %18, %16 : vector<448x1xf32>
    %21 = arith.mulf %6, %20 : vector<448x1xf32>
    %22 = arith.subf %19, %21 : vector<448x1xf32>
    %23 = vector.broadcast %20 : vector<448x1xf32> to vector<448x784xf32>
    %24 = arith.mulf %2, %23 : vector<448x784xf32>
    %25 = vector.broadcast %22 : vector<448x1xf32> to vector<448x784xf32>
    %26 = arith.addf %24, %25 : vector<448x784xf32>
    %cst_10 = arith.constant 0.000000e+00 : f32
    %27 = vector.broadcast %cst_10 : f32 to vector<448x784xf32>
    %28 = arith.maximumf %26, %27 : vector<448x784xf32>
    %c0_11 = arith.constant 0 : index
    %c0_12 = arith.constant 0 : index
    %29 = vector.load %arg4[%c0_11, %c0_12] : memref<448x784xf32, #tpu.memory_space<vmem>>, vector<448x784xf32>
    tpu.vector_store %arg4[%c0_11, %c0_12], %28 {strides = array<i32>} : memref<448x784xf32, #tpu.memory_space<vmem>>, vector<448x784xf32>,
    return
  }
  func.func @transform_0(%arg0: i32) -> (i32, i32) {
    %c0_i32 = arith.constant 0 : i32
    %c0_i32_0 = arith.constant 0 : i32
    %c0_i32_1 = arith.constant 0 : i32
    return %c0_i32, %c0_i32_0 : i32, i32
  }
  func.func @transform_1(%arg0: i32) -> (i32, i32) {
    %c0_i32 = arith.constant 0 : i32
    %c0_i32_0 = arith.constant 0 : i32
    return %arg0, %c0_i32 : i32, i32
  }
  func.func @transform_2(%arg0: i32) -> (i32, i32) {
    %c0_i32 = arith.constant 0 : i32
    %c0_i32_0 = arith.constant 0 : i32
    return %arg0, %c0_i32 : i32, i32
  }
  func.func @transform_3(%arg0: i32) -> (i32, i32) {
    %c0_i32 = arith.constant 0 : i32
    %c0_i32_0 = arith.constant 0 : i32
    return %arg0, %c0_i32 : i32, i32
  }
}

</mosaic_0001>

<llo_original>
// kernel: tpu_custom_call.1
$region0: #{tpu_custom_call.1}
  #allocation0 [shape = 'u32[]', space=smem, size = 0x4, offset = 0x4, fixed_abs, tag = 'smem constant byte address 0x4 - core index']
  #allocation1 [shape = 'u32[144,128]{1,0:T(1,128)}', space=vmem, size = 0x12000, scoped, tag = 'internal scratch']
  %s0 = inlined_call_operand.hbm [shape: bf16[448,784], index: 0, kind: input, shape index: {}]
  %s1 = inlined_call_operand.hbm [shape: bf16[448,448], index: 1, kind: input, shape index: {}]
  %s2 = inlined_call_operand.vmem [shape: f32[448,2], index: 2, kind: input, shape index: {}]
  %s3 = inlined_call_operand.hbm [shape: f32[448,784], index: 3, kind: output, shape index: {}]
  %s4 = sld [smem:[#allocation0]]
  $region30: #{tpu_custom_call.1} parent=0
    _
  %s6 = ssub.s32 1, %s4
  %s7 = scalar_select 0, %s6, %s4
  $region1: #{tpu_custom_call.1} parent=0
    #allocation2 [shape = 'u8[802816]{0}', space=vmem, size = 0xc4000, scoped, tag = 'input window, operand 0, single buffered']
    #allocation3 [shape = 's32[1]{0}', space=sflag, size = 0x4, scoped, tag = 'scoped memory for tpu_custom_call.1']
    #allocation4 [shape = 's32[1]{0}', space=sflag, size = 0x4, scoped, tag = 'scoped memory for tpu_custom_call.1']
    #allocation5 [shape = 'u8[458752]{0}', space=vmem, size = 0x70000, scoped, tag = 'input window, operand 1, single buffered']
    #allocation6 [shape = 's32[1]{0}', space=sflag, size = 0x4, scoped, tag = 'scoped memory for tpu_custom_call.1']
    #allocation7 [shape = 'u8[1605632]{0}', space=vmem, size = 0x188000, scoped, tag = 'output window, operand 0, single buffered']
    %8 = vsyncpa [#allocation3], 0
    %9 = vsyncpa [#allocation6], 0
    %10 = vsyncpa [#allocation4], 0
    // Predicated region
    $region2: #{tpu_custom_call.1} parent=1 // pred_check
      _
    $region3: #{tpu_custom_call.1} parent=1 // pred_check_branch
      %12 = sbr.rel (0) target = $region5
    $region4: #{tpu_custom_call.1} parent=1 // pred_region
      %s14 = ssub.s32 25088, 25088
      %15 = vsyncadd [#allocation3], %s14
      %s16 = sshll.u32 [#allocation2], 4
      %s17 = int_to_ptr.vmem [resolvable:$true] %s16
      %22 = dma.hbm_to_vmem [thread:$0]  %s0, 25088, %s17, [#allocation3], 448, 448, 28
    $region5: #{tpu_custom_call.1} parent=1 // pred_fallthru
      _
    // Predicated region
    $region6: #{tpu_custom_call.1} parent=1 // pred_check
      _
    $region7: #{tpu_custom_call.1} parent=1 // pred_check_branch
      %24 = sbr.rel (0) target = $region9
    $region8: #{tpu_custom_call.1} parent=1 // pred_region
      %s26 = ssub.s32 14336, 14336
      %27 = vsyncadd [#allocation6], %s26
      %s28 = sshll.u32 [#allocation5], 4
      %s29 = int_to_ptr.vmem [resolvable:$true] %s28
      %34 = dma.hbm_to_vmem [thread:$0]  %s1, 14336, %s29, [#allocation6], 256, 256, 16
    $region9: #{tpu_custom_call.1} parent=1 // pred_fallthru
      _
    // Predicated region
    $region10: #{tpu_custom_call.1} parent=1 // pred_check
      _
    $region11: #{tpu_custom_call.1} parent=1 // pred_check_branch
      %36 = sbr.rel (0) target = $region13
    $region12: #{tpu_custom_call.1} parent=1 // pred_region
      _
    $region13: #{tpu_custom_call.1} parent=1 // pred_fallthru
      _
    // Predicated region
    $region14: #{tpu_custom_call.1} parent=1 // pred_check
      _
    $region15: #{tpu_custom_call.1} parent=1 // pred_check_branch
      %38 = sbr.rel (0) target = $region17
    $region16: #{tpu_custom_call.1} parent=1 // pred_region
      %39 = dma.done [#allocation3], 25088
    $region17: #{tpu_custom_call.1} parent=1 // pred_fallthru
      _
    // Predicated region
    $region18: #{tpu_custom_call.1} parent=1 // pred_check
      _
    $region19: #{tpu_custom_call.1} parent=1 // pred_check_branch
      %41 = sbr.rel (0) target = $region21
    $region20: #{tpu_custom_call.1} parent=1 // pred_region
      %42 = dma.done [#allocation6], 14336
    $region21: #{tpu_custom_call.1} parent=1 // pred_fallthru
      _
    %v44 = vld [vmem:[#allocation5] sm:$0xff]
    %v45 = vld [vmem:[#allocation5 + $0x8] sm:$0xff]
    %v46 = vld [vmem:[#allocation5 + $0x10] sm:$0xff]
    %v47 = vld [vmem:[#allocation5 + $0x18] sm:$0xff]
    %v48 = vld [vmem:[#allocation5 + $0x20] sm:$0xff]
    %v49 = vld [vmem:[#allocation5 + $0x28] sm:$0xff]
    %v50 = vld [vmem:[#allocation5 + $0x30] sm:$0xff]
    %v51 = vld [vmem:[#allocation5 + $0x38] sm:$0xff]
    %v52 = vld [vmem:[#allocation5 + $0x40] sm:$0xff]
    %v53 = vld [vmem:[#allocation5 + $0x48] sm:$0xff]
    %v54 = vld [vmem:[#allocation5 + $0x50] sm:$0xff]
    %v55 = vld [vmem:[#allocation5 + $0x58] sm:$0xff]
    %v56 = vld [vmem:[#allocation5 + $0x60] sm:$0xff]
    %v57 = vld [vmem:[#allocation5 + $0x68] sm:$0xff]
    %v58 = vld [vmem:[#allocation5 + $0x70] sm:$0xff]
    %v59 = vld [vmem:[#allocation5 + $0x78] sm:$0xff]
    %v60 = vld [vmem:[#allocation5 + $0x80] sm:$0xff]
    %v61 = vld [vmem:[#allocation5 + $0x88] sm:$0xff]
    %v62 = vld [vmem:[#allocation5 + $0x90] sm:$0xff]
    %v63 = vld [vmem:[#allocation5 + $0x98] sm:$0xff]
    %v64 = vld [vmem:[#allocation5 + $0xa0] sm:$0xff]
    %v65 = vld [vmem:[#allocation5 + $0xa8] sm:$0xff]
    %v66 = vld [vmem:[#allocation5 + $0xb0] sm:$0xff]
    %v67 = vld [vmem:[#allocation5 + $0xb8] sm:$0xff]
    %v68 = vld [vmem:[#allocation5 + $0xc0] sm:$0xff]
    %v69 = vld [vmem:[#allocation5 + $0xc8] sm:$0xff]
    %v70 = vld [vmem:[#allocation5 + $0xd0] sm:$0xff]
    %v71 = vld [vmem:[#allocation5 + $0xd8] sm:$0xff]
    %v72 = vld [vmem:[#allocation5 + $0xe0] sm:$0xff]
    %v73 = vld [vmem:[#allocation5 + $0xe8] sm:$0xff]
    %v74 = vld [vmem:[#allocation5 + $0xf0] sm:$0xff]
    %v75 = vld [vmem:[#allocation5 + $0xf8] sm:$0xff]
    %v76 = vld [vmem:[#allocation5 + $0x100] sm:$0xff]
    %v77 = vld [vmem:[#allocation5 + $0x108] sm:$0xff]
    %v78 = vld [vmem:[#allocation5 + $0x110] sm:$0xff]
    %v79 = vld [vmem:[#allocation5 + $0x118] sm:$0xff]
    %v80 = vld [vmem:[#allocation5 + $0x120] sm:$0xff]
    %v81 = vld [vmem:[#allocation5 + $0x128] sm:$0xff]
    %v82 = vld [vmem:[#allocation5 + $0x130] sm:$0xff]
    %v83 = vld [vmem:[#allocation5 + $0x138] sm:$0xff]
    %v84 = vld [vmem:[#allocation5 + $0x140] sm:$0xff]
    %v85 = vld [vmem:[#allocation5 + $0x148] sm:$0xff]
    %v86 = vld [vmem:[#allocation5 + $0x150] sm:$0xff]
    %v87 = vld [vmem:[#allocation5 + $0x158] sm:$0xff]
    %v88 = vld [vmem:[#allocation5 + $0x160] sm:$0xff]
    %v89 = vld [vmem:[#allocation5 + $0x168] sm:$0xff]
    %v90 = vld [vmem:[#allocation5 + $0x170] sm:$0xff]
    %v91 = vld [vmem:[#allocation5 + $0x178] sm:$0xff]
    %v92 = vld [vmem:[#allocation5 + $0x180] sm:$0xff]
    %v93 = vld [vmem:[#allocation5 + $0x188] sm:$0xff]
    %v94 = vld [vmem:[#allocation5 + $0x190] sm:$0xff]
    %v95 = vld [vmem:[#allocation5 + $0x198] sm:$0xff]
    %v96 = vld [vmem:[#allocation5 + $0x1a0] sm:$0xff]
    %v97 = vld [vmem:[#allocation5 + $0x1a8] sm:$0xff]
    %v98 = vld [vmem:[#allocation5 + $0x1b0] sm:$0xff]
    %v99 = vld [vmem:[#allocation5 + $0x1b8] sm:$0xff]
    %v100 = vld [vmem:[#allocation5 + $0x1c0] sm:$0xff]
    %v101 = vld [vmem:[#allocation5 + $0x1c8] sm:$0xff]
    %v102 = vld [vmem:[#allocation5 + $0x1d0] sm:$0xff]
    %v103 = vld [vmem:[#allocation5 + $0x1d8] sm:$0xff]
    %v104 = vld [vmem:[#allocation5 + $0x1e0] sm:$0xff]
    %v105 = vld [vmem:[#allocation5 + $0x1e8] sm:$0xff]
    %v106 = vld [vmem:[#allocation5 + $0x1f0] sm:$0xff]
    %v107 = vld [vmem:[#allocation5 + $0x1f8] sm:$0xff]
    %v108 = vld [vmem:[#allocation5 + $0x200] sm:$0xff]
    %v109 = vld [vmem:[#allocation5 + $0x208] sm:$0xff]
    %v110 = vld [vmem:[#allocation5 + $0x210] sm:$0xff]
    %v111 = vld [vmem:[#allocation5 + $0x218] sm:$0xff]
    %v112 = vld [vmem:[#allocation5 + $0x220] sm:$0xff]
    %v113 = vld [vmem:[#allocation5 + $0x228] sm:$0xff]
    %v114 = vld [vmem:[#allocation5 + $0x230] sm:$0xff]
    %v115 = vld [vmem:[#allocation5 + $0x238] sm:$0xff]
    %v116 = vld [vmem:[#allocation5 + $0x240] sm:$0xff]
    %v117 = vld [vmem:[#allocation5 + $0x248] sm:$0xff]
    %v118 = vld [vmem:[#allocation5 + $0x250] sm:$0xff]
    %v119 = vld [vmem:[#allocation5 + $0x258] sm:$0xff]
    %v120 = vld [vmem:[#allocation5 + $0x260] sm:$0xff]
    %v121 = vld [vmem:[#allocation5 + $0x268] sm:$0xff]
    %v122 = vld [vmem:[#allocation5 + $0x270] sm:$0xff]
    %v123 = vld [vmem:[#allocation5 + $0x278] sm:$0xff]
    %v124 = vld [vmem:[#allocation5 + $0x280] sm:$0xff]
    %v125 = vld [vmem:[#allocation5 + $0x288] sm:$0xff]
    %v126 = vld [vmem:[#allocation5 + $0x290] sm:$0xff]
    %v127 = vld [vmem:[#allocation5 + $0x298] sm:$0xff]
    %v128 = vld [vmem:[#allocation5 + $0x2a0] sm:$0xff]
    %v129 = vld [vmem:[#allocation5 + $0x2a8] sm:$0xff]
    %v130 = vld [vmem:[#allocation5 + $0x2b0] sm:$0xff]
    %v131 = vld [vmem:[#allocation5 + $0x2b8] sm:$0xff]
    %v132 = vld [vmem:[#allocation5 + $0x2c0] sm:$0xff]
    %v133 = vld [vmem:[#allocation5 + $0x2c8] sm:$0xff]
    %v134 = vld [vmem:[#allocation5 + $0x2d0] sm:$0xff]
    %v135 = vld [vmem:[#allocation5 + $0x2d8] sm:$0xff]
    %v136 = vld [vmem:[#allocation5 + $0x2e0] sm:$0xff]
    %v137 = vld [vmem:[#allocation5 + $0x2e8] sm:$0xff]
    %v138 = vld [vmem:[#allocation5 + $0x2f0] sm:$0xff]
    %v139 = vld [vmem:[#allocation5 + $0x2f8] sm:$0xff]
    %v140 = vld [vmem:[#allocation5 + $0x300] sm:$0xff]
    %v141 = vld [vmem:[#allocation5 + $0x308] sm:$0xff]
    %v142 = vld [vmem:[#allocation5 + $0x310] sm:$0xff]
    %v143 = vld [vmem:[#allocation5 + $0x318] sm:$0xff]
    %v144 = vld [vmem:[#allocation5 + $0x320] sm:$0xff]
    %v145 = vld [vmem:[#allocation5 + $0x328] sm:$0xff]
    %v146 = vld [vmem:[#allocation5 + $0x330] sm:$0xff]
    %v147 = vld [vmem:[#allocation5 + $0x338] sm:$0xff]
    %v148 = vld [vmem:[#allocation5 + $0x340] sm:$0xff]
    %v149 = vld [vmem:[#allocation5 + $0x348] sm:$0xff]
    %v150 = vld [vmem:[#allocation5 + $0x350] sm:$0xff]
    %v151 = vld [vmem:[#allocation5 + $0x358] sm:$0xff]
    %v152 = vld [vmem:[#allocation5 + $0x360] sm:$0xff]
    %v153 = vld [vmem:[#allocation5 + $0x368] sm:$0xff]
    %v154 = vld [vmem:[#allocation5 + $0x370] sm:$0xff]
    %v155 = vld [vmem:[#allocation5 + $0x378] sm:$0xff]
    %v156 = vld [vmem:[#allocation2] sm:$0xff]
    %v157 = vld [vmem:[#allocation2 + $0x8] sm:$0xff]
    %v158 = vld [vmem:[#allocation2 + $0x10] sm:$0xff]
    %v159 = vld [vmem:[#allocation2 + $0x18] sm:$0xf]
    %v160 = vld [vmem:[#allocation2 + $0x1c] sm:$0xff]
    %v161 = vld [vmem:[#allocation2 + $0x24] sm:$0xff]
    %v162 = vld [vmem:[#allocation2 + $0x2c] sm:$0xff]
    %v163 = vld [vmem:[#allocation2 + $0x34] sm:$0xf]
    %v164 = vld [vmem:[#allocation2 + $0x38] sm:$0xff]
    %v165 = vld [vmem:[#allocation2 + $0x40] sm:$0xff]
    %v166 = vld [vmem:[#allocation2 + $0x48] sm:$0xff]
    %v167 = vld [vmem:[#allocation2 + $0x50] sm:$0xf]
    %v168 = vld [vmem:[#allocation2 + $0x54] sm:$0xff]
    %v169 = vld [vmem:[#allocation2 + $0x5c] sm:$0xff]
    %v170 = vld [vmem:[#allocation2 + $0x64] sm:$0xff]
    %v171 = vld [vmem:[#allocation2 + $0x6c] sm:$0xf]
    %v172 = vld [vmem:[#allocation2 + $0x70] sm:$0xff]
    %v173 = vld [vmem:[#allocation2 + $0x78] sm:$0xff]
    %v174 = vld [vmem:[#allocation2 + $0x80] sm:$0xff]
    %v175 = vld [vmem:[#allocation2 + $0x88] sm:$0xf]
    %v176 = vld [vmem:[#allocation2 + $0x8c] sm:$0xff]
    %v177 = vld [vmem:[#allocation2 + $0x94] sm:$0xff]
    %v178 = vld [vmem:[#allocation2 + $0x9c] sm:$0xff]
    %v179 = vld [vmem:[#allocation2 + $0xa4] sm:$0xf]
    %v180 = vld [vmem:[#allocation2 + $0xa8] sm:$0xff]
    %v181 = vld [vmem:[#allocation2 + $0xb0] sm:$0xff]
    %v182 = vld [vmem:[#allocation2 + $0xb8] sm:$0xff]
    %v183 = vld [vmem:[#allocation2 + $0xc0] sm:$0xf]
    %v184 = vld [vmem:[#allocation2 + $0xc4] sm:$0xff]
    %v185 = vld [vmem:[#allocation2 + $0xcc] sm:$0xff]
    %v186 = vld [vmem:[#allocation2 + $0xd4] sm:$0xff]
    %v187 = vld [vmem:[#allocation2 + $0xdc] sm:$0xf]
    %v188 = vld [vmem:[#allocation2 + $0xe0] sm:$0xff]
    %v189 = vld [vmem:[#allocation2 + $0xe8] sm:$0xff]
    %v190 = vld [vmem:[#allocation2 + $0xf0] sm:$0xff]
    %v191 = vld [vmem:[#allocation2 + $0xf8] sm:$0xf]
    %v192 = vld [vmem:[#allocation2 + $0xfc] sm:$0xff]
    %v193 = vld [vmem:[#allocation2 + $0x104] sm:$0xff]
    %v194 = vld [vmem:[#allocation2 + $0x10c] sm:$0xff]
    %v195 = vld [vmem:[#allocation2 + $0x114] sm:$0xf]
    %v196 = vld [vmem:[#allocation2 + $0x118] sm:$0xff]
    %v197 = vld [vmem:[#allocation2 + $0x120] sm:$0xff]
    %v198 = vld [vmem:[#allocation2 + $0x128] sm:$0xff]
    %v199 = vld [vmem:[#allocation2 + $0x130] sm:$0xf]
    %v200 = vld [vmem:[#allocation2 + $0x134] sm:$0xff]
    %v201 = vld [vmem:[#allocation2 + $0x13c] sm:$0xff]
    %v202 = vld [vmem:[#allocation2 + $0x144] sm:$0xff]
    %v203 = vld [vmem:[#allocation2 + $0x14c] sm:$0xf]
    %v204 = vld [vmem:[#allocation2 + $0x150] sm:$0xff]
    %v205 = vld [vmem:[#allocation2 + $0x158] sm:$0xff]
    %v206 = vld [vmem:[#allocation2 + $0x160] sm:$0xff]
    %v207 = vld [vmem:[#allocation2 + $0x168] sm:$0xf]
    %v208 = vld [vmem:[#allocation2 + $0x16c] sm:$0xff]
    %v209 = vld [vmem:[#allocation2 + $0x174] sm:$0xff]
    %v210 = vld [vmem:[#allocation2 + $0x17c] sm:$0xff]
    %v211 = vld [vmem:[#allocation2 + $0x184] sm:$0xf]
    %v212 = vld [vmem:[#allocation2 + $0x188] sm:$0xff]
    %v213 = vld [vmem:[#allocation2 + $0x190] sm:$0xff]
    %v214 = vld [vmem:[#allocation2 + $0x198] sm:$0xff]
    %v215 = vld [vmem:[#allocation2 + $0x1a0] sm:$0xf]
    %v216 = vld [vmem:[#allocation2 + $0x1a4] sm:$0xff]
    %v217 = vld [vmem:[#allocation2 + $0x1ac] sm:$0xff]
    %v218 = vld [vmem:[#allocation2 + $0x1b4] sm:$0xff]
    %v219 = vld [vmem:[#allocation2 + $0x1bc] sm:$0xf]
    %v220 = vld [vmem:[#allocation2 + $0x1c0] sm:$0xff]
    %v221 = vld [vmem:[#allocation2 + $0x1c8] sm:$0xff]
    %v222 = vld [vmem:[#allocation2 + $0x1d0] sm:$0xff]
    %v223 = vld [vmem:[#allocation2 + $0x1d8] sm:$0xf]
    %v224 = vld [vmem:[#allocation2 + $0x1dc] sm:$0xff]
    %v225 = vld [vmem:[#allocation2 + $0x1e4] sm:$0xff]
    %v226 = vld [vmem:[#allocation2 + $0x1ec] sm:$0xff]
    %v227 = vld [vmem:[#allocation2 + $0x1f4] sm:$0xf]
    %v228 = vld [vmem:[#allocation2 + $0x1f8] sm:$0xff]
    %v229 = vld [vmem:[#allocation2 + $0x200] sm:$0xff]
    %v230 = vld [vmem:[#allocation2 + $0x208] sm:$0xff]
    %v231 = vld [vmem:[#allocation2 + $0x210] sm:$0xf]
    %v232 = vld [vmem:[#allocation2 + $0x214] sm:$0xff]
    %v233 = vld [vmem:[#allocation2 + $0x21c] sm:$0xff]
    %v234 = vld [vmem:[#allocation2 + $0x224] sm:$0xff]
    %v235 = vld [vmem:[#allocation2 + $0x22c] sm:$0xf]
    %v236 = vld [vmem:[#allocation2 + $0x230] sm:$0xff]
    %v237 = vld [vmem:[#allocation2 + $0x238] sm:$0xff]
    %v238 = vld [vmem:[#allocation2 + $0x240] sm:$0xff]
    %v239 = vld [vmem:[#allocation2 + $0x248] sm:$0xf]
    %v240 = vld [vmem:[#allocation2 + $0x24c] sm:$0xff]
    %v241 = vld [vmem:[#allocation2 + $0x254] sm:$0xff]
    %v242 = vld [vmem:[#allocation2 + $0x25c] sm:$0xff]
    %v243 = vld [vmem:[#allocation2 + $0x264] sm:$0xf]
    %v244 = vld [vmem:[#allocation2 + $0x268] sm:$0xff]
    %v245 = vld [vmem:[#allocation2 + $0x270] sm:$0xff]
    %v246 = vld [vmem:[#allocation2 + $0x278] sm:$0xff]
    %v247 = vld [vmem:[#allocation2 + $0x280] sm:$0xf]
    %v248 = vld [vmem:[#allocation2 + $0x284] sm:$0xff]
    %v249 = vld [vmem:[#allocation2 + $0x28c] sm:$0xff]
    %v250 = vld [vmem:[#allocation2 + $0x294] sm:$0xff]
    %v251 = vld [vmem:[#allocation2 + $0x29c] sm:$0xf]
    %v252 = vld [vmem:[#allocation2 + $0x2a0] sm:$0xff]
    %v253 = vld [vmem:[#allocation2 + $0x2a8] sm:$0xff]
    %v254 = vld [vmem:[#allocation2 + $0x2b0] sm:$0xff]
    %v255 = vld [vmem:[#allocation2 + $0x2b8] sm:$0xf]
    %v256 = vld [vmem:[#allocation2 + $0x2bc] sm:$0xff]
    %v257 = vld [vmem:[#allocation2 + $0x2c4] sm:$0xff]
    %v258 = vld [vmem:[#allocation2 + $0x2cc] sm:$0xff]
    %v259 = vld [vmem:[#allocation2 + $0x2d4] sm:$0xf]
    %v260 = vld [vmem:[#allocation2 + $0x2d8] sm:$0xff]
    %v261 = vld [vmem:[#allocation2 + $0x2e0] sm:$0xff]
    %v262 = vld [vmem:[#allocation2 + $0x2e8] sm:$0xff]
    %v263 = vld [vmem:[#allocation2 + $0x2f0] sm:$0xf]
    %v264 = vld [vmem:[#allocation2 + $0x2f4] sm:$0xff]
    %v265 = vld [vmem:[#allocation2 + $0x2fc] sm:$0xff]
    %v266 = vld [vmem:[#allocation2 + $0x304] sm:$0xff]
    %v267 = vld [vmem:[#allocation2 + $0x30c] sm:$0xf]
    %v268 = vld [vmem:[#allocation2 + $0x310] sm:$0xff]
    %v269 = vld [vmem:[#allocation2 + $0x318] sm:$0xff]
    %v270 = vld [vmem:[#allocation2 + $0x320] sm:$0xff]
    %v271 = vld [vmem:[#allocation2 + $0x328] sm:$0xf]
    %v272 = vld [vmem:[#allocation2 + $0x32c] sm:$0xff]
    %v273 = vld [vmem:[#allocation2 + $0x334] sm:$0xff]
    %v274 = vld [vmem:[#allocation2 + $0x33c] sm:$0xff]
    %v275 = vld [vmem:[#allocation2 + $0x344] sm:$0xf]
    %v276 = vld [vmem:[#allocation2 + $0x348] sm:$0xff]
    %v277 = vld [vmem:[#allocation2 + $0x350] sm:$0xff]
    %v278 = vld [vmem:[#allocation2 + $0x358] sm:$0xff]
    %v279 = vld [vmem:[#allocation2 + $0x360] sm:$0xf]
    %v280 = vld [vmem:[#allocation2 + $0x364] sm:$0xff]
    %v281 = vld [vmem:[#allocation2 + $0x36c] sm:$0xff]
    %v282 = vld [vmem:[#allocation2 + $0x374] sm:$0xff]
    %v283 = vld [vmem:[#allocation2 + $0x37c] sm:$0xf]
    %v284 = vld [vmem:[#allocation2 + $0x380] sm:$0xff]
    %v285 = vld [vmem:[#allocation2 + $0x388] sm:$0xff]
    %v286 = vld [vmem:[#allocation2 + $0x390] sm:$0xff]
    %v287 = vld [vmem:[#allocation2 + $0x398] sm:$0xf]
    %v288 = vld [vmem:[#allocation2 + $0x39c] sm:$0xff]
    %v289 = vld [vmem:[#allocation2 + $0x3a4] sm:$0xff]
    %v290 = vld [vmem:[#allocation2 + $0x3ac] sm:$0xff]
    %v291 = vld [vmem:[#allocation2 + $0x3b4] sm:$0xf]
    %v292 = vld [vmem:[#allocation2 + $0x3b8] sm:$0xff]
    %v293 = vld [vmem:[#allocation2 + $0x3c0] sm:$0xff]
    %v294 = vld [vmem:[#allocation2 + $0x3c8] sm:$0xff]
    %v295 = vld [vmem:[#allocation2 + $0x3d0] sm:$0xf]
    %v296 = vld [vmem:[#allocation2 + $0x3d4] sm:$0xff]
    %v297 = vld [vmem:[#allocation2 + $0x3dc] sm:$0xff]
    %v298 = vld [vmem:[#allocation2 + $0x3e4] sm:$0xff]
    %v299 = vld [vmem:[#allocation2 + $0x3ec] sm:$0xf]
    %v300 = vld [vmem:[#allocation2 + $0x3f0] sm:$0xff]
    %v301 = vld [vmem:[#allocation2 + $0x3f8] sm:$0xff]
    %v302 = vld [vmem:[#allocation2 + $0x400] sm:$0xff]
    %v303 = vld [vmem:[#allocation2 + $0x408] sm:$0xf]
    %v304 = vld [vmem:[#allocation2 + $0x40c] sm:$0xff]
    %v305 = vld [vmem:[#allocation2 + $0x414] sm:$0xff]
    %v306 = vld [vmem:[#allocation2 + $0x41c] sm:$0xff]
    %v307 = vld [vmem:[#allocation2 + $0x424] sm:$0xf]
    %v308 = vld [vmem:[#allocation2 + $0x428] sm:$0xff]
    %v309 = vld [vmem:[#allocation2 + $0x430] sm:$0xff]
    %v310 = vld [vmem:[#allocation2 + $0x438] sm:$0xff]
    %v311 = vld [vmem:[#allocation2 + $0x440] sm:$0xf]
    %v312 = vld [vmem:[#allocation2 + $0x444] sm:$0xff]
    %v313 = vld [vmem:[#allocation2 + $0x44c] sm:$0xff]
    %v314 = vld [vmem:[#allocation2 + $0x454] sm:$0xff]
    %v315 = vld [vmem:[#allocation2 + $0x45c] sm:$0xf]
    %v316 = vld [vmem:[#allocation2 + $0x460] sm:$0xff]
    %v317 = vld [vmem:[#allocation2 + $0x468] sm:$0xff]
    %v318 = vld [vmem:[#allocation2 + $0x470] sm:$0xff]
    %v319 = vld [vmem:[#allocation2 + $0x478] sm:$0xf]
    %v320 = vld [vmem:[#allocation2 + $0x47c] sm:$0xff]
    %v321 = vld [vmem:[#allocation2 + $0x484] sm:$0xff]
    %v322 = vld [vmem:[#allocation2 + $0x48c] sm:$0xff]
    %v323 = vld [vmem:[#allocation2 + $0x494] sm:$0xf]
    %v324 = vld [vmem:[#allocation2 + $0x498] sm:$0xff]
    %v325 = vld [vmem:[#allocation2 + $0x4a0] sm:$0xff]
    %v326 = vld [vmem:[#allocation2 + $0x4a8] sm:$0xff]
    %v327 = vld [vmem:[#allocation2 + $0x4b0] sm:$0xf]
    %v328 = vld [vmem:[#allocation2 + $0x4b4] sm:$0xff]
    %v329 = vld [vmem:[#allocation2 + $0x4bc] sm:$0xff]
    %v330 = vld [vmem:[#allocation2 + $0x4c4] sm:$0xff]
    %v331 = vld [vmem:[#allocation2 + $0x4cc] sm:$0xf]
    %v332 = vld [vmem:[#allocation2 + $0x4d0] sm:$0xff]
    %v333 = vld [vmem:[#allocation2 + $0x4d8] sm:$0xff]
    %v334 = vld [vmem:[#allocation2 + $0x4e0] sm:$0xff]
    %v335 = vld [vmem:[#allocation2 + $0x4e8] sm:$0xf]
    %v336 = vld [vmem:[#allocation2 + $0x4ec] sm:$0xff]
    %v337 = vld [vmem:[#allocation2 + $0x4f4] sm:$0xff]
    %v338 = vld [vmem:[#allocation2 + $0x4fc] sm:$0xff]
    %v339 = vld [vmem:[#allocation2 + $0x504] sm:$0xf]
    %v340 = vld [vmem:[#allocation2 + $0x508] sm:$0xff]
    %v341 = vld [vmem:[#allocation2 + $0x510] sm:$0xff]
    %v342 = vld [vmem:[#allocation2 + $0x518] sm:$0xff]
    %v343 = vld [vmem:[#allocation2 + $0x520] sm:$0xf]
    %v344 = vld [vmem:[#allocation2 + $0x524] sm:$0xff]
    %v345 = vld [vmem:[#allocation2 + $0x52c] sm:$0xff]
    %v346 = vld [vmem:[#allocation2 + $0x534] sm:$0xff]
    %v347 = vld [vmem:[#allocation2 + $0x53c] sm:$0xf]
    %v348 = vld [vmem:[#allocation2 + $0x540] sm:$0xff]
    %v349 = vld [vmem:[#allocation2 + $0x548] sm:$0xff]
    %v350 = vld [vmem:[#allocation2 + $0x550] sm:$0xff]
    %v351 = vld [vmem:[#allocation2 + $0x558] sm:$0xf]
    %v352 = vld [vmem:[#allocation2 + $0x55c] sm:$0xff]
    %v353 = vld [vmem:[#allocation2 + $0x564] sm:$0xff]
    %v354 = vld [vmem:[#allocation2 + $0x56c] sm:$0xff]
    %v355 = vld [vmem:[#allocation2 + $0x574] sm:$0xf]
    %v356 = vld [vmem:[#allocation2 + $0x578] sm:$0xff]
    %v357 = vld [vmem:[#allocation2 + $0x580] sm:$0xff]
    %v358 = vld [vmem:[#allocation2 + $0x588] sm:$0xff]
    %v359 = vld [vmem:[#allocation2 + $0x590] sm:$0xf]
    %v360 = vld [vmem:[#allocation2 + $0x594] sm:$0xff]
    %v361 = vld [vmem:[#allocation2 + $0x59c] sm:$0xff]
    %v362 = vld [vmem:[#allocation2 + $0x5a4] sm:$0xff]
    %v363 = vld [vmem:[#allocation2 + $0x5ac] sm:$0xf]
    %v364 = vld [vmem:[#allocation2 + $0x5b0] sm:$0xff]
    %v365 = vld [vmem:[#allocation2 + $0x5b8] sm:$0xff]
    %v366 = vld [vmem:[#allocation2 + $0x5c0] sm:$0xff]
    %v367 = vld [vmem:[#allocation2 + $0x5c8] sm:$0xf]
    %v368 = vld [vmem:[#allocation2 + $0x5cc] sm:$0xff]
    %v369 = vld [vmem:[#allocation2 + $0x5d4] sm:$0xff]
    %v370 = vld [vmem:[#allocation2 + $0x5dc] sm:$0xff]
    %v371 = vld [vmem:[#allocation2 + $0x5e4] sm:$0xf]
    %v372 = vld [vmem:[#allocation2 + $0x5e8] sm:$0xff]
    %v373 = vld [vmem:[#allocation2 + $0x5f0] sm:$0xff]
    %v374 = vld [vmem:[#allocation2 + $0x5f8] sm:$0xff]
    %v375 = vld [vmem:[#allocation2 + $0x600] sm:$0xf]
    %v376 = vld [vmem:[#allocation2 + $0x604] sm:$0xff]
    %v377 = vld [vmem:[#allocation2 + $0x60c] sm:$0xff]
    %v378 = vld [vmem:[#allocation2 + $0x614] sm:$0xff]
    %v379 = vld [vmem:[#allocation2 + $0x61c] sm:$0xf]
    %v492 = vunpack.c.l.b16 %v44
    %v493 = vunpack.c.h.b16 %v44
    %v494 = vunpack.c.l.b16 %v45
    %v495 = vunpack.c.h.b16 %v45
    %v496 = vunpack.c.l.b16 %v46
    %v497 = vunpack.c.h.b16 %v46
    %v498 = vunpack.c.l.b16 %v47
    %v499 = vunpack.c.h.b16 %v47
    %v500 = vunpack.c.l.b16 %v48
    %v501 = vunpack.c.h.b16 %v48
    %v502 = vunpack.c.l.b16 %v49
    %v503 = vunpack.c.h.b16 %v49
    %v504 = vunpack.c.l.b16 %v50
    %v505 = vunpack.c.h.b16 %v50
    %v506 = vunpack.c.l.b16 %v51
    %v507 = vunpack.c.h.b16 %v51
    %v508 = vunpack.c.l.b16 %v52
    %v509 = vunpack.c.h.b16 %v52
    %v510 = vunpack.c.l.b16 %v53
    %v511 = vunpack.c.h.b16 %v53
    %v512 = vunpack.c.l.b16 %v54
    %v513 = vunpack.c.h.b16 %v54
    %v514 = vunpack.c.l.b16 %v55
    %v515 = vunpack.c.h.b16 %v55
    %v516 = vunpack.c.l.b16 %v56
    %v517 = vunpack.c.h.b16 %v56
    %v518 = vunpack.c.l.b16 %v57
    %v519 = vunpack.c.h.b16 %v57
    %v520 = vunpack.c.l.b16 %v58
    %v521 = vunpack.c.h.b16 %v58
    %v522 = vunpack.c.l.b16 %v59
    %v523 = vunpack.c.h.b16 %v59
    %v524 = vunpack.c.l.b16 %v60
    %v525 = vunpack.c.h.b16 %v60
    %v526 = vunpack.c.l.b16 %v61
    %v527 = vunpack.c.h.b16 %v61
    %v528 = vunpack.c.l.b16 %v62
    %v529 = vunpack.c.h.b16 %v62
    %v530 = vunpack.c.l.b16 %v63
    %v531 = vunpack.c.h.b16 %v63
    %v532 = vunpack.c.l.b16 %v64
    %v533 = vunpack.c.h.b16 %v64
    %v534 = vunpack.c.l.b16 %v65
    %v535 = vunpack.c.h.b16 %v65
    %v536 = vunpack.c.l.b16 %v66
    %v537 = vunpack.c.h.b16 %v66
    %v538 = vunpack.c.l.b16 %v67
    %v539 = vunpack.c.h.b16 %v67
    %v540 = vunpack.c.l.b16 %v68
    %v541 = vunpack.c.h.b16 %v68
    %v542 = vunpack.c.l.b16 %v69
    %v543 = vunpack.c.h.b16 %v69
    %v544 = vunpack.c.l.b16 %v70
    %v545 = vunpack.c.h.b16 %v70
    %v546 = vunpack.c.l.b16 %v71
    %v547 = vunpack.c.h.b16 %v71
    %v548 = vunpack.c.l.b16 %v72
    %v549 = vunpack.c.h.b16 %v72
    %v550 = vunpack.c.l.b16 %v73
    %v551 = vunpack.c.h.b16 %v73
    %v552 = vunpack.c.l.b16 %v74
    %v553 = vunpack.c.h.b16 %v74
    %v554 = vunpack.c.l.b16 %v75
    %v555 = vunpack.c.h.b16 %v75
    %v556 = vunpack.c.l.b16 %v76
    %v557 = vunpack.c.h.b16 %v76
    %v558 = vunpack.c.l.b16 %v77
    %v559 = vunpack.c.h.b16 %v77
    %v560 = vunpack.c.l.b16 %v78
    %v561 = vunpack.c.h.b16 %v78
    %v562 = vunpack.c.l.b16 %v79
    %v563 = vunpack.c.h.b16 %v79
    %v564 = vunpack.c.l.b16 %v80
    %v565 = vunpack.c.h.b16 %v80
    %v566 = vunpack.c.l.b16 %v81
    %v567 = vunpack.c.h.b16 %v81
    %v568 = vunpack.c.l.b16 %v82
    %v569 = vunpack.c.h.b16 %v82
    %v570 = vunpack.c.l.b16 %v83
    %v571 = vunpack.c.h.b16 %v83
    %v572 = vunpack.c.l.b16 %v84
    %v573 = vunpack.c.h.b16 %v84
    %v574 = vunpack.c.l.b16 %v85
    %v575 = vunpack.c.h.b16 %v85
    %v576 = vunpack.c.l.b16 %v86
    %v577 = vunpack.c.h.b16 %v86
    %v578 = vunpack.c.l.b16 %v87
    %v579 = vunpack.c.h.b16 %v87
    %v580 = vunpack.c.l.b16 %v88
    %v581 = vunpack.c.h.b16 %v88
    %v582 = vunpack.c.l.b16 %v89
    %v583 = vunpack.c.h.b16 %v89
    %v584 = vunpack.c.l.b16 %v90
    %v585 = vunpack.c.h.b16 %v90
    %v586 = vunpack.c.l.b16 %v91
    %v587 = vunpack.c.h.b16 %v91
    %v588 = vunpack.c.l.b16 %v92
    %v589 = vunpack.c.h.b16 %v92
    %v590 = vunpack.c.l.b16 %v93
    %v591 = vunpack.c.h.b16 %v93
    %v592 = vunpack.c.l.b16 %v94
    %v593 = vunpack.c.h.b16 %v94
    %v594 = vunpack.c.l.b16 %v95
    %v595 = vunpack.c.h.b16 %v95
    %v596 = vunpack.c.l.b16 %v96
    %v597 = vunpack.c.h.b16 %v96
    %v598 = vunpack.c.l.b16 %v97
    %v599 = vunpack.c.h.b16 %v97
    %v600 = vunpack.c.l.b16 %v98
    %v601 = vunpack.c.h.b16 %v98
    %v602 = vunpack.c.l.b16 %v99
    %v603 = vunpack.c.h.b16 %v99
    %v604 = vunpack.c.l.b16 %v100
    %v605 = vunpack.c.h.b16 %v100
    %v606 = vunpack.c.l.b16 %v101
    %v607 = vunpack.c.h.b16 %v101
    %v608 = vunpack.c.l.b16 %v102
    %v609 = vunpack.c.h.b16 %v102
    %v610 = vunpack.c.l.b16 %v103
    %v611 = vunpack.c.h.b16 %v103
    %v612 = vunpack.c.l.b16 %v104
    %v613 = vunpack.c.h.b16 %v104
    %v614 = vunpack.c.l.b16 %v105
    %v615 = vunpack.c.h.b16 %v105
    %v616 = vunpack.c.l.b16 %v106
    %v617 = vunpack.c.h.b16 %v106
    %v618 = vunpack.c.l.b16 %v107
    %v619 = vunpack.c.h.b16 %v107
    %v620 = vunpack.c.l.b16 %v108
    %v621 = vunpack.c.h.b16 %v108
    %v622 = vunpack.c.l.b16 %v109
    %v623 = vunpack.c.h.b16 %v109
    %v624 = vunpack.c.l.b16 %v110
    %v625 = vunpack.c.h.b16 %v110
    %v626 = vunpack.c.l.b16 %v111
    %v627 = vunpack.c.h.b16 %v111
    %v628 = vunpack.c.l.b16 %v112
    %v629 = vunpack.c.h.b16 %v112
    %v630 = vunpack.c.l.b16 %v113
    %v631 = vunpack.c.h.b16 %v113
    %v632 = vunpack.c.l.b16 %v114
    %v633 = vunpack.c.h.b16 %v114
    %v634 = vunpack.c.l.b16 %v115
    %v635 = vunpack.c.h.b16 %v115
    %v636 = vunpack.c.l.b16 %v116
    %v637 = vunpack.c.h.b16 %v116
    %v638 = vunpack.c.l.b16 %v117
    %v639 = vunpack.c.h.b16 %v117
    %v640 = vunpack.c.l.b16 %v118
    %v641 = vunpack.c.h.b16 %v118
    %v642 = vunpack.c.l.b16 %v119
    %v643 = vunpack.c.h.b16 %v119
    %v644 = vunpack.c.l.b16 %v120
    %v645 = vunpack.c.h.b16 %v120
    %v646 = vunpack.c.l.b16 %v121
    %v647 = vunpack.c.h.b16 %v121
    %v648 = vunpack.c.l.b16 %v122
    %v649 = vunpack.c.h.b16 %v122
    %v650 = vunpack.c.l.b16 %v123
    %v651 = vunpack.c.h.b16 %v123
    %v652 = vunpack.c.l.b16 %v124
    %v653 = vunpack.c.h.b16 %v124
    %v654 = vunpack.c.l.b16 %v125
    %v655 = vunpack.c.h.b16 %v125
    %v656 = vunpack.c.l.b16 %v126
    %v657 = vunpack.c.h.b16 %v126
    %v658 = vunpack.c.l.b16 %v127
    %v659 = vunpack.c.h.b16 %v127
    %v660 = vunpack.c.l.b16 %v128
    %v661 = vunpack.c.h.b16 %v128
    %v662 = vunpack.c.l.b16 %v129
    %v663 = vunpack.c.h.b16 %v129
    %v664 = vunpack.c.l.b16 %v130
    %v665 = vunpack.c.h.b16 %v130
    %v666 = vunpack.c.l.b16 %v131
    %v667 = vunpack.c.h.b16 %v131
    %v668 = vunpack.c.l.b16 %v132
    %v669 = vunpack.c.h.b16 %v132
    %v670 = vunpack.c.l.b16 %v133
    %v671 = vunpack.c.h.b16 %v133
    %v672 = vunpack.c.l.b16 %v134
    %v673 = vunpack.c.h.b16 %v134
    %v674 = vunpack.c.l.b16 %v135
    %v675 = vunpack.c.h.b16 %v135
    %v676 = vunpack.c.l.b16 %v136
    %v677 = vunpack.c.h.b16 %v136
    %v678 = vunpack.c.l.b16 %v137
    %v679 = vunpack.c.h.b16 %v137
    %v680 = vunpack.c.l.b16 %v138
    %v681 = vunpack.c.h.b16 %v138
    %v682 = vunpack.c.l.b16 %v139
    %v683 = vunpack.c.h.b16 %v139
    %v684 = vunpack.c.l.b16 %v140
    %v685 = vunpack.c.h.b16 %v140
    %v686 = vunpack.c.l.b16 %v141
    %v687 = vunpack.c.h.b16 %v141
    %v688 = vunpack.c.l.b16 %v142
    %v689 = vunpack.c.h.b16 %v142
    %v690 = vunpack.c.l.b16 %v143
    %v691 = vunpack.c.h.b16 %v143
    %v692 = vunpack.c.l.b16 %v144
    %v693 = vunpack.c.h.b16 %v144
    %v694 = vunpack.c.l.b16 %v145
    %v695 = vunpack.c.h.b16 %v145
    %v696 = vunpack.c.l.b16 %v146
    %v697 = vunpack.c.h.b16 %v146
    %v698 = vunpack.c.l.b16 %v147
    %v699 = vunpack.c.h.b16 %v147
    %v700 = vunpack.c.l.b16 %v148
    %v701 = vunpack.c.h.b16 %v148
    %v702 = vunpack.c.l.b16 %v149
    %v703 = vunpack.c.h.b16 %v149
    %v704 = vunpack.c.l.b16 %v150
    %v705 = vunpack.c.h.b16 %v150
    %v706 = vunpack.c.l.b16 %v151
    %v707 = vunpack.c.h.b16 %v151
    %v708 = vunpack.c.l.b16 %v152
    %v709 = vunpack.c.h.b16 %v152
    %v710 = vunpack.c.l.b16 %v153
    %v711 = vunpack.c.h.b16 %v153
    %v712 = vunpack.c.l.b16 %v154
    %v713 = vunpack.c.h.b16 %v154
    %v714 = vunpack.c.l.b16 %v155
    %v715 = vunpack.c.h.b16 %v155
    %v716 = vpack.c.b16 %v496, %v492
    %v717 = vpack.c.b16 %v497, %v493
    %v718 = vpack.c.b16 %v498, %v494
    %v719 = vpack.c.b16 %v499, %v495
    %v720 = vpack.c.b16 %v504, %v500
    %v721 = vpack.c.b16 %v505, %v501
    %v722 = vpack.c.b16 %v506, %v502
    %v723 = vpack.c.b16 %v507, %v503
    %v724 = vpack.c.b16 %v512, %v508
    %v725 = vpack.c.b16 %v513, %v509
    %v726 = vpack.c.b16 %v514, %v510
    %v727 = vpack.c.b16 %v515, %v511
    %v728 = vpack.c.b16 %v520, %v516
    %v729 = vpack.c.b16 %v521, %v517
    %v730 = vpack.c.b16 %v522, %v518
    %v731 = vpack.c.b16 %v523, %v519
    %v732 = vpack.c.b16 %v528, %v524
    %v733 = vpack.c.b16 %v529, %v525
    %v734 = vpack.c.b16 %v530, %v526
    %v735 = vpack.c.b16 %v531, %v527
    %v736 = vpack.c.b16 %v536, %v532
    %v737 = vpack.c.b16 %v537, %v533
    %v738 = vpack.c.b16 %v538, %v534
    %v739 = vpack.c.b16 %v539, %v535
    %v740 = vpack.c.b16 %v544, %v540
    %v741 = vpack.c.b16 %v545, %v541
    %v742 = vpack.c.b16 %v546, %v542
    %v743 = vpack.c.b16 %v547, %v543
    %v744 = vpack.c.b16 %v552, %v548
    %v745 = vpack.c.b16 %v553, %v549
    %v746 = vpack.c.b16 %v554, %v550
    %v747 = vpack.c.b16 %v555, %v551
    %v748 = vpack.c.b16 %v560, %v556
    %v749 = vpack.c.b16 %v561, %v557
    %v750 = vpack.c.b16 %v562, %v558
    %v751 = vpack.c.b16 %v563, %v559
    %v752 = vpack.c.b16 %v568, %v564
    %v753 = vpack.c.b16 %v569, %v565
    %v754 = vpack.c.b16 %v570, %v566
    %v755 = vpack.c.b16 %v571, %v567
    %v756 = vpack.c.b16 %v576, %v572
    %v757 = vpack.c.b16 %v577, %v573
    %v758 = vpack.c.b16 %v578, %v574
    %v759 = vpack.c.b16 %v579, %v575
    %v760 = vpack.c.b16 %v584, %v580
    %v761 = vpack.c.b16 %v585, %v581
    %v762 = vpack.c.b16 %v586, %v582
    %v763 = vpack.c.b16 %v587, %v583
    %v764 = vpack.c.b16 %v592, %v588
    %v765 = vpack.c.b16 %v593, %v589
    %v766 = vpack.c.b16 %v594, %v590
    %v767 = vpack.c.b16 %v595, %v591
    %v768 = vpack.c.b16 %v600, %v596
    %v769 = vpack.c.b16 %v601, %v597
    %v770 = vpack.c.b16 %v602, %v598
    %v771 = vpack.c.b16 %v603, %v599
    %v772 = vpack.c.b16 %v608, %v604
    %v773 = vpack.c.b16 %v609, %v605
    %v774 = vpack.c.b16 %v610, %v606
    %v775 = vpack.c.b16 %v611, %v607
    %v776 = vpack.c.b16 %v616, %v612
    %v777 = vpack.c.b16 %v617, %v613
    %v778 = vpack.c.b16 %v618, %v614
    %v779 = vpack.c.b16 %v619, %v615
    %v780 = vpack.c.b16 %v624, %v620
    %v781 = vpack.c.b16 %v625, %v621
    %v782 = vpack.c.b16 %v626, %v622
    %v783 = vpack.c.b16 %v627, %v623
    %v784 = vpack.c.b16 %v632, %v628
    %v785 = vpack.c.b16 %v633, %v629
    %v786 = vpack.c.b16 %v634, %v630
    %v787 = vpack.c.b16 %v635, %v631
    %v788 = vpack.c.b16 %v640, %v636
    %v789 = vpack.c.b16 %v641, %v637
    %v790 = vpack.c.b16 %v642, %v638
    %v791 = vpack.c.b16 %v643, %v639
    %v792 = vpack.c.b16 %v648, %v644
    %v793 = vpack.c.b16 %v649, %v645
    %v794 = vpack.c.b16 %v650, %v646
    %v795 = vpack.c.b16 %v651, %v647
    %v796 = vpack.c.b16 %v656, %v652
    %v797 = vpack.c.b16 %v657, %v653
    %v798 = vpack.c.b16 %v658, %v654
    %v799 = vpack.c.b16 %v659, %v655
    %v800 = vpack.c.b16 %v664, %v660
    %v801 = vpack.c.b16 %v665, %v661
    %v802 = vpack.c.b16 %v666, %v662
    %v803 = vpack.c.b16 %v667, %v663
    %v804 = vpack.c.b16 %v672, %v668
    %v805 = vpack.c.b16 %v673, %v669
    %v806 = vpack.c.b16 %v674, %v670
    %v807 = vpack.c.b16 %v675, %v671
    %v808 = vpack.c.b16 %v680, %v676
    %v809 = vpack.c.b16 %v681, %v677
    %v810 = vpack.c.b16 %v682, %v678
    %v811 = vpack.c.b16 %v683, %v679
    %v812 = vpack.c.b16 %v688, %v684
    %v813 = vpack.c.b16 %v689, %v685
    %v814 = vpack.c.b16 %v690, %v686
    %v815 = vpack.c.b16 %v691, %v687
    %v816 = vpack.c.b16 %v696, %v692
    %v817 = vpack.c.b16 %v697, %v693
    %v818 = vpack.c.b16 %v698, %v694
    %v819 = vpack.c.b16 %v699, %v695
    %v820 = vpack.c.b16 %v704, %v700
    %v821 = vpack.c.b16 %v705, %v701
    %v822 = vpack.c.b16 %v706, %v702
    %v823 = vpack.c.b16 %v707, %v703
    %v824 = vpack.c.b16 %v712, %v708
    %v825 = vpack.c.b16 %v713, %v709
    %v826 = vpack.c.b16 %v714, %v710
    %v827 = vpack.c.b16 %v715, %v711
    %v1136 = vunpack.c.l.b16 %v156
    %v1137 = vunpack.c.h.b16 %v156
    %v1138 = vunpack.c.l.b16 %v157
    %v1139 = vunpack.c.h.b16 %v157
    %v1140 = vunpack.c.l.b16 %v158
    %v1141 = vunpack.c.h.b16 %v158
    %v1142 = vunpack.c.l.b16 %v159
    %v1143 = vunpack.c.l.b16 %v160
    %v1144 = vunpack.c.h.b16 %v160
    %v1145 = vunpack.c.l.b16 %v161
    %v1146 = vunpack.c.h.b16 %v161
    %v1147 = vunpack.c.l.b16 %v162
    %v1148 = vunpack.c.h.b16 %v162
    %v1149 = vunpack.c.l.b16 %v163
    %v1150 = vunpack.c.l.b16 %v164
    %v1151 = vunpack.c.h.b16 %v164
    %v1152 = vunpack.c.l.b16 %v165
    %v1153 = vunpack.c.h.b16 %v165
    %v1154 = vunpack.c.l.b16 %v166
    %v1155 = vunpack.c.h.b16 %v166
    %v1156 = vunpack.c.l.b16 %v167
    %v1157 = vunpack.c.l.b16 %v168
    %v1158 = vunpack.c.h.b16 %v168
    %v1159 = vunpack.c.l.b16 %v169
    %v1160 = vunpack.c.h.b16 %v169
    %v1161 = vunpack.c.l.b16 %v170
    %v1162 = vunpack.c.h.b16 %v170
    %v1163 = vunpack.c.l.b16 %v171
    %v1164 = vunpack.c.l.b16 %v172
    %v1165 = vunpack.c.h.b16 %v172
    %v1166 = vunpack.c.l.b16 %v173
    %v1167 = vunpack.c.h.b16 %v173
    %v1168 = vunpack.c.l.b16 %v174
    %v1169 = vunpack.c.h.b16 %v174
    %v1170 = vunpack.c.l.b16 %v175
    %v1171 = vunpack.c.l.b16 %v176
    %v1172 = vunpack.c.h.b16 %v176
    %v1173 = vunpack.c.l.b16 %v177
    %v1174 = vunpack.c.h.b16 %v177
    %v1175 = vunpack.c.l.b16 %v178
    %v1176 = vunpack.c.h.b16 %v178
    %v1177 = vunpack.c.l.b16 %v179
    %v1178 = vunpack.c.l.b16 %v180
    %v1179 = vunpack.c.h.b16 %v180
    %v1180 = vunpack.c.l.b16 %v181
    %v1181 = vunpack.c.h.b16 %v181
    %v1182 = vunpack.c.l.b16 %v182
    %v1183 = vunpack.c.h.b16 %v182
    %v1184 = vunpack.c.l.b16 %v183
    %v1185 = vunpack.c.l.b16 %v184
    %v1186 = vunpack.c.h.b16 %v184
    %v1187 = vunpack.c.l.b16 %v185
    %v1188 = vunpack.c.h.b16 %v185
    %v1189 = vunpack.c.l.b16 %v186
    %v1190 = vunpack.c.h.b16 %v186
    %v1191 = vunpack.c.l.b16 %v187
    %v1192 = vunpack.c.l.b16 %v188
    %v1193 = vunpack.c.h.b16 %v188
    %v1194 = vunpack.c.l.b16 %v189
    %v1195 = vunpack.c.h.b16 %v189
    %v1196 = vunpack.c.l.b16 %v190
    %v1197 = vunpack.c.h.b16 %v190
    %v1198 = vunpack.c.l.b16 %v191
    %v1199 = vunpack.c.l.b16 %v192
    %v1200 = vunpack.c.h.b16 %v192
    %v1201 = vunpack.c.l.b16 %v193
    %v1202 = vunpack.c.h.b16 %v193
    %v1203 = vunpack.c.l.b16 %v194
    %v1204 = vunpack.c.h.b16 %v194
    %v1205 = vunpack.c.l.b16 %v195
    %v1206 = vunpack.c.l.b16 %v196
    %v1207 = vunpack.c.h.b16 %v196
    %v1208 = vunpack.c.l.b16 %v197
    %v1209 = vunpack.c.h.b16 %v197
    %v1210 = vunpack.c.l.b16 %v198
    %v1211 = vunpack.c.h.b16 %v198
    %v1212 = vunpack.c.l.b16 %v199
    %v1213 = vunpack.c.l.b16 %v200
    %v1214 = vunpack.c.h.b16 %v200
    %v1215 = vunpack.c.l.b16 %v201
    %v1216 = vunpack.c.h.b16 %v201
    %v1217 = vunpack.c.l.b16 %v202
    %v1218 = vunpack.c.h.b16 %v202
    %v1219 = vunpack.c.l.b16 %v203
    %v1220 = vunpack.c.l.b16 %v204
    %v1221 = vunpack.c.h.b16 %v204
    %v1222 = vunpack.c.l.b16 %v205
    %v1223 = vunpack.c.h.b16 %v205
    %v1224 = vunpack.c.l.b16 %v206
    %v1225 = vunpack.c.h.b16 %v206
    %v1226 = vunpack.c.l.b16 %v207
    %v1227 = vunpack.c.l.b16 %v208
    %v1228 = vunpack.c.h.b16 %v208
    %v1229 = vunpack.c.l.b16 %v209
    %v1230 = vunpack.c.h.b16 %v209
    %v1231 = vunpack.c.l.b16 %v210
    %v1232 = vunpack.c.h.b16 %v210
    %v1233 = vunpack.c.l.b16 %v211
    %v1234 = vunpack.c.l.b16 %v212
    %v1235 = vunpack.c.h.b16 %v212
    %v1236 = vunpack.c.l.b16 %v213
    %v1237 = vunpack.c.h.b16 %v213
    %v1238 = vunpack.c.l.b16 %v214
    %v1239 = vunpack.c.h.b16 %v214
    %v1240 = vunpack.c.l.b16 %v215
    %v1241 = vunpack.c.l.b16 %v216
    %v1242 = vunpack.c.h.b16 %v216
    %v1243 = vunpack.c.l.b16 %v217
    %v1244 = vunpack.c.h.b16 %v217
    %v1245 = vunpack.c.l.b16 %v218
    %v1246 = vunpack.c.h.b16 %v218
    %v1247 = vunpack.c.l.b16 %v219
    %v1248 = vunpack.c.l.b16 %v220
    %v1249 = vunpack.c.h.b16 %v220
    %v1250 = vunpack.c.l.b16 %v221
    %v1251 = vunpack.c.h.b16 %v221
    %v1252 = vunpack.c.l.b16 %v222
    %v1253 = vunpack.c.h.b16 %v222
    %v1254 = vunpack.c.l.b16 %v223
    %v1255 = vunpack.c.l.b16 %v224
    %v1256 = vunpack.c.h.b16 %v224
    %v1257 = vunpack.c.l.b16 %v225
    %v1258 = vunpack.c.h.b16 %v225
    %v1259 = vunpack.c.l.b16 %v226
    %v1260 = vunpack.c.h.b16 %v226
    %v1261 = vunpack.c.l.b16 %v227
    %v1262 = vunpack.c.l.b16 %v228
    %v1263 = vunpack.c.h.b16 %v228
    %v1264 = vunpack.c.l.b16 %v229
    %v1265 = vunpack.c.h.b16 %v229
    %v1266 = vunpack.c.l.b16 %v230
    %v1267 = vunpack.c.h.b16 %v230
    %v1268 = vunpack.c.l.b16 %v231
    %v1269 = vunpack.c.l.b16 %v232
    %v1270 = vunpack.c.h.b16 %v232
    %v1271 = vunpack.c.l.b16 %v233
    %v1272 = vunpack.c.h.b16 %v233
    %v1273 = vunpack.c.l.b16 %v234
    %v1274 = vunpack.c.h.b16 %v234
    %v1275 = vunpack.c.l.b16 %v235
    %v1276 = vunpack.c.l.b16 %v236
    %v1277 = vunpack.c.h.b16 %v236
    %v1278 = vunpack.c.l.b16 %v237
    %v1279 = vunpack.c.h.b16 %v237
    %v1280 = vunpack.c.l.b16 %v238
    %v1281 = vunpack.c.h.b16 %v238
    %v1282 = vunpack.c.l.b16 %v239
    %v1283 = vunpack.c.l.b16 %v240
    %v1284 = vunpack.c.h.b16 %v240
    %v1285 = vunpack.c.l.b16 %v241
    %v1286 = vunpack.c.h.b16 %v241
    %v1287 = vunpack.c.l.b16 %v242
    %v1288 = vunpack.c.h.b16 %v242
    %v1289 = vunpack.c.l.b16 %v243
    %v1290 = vunpack.c.l.b16 %v244
    %v1291 = vunpack.c.h.b16 %v244
    %v1292 = vunpack.c.l.b16 %v245
    %v1293 = vunpack.c.h.b16 %v245
    %v1294 = vunpack.c.l.b16 %v246
    %v1295 = vunpack.c.h.b16 %v246
    %v1296 = vunpack.c.l.b16 %v247
    %v1297 = vunpack.c.l.b16 %v248
    %v1298 = vunpack.c.h.b16 %v248
    %v1299 = vunpack.c.l.b16 %v249
    %v1300 = vunpack.c.h.b16 %v249
    %v1301 = vunpack.c.l.b16 %v250
    %v1302 = vunpack.c.h.b16 %v250
    %v1303 = vunpack.c.l.b16 %v251
    %v1304 = vunpack.c.l.b16 %v252
    %v1305 = vunpack.c.h.b16 %v252
    %v1306 = vunpack.c.l.b16 %v253
    %v1307 = vunpack.c.h.b16 %v253
    %v1308 = vunpack.c.l.b16 %v254
    %v1309 = vunpack.c.h.b16 %v254
    %v1310 = vunpack.c.l.b16 %v255
    %v1311 = vunpack.c.l.b16 %v256
    %v1312 = vunpack.c.h.b16 %v256
    %v1313 = vunpack.c.l.b16 %v257
    %v1314 = vunpack.c.h.b16 %v257
    %v1315 = vunpack.c.l.b16 %v258
    %v1316 = vunpack.c.h.b16 %v258
    %v1317 = vunpack.c.l.b16 %v259
    %v1318 = vunpack.c.l.b16 %v260
    %v1319 = vunpack.c.h.b16 %v260
    %v1320 = vunpack.c.l.b16 %v261
    %v1321 = vunpack.c.h.b16 %v261
    %v1322 = vunpack.c.l.b16 %v262
    %v1323 = vunpack.c.h.b16 %v262
    %v1324 = vunpack.c.l.b16 %v263
    %v1325 = vunpack.c.l.b16 %v264
    %v1326 = vunpack.c.h.b16 %v264
    %v1327 = vunpack.c.l.b16 %v265
    %v1328 = vunpack.c.h.b16 %v265
    %v1329 = vunpack.c.l.b16 %v266
    %v1330 = vunpack.c.h.b16 %v266
    %v1331 = vunpack.c.l.b16 %v267
    %v1332 = vunpack.c.l.b16 %v268
    %v1333 = vunpack.c.h.b16 %v268
    %v1334 = vunpack.c.l.b16 %v269
    %v1335 = vunpack.c.h.b16 %v269
    %v1336 = vunpack.c.l.b16 %v270
    %v1337 = vunpack.c.h.b16 %v270
    %v1338 = vunpack.c.l.b16 %v271
    %v1339 = vunpack.c.l.b16 %v272
    %v1340 = vunpack.c.h.b16 %v272
    %v1341 = vunpack.c.l.b16 %v273
    %v1342 = vunpack.c.h.b16 %v273
    %v1343 = vunpack.c.l.b16 %v274
    %v1344 = vunpack.c.h.b16 %v274
    %v1345 = vunpack.c.l.b16 %v275
    %v1346 = vunpack.c.l.b16 %v276
    %v1347 = vunpack.c.h.b16 %v276
    %v1348 = vunpack.c.l.b16 %v277
    %v1349 = vunpack.c.h.b16 %v277
    %v1350 = vunpack.c.l.b16 %v278
    %v1351 = vunpack.c.h.b16 %v278
    %v1352 = vunpack.c.l.b16 %v279
    %v1353 = vunpack.c.l.b16 %v280
    %v1354 = vunpack.c.h.b16 %v280
    %v1355 = vunpack.c.l.b16 %v281
    %v1356 = vunpack.c.h.b16 %v281
    %v1357 = vunpack.c.l.b16 %v282
    %v1358 = vunpack.c.h.b16 %v282
    %v1359 = vunpack.c.l.b16 %v283
    %v1360 = vunpack.c.l.b16 %v284
    %v1361 = vunpack.c.h.b16 %v284
    %v1362 = vunpack.c.l.b16 %v285
    %v1363 = vunpack.c.h.b16 %v285
    %v1364 = vunpack.c.l.b16 %v286
    %v1365 = vunpack.c.h.b16 %v286
    %v1366 = vunpack.c.l.b16 %v287
    %v1367 = vunpack.c.l.b16 %v288
    %v1368 = vunpack.c.h.b16 %v288
    %v1369 = vunpack.c.l.b16 %v289
    %v1370 = vunpack.c.h.b16 %v289
    %v1371 = vunpack.c.l.b16 %v290
    %v1372 = vunpack.c.h.b16 %v290
    %v1373 = vunpack.c.l.b16 %v291
    %v1374 = vunpack.c.l.b16 %v292
    %v1375 = vunpack.c.h.b16 %v292
    %v1376 = vunpack.c.l.b16 %v293
    %v1377 = vunpack.c.h.b16 %v293
    %v1378 = vunpack.c.l.b16 %v294
    %v1379 = vunpack.c.h.b16 %v294
    %v1380 = vunpack.c.l.b16 %v295
    %v1381 = vunpack.c.l.b16 %v296
    %v1382 = vunpack.c.h.b16 %v296
    %v1383 = vunpack.c.l.b16 %v297
    %v1384 = vunpack.c.h.b16 %v297
    %v1385 = vunpack.c.l.b16 %v298
    %v1386 = vunpack.c.h.b16 %v298
    %v1387 = vunpack.c.l.b16 %v299
    %v1388 = vunpack.c.l.b16 %v300
    %v1389 = vunpack.c.h.b16 %v300
    %v1390 = vunpack.c.l.b16 %v301
    %v1391 = vunpack.c.h.b16 %v301
    %v1392 = vunpack.c.l.b16 %v302
    %v1393 = vunpack.c.h.b16 %v302
    %v1394 = vunpack.c.l.b16 %v303
    %v1395 = vunpack.c.l.b16 %v304
    %v1396 = vunpack.c.h.b16 %v304
    %v1397 = vunpack.c.l.b16 %v305
    %v1398 = vunpack.c.h.b16 %v305
    %v1399 = vunpack.c.l.b16 %v306
    %v1400 = vunpack.c.h.b16 %v306
    %v1401 = vunpack.c.l.b16 %v307
    %v1402 = vunpack.c.l.b16 %v308
    %v1403 = vunpack.c.h.b16 %v308
    %v1404 = vunpack.c.l.b16 %v309
    %v1405 = vunpack.c.h.b16 %v309
    %v1406 = vunpack.c.l.b16 %v310
    %v1407 = vunpack.c.h.b16 %v310
    %v1408 = vunpack.c.l.b16 %v311
    %v1409 = vunpack.c.l.b16 %v312
    %v1410 = vunpack.c.h.b16 %v312
    %v1411 = vunpack.c.l.b16 %v313
    %v1412 = vunpack.c.h.b16 %v313
    %v1413 = vunpack.c.l.b16 %v314
    %v1414 = vunpack.c.h.b16 %v314
    %v1415 = vunpack.c.l.b16 %v315
    %v1416 = vunpack.c.l.b16 %v316
    %v1417 = vunpack.c.h.b16 %v316
    %v1418 = vunpack.c.l.b16 %v317
    %v1419 = vunpack.c.h.b16 %v317
    %v1420 = vunpack.c.l.b16 %v318
    %v1421 = vunpack.c.h.b16 %v318
    %v1422 = vunpack.c.l.b16 %v319
    %v1423 = vunpack.c.l.b16 %v320
    %v1424 = vunpack.c.h.b16 %v320
    %v1425 = vunpack.c.l.b16 %v321
    %v1426 = vunpack.c.h.b16 %v321
    %v1427 = vunpack.c.l.b16 %v322
    %v1428 = vunpack.c.h.b16 %v322
    %v1429 = vunpack.c.l.b16 %v323
    %v1430 = vunpack.c.l.b16 %v324
    %v1431 = vunpack.c.h.b16 %v324
    %v1432 = vunpack.c.l.b16 %v325
    %v1433 = vunpack.c.h.b16 %v325
    %v1434 = vunpack.c.l.b16 %v326
    %v1435 = vunpack.c.h.b16 %v326
    %v1436 = vunpack.c.l.b16 %v327
    %v1437 = vunpack.c.l.b16 %v328
    %v1438 = vunpack.c.h.b16 %v328
    %v1439 = vunpack.c.l.b16 %v329
    %v1440 = vunpack.c.h.b16 %v329
    %v1441 = vunpack.c.l.b16 %v330
    %v1442 = vunpack.c.h.b16 %v330
    %v1443 = vunpack.c.l.b16 %v331
    %v1444 = vunpack.c.l.b16 %v332
    %v1445 = vunpack.c.h.b16 %v332
    %v1446 = vunpack.c.l.b16 %v333
    %v1447 = vunpack.c.h.b16 %v333
    %v1448 = vunpack.c.l.b16 %v334
    %v1449 = vunpack.c.h.b16 %v334
    %v1450 = vunpack.c.l.b16 %v335
    %v1451 = vunpack.c.l.b16 %v336
    %v1452 = vunpack.c.h.b16 %v336
    %v1453 = vunpack.c.l.b16 %v337
    %v1454 = vunpack.c.h.b16 %v337
    %v1455 = vunpack.c.l.b16 %v338
    %v1456 = vunpack.c.h.b16 %v338
    %v1457 = vunpack.c.l.b16 %v339
    %v1458 = vunpack.c.l.b16 %v340
    %v1459 = vunpack.c.h.b16 %v340
    %v1460 = vunpack.c.l.b16 %v341
    %v1461 = vunpack.c.h.b16 %v341
    %v1462 = vunpack.c.l.b16 %v342
    %v1463 = vunpack.c.h.b16 %v342
    %v1464 = vunpack.c.l.b16 %v343
    %v1465 = vunpack.c.l.b16 %v344
    %v1466 = vunpack.c.h.b16 %v344
    %v1467 = vunpack.c.l.b16 %v345
    %v1468 = vunpack.c.h.b16 %v345
    %v1469 = vunpack.c.l.b16 %v346
    %v1470 = vunpack.c.h.b16 %v346
    %v1471 = vunpack.c.l.b16 %v347
    %v1472 = vunpack.c.l.b16 %v348
    %v1473 = vunpack.c.h.b16 %v348
    %v1474 = vunpack.c.l.b16 %v349
    %v1475 = vunpack.c.h.b16 %v349
    %v1476 = vunpack.c.l.b16 %v350
    %v1477 = vunpack.c.h.b16 %v350
    %v1478 = vunpack.c.l.b16 %v351
    %v1479 = vunpack.c.l.b16 %v352
    %v1480 = vunpack.c.h.b16 %v352
    %v1481 = vunpack.c.l.b16 %v353
    %v1482 = vunpack.c.h.b16 %v353
    %v1483 = vunpack.c.l.b16 %v354
    %v1484 = vunpack.c.h.b16 %v354
    %v1485 = vunpack.c.l.b16 %v355
    %v1486 = vunpack.c.l.b16 %v356
    %v1487 = vunpack.c.h.b16 %v356
    %v1488 = vunpack.c.l.b16 %v357
    %v1489 = vunpack.c.h.b16 %v357
    %v1490 = vunpack.c.l.b16 %v358
    %v1491 = vunpack.c.h.b16 %v358
    %v1492 = vunpack.c.l.b16 %v359
    %v1493 = vunpack.c.l.b16 %v360
    %v1494 = vunpack.c.h.b16 %v360
    %v1495 = vunpack.c.l.b16 %v361
    %v1496 = vunpack.c.h.b16 %v361
    %v1497 = vunpack.c.l.b16 %v362
    %v1498 = vunpack.c.h.b16 %v362
    %v1499 = vunpack.c.l.b16 %v363
    %v1500 = vunpack.c.l.b16 %v364
    %v1501 = vunpack.c.h.b16 %v364
    %v1502 = vunpack.c.l.b16 %v365
    %v1503 = vunpack.c.h.b16 %v365
    %v1504 = vunpack.c.l.b16 %v366
    %v1505 = vunpack.c.h.b16 %v366
    %v1506 = vunpack.c.l.b16 %v367
    %v1507 = vunpack.c.l.b16 %v368
    %v1508 = vunpack.c.h.b16 %v368
    %v1509 = vunpack.c.l.b16 %v369
    %v1510 = vunpack.c.h.b16 %v369
    %v1511 = vunpack.c.l.b16 %v370
    %v1512 = vunpack.c.h.b16 %v370
    %v1513 = vunpack.c.l.b16 %v371
    %v1514 = vunpack.c.l.b16 %v372
    %v1515 = vunpack.c.h.b16 %v372
    %v1516 = vunpack.c.l.b16 %v373
    %v1517 = vunpack.c.h.b16 %v373
    %v1518 = vunpack.c.l.b16 %v374
    %v1519 = vunpack.c.h.b16 %v374
    %v1520 = vunpack.c.l.b16 %v375
    %v1521 = vunpack.c.l.b16 %v376
    %v1522 = vunpack.c.h.b16 %v376
    %v1523 = vunpack.c.l.b16 %v377
    %v1524 = vunpack.c.h.b16 %v377
    %v1525 = vunpack.c.l.b16 %v378
    %v1526 = vunpack.c.h.b16 %v378
    %v1527 = vunpack.c.l.b16 %v379
    %v1528 = vpack.c.b16 %v1143, %v1136
    %v1529 = vpack.c.b16 %v1144, %v1137
    %v1530 = vpack.c.b16 %v1145, %v1138
    %v1531 = vpack.c.b16 %v1146, %v1139
    %v1532 = vpack.c.b16 %v1147, %v1140
    %v1533 = vpack.c.b16 %v1148, %v1141
    %v1534 = vpack.c.b16 %v1149, %v1142
    %v1535 = vpack.c.b16 %v1157, %v1150
    %v1536 = vpack.c.b16 %v1158, %v1151
    %v1537 = vpack.c.b16 %v1159, %v1152
    %v1538 = vpack.c.b16 %v1160, %v1153
    %v1539 = vpack.c.b16 %v1161, %v1154
    %v1540 = vpack.c.b16 %v1162, %v1155
    %v1541 = vpack.c.b16 %v1163, %v1156
    %v1542 = vpack.c.b16 %v1171, %v1164
    %v1543 = vpack.c.b16 %v1172, %v1165
    %v1544 = vpack.c.b16 %v1173, %v1166
    %v1545 = vpack.c.b16 %v1174, %v1167
    %v1546 = vpack.c.b16 %v1175, %v1168
    %v1547 = vpack.c.b16 %v1176, %v1169
    %v1548 = vpack.c.b16 %v1177, %v1170
    %v1549 = vpack.c.b16 %v1185, %v1178
    %v1550 = vpack.c.b16 %v1186, %v1179
    %v1551 = vpack.c.b16 %v1187, %v1180
    %v1552 = vpack.c.b16 %v1188, %v1181
    %v1553 = vpack.c.b16 %v1189, %v1182
    %v1554 = vpack.c.b16 %v1190, %v1183
    %v1555 = vpack.c.b16 %v1191, %v1184
    %v1556 = vpack.c.b16 %v1199, %v1192
    %v1557 = vpack.c.b16 %v1200, %v1193
    %v1558 = vpack.c.b16 %v1201, %v1194
    %v1559 = vpack.c.b16 %v1202, %v1195
    %v1560 = vpack.c.b16 %v1203, %v1196
    %v1561 = vpack.c.b16 %v1204, %v1197
    %v1562 = vpack.c.b16 %v1205, %v1198
    %v1563 = vpack.c.b16 %v1213, %v1206
    %v1564 = vpack.c.b16 %v1214, %v1207
    %v1565 = vpack.c.b16 %v1215, %v1208
    %v1566 = vpack.c.b16 %v1216, %v1209
    %v1567 = vpack.c.b16 %v1217, %v1210
    %v1568 = vpack.c.b16 %v1218, %v1211
    %v1569 = vpack.c.b16 %v1219, %v1212
    %v1570 = vpack.c.b16 %v1227, %v1220
    %v1571 = vpack.c.b16 %v1228, %v1221
    %v1572 = vpack.c.b16 %v1229, %v1222
    %v1573 = vpack.c.b16 %v1230, %v1223
    %v1574 = vpack.c.b16 %v1231, %v1224
    %v1575 = vpack.c.b16 %v1232, %v1225
    %v1576 = vpack.c.b16 %v1233, %v1226
    %v1577 = vpack.c.b16 %v1241, %v1234
    %v1578 = vpack.c.b16 %v1242, %v1235
    %v1579 = vpack.c.b16 %v1243, %v1236
    %v1580 = vpack.c.b16 %v1244, %v1237
    %v1581 = vpack.c.b16 %v1245, %v1238
    %v1582 = vpack.c.b16 %v1246, %v1239
    %v1583 = vpack.c.b16 %v1247, %v1240
    %v1584 = vpack.c.b16 %v1255, %v1248
    %v1585 = vpack.c.b16 %v1256, %v1249
    %v1586 = vpack.c.b16 %v1257, %v1250
    %v1587 = vpack.c.b16 %v1258, %v1251
    %v1588 = vpack.c.b16 %v1259, %v1252
    %v1589 = vpack.c.b16 %v1260, %v1253
    %v1590 = vpack.c.b16 %v1261, %v1254
    %v1591 = vpack.c.b16 %v1269, %v1262
    %v1592 = vpack.c.b16 %v1270, %v1263
    %v1593 = vpack.c.b16 %v1271, %v1264
    %v1594 = vpack.c.b16 %v1272, %v1265
    %v1595 = vpack.c.b16 %v1273, %v1266
    %v1596 = vpack.c.b16 %v1274, %v1267
    %v1597 = vpack.c.b16 %v1275, %v1268
    %v1598 = vpack.c.b16 %v1283, %v1276
    %v1599 = vpack.c.b16 %v1284, %v1277
    %v1600 = vpack.c.b16 %v1285, %v1278
    %v1601 = vpack.c.b16 %v1286, %v1279
    %v1602 = vpack.c.b16 %v1287, %v1280
    %v1603 = vpack.c.b16 %v1288, %v1281
    %v1604 = vpack.c.b16 %v1289, %v1282
    %v1605 = vpack.c.b16 %v1297, %v1290
    %v1606 = vpack.c.b16 %v1298, %v1291
    %v1607 = vpack.c.b16 %v1299, %v1292
    %v1608 = vpack.c.b16 %v1300, %v1293
    %v1609 = vpack.c.b16 %v1301, %v1294
    %v1610 = vpack.c.b16 %v1302, %v1295
    %v1611 = vpack.c.b16 %v1303, %v1296
    %v1612 = vpack.c.b16 %v1311, %v1304
    %v1613 = vpack.c.b16 %v1312, %v1305
    %v1614 = vpack.c.b16 %v1313, %v1306
    %v1615 = vpack.c.b16 %v1314, %v1307
    %v1616 = vpack.c.b16 %v1315, %v1308
    %v1617 = vpack.c.b16 %v1316, %v1309
    %v1618 = vpack.c.b16 %v1317, %v1310
    %v1619 = vpack.c.b16 %v1325, %v1318
    %v1620 = vpack.c.b16 %v1326, %v1319
    %v1621 = vpack.c.b16 %v1327, %v1320
    %v1622 = vpack.c.b16 %v1328, %v1321
    %v1623 = vpack.c.b16 %v1329, %v1322
    %v1624 = vpack.c.b16 %v1330, %v1323
    %v1625 = vpack.c.b16 %v1331, %v1324
    %v1626 = vpack.c.b16 %v1339, %v1332
    %v1627 = vpack.c.b16 %v1340, %v1333
    %v1628 = vpack.c.b16 %v1341, %v1334
    %v1629 = vpack.c.b16 %v1342, %v1335
    %v1630 = vpack.c.b16 %v1343, %v1336
    %v1631 = vpack.c.b16 %v1344, %v1337
    %v1632 = vpack.c.b16 %v1345, %v1338
    %v1633 = vpack.c.b16 %v1353, %v1346
    %v1634 = vpack.c.b16 %v1354, %v1347
    %v1635 = vpack.c.b16 %v1355, %v1348
    %v1636 = vpack.c.b16 %v1356, %v1349
    %v1637 = vpack.c.b16 %v1357, %v1350
    %v1638 = vpack.c.b16 %v1358, %v1351
    %v1639 = vpack.c.b16 %v1359, %v1352
    %v1640 = vpack.c.b16 %v1367, %v1360
    %v1641 = vpack.c.b16 %v1368, %v1361
    %v1642 = vpack.c.b16 %v1369, %v1362
    %v1643 = vpack.c.b16 %v1370, %v1363
    %v1644 = vpack.c.b16 %v1371, %v1364
    %v1645 = vpack.c.b16 %v1372, %v1365
    %v1646 = vpack.c.b16 %v1373, %v1366
    %v1647 = vpack.c.b16 %v1381, %v1374
    %v1648 = vpack.c.b16 %v1382, %v1375
    %v1649 = vpack.c.b16 %v1383, %v1376
    %v1650 = vpack.c.b16 %v1384, %v1377
    %v1651 = vpack.c.b16 %v1385, %v1378
    %v1652 = vpack.c.b16 %v1386, %v1379
    %v1653 = vpack.c.b16 %v1387, %v1380
    %v1654 = vpack.c.b16 %v1395, %v1388
    %v1655 = vpack.c.b16 %v1396, %v1389
    %v1656 = vpack.c.b16 %v1397, %v1390
    %v1657 = vpack.c.b16 %v1398, %v1391
    %v1658 = vpack.c.b16 %v1399, %v1392
    %v1659 = vpack.c.b16 %v1400, %v1393
    %v1660 = vpack.c.b16 %v1401, %v1394
    %v1661 = vpack.c.b16 %v1409, %v1402
    %v1662 = vpack.c.b16 %v1410, %v1403
    %v1663 = vpack.c.b16 %v1411, %v1404
    %v1664 = vpack.c.b16 %v1412, %v1405
    %v1665 = vpack.c.b16 %v1413, %v1406
    %v1666 = vpack.c.b16 %v1414, %v1407
    %v1667 = vpack.c.b16 %v1415, %v1408
    %v1668 = vpack.c.b16 %v1423, %v1416
    %v1669 = vpack.c.b16 %v1424, %v1417
    %v1670 = vpack.c.b16 %v1425, %v1418
    %v1671 = vpack.c.b16 %v1426, %v1419
    %v1672 = vpack.c.b16 %v1427, %v1420
    %v1673 = vpack.c.b16 %v1428, %v1421
    %v1674 = vpack.c.b16 %v1429, %v1422
    %v1675 = vpack.c.b16 %v1437, %v1430
    %v1676 = vpack.c.b16 %v1438, %v1431
    %v1677 = vpack.c.b16 %v1439, %v1432
    %v1678 = vpack.c.b16 %v1440, %v1433
    %v1679 = vpack.c.b16 %v1441, %v1434
    %v1680 = vpack.c.b16 %v1442, %v1435
    %v1681 = vpack.c.b16 %v1443, %v1436
    %v1682 = vpack.c.b16 %v1451, %v1444
    %v1683 = vpack.c.b16 %v1452, %v1445
    %v1684 = vpack.c.b16 %v1453, %v1446
    %v1685 = vpack.c.b16 %v1454, %v1447
    %v1686 = vpack.c.b16 %v1455, %v1448
    %v1687 = vpack.c.b16 %v1456, %v1449
    %v1688 = vpack.c.b16 %v1457, %v1450
    %v1689 = vpack.c.b16 %v1465, %v1458
    %v1690 = vpack.c.b16 %v1466, %v1459
    %v1691 = vpack.c.b16 %v1467, %v1460
    %v1692 = vpack.c.b16 %v1468, %v1461
    %v1693 = vpack.c.b16 %v1469, %v1462
    %v1694 = vpack.c.b16 %v1470, %v1463
    %v1695 = vpack.c.b16 %v1471, %v1464
    %v1696 = vpack.c.b16 %v1479, %v1472
    %v1697 = vpack.c.b16 %v1480, %v1473
    %v1698 = vpack.c.b16 %v1481, %v1474
    %v1699 = vpack.c.b16 %v1482, %v1475
    %v1700 = vpack.c.b16 %v1483, %v1476
    %v1701 = vpack.c.b16 %v1484, %v1477
    %v1702 = vpack.c.b16 %v1485, %v1478
    %v1703 = vpack.c.b16 %v1493, %v1486
    %v1704 = vpack.c.b16 %v1494, %v1487
    %v1705 = vpack.c.b16 %v1495, %v1488
    %v1706 = vpack.c.b16 %v1496, %v1489
    %v1707 = vpack.c.b16 %v1497, %v1490
    %v1708 = vpack.c.b16 %v1498, %v1491
    %v1709 = vpack.c.b16 %v1499, %v1492
    %v1710 = vpack.c.b16 %v1507, %v1500
    %v1711 = vpack.c.b16 %v1508, %v1501
    %v1712 = vpack.c.b16 %v1509, %v1502
    %v1713 = vpack.c.b16 %v1510, %v1503
    %v1714 = vpack.c.b16 %v1511, %v1504
    %v1715 = vpack.c.b16 %v1512, %v1505
    %v1716 = vpack.c.b16 %v1513, %v1506
    %v1717 = vpack.c.b16 %v1521, %v1514
    %v1718 = vpack.c.b16 %v1522, %v1515
    %v1719 = vpack.c.b16 %v1523, %v1516
    %v1720 = vpack.c.b16 %v1524, %v1517
    %v1721 = vpack.c.b16 %v1525, %v1518
    %v1722 = vpack.c.b16 %v1526, %v1519
    %v1723 = vpack.c.b16 %v1527, %v1520
    %vm1920 = vcmask 523264
    %v1922 = vsel %vm1920, %v719, 0
    %v1925 = vsel %vm1920, %v723, 0
    %v1928 = vsel %vm1920, %v727, 0
    %v1931 = vsel %vm1920, %v731, 0
    %v1934 = vsel %vm1920, %v735, 0
    %v1937 = vsel %vm1920, %v739, 0
    %v1940 = vsel %vm1920, %v743, 0
    %v1943 = vsel %vm1920, %v747, 0
    %v1946 = vsel %vm1920, %v751, 0
    %v1949 = vsel %vm1920, %v755, 0
    %v1952 = vsel %vm1920, %v759, 0
    %v1955 = vsel %vm1920, %v763, 0
    %v1958 = vsel %vm1920, %v767, 0
    %v1961 = vsel %vm1920, %v771, 0
    %v1964 = vsel %vm1920, %v775, 0
    %v1967 = vsel %vm1920, %v779, 0
    %v1970 = vsel %vm1920, %v783, 0
    %v1973 = vsel %vm1920, %v787, 0
    %v1976 = vsel %vm1920, %v791, 0
    %v1979 = vsel %vm1920, %v795, 0
    %v1982 = vsel %vm1920, %v799, 0
    %v1985 = vsel %vm1920, %v803, 0
    %v1988 = vsel %vm1920, %v807, 0
    %v1991 = vsel %vm1920, %v811, 0
    %v1994 = vsel %vm1920, %v815, 0
    %v1997 = vsel %vm1920, %v819, 0
    %v2000 = vsel %vm1920, %v823, 0
    %v2003 = vsel %vm1920, %v827, 0
    %2005 = vmatprep.subr.bf16.mxu0 %v1578
    %2006 = vmatpush1.bf16.msra.mxu0 %v1577
    %2007 = vmatprep.subr.bf16.mxu0 %v1571
    %2008 = vmatpush1.bf16.msra.mxu0 %v1570
    %2009 = vmatprep.subr.bf16.mxu0 %v1564
    %2010 = vmatpush1.bf16.msra.mxu0 %v1563
    %2011 = vmatprep.subr.bf16.mxu0 %v1557
    %2012 = vmatpush1.bf16.msra.mxu0 %v1556
    %2013 = vmatprep.subr.bf16.mxu0 %v1550
    %2014 = vmatpush1.bf16.msra.mxu0 %v1549
    %2015 = vmatprep.subr.bf16.mxu0 %v1543
    %2016 = vmatpush1.bf16.msra.mxu0 %v1542
    %2017 = vmatprep.subr.bf16.mxu0 %v1536
    %2018 = vmatpush1.bf16.msra.mxu0 %v1535
    %2019 = vmatprep.subr.bf16.mxu0 %v1529
    %2020 = vmatpush1.bf16.msra.mxu0 %v1528
    %2021 = vmatprep.subr.bf16.mxu0 %v1634
    %2022 = vmatpush2.bf16.msra.mxu0 %v1633
    %2023 = vmatprep.subr.bf16.mxu0 %v1627
    %2024 = vmatpush2.bf16.msra.mxu0 %v1626
    %2025 = vmatprep.subr.bf16.mxu0 %v1620
    %2026 = vmatpush2.bf16.msra.mxu0 %v1619
    %2027 = vmatprep.subr.bf16.mxu0 %v1613
    %2028 = vmatpush2.bf16.msra.mxu0 %v1612
    %2029 = vmatprep.subr.bf16.mxu0 %v1606
    %2030 = vmatpush2.bf16.msra.mxu0 %v1605
    %2031 = vmatprep.subr.bf16.mxu0 %v1599
    %2032 = vmatpush2.bf16.msra.mxu0 %v1598
    %2033 = vmatprep.subr.bf16.mxu0 %v1592
    %2034 = vmatpush2.bf16.msra.mxu0 %v1591
    %2035 = vmatprep.subr.bf16.mxu0 %v1585
    %2036 = vmatpush2.bf16.msra.mxu0 %v1584
    %2037 = vmatprep.mubr.bf16.mxu0 %v717
    %2038 = vmatmul.mubr.bf16.gmra.mxu0 %v716
    %v2039 = vpop.f32.mrf.mxu0
    %v2040 = vadd.f32 0.0, %v2039
    %v2041 = vpop.f32.mrf.mxu0
    %v2042 = vadd.f32 0.0, %v2041
    %v2043 = vpop.f32.mrf.mxu0
    %v2044 = vadd.f32 0.0, %v2043
    %v2045 = vpop.f32.mrf.mxu0
    %v2046 = vadd.f32 0.0, %v2045
    %2047 = vmatprep.mubr.bf16.mxu0 %v721
    %2048 = vmatmul.mubr.bf16.gmra.mxu0 %v720
    %v2049 = vpop.f32.mrf.mxu0
    %v2050 = vadd.f32 0.0, %v2049
    %v2051 = vpop.f32.mrf.mxu0
    %v2052 = vadd.f32 0.0, %v2051
    %v2053 = vpop.f32.mrf.mxu0
    %v2054 = vadd.f32 0.0, %v2053
    %v2055 = vpop.f32.mrf.mxu0
    %v2056 = vadd.f32 0.0, %v2055
    %2057 = vmatprep.mubr.bf16.mxu0 %v725
    %2058 = vmatmul.mubr.bf16.gmra.mxu0 %v724
    %v2059 = vpop.f32.mrf.mxu0
    %v2060 = vadd.f32 0.0, %v2059
    %v2061 = vpop.f32.mrf.mxu0
    %v2062 = vadd.f32 0.0, %v2061
    %v2063 = vpop.f32.mrf.mxu0
    %v2064 = vadd.f32 0.0, %v2063
    %v2065 = vpop.f32.mrf.mxu0
    %v2066 = vadd.f32 0.0, %v2065
    %2067 = vmatprep.mubr.bf16.mxu0 %v729
    %2068 = vmatmul.mubr.bf16.gmra.mxu0 %v728
    %v2069 = vpop.f32.mrf.mxu0
    %v2070 = vadd.f32 0.0, %v2069
    %v2071 = vpop.f32.mrf.mxu0
    %v2072 = vadd.f32 0.0, %v2071
    %v2073 = vpop.f32.mrf.mxu0
    %v2074 = vadd.f32 0.0, %v2073
    %v2075 = vpop.f32.mrf.mxu0
    %v2076 = vadd.f32 0.0, %v2075
    %2077 = vmatprep.mubr.bf16.mxu0 %v733
    %2078 = vmatmul.mubr.bf16.gmra.mxu0 %v732
    %v2079 = vpop.f32.mrf.mxu0
    %v2080 = vadd.f32 0.0, %v2079
    %v2081 = vpop.f32.mrf.mxu0
    %v2082 = vadd.f32 0.0, %v2081
    %v2083 = vpop.f32.mrf.mxu0
    %v2084 = vadd.f32 0.0, %v2083
    %v2085 = vpop.f32.mrf.mxu0
    %v2086 = vadd.f32 0.0, %v2085
    %2087 = vmatprep.mubr.bf16.mxu0 %v737
    %2088 = vmatmul.mubr.bf16.gmra.mxu0 %v736
    %v2089 = vpop.f32.mrf.mxu0
    %v2090 = vadd.f32 0.0, %v2089
    %v2091 = vpop.f32.mrf.mxu0
    %v2092 = vadd.f32 0.0, %v2091
    %v2093 = vpop.f32.mrf.mxu0
    %v2094 = vadd.f32 0.0, %v2093
    %v2095 = vpop.f32.mrf.mxu0
    %v2096 = vadd.f32 0.0, %v2095
    %2097 = vmatprep.mubr.bf16.mxu0 %v741
    %2098 = vmatmul.mubr.bf16.gmra.mxu0 %v740
    %v2099 = vpop.f32.mrf.mxu0
    %v2100 = vadd.f32 0.0, %v2099
    %v2101 = vpop.f32.mrf.mxu0
    %v2102 = vadd.f32 0.0, %v2101
    %v2103 = vpop.f32.mrf.mxu0
    %v2104 = vadd.f32 0.0, %v2103
    %v2105 = vpop.f32.mrf.mxu0
    %v2106 = vadd.f32 0.0, %v2105
    %2107 = vmatprep.mubr.bf16.mxu0 %v745
    %2108 = vmatmul.mubr.bf16.gmra.mxu0 %v744
    %v2109 = vpop.f32.mrf.mxu0
    %v2110 = vadd.f32 0.0, %v2109
    %v2111 = vpop.f32.mrf.mxu0
    %v2112 = vadd.f32 0.0, %v2111
    %v2113 = vpop.f32.mrf.mxu0
    %v2114 = vadd.f32 0.0, %v2113
    %v2115 = vpop.f32.mrf.mxu0
    %v2116 = vadd.f32 0.0, %v2115
    %2117 = vmatprep.mubr.bf16.mxu0 %v749
    %2118 = vmatmul.mubr.bf16.gmra.mxu0 %v748
    %v2119 = vpop.f32.mrf.mxu0
    %v2120 = vadd.f32 0.0, %v2119
    %v2121 = vpop.f32.mrf.mxu0
    %v2122 = vadd.f32 0.0, %v2121
    %v2123 = vpop.f32.mrf.mxu0
    %v2124 = vadd.f32 0.0, %v2123
    %v2125 = vpop.f32.mrf.mxu0
    %v2126 = vadd.f32 0.0, %v2125
    %2127 = vmatprep.mubr.bf16.mxu0 %v753
    %2128 = vmatmul.mubr.bf16.gmra.mxu0 %v752
    %v2129 = vpop.f32.mrf.mxu0
    %v2130 = vadd.f32 0.0, %v2129
    %v2131 = vpop.f32.mrf.mxu0
    %v2132 = vadd.f32 0.0, %v2131
    %v2133 = vpop.f32.mrf.mxu0
    %v2134 = vadd.f32 0.0, %v2133
    %v2135 = vpop.f32.mrf.mxu0
    %v2136 = vadd.f32 0.0, %v2135
    %2137 = vmatprep.mubr.bf16.mxu0 %v757
    %2138 = vmatmul.mubr.bf16.gmra.mxu0 %v756
    %v2139 = vpop.f32.mrf.mxu0
    %v2140 = vadd.f32 0.0, %v2139
    %v2141 = vpop.f32.mrf.mxu0
    %v2142 = vadd.f32 0.0, %v2141
    %v2143 = vpop.f32.mrf.mxu0
    %v2144 = vadd.f32 0.0, %v2143
    %v2145 = vpop.f32.mrf.mxu0
    %v2146 = vadd.f32 0.0, %v2145
    %2147 = vmatprep.mubr.bf16.mxu0 %v761
    %2148 = vmatmul.mubr.bf16.gmra.mxu0 %v760
    %v2149 = vpop.f32.mrf.mxu0
    %v2150 = vadd.f32 0.0, %v2149
    %v2151 = vpop.f32.mrf.mxu0
    %v2152 = vadd.f32 0.0, %v2151
    %v2153 = vpop.f32.mrf.mxu0
    %v2154 = vadd.f32 0.0, %v2153
    %v2155 = vpop.f32.mrf.mxu0
    %v2156 = vadd.f32 0.0, %v2155
    %2157 = vmatprep.mubr.bf16.mxu0 %v765
    %2158 = vmatmul.mubr.bf16.gmra.mxu0 %v764
    %v2159 = vpop.f32.mrf.mxu0
    %v2160 = vadd.f32 0.0, %v2159
    %v2161 = vpop.f32.mrf.mxu0
    %v2162 = vadd.f32 0.0, %v2161
    %v2163 = vpop.f32.mrf.mxu0
    %v2164 = vadd.f32 0.0, %v2163
    %v2165 = vpop.f32.mrf.mxu0
    %v2166 = vadd.f32 0.0, %v2165
    %2167 = vmatprep.mubr.bf16.mxu0 %v769
    %2168 = vmatmul.mubr.bf16.gmra.mxu0 %v768
    %v2169 = vpop.f32.mrf.mxu0
    %v2170 = vadd.f32 0.0, %v2169
    %v2171 = vpop.f32.mrf.mxu0
    %v2172 = vadd.f32 0.0, %v2171
    %v2173 = vpop.f32.mrf.mxu0
    %v2174 = vadd.f32 0.0, %v2173
    %v2175 = vpop.f32.mrf.mxu0
    %v2176 = vadd.f32 0.0, %v2175
    %2177 = vmatprep.mubr.bf16.mxu0 %v773
    %2178 = vmatmul.mubr.bf16.gmra.mxu0 %v772
    %v2179 = vpop.f32.mrf.mxu0
    %v2180 = vadd.f32 0.0, %v2179
    %v2181 = vpop.f32.mrf.mxu0
    %v2182 = vadd.f32 0.0, %v2181
    %v2183 = vpop.f32.mrf.mxu0
    %v2184 = vadd.f32 0.0, %v2183
    %v2185 = vpop.f32.mrf.mxu0
    %v2186 = vadd.f32 0.0, %v2185
    %2187 = vmatprep.mubr.bf16.mxu0 %v777
    %2188 = vmatmul.mubr.bf16.gmra.mxu0 %v776
    %v2189 = vpop.f32.mrf.mxu0
    %v2190 = vadd.f32 0.0, %v2189
    %v2191 = vpop.f32.mrf.mxu0
    %v2192 = vadd.f32 0.0, %v2191
    %v2193 = vpop.f32.mrf.mxu0
    %v2194 = vadd.f32 0.0, %v2193
    %v2195 = vpop.f32.mrf.mxu0
    %v2196 = vadd.f32 0.0, %v2195
    %2197 = vmatprep.mubr.bf16.mxu0 %v781
    %2198 = vmatmul.mubr.bf16.gmra.mxu0 %v780
    %v2199 = vpop.f32.mrf.mxu0
    %v2200 = vadd.f32 0.0, %v2199
    %v2201 = vpop.f32.mrf.mxu0
    %v2202 = vadd.f32 0.0, %v2201
    %v2203 = vpop.f32.mrf.mxu0
    %v2204 = vadd.f32 0.0, %v2203
    %v2205 = vpop.f32.mrf.mxu0
    %v2206 = vadd.f32 0.0, %v2205
    %2207 = vmatprep.mubr.bf16.mxu0 %v785
    %2208 = vmatmul.mubr.bf16.gmra.mxu0 %v784
    %v2209 = vpop.f32.mrf.mxu0
    %v2210 = vadd.f32 0.0, %v2209
    %v2211 = vpop.f32.mrf.mxu0
    %v2212 = vadd.f32 0.0, %v2211
    %v2213 = vpop.f32.mrf.mxu0
    %v2214 = vadd.f32 0.0, %v2213
    %v2215 = vpop.f32.mrf.mxu0
    %v2216 = vadd.f32 0.0, %v2215
    %2217 = vmatprep.mubr.bf16.mxu0 %v789
    %2218 = vmatmul.mubr.bf16.gmra.mxu0 %v788
    %v2219 = vpop.f32.mrf.mxu0
    %v2220 = vadd.f32 0.0, %v2219
    %v2221 = vpop.f32.mrf.mxu0
    %v2222 = vadd.f32 0.0, %v2221
    %v2223 = vpop.f32.mrf.mxu0
    %v2224 = vadd.f32 0.0, %v2223
    %v2225 = vpop.f32.mrf.mxu0
    %v2226 = vadd.f32 0.0, %v2225
    %2227 = vmatprep.mubr.bf16.mxu0 %v793
    %2228 = vmatmul.mubr.bf16.gmra.mxu0 %v792
    %v2229 = vpop.f32.mrf.mxu0
    %v2230 = vadd.f32 0.0, %v2229
    %v2231 = vpop.f32.mrf.mxu0
    %v2232 = vadd.f32 0.0, %v2231
    %v2233 = vpop.f32.mrf.mxu0
    %v2234 = vadd.f32 0.0, %v2233
    %v2235 = vpop.f32.mrf.mxu0
    %v2236 = vadd.f32 0.0, %v2235
    %2237 = vmatprep.mubr.bf16.mxu0 %v797
    %2238 = vmatmul.mubr.bf16.gmra.mxu0 %v796
    %v2239 = vpop.f32.mrf.mxu0
    %v2240 = vadd.f32 0.0, %v2239
    %v2241 = vpop.f32.mrf.mxu0
    %v2242 = vadd.f32 0.0, %v2241
    %v2243 = vpop.f32.mrf.mxu0
    %v2244 = vadd.f32 0.0, %v2243
    %v2245 = vpop.f32.mrf.mxu0
    %v2246 = vadd.f32 0.0, %v2245
    %2247 = vmatprep.mubr.bf16.mxu0 %v801
    %2248 = vmatmul.mubr.bf16.gmra.mxu0 %v800
    %v2249 = vpop.f32.mrf.mxu0
    %v2250 = vadd.f32 0.0, %v2249
    %v2251 = vpop.f32.mrf.mxu0
    %v2252 = vadd.f32 0.0, %v2251
    %v2253 = vpop.f32.mrf.mxu0
    %v2254 = vadd.f32 0.0, %v2253
    %v2255 = vpop.f32.mrf.mxu0
    %v2256 = vadd.f32 0.0, %v2255
    %2257 = vmatprep.mubr.bf16.mxu0 %v805
    %2258 = vmatmul.mubr.bf16.gmra.mxu0 %v804
    %v2259 = vpop.f32.mrf.mxu0
    %v2260 = vadd.f32 0.0, %v2259
    %v2261 = vpop.f32.mrf.mxu0
    %v2262 = vadd.f32 0.0, %v2261
    %v2263 = vpop.f32.mrf.mxu0
    %v2264 = vadd.f32 0.0, %v2263
    %v2265 = vpop.f32.mrf.mxu0
    %v2266 = vadd.f32 0.0, %v2265
    %2267 = vmatprep.mubr.bf16.mxu0 %v809
    %2268 = vmatmul.mubr.bf16.gmra.mxu0 %v808
    %v2269 = vpop.f32.mrf.mxu0
    %v2270 = vadd.f32 0.0, %v2269
    %v2271 = vpop.f32.mrf.mxu0
    %v2272 = vadd.f32 0.0, %v2271
    %v2273 = vpop.f32.mrf.mxu0
    %v2274 = vadd.f32 0.0, %v2273
    %v2275 = vpop.f32.mrf.mxu0
    %v2276 = vadd.f32 0.0, %v2275
    %2277 = vmatprep.mubr.bf16.mxu0 %v813
    %2278 = vmatmul.mubr.bf16.gmra.mxu0 %v812
    %v2279 = vpop.f32.mrf.mxu0
    %v2280 = vadd.f32 0.0, %v2279
    %v2281 = vpop.f32.mrf.mxu0
    %v2282 = vadd.f32 0.0, %v2281
    %v2283 = vpop.f32.mrf.mxu0
    %v2284 = vadd.f32 0.0, %v2283
    %v2285 = vpop.f32.mrf.mxu0
    %v2286 = vadd.f32 0.0, %v2285
    %2287 = vmatprep.mubr.bf16.mxu0 %v817
    %2288 = vmatmul.mubr.bf16.gmra.mxu0 %v816
    %v2289 = vpop.f32.mrf.mxu0
    %v2290 = vadd.f32 0.0, %v2289
    %v2291 = vpop.f32.mrf.mxu0
    %v2292 = vadd.f32 0.0, %v2291
    %v2293 = vpop.f32.mrf.mxu0
    %v2294 = vadd.f32 0.0, %v2293
    %v2295 = vpop.f32.mrf.mxu0
    %v2296 = vadd.f32 0.0, %v2295
    %2297 = vmatprep.mubr.bf16.mxu0 %v821
    %2298 = vmatmul.mubr.bf16.gmra.mxu0 %v820
    %v2299 = vpop.f32.mrf.mxu0
    %v2300 = vadd.f32 0.0, %v2299
    %v2301 = vpop.f32.mrf.mxu0
    %v2302 = vadd.f32 0.0, %v2301
    %v2303 = vpop.f32.mrf.mxu0
    %v2304 = vadd.f32 0.0, %v2303
    %v2305 = vpop.f32.mrf.mxu0
    %v2306 = vadd.f32 0.0, %v2305
    %2307 = vmatprep.mubr.bf16.mxu0 %v825
    %2308 = vmatmul.mubr.bf16.gmra.mxu0 %v824
    %v2309 = vpop.f32.mrf.mxu0
    %v2310 = vadd.f32 0.0, %v2309
    %v2311 = vpop.f32.mrf.mxu0
    %v2312 = vadd.f32 0.0, %v2311
    %v2313 = vpop.f32.mrf.mxu0
    %v2314 = vadd.f32 0.0, %v2313
    %v2315 = vpop.f32.mrf.mxu0
    %v2316 = vadd.f32 0.0, %v2315
    %2317 = vdwg.mxu0
    %2318 = vmatprep.subr.bf16.mxu0 %v1690
    %2319 = vmatpush1.bf16.msra.mxu0 %v1689
    %2320 = vmatprep.subr.bf16.mxu0 %v1683
    %2321 = vmatpush1.bf16.msra.mxu0 %v1682
    %2322 = vmatprep.subr.bf16.mxu0 %v1676
    %2323 = vmatpush1.bf16.msra.mxu0 %v1675
    %2324 = vmatprep.subr.bf16.mxu0 %v1669
    %2325 = vmatpush1.bf16.msra.mxu0 %v1668
    %2326 = vmatprep.subr.bf16.mxu0 %v1662
    %2327 = vmatpush1.bf16.msra.mxu0 %v1661
    %2328 = vmatprep.subr.bf16.mxu0 %v1655
    %2329 = vmatpush1.bf16.msra.mxu0 %v1654
    %2330 = vmatprep.subr.bf16.mxu0 %v1648
    %2331 = vmatpush1.bf16.msra.mxu0 %v1647
    %2332 = vmatprep.subr.bf16.mxu0 %v1641
    %2333 = vmatpush1.bf16.msra.mxu0 %v1640
    %2334 = vmatprep.subr.bf16.mxu0 0
    %2335 = vmatpush2.bf16.msra.mxu0 0
    %2336 = vmatprep.subr.bf16.mxu0 0
    %2337 = vmatpush2.bf16.msra.mxu0 0
    %2338 = vmatprep.subr.bf16.mxu0 0
    %2339 = vmatpush2.bf16.msra.mxu0 0
    %2340 = vmatprep.subr.bf16.mxu0 0
    %2341 = vmatpush2.bf16.msra.mxu0 0
    %2342 = vmatprep.subr.bf16.mxu0 %v1718
    %2343 = vmatpush2.bf16.msra.mxu0 %v1717
    %2344 = vmatprep.subr.bf16.mxu0 %v1711
    %2345 = vmatpush2.bf16.msra.mxu0 %v1710
    %2346 = vmatprep.subr.bf16.mxu0 %v1704
    %2347 = vmatpush2.bf16.msra.mxu0 %v1703
    %2348 = vmatprep.subr.bf16.mxu0 %v1697
    %2349 = vmatpush2.bf16.msra.mxu0 %v1696
    %2350 = vmatprep.mubr.bf16.mxu0 %v1922
    %2351 = vmatmul.mubr.bf16.gmra.mxu0 %v718
    %v2352 = vpop.f32.mrf.mxu0
    %v2353 = vadd.f32 %v2040, %v2352
    %v2354 = vpop.f32.mrf.mxu0
    %v2355 = vadd.f32 %v2042, %v2354
    %v2356 = vpop.f32.mrf.mxu0
    %v2357 = vadd.f32 %v2044, %v2356
    %v2358 = vpop.f32.mrf.mxu0
    %v2359 = vadd.f32 %v2046, %v2358
    %2360 = vmatprep.mubr.bf16.mxu0 %v1925
    %2361 = vmatmul.mubr.bf16.gmra.mxu0 %v722
    %v2362 = vpop.f32.mrf.mxu0
    %v2363 = vadd.f32 %v2050, %v2362
    %v2364 = vpop.f32.mrf.mxu0
    %v2365 = vadd.f32 %v2052, %v2364
    %v2366 = vpop.f32.mrf.mxu0
    %v2367 = vadd.f32 %v2054, %v2366
    %v2368 = vpop.f32.mrf.mxu0
    %v2369 = vadd.f32 %v2056, %v2368
    %2370 = vmatprep.mubr.bf16.mxu0 %v1928
    %2371 = vmatmul.mubr.bf16.gmra.mxu0 %v726
    %v2372 = vpop.f32.mrf.mxu0
    %v2373 = vadd.f32 %v2060, %v2372
    %v2374 = vpop.f32.mrf.mxu0
    %v2375 = vadd.f32 %v2062, %v2374
    %v2376 = vpop.f32.mrf.mxu0
    %v2377 = vadd.f32 %v2064, %v2376
    %v2378 = vpop.f32.mrf.mxu0
    %v2379 = vadd.f32 %v2066, %v2378
    %2380 = vmatprep.mubr.bf16.mxu0 %v1931
    %2381 = vmatmul.mubr.bf16.gmra.mxu0 %v730
    %v2382 = vpop.f32.mrf.mxu0
    %v2383 = vadd.f32 %v2070, %v2382
    %v2384 = vpop.f32.mrf.mxu0
    %v2385 = vadd.f32 %v2072, %v2384
    %v2386 = vpop.f32.mrf.mxu0
    %v2387 = vadd.f32 %v2074, %v2386
    %v2388 = vpop.f32.mrf.mxu0
    %v2389 = vadd.f32 %v2076, %v2388
    %2390 = vmatprep.mubr.bf16.mxu0 %v1934
    %2391 = vmatmul.mubr.bf16.gmra.mxu0 %v734
    %v2392 = vpop.f32.mrf.mxu0
    %v2393 = vadd.f32 %v2080, %v2392
    %v2394 = vpop.f32.mrf.mxu0
    %v2395 = vadd.f32 %v2082, %v2394
    %v2396 = vpop.f32.mrf.mxu0
    %v2397 = vadd.f32 %v2084, %v2396
    %v2398 = vpop.f32.mrf.mxu0
    %v2399 = vadd.f32 %v2086, %v2398
    %2400 = vmatprep.mubr.bf16.mxu0 %v1937
    %2401 = vmatmul.mubr.bf16.gmra.mxu0 %v738
    %v2402 = vpop.f32.mrf.mxu0
    %v2403 = vadd.f32 %v2090, %v2402
    %v2404 = vpop.f32.mrf.mxu0
    %v2405 = vadd.f32 %v2092, %v2404
    %v2406 = vpop.f32.mrf.mxu0
    %v2407 = vadd.f32 %v2094, %v2406
    %v2408 = vpop.f32.mrf.mxu0
    %v2409 = vadd.f32 %v2096, %v2408
    %2410 = vmatprep.mubr.bf16.mxu0 %v1940
    %2411 = vmatmul.mubr.bf16.gmra.mxu0 %v742
    %v2412 = vpop.f32.mrf.mxu0
    %v2413 = vadd.f32 %v2100, %v2412
    %v2414 = vpop.f32.mrf.mxu0
    %v2415 = vadd.f32 %v2102, %v2414
    %v2416 = vpop.f32.mrf.mxu0
    %v2417 = vadd.f32 %v2104, %v2416
    %v2418 = vpop.f32.mrf.mxu0
    %v2419 = vadd.f32 %v2106, %v2418
    %2420 = vmatprep.mubr.bf16.mxu0 %v1943
    %2421 = vmatmul.mubr.bf16.gmra.mxu0 %v746
    %v2422 = vpop.f32.mrf.mxu0
    %v2423 = vadd.f32 %v2110, %v2422
    %v2424 = vpop.f32.mrf.mxu0
    %v2425 = vadd.f32 %v2112, %v2424
    %v2426 = vpop.f32.mrf.mxu0
    %v2427 = vadd.f32 %v2114, %v2426
    %v2428 = vpop.f32.mrf.mxu0
    %v2429 = vadd.f32 %v2116, %v2428
    %2430 = vmatprep.mubr.bf16.mxu0 %v1946
    %2431 = vmatmul.mubr.bf16.gmra.mxu0 %v750
    %v2432 = vpop.f32.mrf.mxu0
    %v2433 = vadd.f32 %v2120, %v2432
    %v2434 = vpop.f32.mrf.mxu0
    %v2435 = vadd.f32 %v2122, %v2434
    %v2436 = vpop.f32.mrf.mxu0
    %v2437 = vadd.f32 %v2124, %v2436
    %v2438 = vpop.f32.mrf.mxu0
    %v2439 = vadd.f32 %v2126, %v2438
    %2440 = vmatprep.mubr.bf16.mxu0 %v1949
    %2441 = vmatmul.mubr.bf16.gmra.mxu0 %v754
    %v2442 = vpop.f32.mrf.mxu0
    %v2443 = vadd.f32 %v2130, %v2442
    %v2444 = vpop.f32.mrf.mxu0
    %v2445 = vadd.f32 %v2132, %v2444
    %v2446 = vpop.f32.mrf.mxu0
    %v2447 = vadd.f32 %v2134, %v2446
    %v2448 = vpop.f32.mrf.mxu0
    %v2449 = vadd.f32 %v2136, %v2448
    %2450 = vmatprep.mubr.bf16.mxu0 %v1952
    %2451 = vmatmul.mubr.bf16.gmra.mxu0 %v758
    %v2452 = vpop.f32.mrf.mxu0
    %v2453 = vadd.f32 %v2140, %v2452
    %v2454 = vpop.f32.mrf.mxu0
    %v2455 = vadd.f32 %v2142, %v2454
    %v2456 = vpop.f32.mrf.mxu0
    %v2457 = vadd.f32 %v2144, %v2456
    %v2458 = vpop.f32.mrf.mxu0
    %v2459 = vadd.f32 %v2146, %v2458
    %2460 = vmatprep.mubr.bf16.mxu0 %v1955
    %2461 = vmatmul.mubr.bf16.gmra.mxu0 %v762
    %v2462 = vpop.f32.mrf.mxu0
    %v2463 = vadd.f32 %v2150, %v2462
    %v2464 = vpop.f32.mrf.mxu0
    %v2465 = vadd.f32 %v2152, %v2464
    %v2466 = vpop.f32.mrf.mxu0
    %v2467 = vadd.f32 %v2154, %v2466
    %v2468 = vpop.f32.mrf.mxu0
    %v2469 = vadd.f32 %v2156, %v2468
    %2470 = vmatprep.mubr.bf16.mxu0 %v1958
    %2471 = vmatmul.mubr.bf16.gmra.mxu0 %v766
    %v2472 = vpop.f32.mrf.mxu0
    %v2473 = vadd.f32 %v2160, %v2472
    %v2474 = vpop.f32.mrf.mxu0
    %v2475 = vadd.f32 %v2162, %v2474
    %v2476 = vpop.f32.mrf.mxu0
    %v2477 = vadd.f32 %v2164, %v2476
    %v2478 = vpop.f32.mrf.mxu0
    %v2479 = vadd.f32 %v2166, %v2478
    %2480 = vmatprep.mubr.bf16.mxu0 %v1961
    %2481 = vmatmul.mubr.bf16.gmra.mxu0 %v770
    %v2482 = vpop.f32.mrf.mxu0
    %v2483 = vadd.f32 %v2170, %v2482
    %v2484 = vpop.f32.mrf.mxu0
    %v2485 = vadd.f32 %v2172, %v2484
    %v2486 = vpop.f32.mrf.mxu0
    %v2487 = vadd.f32 %v2174, %v2486
    %v2488 = vpop.f32.mrf.mxu0
    %v2489 = vadd.f32 %v2176, %v2488
    %2490 = vmatprep.mubr.bf16.mxu0 %v1964
    %2491 = vmatmul.mubr.bf16.gmra.mxu0 %v774
    %v2492 = vpop.f32.mrf.mxu0
    %v2493 = vadd.f32 %v2180, %v2492
    %v2494 = vpop.f32.mrf.mxu0
    %v2495 = vadd.f32 %v2182, %v2494
    %v2496 = vpop.f32.mrf.mxu0
    %v2497 = vadd.f32 %v2184, %v2496
    %v2498 = vpop.f32.mrf.mxu0
    %v2499 = vadd.f32 %v2186, %v2498
    %2500 = vmatprep.mubr.bf16.mxu0 %v1967
    %2501 = vmatmul.mubr.bf16.gmra.mxu0 %v778
    %v2502 = vpop.f32.mrf.mxu0
    %v2503 = vadd.f32 %v2190, %v2502
    %v2504 = vpop.f32.mrf.mxu0
    %v2505 = vadd.f32 %v2192, %v2504
    %v2506 = vpop.f32.mrf.mxu0
    %v2507 = vadd.f32 %v2194, %v2506
    %v2508 = vpop.f32.mrf.mxu0
    %v2509 = vadd.f32 %v2196, %v2508
    %2510 = vmatprep.mubr.bf16.mxu0 %v1970
    %2511 = vmatmul.mubr.bf16.gmra.mxu0 %v782
    %v2512 = vpop.f32.mrf.mxu0
    %v2513 = vadd.f32 %v2200, %v2512
    %v2514 = vpop.f32.mrf.mxu0
    %v2515 = vadd.f32 %v2202, %v2514
    %v2516 = vpop.f32.mrf.mxu0
    %v2517 = vadd.f32 %v2204, %v2516
    %v2518 = vpop.f32.mrf.mxu0
    %v2519 = vadd.f32 %v2206, %v2518
    %2520 = vmatprep.mubr.bf16.mxu0 %v1973
    %2521 = vmatmul.mubr.bf16.gmra.mxu0 %v786
    %v2522 = vpop.f32.mrf.mxu0
    %v2523 = vadd.f32 %v2210, %v2522
    %v2524 = vpop.f32.mrf.mxu0
    %v2525 = vadd.f32 %v2212, %v2524
    %v2526 = vpop.f32.mrf.mxu0
    %v2527 = vadd.f32 %v2214, %v2526
    %v2528 = vpop.f32.mrf.mxu0
    %v2529 = vadd.f32 %v2216, %v2528
    %2530 = vmatprep.mubr.bf16.mxu0 %v1976
    %2531 = vmatmul.mubr.bf16.gmra.mxu0 %v790
    %v2532 = vpop.f32.mrf.mxu0
    %v2533 = vadd.f32 %v2220, %v2532
    %v2534 = vpop.f32.mrf.mxu0
    %v2535 = vadd.f32 %v2222, %v2534
    %v2536 = vpop.f32.mrf.mxu0
    %v2537 = vadd.f32 %v2224, %v2536
    %v2538 = vpop.f32.mrf.mxu0
    %v2539 = vadd.f32 %v2226, %v2538
    %2540 = vmatprep.mubr.bf16.mxu0 %v1979
    %2541 = vmatmul.mubr.bf16.gmra.mxu0 %v794
    %v2542 = vpop.f32.mrf.mxu0
    %v2543 = vadd.f32 %v2230, %v2542
    %v2544 = vpop.f32.mrf.mxu0
    %v2545 = vadd.f32 %v2232, %v2544
    %v2546 = vpop.f32.mrf.mxu0
    %v2547 = vadd.f32 %v2234, %v2546
    %v2548 = vpop.f32.mrf.mxu0
    %v2549 = vadd.f32 %v2236, %v2548
    %2550 = vmatprep.mubr.bf16.mxu0 %v1982
    %2551 = vmatmul.mubr.bf16.gmra.mxu0 %v798
    %v2552 = vpop.f32.mrf.mxu0
    %v2553 = vadd.f32 %v2240, %v2552
    %v2554 = vpop.f32.mrf.mxu0
    %v2555 = vadd.f32 %v2242, %v2554
    %v2556 = vpop.f32.mrf.mxu0
    %v2557 = vadd.f32 %v2244, %v2556
    %v2558 = vpop.f32.mrf.mxu0
    %v2559 = vadd.f32 %v2246, %v2558
    %2560 = vmatprep.mubr.bf16.mxu0 %v1985
    %2561 = vmatmul.mubr.bf16.gmra.mxu0 %v802
    %v2562 = vpop.f32.mrf.mxu0
    %v2563 = vadd.f32 %v2250, %v2562
    %v2564 = vpop.f32.mrf.mxu0
    %v2565 = vadd.f32 %v2252, %v2564
    %v2566 = vpop.f32.mrf.mxu0
    %v2567 = vadd.f32 %v2254, %v2566
    %v2568 = vpop.f32.mrf.mxu0
    %v2569 = vadd.f32 %v2256, %v2568
    %2570 = vmatprep.mubr.bf16.mxu0 %v1988
    %2571 = vmatmul.mubr.bf16.gmra.mxu0 %v806
    %v2572 = vpop.f32.mrf.mxu0
    %v2573 = vadd.f32 %v2260, %v2572
    %v2574 = vpop.f32.mrf.mxu0
    %v2575 = vadd.f32 %v2262, %v2574
    %v2576 = vpop.f32.mrf.mxu0
    %v2577 = vadd.f32 %v2264, %v2576
    %v2578 = vpop.f32.mrf.mxu0
    %v2579 = vadd.f32 %v2266, %v2578
    %2580 = vmatprep.mubr.bf16.mxu0 %v1991
    %2581 = vmatmul.mubr.bf16.gmra.mxu0 %v810
    %v2582 = vpop.f32.mrf.mxu0
    %v2583 = vadd.f32 %v2270, %v2582
    %v2584 = vpop.f32.mrf.mxu0
    %v2585 = vadd.f32 %v2272, %v2584
    %v2586 = vpop.f32.mrf.mxu0
    %v2587 = vadd.f32 %v2274, %v2586
    %v2588 = vpop.f32.mrf.mxu0
    %v2589 = vadd.f32 %v2276, %v2588
    %2590 = vmatprep.mubr.bf16.mxu0 %v1994
    %2591 = vmatmul.mubr.bf16.gmra.mxu0 %v814
    %v2592 = vpop.f32.mrf.mxu0
    %v2593 = vadd.f32 %v2280, %v2592
    %v2594 = vpop.f32.mrf.mxu0
    %v2595 = vadd.f32 %v2282, %v2594
    %v2596 = vpop.f32.mrf.mxu0
    %v2597 = vadd.f32 %v2284, %v2596
    %v2598 = vpop.f32.mrf.mxu0
    %v2599 = vadd.f32 %v2286, %v2598
    %2600 = vmatprep.mubr.bf16.mxu0 %v1997
    %2601 = vmatmul.mubr.bf16.gmra.mxu0 %v818
    %v2602 = vpop.f32.mrf.mxu0
    %v2603 = vadd.f32 %v2290, %v2602
    %v2604 = vpop.f32.mrf.mxu0
    %v2605 = vadd.f32 %v2292, %v2604
    %v2606 = vpop.f32.mrf.mxu0
    %v2607 = vadd.f32 %v2294, %v2606
    %v2608 = vpop.f32.mrf.mxu0
    %v2609 = vadd.f32 %v2296, %v2608
    %2610 = vmatprep.mubr.bf16.mxu0 %v2000
    %2611 = vmatmul.mubr.bf16.gmra.mxu0 %v822
    %v2612 = vpop.f32.mrf.mxu0
    %v2613 = vadd.f32 %v2300, %v2612
    %v2614 = vpop.f32.mrf.mxu0
    %v2615 = vadd.f32 %v2302, %v2614
    %v2616 = vpop.f32.mrf.mxu0
    %v2617 = vadd.f32 %v2304, %v2616
    %v2618 = vpop.f32.mrf.mxu0
    %v2619 = vadd.f32 %v2306, %v2618
    %2620 = vmatprep.mubr.bf16.mxu0 %v2003
    %2621 = vmatmul.mubr.bf16.gmra.mxu0 %v826
    %v2622 = vpop.f32.mrf.mxu0
    %v2623 = vadd.f32 %v2310, %v2622
    %v2624 = vpop.f32.mrf.mxu0
    %v2625 = vadd.f32 %v2312, %v2624
    %v2626 = vpop.f32.mrf.mxu0
    %v2627 = vadd.f32 %v2314, %v2626
    %v2628 = vpop.f32.mrf.mxu0
    %v2629 = vadd.f32 %v2316, %v2628
    %2630 = vdwg.mxu0
    %2631 = vmatprep.subr.bf16.mxu0 %v1580
    %2632 = vmatpush1.bf16.msra.mxu0 %v1579
    %2633 = vmatprep.subr.bf16.mxu0 %v1573
    %2634 = vmatpush1.bf16.msra.mxu0 %v1572
    %2635 = vmatprep.subr.bf16.mxu0 %v1566
    %2636 = vmatpush1.bf16.msra.mxu0 %v1565
    %2637 = vmatprep.subr.bf16.mxu0 %v1559
    %2638 = vmatpush1.bf16.msra.mxu0 %v1558
    %2639 = vmatprep.subr.bf16.mxu0 %v1552
    %2640 = vmatpush1.bf16.msra.mxu0 %v1551
    %2641 = vmatprep.subr.bf16.mxu0 %v1545
    %2642 = vmatpush1.bf16.msra.mxu0 %v1544
    %2643 = vmatprep.subr.bf16.mxu0 %v1538
    %2644 = vmatpush1.bf16.msra.mxu0 %v1537
    %2645 = vmatprep.subr.bf16.mxu0 %v1531
    %2646 = vmatpush1.bf16.msra.mxu0 %v1530
    %2647 = vmatprep.subr.bf16.mxu0 %v1636
    %2648 = vmatpush2.bf16.msra.mxu0 %v1635
    %2649 = vmatprep.subr.bf16.mxu0 %v1629
    %2650 = vmatpush2.bf16.msra.mxu0 %v1628
    %2651 = vmatprep.subr.bf16.mxu0 %v1622
    %2652 = vmatpush2.bf16.msra.mxu0 %v1621
    %2653 = vmatprep.subr.bf16.mxu0 %v1615
    %2654 = vmatpush2.bf16.msra.mxu0 %v1614
    %2655 = vmatprep.subr.bf16.mxu0 %v1608
    %2656 = vmatpush2.bf16.msra.mxu0 %v1607
    %2657 = vmatprep.subr.bf16.mxu0 %v1601
    %2658 = vmatpush2.bf16.msra.mxu0 %v1600
    %2659 = vmatprep.subr.bf16.mxu0 %v1594
    %2660 = vmatpush2.bf16.msra.mxu0 %v1593
    %2661 = vmatprep.subr.bf16.mxu0 %v1587
    %2662 = vmatpush2.bf16.msra.mxu0 %v1586
    %2663 = vmatprep.mubr.bf16.mxu0 %v717
    %2664 = vmatmul.mubr.bf16.gmra.mxu0 %v716
    %v2665 = vpop.f32.mrf.mxu0
    %v2666 = vadd.f32 0.0, %v2665
    %v2667 = vpop.f32.mrf.mxu0
    %v2668 = vadd.f32 0.0, %v2667
    %v2669 = vpop.f32.mrf.mxu0
    %v2670 = vadd.f32 0.0, %v2669
    %v2671 = vpop.f32.mrf.mxu0
    %v2672 = vadd.f32 0.0, %v2671
    %2673 = vmatprep.mubr.bf16.mxu0 %v721
    %2674 = vmatmul.mubr.bf16.gmra.mxu0 %v720
    %v2675 = vpop.f32.mrf.mxu0
    %v2676 = vadd.f32 0.0, %v2675
    %v2677 = vpop.f32.mrf.mxu0
    %v2678 = vadd.f32 0.0, %v2677
    %v2679 = vpop.f32.mrf.mxu0
    %v2680 = vadd.f32 0.0, %v2679
    %v2681 = vpop.f32.mrf.mxu0
    %v2682 = vadd.f32 0.0, %v2681
    %2683 = vmatprep.mubr.bf16.mxu0 %v725
    %2684 = vmatmul.mubr.bf16.gmra.mxu0 %v724
    %v2685 = vpop.f32.mrf.mxu0
    %v2686 = vadd.f32 0.0, %v2685
    %v2687 = vpop.f32.mrf.mxu0
    %v2688 = vadd.f32 0.0, %v2687
    %v2689 = vpop.f32.mrf.mxu0
    %v2690 = vadd.f32 0.0, %v2689
    %v2691 = vpop.f32.mrf.mxu0
    %v2692 = vadd.f32 0.0, %v2691
    %2693 = vmatprep.mubr.bf16.mxu0 %v729
    %2694 = vmatmul.mubr.bf16.gmra.mxu0 %v728
    %v2695 = vpop.f32.mrf.mxu0
    %v2696 = vadd.f32 0.0, %v2695
    %v2697 = vpop.f32.mrf.mxu0
    %v2698 = vadd.f32 0.0, %v2697
    %v2699 = vpop.f32.mrf.mxu0
    %v2700 = vadd.f32 0.0, %v2699
    %v2701 = vpop.f32.mrf.mxu0
    %v2702 = vadd.f32 0.0, %v2701
    %2703 = vmatprep.mubr.bf16.mxu0 %v733
    %2704 = vmatmul.mubr.bf16.gmra.mxu0 %v732
    %v2705 = vpop.f32.mrf.mxu0
    %v2706 = vadd.f32 0.0, %v2705
    %v2707 = vpop.f32.mrf.mxu0
    %v2708 = vadd.f32 0.0, %v2707
    %v2709 = vpop.f32.mrf.mxu0
    %v2710 = vadd.f32 0.0, %v2709
    %v2711 = vpop.f32.mrf.mxu0
    %v2712 = vadd.f32 0.0, %v2711
    %2713 = vmatprep.mubr.bf16.mxu0 %v737
    %2714 = vmatmul.mubr.bf16.gmra.mxu0 %v736
    %v2715 = vpop.f32.mrf.mxu0
    %v2716 = vadd.f32 0.0, %v2715
    %v2717 = vpop.f32.mrf.mxu0
    %v2718 = vadd.f32 0.0, %v2717
    %v2719 = vpop.f32.mrf.mxu0
    %v2720 = vadd.f32 0.0, %v2719
    %v2721 = vpop.f32.mrf.mxu0
    %v2722 = vadd.f32 0.0, %v2721
    %2723 = vmatprep.mubr.bf16.mxu0 %v741
    %2724 = vmatmul.mubr.bf16.gmra.mxu0 %v740
    %v2725 = vpop.f32.mrf.mxu0
    %v2726 = vadd.f32 0.0, %v2725
    %v2727 = vpop.f32.mrf.mxu0
    %v2728 = vadd.f32 0.0, %v2727
    %v2729 = vpop.f32.mrf.mxu0
    %v2730 = vadd.f32 0.0, %v2729
    %v2731 = vpop.f32.mrf.mxu0
    %v2732 = vadd.f32 0.0, %v2731
    %2733 = vmatprep.mubr.bf16.mxu0 %v745
    %2734 = vmatmul.mubr.bf16.gmra.mxu0 %v744
    %v2735 = vpop.f32.mrf.mxu0
    %v2736 = vadd.f32 0.0, %v2735
    %v2737 = vpop.f32.mrf.mxu0
    %v2738 = vadd.f32 0.0, %v2737
    %v2739 = vpop.f32.mrf.mxu0
    %v2740 = vadd.f32 0.0, %v2739
    %v2741 = vpop.f32.mrf.mxu0
    %v2742 = vadd.f32 0.0, %v2741
    %2743 = vmatprep.mubr.bf16.mxu0 %v749
    %2744 = vmatmul.mubr.bf16.gmra.mxu0 %v748
    %v2745 = vpop.f32.mrf.mxu0
    %v2746 = vadd.f32 0.0, %v2745
    %v2747 = vpop.f32.mrf.mxu0
    %v2748 = vadd.f32 0.0, %v2747
    %v2749 = vpop.f32.mrf.mxu0
    %v2750 = vadd.f32 0.0, %v2749
    %v2751 = vpop.f32.mrf.mxu0
    %v2752 = vadd.f32 0.0, %v2751
    %2753 = vmatprep.mubr.bf16.mxu0 %v753
    %2754 = vmatmul.mubr.bf16.gmra.mxu0 %v752
    %v2755 = vpop.f32.mrf.mxu0
    %v2756 = vadd.f32 0.0, %v2755
    %v2757 = vpop.f32.mrf.mxu0
    %v2758 = vadd.f32 0.0, %v2757
    %v2759 = vpop.f32.mrf.mxu0
    %v2760 = vadd.f32 0.0, %v2759
    %v2761 = vpop.f32.mrf.mxu0
    %v2762 = vadd.f32 0.0, %v2761
    %2763 = vmatprep.mubr.bf16.mxu0 %v757
    %2764 = vmatmul.mubr.bf16.gmra.mxu0 %v756
    %v2765 = vpop.f32.mrf.mxu0
    %v2766 = vadd.f32 0.0, %v2765
    %v2767 = vpop.f32.mrf.mxu0
    %v2768 = vadd.f32 0.0, %v2767
    %v2769 = vpop.f32.mrf.mxu0
    %v2770 = vadd.f32 0.0, %v2769
    %v2771 = vpop.f32.mrf.mxu0
    %v2772 = vadd.f32 0.0, %v2771
    %2773 = vmatprep.mubr.bf16.mxu0 %v761
    %2774 = vmatmul.mubr.bf16.gmra.mxu0 %v760
    %v2775 = vpop.f32.mrf.mxu0
    %v2776 = vadd.f32 0.0, %v2775
    %v2777 = vpop.f32.mrf.mxu0
    %v2778 = vadd.f32 0.0, %v2777
    %v2779 = vpop.f32.mrf.mxu0
    %v2780 = vadd.f32 0.0, %v2779
    %v2781 = vpop.f32.mrf.mxu0
    %v2782 = vadd.f32 0.0, %v2781
    %2783 = vmatprep.mubr.bf16.mxu0 %v765
    %2784 = vmatmul.mubr.bf16.gmra.mxu0 %v764
    %v2785 = vpop.f32.mrf.mxu0
    %v2786 = vadd.f32 0.0, %v2785
    %v2787 = vpop.f32.mrf.mxu0
    %v2788 = vadd.f32 0.0, %v2787
    %v2789 = vpop.f32.mrf.mxu0
    %v2790 = vadd.f32 0.0, %v2789
    %v2791 = vpop.f32.mrf.mxu0
    %v2792 = vadd.f32 0.0, %v2791
    %2793 = vmatprep.mubr.bf16.mxu0 %v769
    %2794 = vmatmul.mubr.bf16.gmra.mxu0 %v768
    %v2795 = vpop.f32.mrf.mxu0
    %v2796 = vadd.f32 0.0, %v2795
    %v2797 = vpop.f32.mrf.mxu0
    %v2798 = vadd.f32 0.0, %v2797
    %v2799 = vpop.f32.mrf.mxu0
    %v2800 = vadd.f32 0.0, %v2799
    %v2801 = vpop.f32.mrf.mxu0
    %v2802 = vadd.f32 0.0, %v2801
    %2803 = vmatprep.mubr.bf16.mxu0 %v773
    %2804 = vmatmul.mubr.bf16.gmra.mxu0 %v772
    %v2805 = vpop.f32.mrf.mxu0
    %v2806 = vadd.f32 0.0, %v2805
    %v2807 = vpop.f32.mrf.mxu0
    %v2808 = vadd.f32 0.0, %v2807
    %v2809 = vpop.f32.mrf.mxu0
    %v2810 = vadd.f32 0.0, %v2809
    %v2811 = vpop.f32.mrf.mxu0
    %v2812 = vadd.f32 0.0, %v2811
    %2813 = vmatprep.mubr.bf16.mxu0 %v777
    %2814 = vmatmul.mubr.bf16.gmra.mxu0 %v776
    %v2815 = vpop.f32.mrf.mxu0
    %v2816 = vadd.f32 0.0, %v2815
    %v2817 = vpop.f32.mrf.mxu0
    %v2818 = vadd.f32 0.0, %v2817
    %v2819 = vpop.f32.mrf.mxu0
    %v2820 = vadd.f32 0.0, %v2819
    %v2821 = vpop.f32.mrf.mxu0
    %v2822 = vadd.f32 0.0, %v2821
    %2823 = vmatprep.mubr.bf16.mxu0 %v781
    %2824 = vmatmul.mubr.bf16.gmra.mxu0 %v780
    %v2825 = vpop.f32.mrf.mxu0
    %v2826 = vadd.f32 0.0, %v2825
    %v2827 = vpop.f32.mrf.mxu0
    %v2828 = vadd.f32 0.0, %v2827
    %v2829 = vpop.f32.mrf.mxu0
    %v2830 = vadd.f32 0.0, %v2829
    %v2831 = vpop.f32.mrf.mxu0
    %v2832 = vadd.f32 0.0, %v2831
    %2833 = vmatprep.mubr.bf16.mxu0 %v785
    %2834 = vmatmul.mubr.bf16.gmra.mxu0 %v784
    %v2835 = vpop.f32.mrf.mxu0
    %v2836 = vadd.f32 0.0, %v2835
    %v2837 = vpop.f32.mrf.mxu0
    %v2838 = vadd.f32 0.0, %v2837
    %v2839 = vpop.f32.mrf.mxu0
    %v2840 = vadd.f32 0.0, %v2839
    %v2841 = vpop.f32.mrf.mxu0
    %v2842 = vadd.f32 0.0, %v2841
    %2843 = vmatprep.mubr.bf16.mxu0 %v789
    %2844 = vmatmul.mubr.bf16.gmra.mxu0 %v788
    %v2845 = vpop.f32.mrf.mxu0
    %v2846 = vadd.f32 0.0, %v2845
    %v2847 = vpop.f32.mrf.mxu0
    %v2848 = vadd.f32 0.0, %v2847
    %v2849 = vpop.f32.mrf.mxu0
    %v2850 = vadd.f32 0.0, %v2849
    %v2851 = vpop.f32.mrf.mxu0
    %v2852 = vadd.f32 0.0, %v2851
    %2853 = vmatprep.mubr.bf16.mxu0 %v793
    %2854 = vmatmul.mubr.bf16.gmra.mxu0 %v792
    %v2855 = vpop.f32.mrf.mxu0
    %v2856 = vadd.f32 0.0, %v2855
    %v2857 = vpop.f32.mrf.mxu0
    %v2858 = vadd.f32 0.0, %v2857
    %v2859 = vpop.f32.mrf.mxu0
    %v2860 = vadd.f32 0.0, %v2859
    %v2861 = vpop.f32.mrf.mxu0
    %v2862 = vadd.f32 0.0, %v2861
    %2863 = vmatprep.mubr.bf16.mxu0 %v797
    %2864 = vmatmul.mubr.bf16.gmra.mxu0 %v796
    %v2865 = vpop.f32.mrf.mxu0
    %v2866 = vadd.f32 0.0, %v2865
    %v2867 = vpop.f32.mrf.mxu0
    %v2868 = vadd.f32 0.0, %v2867
    %v2869 = vpop.f32.mrf.mxu0
    %v2870 = vadd.f32 0.0, %v2869
    %v2871 = vpop.f32.mrf.mxu0
    %v2872 = vadd.f32 0.0, %v2871
    %2873 = vmatprep.mubr.bf16.mxu0 %v801
    %2874 = vmatmul.mubr.bf16.gmra.mxu0 %v800
    %v2875 = vpop.f32.mrf.mxu0
    %v2876 = vadd.f32 0.0, %v2875
    %v2877 = vpop.f32.mrf.mxu0
    %v2878 = vadd.f32 0.0, %v2877
    %v2879 = vpop.f32.mrf.mxu0
    %v2880 = vadd.f32 0.0, %v2879
    %v2881 = vpop.f32.mrf.mxu0
    %v2882 = vadd.f32 0.0, %v2881
    %2883 = vmatprep.mubr.bf16.mxu0 %v805
    %2884 = vmatmul.mubr.bf16.gmra.mxu0 %v804
    %v2885 = vpop.f32.mrf.mxu0
    %v2886 = vadd.f32 0.0, %v2885
    %v2887 = vpop.f32.mrf.mxu0
    %v2888 = vadd.f32 0.0, %v2887
    %v2889 = vpop.f32.mrf.mxu0
    %v2890 = vadd.f32 0.0, %v2889
    %v2891 = vpop.f32.mrf.mxu0
    %v2892 = vadd.f32 0.0, %v2891
    %2893 = vmatprep.mubr.bf16.mxu0 %v809
    %2894 = vmatmul.mubr.bf16.gmra.mxu0 %v808
    %v2895 = vpop.f32.mrf.mxu0
    %v2896 = vadd.f32 0.0, %v2895
    %v2897 = vpop.f32.mrf.mxu0
    %v2898 = vadd.f32 0.0, %v2897
    %v2899 = vpop.f32.mrf.mxu0
    %v2900 = vadd.f32 0.0, %v2899
    %v2901 = vpop.f32.mrf.mxu0
    %v2902 = vadd.f32 0.0, %v2901
    %2903 = vmatprep.mubr.bf16.mxu0 %v813
    %2904 = vmatmul.mubr.bf16.gmra.mxu0 %v812
    %v2905 = vpop.f32.mrf.mxu0
    %v2906 = vadd.f32 0.0, %v2905
    %v2907 = vpop.f32.mrf.mxu0
    %v2908 = vadd.f32 0.0, %v2907
    %v2909 = vpop.f32.mrf.mxu0
    %v2910 = vadd.f32 0.0, %v2909
    %v2911 = vpop.f32.mrf.mxu0
    %v2912 = vadd.f32 0.0, %v2911
    %2913 = vmatprep.mubr.bf16.mxu0 %v817
    %2914 = vmatmul.mubr.bf16.gmra.mxu0 %v816
    %v2915 = vpop.f32.mrf.mxu0
    %v2916 = vadd.f32 0.0, %v2915
    %v2917 = vpop.f32.mrf.mxu0
    %v2918 = vadd.f32 0.0, %v2917
    %v2919 = vpop.f32.mrf.mxu0
    %v2920 = vadd.f32 0.0, %v2919
    %v2921 = vpop.f32.mrf.mxu0
    %v2922 = vadd.f32 0.0, %v2921
    %2923 = vmatprep.mubr.bf16.mxu0 %v821
    %2924 = vmatmul.mubr.bf16.gmra.mxu0 %v820
    %v2925 = vpop.f32.mrf.mxu0
    %v2926 = vadd.f32 0.0, %v2925
    %v2927 = vpop.f32.mrf.mxu0
    %v2928 = vadd.f32 0.0, %v2927
    %v2929 = vpop.f32.mrf.mxu0
    %v2930 = vadd.f32 0.0, %v2929
    %v2931 = vpop.f32.mrf.mxu0
    %v2932 = vadd.f32 0.0, %v2931
    %2933 = vmatprep.mubr.bf16.mxu0 %v825
    %2934 = vmatmul.mubr.bf16.gmra.mxu0 %v824
    %v2935 = vpop.f32.mrf.mxu0
    %v2936 = vadd.f32 0.0, %v2935
    %v2937 = vpop.f32.mrf.mxu0
    %v2938 = vadd.f32 0.0, %v2937
    %v2939 = vpop.f32.mrf.mxu0
    %v2940 = vadd.f32 0.0, %v2939
    %v2941 = vpop.f32.mrf.mxu0
    %v2942 = vadd.f32 0.0, %v2941
    %2943 = vdwg.mxu0
    %2944 = vmatprep.subr.bf16.mxu0 %v1692
    %2945 = vmatpush1.bf16.msra.mxu0 %v1691
    %2946 = vmatprep.subr.bf16.mxu0 %v1685
    %2947 = vmatpush1.bf16.msra.mxu0 %v1684
    %2948 = vmatprep.subr.bf16.mxu0 %v1678
    %2949 = vmatpush1.bf16.msra.mxu0 %v1677
    %2950 = vmatprep.subr.bf16.mxu0 %v1671
    %2951 = vmatpush1.bf16.msra.mxu0 %v1670
    %2952 = vmatprep.subr.bf16.mxu0 %v1664
    %2953 = vmatpush1.bf16.msra.mxu0 %v1663
    %2954 = vmatprep.subr.bf16.mxu0 %v1657
    %2955 = vmatpush1.bf16.msra.mxu0 %v1656
    %2956 = vmatprep.subr.bf16.mxu0 %v1650
    %2957 = vmatpush1.bf16.msra.mxu0 %v1649
    %2958 = vmatprep.subr.bf16.mxu0 %v1643
    %2959 = vmatpush1.bf16.msra.mxu0 %v1642
    %2960 = vmatprep.subr.bf16.mxu0 0
    %2961 = vmatpush2.bf16.msra.mxu0 0
    %2962 = vmatprep.subr.bf16.mxu0 0
    %2963 = vmatpush2.bf16.msra.mxu0 0
    %2964 = vmatprep.subr.bf16.mxu0 0
    %2965 = vmatpush2.bf16.msra.mxu0 0
    %2966 = vmatprep.subr.bf16.mxu0 0
    %2967 = vmatpush2.bf16.msra.mxu0 0
    %2968 = vmatprep.subr.bf16.mxu0 %v1720
    %2969 = vmatpush2.bf16.msra.mxu0 %v1719
    %2970 = vmatprep.subr.bf16.mxu0 %v1713
    %2971 = vmatpush2.bf16.msra.mxu0 %v1712
    %2972 = vmatprep.subr.bf16.mxu0 %v1706
    %2973 = vmatpush2.bf16.msra.mxu0 %v1705
    %2974 = vmatprep.subr.bf16.mxu0 %v1699
    %2975 = vmatpush2.bf16.msra.mxu0 %v1698
    %2976 = vmatprep.mubr.bf16.mxu0 %v1922
    %2977 = vmatmul.mubr.bf16.gmra.mxu0 %v718
    %v2978 = vpop.f32.mrf.mxu0
    %v2979 = vadd.f32 %v2666, %v2978
    %v2980 = vpop.f32.mrf.mxu0
    %v2981 = vadd.f32 %v2668, %v2980
    %v2982 = vpop.f32.mrf.mxu0
    %v2983 = vadd.f32 %v2670, %v2982
    %v2984 = vpop.f32.mrf.mxu0
    %v2985 = vadd.f32 %v2672, %v2984
    %2986 = vmatprep.mubr.bf16.mxu0 %v1925
    %2987 = vmatmul.mubr.bf16.gmra.mxu0 %v722
    %v2988 = vpop.f32.mrf.mxu0
    %v2989 = vadd.f32 %v2676, %v2988
    %v2990 = vpop.f32.mrf.mxu0
    %v2991 = vadd.f32 %v2678, %v2990
    %v2992 = vpop.f32.mrf.mxu0
    %v2993 = vadd.f32 %v2680, %v2992
    %v2994 = vpop.f32.mrf.mxu0
    %v2995 = vadd.f32 %v2682, %v2994
    %2996 = vmatprep.mubr.bf16.mxu0 %v1928
    %2997 = vmatmul.mubr.bf16.gmra.mxu0 %v726
    %v2998 = vpop.f32.mrf.mxu0
    %v2999 = vadd.f32 %v2686, %v2998
    %v3000 = vpop.f32.mrf.mxu0
    %v3001 = vadd.f32 %v2688, %v3000
    %v3002 = vpop.f32.mrf.mxu0
    %v3003 = vadd.f32 %v2690, %v3002
    %v3004 = vpop.f32.mrf.mxu0
    %v3005 = vadd.f32 %v2692, %v3004
    %3006 = vmatprep.mubr.bf16.mxu0 %v1931
    %3007 = vmatmul.mubr.bf16.gmra.mxu0 %v730
    %v3008 = vpop.f32.mrf.mxu0
    %v3009 = vadd.f32 %v2696, %v3008
    %v3010 = vpop.f32.mrf.mxu0
    %v3011 = vadd.f32 %v2698, %v3010
    %v3012 = vpop.f32.mrf.mxu0
    %v3013 = vadd.f32 %v2700, %v3012
    %v3014 = vpop.f32.mrf.mxu0
    %v3015 = vadd.f32 %v2702, %v3014
    %3016 = vmatprep.mubr.bf16.mxu0 %v1934
    %3017 = vmatmul.mubr.bf16.gmra.mxu0 %v734
    %v3018 = vpop.f32.mrf.mxu0
    %v3019 = vadd.f32 %v2706, %v3018
    %v3020 = vpop.f32.mrf.mxu0
    %v3021 = vadd.f32 %v2708, %v3020
    %v3022 = vpop.f32.mrf.mxu0
    %v3023 = vadd.f32 %v2710, %v3022
    %v3024 = vpop.f32.mrf.mxu0
    %v3025 = vadd.f32 %v2712, %v3024
    %3026 = vmatprep.mubr.bf16.mxu0 %v1937
    %3027 = vmatmul.mubr.bf16.gmra.mxu0 %v738
    %v3028 = vpop.f32.mrf.mxu0
    %v3029 = vadd.f32 %v2716, %v3028
    %v3030 = vpop.f32.mrf.mxu0
    %v3031 = vadd.f32 %v2718, %v3030
    %v3032 = vpop.f32.mrf.mxu0
    %v3033 = vadd.f32 %v2720, %v3032
    %v3034 = vpop.f32.mrf.mxu0
    %v3035 = vadd.f32 %v2722, %v3034
    %3036 = vmatprep.mubr.bf16.mxu0 %v1940
    %3037 = vmatmul.mubr.bf16.gmra.mxu0 %v742
    %v3038 = vpop.f32.mrf.mxu0
    %v3039 = vadd.f32 %v2726, %v3038
    %v3040 = vpop.f32.mrf.mxu0
    %v3041 = vadd.f32 %v2728, %v3040
    %v3042 = vpop.f32.mrf.mxu0
    %v3043 = vadd.f32 %v2730, %v3042
    %v3044 = vpop.f32.mrf.mxu0
    %v3045 = vadd.f32 %v2732, %v3044
    %3046 = vmatprep.mubr.bf16.mxu0 %v1943
    %3047 = vmatmul.mubr.bf16.gmra.mxu0 %v746
    %v3048 = vpop.f32.mrf.mxu0
    %v3049 = vadd.f32 %v2736, %v3048
    %v3050 = vpop.f32.mrf.mxu0
    %v3051 = vadd.f32 %v2738, %v3050
    %v3052 = vpop.f32.mrf.mxu0
    %v3053 = vadd.f32 %v2740, %v3052
    %v3054 = vpop.f32.mrf.mxu0
    %v3055 = vadd.f32 %v2742, %v3054
    %3056 = vmatprep.mubr.bf16.mxu0 %v1946
    %3057 = vmatmul.mubr.bf16.gmra.mxu0 %v750
    %v3058 = vpop.f32.mrf.mxu0
    %v3059 = vadd.f32 %v2746, %v3058
    %v3060 = vpop.f32.mrf.mxu0
    %v3061 = vadd.f32 %v2748, %v3060
    %v3062 = vpop.f32.mrf.mxu0
    %v3063 = vadd.f32 %v2750, %v3062
    %v3064 = vpop.f32.mrf.mxu0
    %v3065 = vadd.f32 %v2752, %v3064
    %3066 = vmatprep.mubr.bf16.mxu0 %v1949
    %3067 = vmatmul.mubr.bf16.gmra.mxu0 %v754
    %v3068 = vpop.f32.mrf.mxu0
    %v3069 = vadd.f32 %v2756, %v3068
    %v3070 = vpop.f32.mrf.mxu0
    %v3071 = vadd.f32 %v2758, %v3070
    %v3072 = vpop.f32.mrf.mxu0
    %v3073 = vadd.f32 %v2760, %v3072
    %v3074 = vpop.f32.mrf.mxu0
    %v3075 = vadd.f32 %v2762, %v3074
    %3076 = vmatprep.mubr.bf16.mxu0 %v1952
    %3077 = vmatmul.mubr.bf16.gmra.mxu0 %v758
    %v3078 = vpop.f32.mrf.mxu0
    %v3079 = vadd.f32 %v2766, %v3078
    %v3080 = vpop.f32.mrf.mxu0
    %v3081 = vadd.f32 %v2768, %v3080
    %v3082 = vpop.f32.mrf.mxu0
    %v3083 = vadd.f32 %v2770, %v3082
    %v3084 = vpop.f32.mrf.mxu0
    %v3085 = vadd.f32 %v2772, %v3084
    %3086 = vmatprep.mubr.bf16.mxu0 %v1955
    %3087 = vmatmul.mubr.bf16.gmra.mxu0 %v762
    %v3088 = vpop.f32.mrf.mxu0
    %v3089 = vadd.f32 %v2776, %v3088
    %v3090 = vpop.f32.mrf.mxu0
    %v3091 = vadd.f32 %v2778, %v3090
    %v3092 = vpop.f32.mrf.mxu0
    %v3093 = vadd.f32 %v2780, %v3092
    %v3094 = vpop.f32.mrf.mxu0
    %v3095 = vadd.f32 %v2782, %v3094
    %3096 = vmatprep.mubr.bf16.mxu0 %v1958
    %3097 = vmatmul.mubr.bf16.gmra.mxu0 %v766
    %v3098 = vpop.f32.mrf.mxu0
    %v3099 = vadd.f32 %v2786, %v3098
    %v3100 = vpop.f32.mrf.mxu0
    %v3101 = vadd.f32 %v2788, %v3100
    %v3102 = vpop.f32.mrf.mxu0
    %v3103 = vadd.f32 %v2790, %v3102
    %v3104 = vpop.f32.mrf.mxu0
    %v3105 = vadd.f32 %v2792, %v3104
    %3106 = vmatprep.mubr.bf16.mxu0 %v1961
    %3107 = vmatmul.mubr.bf16.gmra.mxu0 %v770
    %v3108 = vpop.f32.mrf.mxu0
    %v3109 = vadd.f32 %v2796, %v3108
    %v3110 = vpop.f32.mrf.mxu0
    %v3111 = vadd.f32 %v2798, %v3110
    %v3112 = vpop.f32.mrf.mxu0
    %v3113 = vadd.f32 %v2800, %v3112
    %v3114 = vpop.f32.mrf.mxu0
    %v3115 = vadd.f32 %v2802, %v3114
    %3116 = vmatprep.mubr.bf16.mxu0 %v1964
    %3117 = vmatmul.mubr.bf16.gmra.mxu0 %v774
    %v3118 = vpop.f32.mrf.mxu0
    %v3119 = vadd.f32 %v2806, %v3118
    %v3120 = vpop.f32.mrf.mxu0
    %v3121 = vadd.f32 %v2808, %v3120
    %v3122 = vpop.f32.mrf.mxu0
    %v3123 = vadd.f32 %v2810, %v3122
    %v3124 = vpop.f32.mrf.mxu0
    %v3125 = vadd.f32 %v2812, %v3124
    %3126 = vmatprep.mubr.bf16.mxu0 %v1967
    %3127 = vmatmul.mubr.bf16.gmra.mxu0 %v778
    %v3128 = vpop.f32.mrf.mxu0
    %v3129 = vadd.f32 %v2816, %v3128
    %v3130 = vpop.f32.mrf.mxu0
    %v3131 = vadd.f32 %v2818, %v3130
    %v3132 = vpop.f32.mrf.mxu0
    %v3133 = vadd.f32 %v2820, %v3132
    %v3134 = vpop.f32.mrf.mxu0
    %v3135 = vadd.f32 %v2822, %v3134
    %3136 = vmatprep.mubr.bf16.mxu0 %v1970
    %3137 = vmatmul.mubr.bf16.gmra.mxu0 %v782
    %v3138 = vpop.f32.mrf.mxu0
    %v3139 = vadd.f32 %v2826, %v3138
    %v3140 = vpop.f32.mrf.mxu0
    %v3141 = vadd.f32 %v2828, %v3140
    %v3142 = vpop.f32.mrf.mxu0
    %v3143 = vadd.f32 %v2830, %v3142
    %v3144 = vpop.f32.mrf.mxu0
    %v3145 = vadd.f32 %v2832, %v3144
    %3146 = vmatprep.mubr.bf16.mxu0 %v1973
    %3147 = vmatmul.mubr.bf16.gmra.mxu0 %v786
    %v3148 = vpop.f32.mrf.mxu0
    %v3149 = vadd.f32 %v2836, %v3148
    %v3150 = vpop.f32.mrf.mxu0
    %v3151 = vadd.f32 %v2838, %v3150
    %v3152 = vpop.f32.mrf.mxu0
    %v3153 = vadd.f32 %v2840, %v3152
    %v3154 = vpop.f32.mrf.mxu0
    %v3155 = vadd.f32 %v2842, %v3154
    %3156 = vmatprep.mubr.bf16.mxu0 %v1976
    %3157 = vmatmul.mubr.bf16.gmra.mxu0 %v790
    %v3158 = vpop.f32.mrf.mxu0
    %v3159 = vadd.f32 %v2846, %v3158
    %v3160 = vpop.f32.mrf.mxu0
    %v3161 = vadd.f32 %v2848, %v3160
    %v3162 = vpop.f32.mrf.mxu0
    %v3163 = vadd.f32 %v2850, %v3162
    %v3164 = vpop.f32.mrf.mxu0
    %v3165 = vadd.f32 %v2852, %v3164
    %3166 = vmatprep.mubr.bf16.mxu0 %v1979
    %3167 = vmatmul.mubr.bf16.gmra.mxu0 %v794
    %v3168 = vpop.f32.mrf.mxu0
    %v3169 = vadd.f32 %v2856, %v3168
    %v3170 = vpop.f32.mrf.mxu0
    %v3171 = vadd.f32 %v2858, %v3170
    %v3172 = vpop.f32.mrf.mxu0
    %v3173 = vadd.f32 %v2860, %v3172
    %v3174 = vpop.f32.mrf.mxu0
    %v3175 = vadd.f32 %v2862, %v3174
    %3176 = vmatprep.mubr.bf16.mxu0 %v1982
    %3177 = vmatmul.mubr.bf16.gmra.mxu0 %v798
    %v3178 = vpop.f32.mrf.mxu0
    %v3179 = vadd.f32 %v2866, %v3178
    %v3180 = vpop.f32.mrf.mxu0
    %v3181 = vadd.f32 %v2868, %v3180
    %v3182 = vpop.f32.mrf.mxu0
    %v3183 = vadd.f32 %v2870, %v3182
    %v3184 = vpop.f32.mrf.mxu0
    %v3185 = vadd.f32 %v2872, %v3184
    %3186 = vmatprep.mubr.bf16.mxu0 %v1985
    %3187 = vmatmul.mubr.bf16.gmra.mxu0 %v802
    %v3188 = vpop.f32.mrf.mxu0
    %v3189 = vadd.f32 %v2876, %v3188
    %v3190 = vpop.f32.mrf.mxu0
    %v3191 = vadd.f32 %v2878, %v3190
    %v3192 = vpop.f32.mrf.mxu0
    %v3193 = vadd.f32 %v2880, %v3192
    %v3194 = vpop.f32.mrf.mxu0
    %v3195 = vadd.f32 %v2882, %v3194
    %3196 = vmatprep.mubr.bf16.mxu0 %v1988
    %3197 = vmatmul.mubr.bf16.gmra.mxu0 %v806
    %v3198 = vpop.f32.mrf.mxu0
    %v3199 = vadd.f32 %v2886, %v3198
    %v3200 = vpop.f32.mrf.mxu0
    %v3201 = vadd.f32 %v2888, %v3200
    %v3202 = vpop.f32.mrf.mxu0
    %v3203 = vadd.f32 %v2890, %v3202
    %v3204 = vpop.f32.mrf.mxu0
    %v3205 = vadd.f32 %v2892, %v3204
    %3206 = vmatprep.mubr.bf16.mxu0 %v1991
    %3207 = vmatmul.mubr.bf16.gmra.mxu0 %v810
    %v3208 = vpop.f32.mrf.mxu0
    %v3209 = vadd.f32 %v2896, %v3208
    %v3210 = vpop.f32.mrf.mxu0
    %v3211 = vadd.f32 %v2898, %v3210
    %v3212 = vpop.f32.mrf.mxu0
    %v3213 = vadd.f32 %v2900, %v3212
    %v3214 = vpop.f32.mrf.mxu0
    %v3215 = vadd.f32 %v2902, %v3214
    %3216 = vmatprep.mubr.bf16.mxu0 %v1994
    %3217 = vmatmul.mubr.bf16.gmra.mxu0 %v814
    %v3218 = vpop.f32.mrf.mxu0
    %v3219 = vadd.f32 %v2906, %v3218
    %v3220 = vpop.f32.mrf.mxu0
    %v3221 = vadd.f32 %v2908, %v3220
    %v3222 = vpop.f32.mrf.mxu0
    %v3223 = vadd.f32 %v2910, %v3222
    %v3224 = vpop.f32.mrf.mxu0
    %v3225 = vadd.f32 %v2912, %v3224
    %3226 = vmatprep.mubr.bf16.mxu0 %v1997
    %3227 = vmatmul.mubr.bf16.gmra.mxu0 %v818
    %v3228 = vpop.f32.mrf.mxu0
    %v3229 = vadd.f32 %v2916, %v3228
    %v3230 = vpop.f32.mrf.mxu0
    %v3231 = vadd.f32 %v2918, %v3230
    %v3232 = vpop.f32.mrf.mxu0
    %v3233 = vadd.f32 %v2920, %v3232
    %v3234 = vpop.f32.mrf.mxu0
    %v3235 = vadd.f32 %v2922, %v3234
    %3236 = vmatprep.mubr.bf16.mxu0 %v2000
    %3237 = vmatmul.mubr.bf16.gmra.mxu0 %v822
    %v3238 = vpop.f32.mrf.mxu0
    %v3239 = vadd.f32 %v2926, %v3238
    %v3240 = vpop.f32.mrf.mxu0
    %v3241 = vadd.f32 %v2928, %v3240
    %v3242 = vpop.f32.mrf.mxu0
    %v3243 = vadd.f32 %v2930, %v3242
    %v3244 = vpop.f32.mrf.mxu0
    %v3245 = vadd.f32 %v2932, %v3244
    %3246 = vmatprep.mubr.bf16.mxu0 %v2003
    %3247 = vmatmul.mubr.bf16.gmra.mxu0 %v826
    %v3248 = vpop.f32.mrf.mxu0
    %v3249 = vadd.f32 %v2936, %v3248
    %v3250 = vpop.f32.mrf.mxu0
    %v3251 = vadd.f32 %v2938, %v3250
    %v3252 = vpop.f32.mrf.mxu0
    %v3253 = vadd.f32 %v2940, %v3252
    %v3254 = vpop.f32.mrf.mxu0
    %v3255 = vadd.f32 %v2942, %v3254
    %3256 = vdwg.mxu0
    %3257 = vmatprep.subr.bf16.mxu0 %v1582
    %3258 = vmatpush1.bf16.msra.mxu0 %v1581
    %3259 = vmatprep.subr.bf16.mxu0 %v1575
    %3260 = vmatpush1.bf16.msra.mxu0 %v1574
    %3261 = vmatprep.subr.bf16.mxu0 %v1568
    %3262 = vmatpush1.bf16.msra.mxu0 %v1567
    %3263 = vmatprep.subr.bf16.mxu0 %v1561
    %3264 = vmatpush1.bf16.msra.mxu0 %v1560
    %3265 = vmatprep.subr.bf16.mxu0 %v1554
    %3266 = vmatpush1.bf16.msra.mxu0 %v1553
    %3267 = vmatprep.subr.bf16.mxu0 %v1547
    %3268 = vmatpush1.bf16.msra.mxu0 %v1546
    %3269 = vmatprep.subr.bf16.mxu0 %v1540
    %3270 = vmatpush1.bf16.msra.mxu0 %v1539
    %3271 = vmatprep.subr.bf16.mxu0 %v1533
    %3272 = vmatpush1.bf16.msra.mxu0 %v1532
    %3273 = vmatprep.subr.bf16.mxu0 %v1638
    %3274 = vmatpush2.bf16.msra.mxu0 %v1637
    %3275 = vmatprep.subr.bf16.mxu0 %v1631
    %3276 = vmatpush2.bf16.msra.mxu0 %v1630
    %3277 = vmatprep.subr.bf16.mxu0 %v1624
    %3278 = vmatpush2.bf16.msra.mxu0 %v1623
    %3279 = vmatprep.subr.bf16.mxu0 %v1617
    %3280 = vmatpush2.bf16.msra.mxu0 %v1616
    %3281 = vmatprep.subr.bf16.mxu0 %v1610
    %3282 = vmatpush2.bf16.msra.mxu0 %v1609
    %3283 = vmatprep.subr.bf16.mxu0 %v1603
    %3284 = vmatpush2.bf16.msra.mxu0 %v1602
    %3285 = vmatprep.subr.bf16.mxu0 %v1596
    %3286 = vmatpush2.bf16.msra.mxu0 %v1595
    %3287 = vmatprep.subr.bf16.mxu0 %v1589
    %3288 = vmatpush2.bf16.msra.mxu0 %v1588
    %3289 = vmatprep.mubr.bf16.mxu0 %v717
    %3290 = vmatmul.mubr.bf16.gmra.mxu0 %v716
    %v3291 = vpop.f32.mrf.mxu0
    %v3292 = vadd.f32 0.0, %v3291
    %v3293 = vpop.f32.mrf.mxu0
    %v3294 = vadd.f32 0.0, %v3293
    %v3295 = vpop.f32.mrf.mxu0
    %v3296 = vadd.f32 0.0, %v3295
    %v3297 = vpop.f32.mrf.mxu0
    %v3298 = vadd.f32 0.0, %v3297
    %3299 = vmatprep.mubr.bf16.mxu0 %v721
    %3300 = vmatmul.mubr.bf16.gmra.mxu0 %v720
    %v3301 = vpop.f32.mrf.mxu0
    %v3302 = vadd.f32 0.0, %v3301
    %v3303 = vpop.f32.mrf.mxu0
    %v3304 = vadd.f32 0.0, %v3303
    %v3305 = vpop.f32.mrf.mxu0
    %v3306 = vadd.f32 0.0, %v3305
    %v3307 = vpop.f32.mrf.mxu0
    %v3308 = vadd.f32 0.0, %v3307
    %3309 = vmatprep.mubr.bf16.mxu0 %v725
    %3310 = vmatmul.mubr.bf16.gmra.mxu0 %v724
    %v3311 = vpop.f32.mrf.mxu0
    %v3312 = vadd.f32 0.0, %v3311
    %v3313 = vpop.f32.mrf.mxu0
    %v3314 = vadd.f32 0.0, %v3313
    %v3315 = vpop.f32.mrf.mxu0
    %v3316 = vadd.f32 0.0, %v3315
    %v3317 = vpop.f32.mrf.mxu0
    %v3318 = vadd.f32 0.0, %v3317
    %3319 = vmatprep.mubr.bf16.mxu0 %v729
    %3320 = vmatmul.mubr.bf16.gmra.mxu0 %v728
    %v3321 = vpop.f32.mrf.mxu0
    %v3322 = vadd.f32 0.0, %v3321
    %v3323 = vpop.f32.mrf.mxu0
    %v3324 = vadd.f32 0.0, %v3323
    %v3325 = vpop.f32.mrf.mxu0
    %v3326 = vadd.f32 0.0, %v3325
    %v3327 = vpop.f32.mrf.mxu0
    %v3328 = vadd.f32 0.0, %v3327
    %3329 = vmatprep.mubr.bf16.mxu0 %v733
    %3330 = vmatmul.mubr.bf16.gmra.mxu0 %v732
    %v3331 = vpop.f32.mrf.mxu0
    %v3332 = vadd.f32 0.0, %v3331
    %v3333 = vpop.f32.mrf.mxu0
    %v3334 = vadd.f32 0.0, %v3333
    %v3335 = vpop.f32.mrf.mxu0
    %v3336 = vadd.f32 0.0, %v3335
    %v3337 = vpop.f32.mrf.mxu0
    %v3338 = vadd.f32 0.0, %v3337
    %3339 = vmatprep.mubr.bf16.mxu0 %v737
    %3340 = vmatmul.mubr.bf16.gmra.mxu0 %v736
    %v3341 = vpop.f32.mrf.mxu0
    %v3342 = vadd.f32 0.0, %v3341
    %v3343 = vpop.f32.mrf.mxu0
    %v3344 = vadd.f32 0.0, %v3343
    %v3345 = vpop.f32.mrf.mxu0
    %v3346 = vadd.f32 0.0, %v3345
    %v3347 = vpop.f32.mrf.mxu0
    %v3348 = vadd.f32 0.0, %v3347
    %3349 = vmatprep.mubr.bf16.mxu0 %v741
    %3350 = vmatmul.mubr.bf16.gmra.mxu0 %v740
    %v3351 = vpop.f32.mrf.mxu0
    %v3352 = vadd.f32 0.0, %v3351
    %v3353 = vpop.f32.mrf.mxu0
    %v3354 = vadd.f32 0.0, %v3353
    %v3355 = vpop.f32.mrf.mxu0
    %v3356 = vadd.f32 0.0, %v3355
    %v3357 = vpop.f32.mrf.mxu0
    %v3358 = vadd.f32 0.0, %v3357
    %3359 = vmatprep.mubr.bf16.mxu0 %v745
    %3360 = vmatmul.mubr.bf16.gmra.mxu0 %v744
    %v3361 = vpop.f32.mrf.mxu0
    %v3362 = vadd.f32 0.0, %v3361
    %v3363 = vpop.f32.mrf.mxu0
    %v3364 = vadd.f32 0.0, %v3363
    %v3365 = vpop.f32.mrf.mxu0
    %v3366 = vadd.f32 0.0, %v3365
    %v3367 = vpop.f32.mrf.mxu0
    %v3368 = vadd.f32 0.0, %v3367
    %3369 = vmatprep.mubr.bf16.mxu0 %v749
    %3370 = vmatmul.mubr.bf16.gmra.mxu0 %v748
    %v3371 = vpop.f32.mrf.mxu0
    %v3372 = vadd.f32 0.0, %v3371
    %v3373 = vpop.f32.mrf.mxu0
    %v3374 = vadd.f32 0.0, %v3373
    %v3375 = vpop.f32.mrf.mxu0
    %v3376 = vadd.f32 0.0, %v3375
    %v3377 = vpop.f32.mrf.mxu0
    %v3378 = vadd.f32 0.0, %v3377
    %3379 = vmatprep.mubr.bf16.mxu0 %v753
    %3380 = vmatmul.mubr.bf16.gmra.mxu0 %v752
    %v3381 = vpop.f32.mrf.mxu0
    %v3382 = vadd.f32 0.0, %v3381
    %v3383 = vpop.f32.mrf.mxu0
    %v3384 = vadd.f32 0.0, %v3383
    %v3385 = vpop.f32.mrf.mxu0
    %v3386 = vadd.f32 0.0, %v3385
    %v3387 = vpop.f32.mrf.mxu0
    %v3388 = vadd.f32 0.0, %v3387
    %3389 = vmatprep.mubr.bf16.mxu0 %v757
    %3390 = vmatmul.mubr.bf16.gmra.mxu0 %v756
    %v3391 = vpop.f32.mrf.mxu0
    %v3392 = vadd.f32 0.0, %v3391
    %v3393 = vpop.f32.mrf.mxu0
    %v3394 = vadd.f32 0.0, %v3393
    %v3395 = vpop.f32.mrf.mxu0
    %v3396 = vadd.f32 0.0, %v3395
    %v3397 = vpop.f32.mrf.mxu0
    %v3398 = vadd.f32 0.0, %v3397
    %3399 = vmatprep.mubr.bf16.mxu0 %v761
    %3400 = vmatmul.mubr.bf16.gmra.mxu0 %v760
    %v3401 = vpop.f32.mrf.mxu0
    %v3402 = vadd.f32 0.0, %v3401
    %v3403 = vpop.f32.mrf.mxu0
    %v3404 = vadd.f32 0.0, %v3403
    %v3405 = vpop.f32.mrf.mxu0
    %v3406 = vadd.f32 0.0, %v3405
    %v3407 = vpop.f32.mrf.mxu0
    %v3408 = vadd.f32 0.0, %v3407
    %3409 = vmatprep.mubr.bf16.mxu0 %v765
    %3410 = vmatmul.mubr.bf16.gmra.mxu0 %v764
    %v3411 = vpop.f32.mrf.mxu0
    %v3412 = vadd.f32 0.0, %v3411
    %v3413 = vpop.f32.mrf.mxu0
    %v3414 = vadd.f32 0.0, %v3413
    %v3415 = vpop.f32.mrf.mxu0
    %v3416 = vadd.f32 0.0, %v3415
    %v3417 = vpop.f32.mrf.mxu0
    %v3418 = vadd.f32 0.0, %v3417
    %3419 = vmatprep.mubr.bf16.mxu0 %v769
    %3420 = vmatmul.mubr.bf16.gmra.mxu0 %v768
    %v3421 = vpop.f32.mrf.mxu0
    %v3422 = vadd.f32 0.0, %v3421
    %v3423 = vpop.f32.mrf.mxu0
    %v3424 = vadd.f32 0.0, %v3423
    %v3425 = vpop.f32.mrf.mxu0
    %v3426 = vadd.f32 0.0, %v3425
    %v3427 = vpop.f32.mrf.mxu0
    %v3428 = vadd.f32 0.0, %v3427
    %3429 = vmatprep.mubr.bf16.mxu0 %v773
    %3430 = vmatmul.mubr.bf16.gmra.mxu0 %v772
    %v3431 = vpop.f32.mrf.mxu0
    %v3432 = vadd.f32 0.0, %v3431
    %v3433 = vpop.f32.mrf.mxu0
    %v3434 = vadd.f32 0.0, %v3433
    %v3435 = vpop.f32.mrf.mxu0
    %v3436 = vadd.f32 0.0, %v3435
    %v3437 = vpop.f32.mrf.mxu0
    %v3438 = vadd.f32 0.0, %v3437
    %3439 = vmatprep.mubr.bf16.mxu0 %v777
    %3440 = vmatmul.mubr.bf16.gmra.mxu0 %v776
    %v3441 = vpop.f32.mrf.mxu0
    %v3442 = vadd.f32 0.0, %v3441
    %v3443 = vpop.f32.mrf.mxu0
    %v3444 = vadd.f32 0.0, %v3443
    %v3445 = vpop.f32.mrf.mxu0
    %v3446 = vadd.f32 0.0, %v3445
    %v3447 = vpop.f32.mrf.mxu0
    %v3448 = vadd.f32 0.0, %v3447
    %3449 = vmatprep.mubr.bf16.mxu0 %v781
    %3450 = vmatmul.mubr.bf16.gmra.mxu0 %v780
    %v3451 = vpop.f32.mrf.mxu0
    %v3452 = vadd.f32 0.0, %v3451
    %v3453 = vpop.f32.mrf.mxu0
    %v3454 = vadd.f32 0.0, %v3453
    %v3455 = vpop.f32.mrf.mxu0
    %v3456 = vadd.f32 0.0, %v3455
    %v3457 = vpop.f32.mrf.mxu0
    %v3458 = vadd.f32 0.0, %v3457
    %3459 = vmatprep.mubr.bf16.mxu0 %v785
    %3460 = vmatmul.mubr.bf16.gmra.mxu0 %v784
    %v3461 = vpop.f32.mrf.mxu0
    %v3462 = vadd.f32 0.0, %v3461
    %v3463 = vpop.f32.mrf.mxu0
    %v3464 = vadd.f32 0.0, %v3463
    %v3465 = vpop.f32.mrf.mxu0
    %v3466 = vadd.f32 0.0, %v3465
    %v3467 = vpop.f32.mrf.mxu0
    %v3468 = vadd.f32 0.0, %v3467
    %3469 = vmatprep.mubr.bf16.mxu0 %v789
    %3470 = vmatmul.mubr.bf16.gmra.mxu0 %v788
    %v3471 = vpop.f32.mrf.mxu0
    %v3472 = vadd.f32 0.0, %v3471
    %v3473 = vpop.f32.mrf.mxu0
    %v3474 = vadd.f32 0.0, %v3473
    %v3475 = vpop.f32.mrf.mxu0
    %v3476 = vadd.f32 0.0, %v3475
    %v3477 = vpop.f32.mrf.mxu0
    %v3478 = vadd.f32 0.0, %v3477
    %3479 = vmatprep.mubr.bf16.mxu0 %v793
    %3480 = vmatmul.mubr.bf16.gmra.mxu0 %v792
    %v3481 = vpop.f32.mrf.mxu0
    %v3482 = vadd.f32 0.0, %v3481
    %v3483 = vpop.f32.mrf.mxu0
    %v3484 = vadd.f32 0.0, %v3483
    %v3485 = vpop.f32.mrf.mxu0
    %v3486 = vadd.f32 0.0, %v3485
    %v3487 = vpop.f32.mrf.mxu0
    %v3488 = vadd.f32 0.0, %v3487
    %3489 = vmatprep.mubr.bf16.mxu0 %v797
    %3490 = vmatmul.mubr.bf16.gmra.mxu0 %v796
    %v3491 = vpop.f32.mrf.mxu0
    %v3492 = vadd.f32 0.0, %v3491
    %v3493 = vpop.f32.mrf.mxu0
    %v3494 = vadd.f32 0.0, %v3493
    %v3495 = vpop.f32.mrf.mxu0
    %v3496 = vadd.f32 0.0, %v3495
    %v3497 = vpop.f32.mrf.mxu0
    %v3498 = vadd.f32 0.0, %v3497
    %3499 = vmatprep.mubr.bf16.mxu0 %v801
    %3500 = vmatmul.mubr.bf16.gmra.mxu0 %v800
    %v3501 = vpop.f32.mrf.mxu0
    %v3502 = vadd.f32 0.0, %v3501
    %v3503 = vpop.f32.mrf.mxu0
    %v3504 = vadd.f32 0.0, %v3503
    %v3505 = vpop.f32.mrf.mxu0
    %v3506 = vadd.f32 0.0, %v3505
    %v3507 = vpop.f32.mrf.mxu0
    %v3508 = vadd.f32 0.0, %v3507
    %3509 = vmatprep.mubr.bf16.mxu0 %v805
    %3510 = vmatmul.mubr.bf16.gmra.mxu0 %v804
    %v3511 = vpop.f32.mrf.mxu0
    %v3512 = vadd.f32 0.0, %v3511
    %v3513 = vpop.f32.mrf.mxu0
    %v3514 = vadd.f32 0.0, %v3513
    %v3515 = vpop.f32.mrf.mxu0
    %v3516 = vadd.f32 0.0, %v3515
    %v3517 = vpop.f32.mrf.mxu0
    %v3518 = vadd.f32 0.0, %v3517
    %3519 = vmatprep.mubr.bf16.mxu0 %v809
    %3520 = vmatmul.mubr.bf16.gmra.mxu0 %v808
    %v3521 = vpop.f32.mrf.mxu0
    %v3522 = vadd.f32 0.0, %v3521
    %v3523 = vpop.f32.mrf.mxu0
    %v3524 = vadd.f32 0.0, %v3523
    %v3525 = vpop.f32.mrf.mxu0
    %v3526 = vadd.f32 0.0, %v3525
    %v3527 = vpop.f32.mrf.mxu0
    %v3528 = vadd.f32 0.0, %v3527
    %3529 = vmatprep.mubr.bf16.mxu0 %v813
    %3530 = vmatmul.mubr.bf16.gmra.mxu0 %v812
    %v3531 = vpop.f32.mrf.mxu0
    %v3532 = vadd.f32 0.0, %v3531
    %v3533 = vpop.f32.mrf.mxu0
    %v3534 = vadd.f32 0.0, %v3533
    %v3535 = vpop.f32.mrf.mxu0
    %v3536 = vadd.f32 0.0, %v3535
    %v3537 = vpop.f32.mrf.mxu0
    %v3538 = vadd.f32 0.0, %v3537
    %3539 = vmatprep.mubr.bf16.mxu0 %v817
    %3540 = vmatmul.mubr.bf16.gmra.mxu0 %v816
    %v3541 = vpop.f32.mrf.mxu0
    %v3542 = vadd.f32 0.0, %v3541
    %v3543 = vpop.f32.mrf.mxu0
    %v3544 = vadd.f32 0.0, %v3543
    %v3545 = vpop.f32.mrf.mxu0
    %v3546 = vadd.f32 0.0, %v3545
    %v3547 = vpop.f32.mrf.mxu0
    %v3548 = vadd.f32 0.0, %v3547
    %3549 = vmatprep.mubr.bf16.mxu0 %v821
    %3550 = vmatmul.mubr.bf16.gmra.mxu0 %v820
    %v3551 = vpop.f32.mrf.mxu0
    %v3552 = vadd.f32 0.0, %v3551
    %v3553 = vpop.f32.mrf.mxu0
    %v3554 = vadd.f32 0.0, %v3553
    %v3555 = vpop.f32.mrf.mxu0
    %v3556 = vadd.f32 0.0, %v3555
    %v3557 = vpop.f32.mrf.mxu0
    %v3558 = vadd.f32 0.0, %v3557
    %3559 = vmatprep.mubr.bf16.mxu0 %v825
    %3560 = vmatmul.mubr.bf16.gmra.mxu0 %v824
    %v3561 = vpop.f32.mrf.mxu0
    %v3562 = vadd.f32 0.0, %v3561
    %v3563 = vpop.f32.mrf.mxu0
    %v3564 = vadd.f32 0.0, %v3563
    %v3565 = vpop.f32.mrf.mxu0
    %v3566 = vadd.f32 0.0, %v3565
    %v3567 = vpop.f32.mrf.mxu0
    %v3568 = vadd.f32 0.0, %v3567
    %3569 = vdwg.mxu0
    %3570 = vmatprep.subr.bf16.mxu0 %v1694
    %3571 = vmatpush1.bf16.msra.mxu0 %v1693
    %3572 = vmatprep.subr.bf16.mxu0 %v1687
    %3573 = vmatpush1.bf16.msra.mxu0 %v1686
    %3574 = vmatprep.subr.bf16.mxu0 %v1680
    %3575 = vmatpush1.bf16.msra.mxu0 %v1679
    %3576 = vmatprep.subr.bf16.mxu0 %v1673
    %3577 = vmatpush1.bf16.msra.mxu0 %v1672
    %3578 = vmatprep.subr.bf16.mxu0 %v1666
    %3579 = vmatpush1.bf16.msra.mxu0 %v1665
    %3580 = vmatprep.subr.bf16.mxu0 %v1659
    %3581 = vmatpush1.bf16.msra.mxu0 %v1658
    %3582 = vmatprep.subr.bf16.mxu0 %v1652
    %3583 = vmatpush1.bf16.msra.mxu0 %v1651
    %3584 = vmatprep.subr.bf16.mxu0 %v1645
    %3585 = vmatpush1.bf16.msra.mxu0 %v1644
    %3586 = vmatprep.subr.bf16.mxu0 0
    %3587 = vmatpush2.bf16.msra.mxu0 0
    %3588 = vmatprep.subr.bf16.mxu0 0
    %3589 = vmatpush2.bf16.msra.mxu0 0
    %3590 = vmatprep.subr.bf16.mxu0 0
    %3591 = vmatpush2.bf16.msra.mxu0 0
    %3592 = vmatprep.subr.bf16.mxu0 0
    %3593 = vmatpush2.bf16.msra.mxu0 0
    %3594 = vmatprep.subr.bf16.mxu0 %v1722
    %3595 = vmatpush2.bf16.msra.mxu0 %v1721
    %3596 = vmatprep.subr.bf16.mxu0 %v1715
    %3597 = vmatpush2.bf16.msra.mxu0 %v1714
    %3598 = vmatprep.subr.bf16.mxu0 %v1708
    %3599 = vmatpush2.bf16.msra.mxu0 %v1707
    %3600 = vmatprep.subr.bf16.mxu0 %v1701
    %3601 = vmatpush2.bf16.msra.mxu0 %v1700
    %3602 = vmatprep.mubr.bf16.mxu0 %v1922
    %3603 = vmatmul.mubr.bf16.gmra.mxu0 %v718
    %v3604 = vpop.f32.mrf.mxu0
    %v3605 = vadd.f32 %v3292, %v3604
    %v3606 = vpop.f32.mrf.mxu0
    %v3607 = vadd.f32 %v3294, %v3606
    %v3608 = vpop.f32.mrf.mxu0
    %v3609 = vadd.f32 %v3296, %v3608
    %v3610 = vpop.f32.mrf.mxu0
    %v3611 = vadd.f32 %v3298, %v3610
    %3612 = vmatprep.mubr.bf16.mxu0 %v1925
    %3613 = vmatmul.mubr.bf16.gmra.mxu0 %v722
    %v3614 = vpop.f32.mrf.mxu0
    %v3615 = vadd.f32 %v3302, %v3614
    %v3616 = vpop.f32.mrf.mxu0
    %v3617 = vadd.f32 %v3304, %v3616
    %v3618 = vpop.f32.mrf.mxu0
    %v3619 = vadd.f32 %v3306, %v3618
    %v3620 = vpop.f32.mrf.mxu0
    %v3621 = vadd.f32 %v3308, %v3620
    %3622 = vmatprep.mubr.bf16.mxu0 %v1928
    %3623 = vmatmul.mubr.bf16.gmra.mxu0 %v726
    %v3624 = vpop.f32.mrf.mxu0
    %v3625 = vadd.f32 %v3312, %v3624
    %v3626 = vpop.f32.mrf.mxu0
    %v3627 = vadd.f32 %v3314, %v3626
    %v3628 = vpop.f32.mrf.mxu0
    %v3629 = vadd.f32 %v3316, %v3628
    %v3630 = vpop.f32.mrf.mxu0
    %v3631 = vadd.f32 %v3318, %v3630
    %3632 = vmatprep.mubr.bf16.mxu0 %v1931
    %3633 = vmatmul.mubr.bf16.gmra.mxu0 %v730
    %v3634 = vpop.f32.mrf.mxu0
    %v3635 = vadd.f32 %v3322, %v3634
    %v3636 = vpop.f32.mrf.mxu0
    %v3637 = vadd.f32 %v3324, %v3636
    %v3638 = vpop.f32.mrf.mxu0
    %v3639 = vadd.f32 %v3326, %v3638
    %v3640 = vpop.f32.mrf.mxu0
    %v3641 = vadd.f32 %v3328, %v3640
    %3642 = vmatprep.mubr.bf16.mxu0 %v1934
    %3643 = vmatmul.mubr.bf16.gmra.mxu0 %v734
    %v3644 = vpop.f32.mrf.mxu0
    %v3645 = vadd.f32 %v3332, %v3644
    %v3646 = vpop.f32.mrf.mxu0
    %v3647 = vadd.f32 %v3334, %v3646
    %v3648 = vpop.f32.mrf.mxu0
    %v3649 = vadd.f32 %v3336, %v3648
    %v3650 = vpop.f32.mrf.mxu0
    %v3651 = vadd.f32 %v3338, %v3650
    %3652 = vmatprep.mubr.bf16.mxu0 %v1937
    %3653 = vmatmul.mubr.bf16.gmra.mxu0 %v738
    %v3654 = vpop.f32.mrf.mxu0
    %v3655 = vadd.f32 %v3342, %v3654
    %v3656 = vpop.f32.mrf.mxu0
    %v3657 = vadd.f32 %v3344, %v3656
    %v3658 = vpop.f32.mrf.mxu0
    %v3659 = vadd.f32 %v3346, %v3658
    %v3660 = vpop.f32.mrf.mxu0
    %v3661 = vadd.f32 %v3348, %v3660
    %3662 = vmatprep.mubr.bf16.mxu0 %v1940
    %3663 = vmatmul.mubr.bf16.gmra.mxu0 %v742
    %v3664 = vpop.f32.mrf.mxu0
    %v3665 = vadd.f32 %v3352, %v3664
    %v3666 = vpop.f32.mrf.mxu0
    %v3667 = vadd.f32 %v3354, %v3666
    %v3668 = vpop.f32.mrf.mxu0
    %v3669 = vadd.f32 %v3356, %v3668
    %v3670 = vpop.f32.mrf.mxu0
    %v3671 = vadd.f32 %v3358, %v3670
    %3672 = vmatprep.mubr.bf16.mxu0 %v1943
    %3673 = vmatmul.mubr.bf16.gmra.mxu0 %v746
    %v3674 = vpop.f32.mrf.mxu0
    %v3675 = vadd.f32 %v3362, %v3674
    %v3676 = vpop.f32.mrf.mxu0
    %v3677 = vadd.f32 %v3364, %v3676
    %v3678 = vpop.f32.mrf.mxu0
    %v3679 = vadd.f32 %v3366, %v3678
    %v3680 = vpop.f32.mrf.mxu0
    %v3681 = vadd.f32 %v3368, %v3680
    %3682 = vmatprep.mubr.bf16.mxu0 %v1946
    %3683 = vmatmul.mubr.bf16.gmra.mxu0 %v750
    %v3684 = vpop.f32.mrf.mxu0
    %v3685 = vadd.f32 %v3372, %v3684
    %v3686 = vpop.f32.mrf.mxu0
    %v3687 = vadd.f32 %v3374, %v3686
    %v3688 = vpop.f32.mrf.mxu0
    %v3689 = vadd.f32 %v3376, %v3688
    %v3690 = vpop.f32.mrf.mxu0
    %v3691 = vadd.f32 %v3378, %v3690
    %3692 = vmatprep.mubr.bf16.mxu0 %v1949
    %3693 = vmatmul.mubr.bf16.gmra.mxu0 %v754
    %v3694 = vpop.f32.mrf.mxu0
    %v3695 = vadd.f32 %v3382, %v3694
    %v3696 = vpop.f32.mrf.mxu0
    %v3697 = vadd.f32 %v3384, %v3696
    %v3698 = vpop.f32.mrf.mxu0
    %v3699 = vadd.f32 %v3386, %v3698
    %v3700 = vpop.f32.mrf.mxu0
    %v3701 = vadd.f32 %v3388, %v3700
    %3702 = vmatprep.mubr.bf16.mxu0 %v1952
    %3703 = vmatmul.mubr.bf16.gmra.mxu0 %v758
    %v3704 = vpop.f32.mrf.mxu0
    %v3705 = vadd.f32 %v3392, %v3704
    %v3706 = vpop.f32.mrf.mxu0
    %v3707 = vadd.f32 %v3394, %v3706
    %v3708 = vpop.f32.mrf.mxu0
    %v3709 = vadd.f32 %v3396, %v3708
    %v3710 = vpop.f32.mrf.mxu0
    %v3711 = vadd.f32 %v3398, %v3710
    %3712 = vmatprep.mubr.bf16.mxu0 %v1955
    %3713 = vmatmul.mubr.bf16.gmra.mxu0 %v762
    %v3714 = vpop.f32.mrf.mxu0
    %v3715 = vadd.f32 %v3402, %v3714
    %v3716 = vpop.f32.mrf.mxu0
    %v3717 = vadd.f32 %v3404, %v3716
    %v3718 = vpop.f32.mrf.mxu0
    %v3719 = vadd.f32 %v3406, %v3718
    %v3720 = vpop.f32.mrf.mxu0
    %v3721 = vadd.f32 %v3408, %v3720
    %3722 = vmatprep.mubr.bf16.mxu0 %v1958
    %3723 = vmatmul.mubr.bf16.gmra.mxu0 %v766
    %v3724 = vpop.f32.mrf.mxu0
    %v3725 = vadd.f32 %v3412, %v3724
    %v3726 = vpop.f32.mrf.mxu0
    %v3727 = vadd.f32 %v3414, %v3726
    %v3728 = vpop.f32.mrf.mxu0
    %v3729 = vadd.f32 %v3416, %v3728
    %v3730 = vpop.f32.mrf.mxu0
    %v3731 = vadd.f32 %v3418, %v3730
    %3732 = vmatprep.mubr.bf16.mxu0 %v1961
    %3733 = vmatmul.mubr.bf16.gmra.mxu0 %v770
    %v3734 = vpop.f32.mrf.mxu0
    %v3735 = vadd.f32 %v3422, %v3734
    %v3736 = vpop.f32.mrf.mxu0
    %v3737 = vadd.f32 %v3424, %v3736
    %v3738 = vpop.f32.mrf.mxu0
    %v3739 = vadd.f32 %v3426, %v3738
    %v3740 = vpop.f32.mrf.mxu0
    %v3741 = vadd.f32 %v3428, %v3740
    %3742 = vmatprep.mubr.bf16.mxu0 %v1964
    %3743 = vmatmul.mubr.bf16.gmra.mxu0 %v774
    %v3744 = vpop.f32.mrf.mxu0
    %v3745 = vadd.f32 %v3432, %v3744
    %v3746 = vpop.f32.mrf.mxu0
    %v3747 = vadd.f32 %v3434, %v3746
    %v3748 = vpop.f32.mrf.mxu0
    %v3749 = vadd.f32 %v3436, %v3748
    %v3750 = vpop.f32.mrf.mxu0
    %v3751 = vadd.f32 %v3438, %v3750
    %3752 = vmatprep.mubr.bf16.mxu0 %v1967
    %3753 = vmatmul.mubr.bf16.gmra.mxu0 %v778
    %v3754 = vpop.f32.mrf.mxu0
    %v3755 = vadd.f32 %v3442, %v3754
    %v3756 = vpop.f32.mrf.mxu0
    %v3757 = vadd.f32 %v3444, %v3756
    %v3758 = vpop.f32.mrf.mxu0
    %v3759 = vadd.f32 %v3446, %v3758
    %v3760 = vpop.f32.mrf.mxu0
    %v3761 = vadd.f32 %v3448, %v3760
    %3762 = vmatprep.mubr.bf16.mxu0 %v1970
    %3763 = vmatmul.mubr.bf16.gmra.mxu0 %v782
    %v3764 = vpop.f32.mrf.mxu0
    %v3765 = vadd.f32 %v3452, %v3764
    %v3766 = vpop.f32.mrf.mxu0
    %v3767 = vadd.f32 %v3454, %v3766
    %v3768 = vpop.f32.mrf.mxu0
    %v3769 = vadd.f32 %v3456, %v3768
    %v3770 = vpop.f32.mrf.mxu0
    %v3771 = vadd.f32 %v3458, %v3770
    %3772 = vmatprep.mubr.bf16.mxu0 %v1973
    %3773 = vmatmul.mubr.bf16.gmra.mxu0 %v786
    %v3774 = vpop.f32.mrf.mxu0
    %v3775 = vadd.f32 %v3462, %v3774
    %v3776 = vpop.f32.mrf.mxu0
    %v3777 = vadd.f32 %v3464, %v3776
    %v3778 = vpop.f32.mrf.mxu0
    %v3779 = vadd.f32 %v3466, %v3778
    %v3780 = vpop.f32.mrf.mxu0
    %v3781 = vadd.f32 %v3468, %v3780
    %3782 = vmatprep.mubr.bf16.mxu0 %v1976
    %3783 = vmatmul.mubr.bf16.gmra.mxu0 %v790
    %v3784 = vpop.f32.mrf.mxu0
    %v3785 = vadd.f32 %v3472, %v3784
    %v3786 = vpop.f32.mrf.mxu0
    %v3787 = vadd.f32 %v3474, %v3786
    %v3788 = vpop.f32.mrf.mxu0
    %v3789 = vadd.f32 %v3476, %v3788
    %v3790 = vpop.f32.mrf.mxu0
    %v3791 = vadd.f32 %v3478, %v3790
    %3792 = vmatprep.mubr.bf16.mxu0 %v1979
    %3793 = vmatmul.mubr.bf16.gmra.mxu0 %v794
    %v3794 = vpop.f32.mrf.mxu0
    %v3795 = vadd.f32 %v3482, %v3794
    %v3796 = vpop.f32.mrf.mxu0
    %v3797 = vadd.f32 %v3484, %v3796
    %v3798 = vpop.f32.mrf.mxu0
    %v3799 = vadd.f32 %v3486, %v3798
    %v3800 = vpop.f32.mrf.mxu0
    %v3801 = vadd.f32 %v3488, %v3800
    %3802 = vmatprep.mubr.bf16.mxu0 %v1982
    %3803 = vmatmul.mubr.bf16.gmra.mxu0 %v798
    %v3804 = vpop.f32.mrf.mxu0
    %v3805 = vadd.f32 %v3492, %v3804
    %v3806 = vpop.f32.mrf.mxu0
    %v3807 = vadd.f32 %v3494, %v3806
    %v3808 = vpop.f32.mrf.mxu0
    %v3809 = vadd.f32 %v3496, %v3808
    %v3810 = vpop.f32.mrf.mxu0
    %v3811 = vadd.f32 %v3498, %v3810
    %3812 = vmatprep.mubr.bf16.mxu0 %v1985
    %3813 = vmatmul.mubr.bf16.gmra.mxu0 %v802
    %v3814 = vpop.f32.mrf.mxu0
    %v3815 = vadd.f32 %v3502, %v3814
    %v3816 = vpop.f32.mrf.mxu0
    %v3817 = vadd.f32 %v3504, %v3816
    %v3818 = vpop.f32.mrf.mxu0
    %v3819 = vadd.f32 %v3506, %v3818
    %v3820 = vpop.f32.mrf.mxu0
    %v3821 = vadd.f32 %v3508, %v3820
    %3822 = vmatprep.mubr.bf16.mxu0 %v1988
    %3823 = vmatmul.mubr.bf16.gmra.mxu0 %v806
    %v3824 = vpop.f32.mrf.mxu0
    %v3825 = vadd.f32 %v3512, %v3824
    %v3826 = vpop.f32.mrf.mxu0
    %v3827 = vadd.f32 %v3514, %v3826
    %v3828 = vpop.f32.mrf.mxu0
    %v3829 = vadd.f32 %v3516, %v3828
    %v3830 = vpop.f32.mrf.mxu0
    %v3831 = vadd.f32 %v3518, %v3830
    %3832 = vmatprep.mubr.bf16.mxu0 %v1991
    %3833 = vmatmul.mubr.bf16.gmra.mxu0 %v810
    %v3834 = vpop.f32.mrf.mxu0
    %v3835 = vadd.f32 %v3522, %v3834
    %v3836 = vpop.f32.mrf.mxu0
    %v3837 = vadd.f32 %v3524, %v3836
    %v3838 = vpop.f32.mrf.mxu0
    %v3839 = vadd.f32 %v3526, %v3838
    %v3840 = vpop.f32.mrf.mxu0
    %v3841 = vadd.f32 %v3528, %v3840
    %3842 = vmatprep.mubr.bf16.mxu0 %v1994
    %3843 = vmatmul.mubr.bf16.gmra.mxu0 %v814
    %v3844 = vpop.f32.mrf.mxu0
    %v3845 = vadd.f32 %v3532, %v3844
    %v3846 = vpop.f32.mrf.mxu0
    %v3847 = vadd.f32 %v3534, %v3846
    %v3848 = vpop.f32.mrf.mxu0
    %v3849 = vadd.f32 %v3536, %v3848
    %v3850 = vpop.f32.mrf.mxu0
    %v3851 = vadd.f32 %v3538, %v3850
    %3852 = vmatprep.mubr.bf16.mxu0 %v1997
    %3853 = vmatmul.mubr.bf16.gmra.mxu0 %v818
    %v3854 = vpop.f32.mrf.mxu0
    %v3855 = vadd.f32 %v3542, %v3854
    %v3856 = vpop.f32.mrf.mxu0
    %v3857 = vadd.f32 %v3544, %v3856
    %v3858 = vpop.f32.mrf.mxu0
    %v3859 = vadd.f32 %v3546, %v3858
    %v3860 = vpop.f32.mrf.mxu0
    %v3861 = vadd.f32 %v3548, %v3860
    %3862 = vmatprep.mubr.bf16.mxu0 %v2000
    %3863 = vmatmul.mubr.bf16.gmra.mxu0 %v822
    %v3864 = vpop.f32.mrf.mxu0
    %v3865 = vadd.f32 %v3552, %v3864
    %v3866 = vpop.f32.mrf.mxu0
    %v3867 = vadd.f32 %v3554, %v3866
    %v3868 = vpop.f32.mrf.mxu0
    %v3869 = vadd.f32 %v3556, %v3868
    %v3870 = vpop.f32.mrf.mxu0
    %v3871 = vadd.f32 %v3558, %v3870
    %3872 = vmatprep.mubr.bf16.mxu0 %v2003
    %3873 = vmatmul.mubr.bf16.gmra.mxu0 %v826
    %v3874 = vpop.f32.mrf.mxu0
    %v3875 = vadd.f32 %v3562, %v3874
    %v3876 = vpop.f32.mrf.mxu0
    %v3877 = vadd.f32 %v3564, %v3876
    %v3878 = vpop.f32.mrf.mxu0
    %v3879 = vadd.f32 %v3566, %v3878
    %v3880 = vpop.f32.mrf.mxu0
    %v3881 = vadd.f32 %v3568, %v3880
    %3882 = vdwg.mxu0
    %3883 = vmatprep.subr.bf16.mxu0 0
    %3884 = vmatpush1.bf16.msra.mxu0 %v1583
    %3885 = vmatprep.subr.bf16.mxu0 0
    %3886 = vmatpush1.bf16.msra.mxu0 %v1576
    %3887 = vmatprep.subr.bf16.mxu0 0
    %3888 = vmatpush1.bf16.msra.mxu0 %v1569
    %3889 = vmatprep.subr.bf16.mxu0 0
    %3890 = vmatpush1.bf16.msra.mxu0 %v1562
    %3891 = vmatprep.subr.bf16.mxu0 0
    %3892 = vmatpush1.bf16.msra.mxu0 %v1555
    %3893 = vmatprep.subr.bf16.mxu0 0
    %3894 = vmatpush1.bf16.msra.mxu0 %v1548
    %3895 = vmatprep.subr.bf16.mxu0 0
    %3896 = vmatpush1.bf16.msra.mxu0 %v1541
    %3897 = vmatprep.subr.bf16.mxu0 0
    %3898 = vmatpush1.bf16.msra.mxu0 %v1534
    %3899 = vmatprep.subr.bf16.mxu0 0
    %3900 = vmatpush2.bf16.msra.mxu0 %v1639
    %3901 = vmatprep.subr.bf16.mxu0 0
    %3902 = vmatpush2.bf16.msra.mxu0 %v1632
    %3903 = vmatprep.subr.bf16.mxu0 0
    %3904 = vmatpush2.bf16.msra.mxu0 %v1625
    %3905 = vmatprep.subr.bf16.mxu0 0
    %3906 = vmatpush2.bf16.msra.mxu0 %v1618
    %3907 = vmatprep.subr.bf16.mxu0 0
    %3908 = vmatpush2.bf16.msra.mxu0 %v1611
    %3909 = vmatprep.subr.bf16.mxu0 0
    %3910 = vmatpush2.bf16.msra.mxu0 %v1604
    %3911 = vmatprep.subr.bf16.mxu0 0
    %3912 = vmatpush2.bf16.msra.mxu0 %v1597
    %3913 = vmatprep.subr.bf16.mxu0 0
    %3914 = vmatpush2.bf16.msra.mxu0 %v1590
    %3915 = vmatprep.mubr.bf16.mxu0 %v717
    %3916 = vmatmul.mubr.bf16.gmra.mxu0 %v716
    %v3917 = vpop.f32.mrf.mxu0
    %v3918 = vadd.f32 0.0, %v3917
    %v3919 = vpop.f32.mrf.mxu0
    %v3920 = vpop.f32.mrf.mxu0
    %v3921 = vadd.f32 0.0, %v3920
    %v3922 = vpop.f32.mrf.mxu0
    %3923 = vmatprep.mubr.bf16.mxu0 %v721
    %3924 = vmatmul.mubr.bf16.gmra.mxu0 %v720
    %v3925 = vpop.f32.mrf.mxu0
    %v3926 = vadd.f32 0.0, %v3925
    %v3927 = vpop.f32.mrf.mxu0
    %v3928 = vpop.f32.mrf.mxu0
    %v3929 = vadd.f32 0.0, %v3928
    %v3930 = vpop.f32.mrf.mxu0
    %3931 = vmatprep.mubr.bf16.mxu0 %v725
    %3932 = vmatmul.mubr.bf16.gmra.mxu0 %v724
    %v3933 = vpop.f32.mrf.mxu0
    %v3934 = vadd.f32 0.0, %v3933
    %v3935 = vpop.f32.mrf.mxu0
    %v3936 = vpop.f32.mrf.mxu0
    %v3937 = vadd.f32 0.0, %v3936
    %v3938 = vpop.f32.mrf.mxu0
    %3939 = vmatprep.mubr.bf16.mxu0 %v729
    %3940 = vmatmul.mubr.bf16.gmra.mxu0 %v728
    %v3941 = vpop.f32.mrf.mxu0
    %v3942 = vadd.f32 0.0, %v3941
    %v3943 = vpop.f32.mrf.mxu0
    %v3944 = vpop.f32.mrf.mxu0
    %v3945 = vadd.f32 0.0, %v3944
    %v3946 = vpop.f32.mrf.mxu0
    %3947 = vmatprep.mubr.bf16.mxu0 %v733
    %3948 = vmatmul.mubr.bf16.gmra.mxu0 %v732
    %v3949 = vpop.f32.mrf.mxu0
    %v3950 = vadd.f32 0.0, %v3949
    %v3951 = vpop.f32.mrf.mxu0
    %v3952 = vpop.f32.mrf.mxu0
    %v3953 = vadd.f32 0.0, %v3952
    %v3954 = vpop.f32.mrf.mxu0
    %3955 = vmatprep.mubr.bf16.mxu0 %v737
    %3956 = vmatmul.mubr.bf16.gmra.mxu0 %v736
    %v3957 = vpop.f32.mrf.mxu0
    %v3958 = vadd.f32 0.0, %v3957
    %v3959 = vpop.f32.mrf.mxu0
    %v3960 = vpop.f32.mrf.mxu0
    %v3961 = vadd.f32 0.0, %v3960
    %v3962 = vpop.f32.mrf.mxu0
    %3963 = vmatprep.mubr.bf16.mxu0 %v741
    %3964 = vmatmul.mubr.bf16.gmra.mxu0 %v740
    %v3965 = vpop.f32.mrf.mxu0
    %v3966 = vadd.f32 0.0, %v3965
    %v3967 = vpop.f32.mrf.mxu0
    %v3968 = vpop.f32.mrf.mxu0
    %v3969 = vadd.f32 0.0, %v3968
    %v3970 = vpop.f32.mrf.mxu0
    %3971 = vmatprep.mubr.bf16.mxu0 %v745
    %3972 = vmatmul.mubr.bf16.gmra.mxu0 %v744
    %v3973 = vpop.f32.mrf.mxu0
    %v3974 = vadd.f32 0.0, %v3973
    %v3975 = vpop.f32.mrf.mxu0
    %v3976 = vpop.f32.mrf.mxu0
    %v3977 = vadd.f32 0.0, %v3976
    %v3978 = vpop.f32.mrf.mxu0
    %3979 = vmatprep.mubr.bf16.mxu0 %v749
    %3980 = vmatmul.mubr.bf16.gmra.mxu0 %v748
    %v3981 = vpop.f32.mrf.mxu0
    %v3982 = vadd.f32 0.0, %v3981
    %v3983 = vpop.f32.mrf.mxu0
    %v3984 = vpop.f32.mrf.mxu0
    %v3985 = vadd.f32 0.0, %v3984
    %v3986 = vpop.f32.mrf.mxu0
    %3987 = vmatprep.mubr.bf16.mxu0 %v753
    %3988 = vmatmul.mubr.bf16.gmra.mxu0 %v752
    %v3989 = vpop.f32.mrf.mxu0
    %v3990 = vadd.f32 0.0, %v3989
    %v3991 = vpop.f32.mrf.mxu0
    %v3992 = vpop.f32.mrf.mxu0
    %v3993 = vadd.f32 0.0, %v3992
    %v3994 = vpop.f32.mrf.mxu0
    %3995 = vmatprep.mubr.bf16.mxu0 %v757
    %3996 = vmatmul.mubr.bf16.gmra.mxu0 %v756
    %v3997 = vpop.f32.mrf.mxu0
    %v3998 = vadd.f32 0.0, %v3997
    %v3999 = vpop.f32.mrf.mxu0
    %v4000 = vpop.f32.mrf.mxu0
    %v4001 = vadd.f32 0.0, %v4000
    %v4002 = vpop.f32.mrf.mxu0
    %4003 = vmatprep.mubr.bf16.mxu0 %v761
    %4004 = vmatmul.mubr.bf16.gmra.mxu0 %v760
    %v4005 = vpop.f32.mrf.mxu0
    %v4006 = vadd.f32 0.0, %v4005
    %v4007 = vpop.f32.mrf.mxu0
    %v4008 = vpop.f32.mrf.mxu0
    %v4009 = vadd.f32 0.0, %v4008
    %v4010 = vpop.f32.mrf.mxu0
    %4011 = vmatprep.mubr.bf16.mxu0 %v765
    %4012 = vmatmul.mubr.bf16.gmra.mxu0 %v764
    %v4013 = vpop.f32.mrf.mxu0
    %v4014 = vadd.f32 0.0, %v4013
    %v4015 = vpop.f32.mrf.mxu0
    %v4016 = vpop.f32.mrf.mxu0
    %v4017 = vadd.f32 0.0, %v4016
    %v4018 = vpop.f32.mrf.mxu0
    %4019 = vmatprep.mubr.bf16.mxu0 %v769
    %4020 = vmatmul.mubr.bf16.gmra.mxu0 %v768
    %v4021 = vpop.f32.mrf.mxu0
    %v4022 = vadd.f32 0.0, %v4021
    %v4023 = vpop.f32.mrf.mxu0
    %v4024 = vpop.f32.mrf.mxu0
    %v4025 = vadd.f32 0.0, %v4024
    %v4026 = vpop.f32.mrf.mxu0
    %4027 = vmatprep.mubr.bf16.mxu0 %v773
    %4028 = vmatmul.mubr.bf16.gmra.mxu0 %v772
    %v4029 = vpop.f32.mrf.mxu0
    %v4030 = vadd.f32 0.0, %v4029
    %v4031 = vpop.f32.mrf.mxu0
    %v4032 = vpop.f32.mrf.mxu0
    %v4033 = vadd.f32 0.0, %v4032
    %v4034 = vpop.f32.mrf.mxu0
    %4035 = vmatprep.mubr.bf16.mxu0 %v777
    %4036 = vmatmul.mubr.bf16.gmra.mxu0 %v776
    %v4037 = vpop.f32.mrf.mxu0
    %v4038 = vadd.f32 0.0, %v4037
    %v4039 = vpop.f32.mrf.mxu0
    %v4040 = vpop.f32.mrf.mxu0
    %v4041 = vadd.f32 0.0, %v4040
    %v4042 = vpop.f32.mrf.mxu0
    %4043 = vmatprep.mubr.bf16.mxu0 %v781
    %4044 = vmatmul.mubr.bf16.gmra.mxu0 %v780
    %v4045 = vpop.f32.mrf.mxu0
    %v4046 = vadd.f32 0.0, %v4045
    %v4047 = vpop.f32.mrf.mxu0
    %v4048 = vpop.f32.mrf.mxu0
    %v4049 = vadd.f32 0.0, %v4048
    %v4050 = vpop.f32.mrf.mxu0
    %4051 = vmatprep.mubr.bf16.mxu0 %v785
    %4052 = vmatmul.mubr.bf16.gmra.mxu0 %v784
    %v4053 = vpop.f32.mrf.mxu0
    %v4054 = vadd.f32 0.0, %v4053
    %v4055 = vpop.f32.mrf.mxu0
    %v4056 = vpop.f32.mrf.mxu0
    %v4057 = vadd.f32 0.0, %v4056
    %v4058 = vpop.f32.mrf.mxu0
    %4059 = vmatprep.mubr.bf16.mxu0 %v789
    %4060 = vmatmul.mubr.bf16.gmra.mxu0 %v788
    %v4061 = vpop.f32.mrf.mxu0
    %v4062 = vadd.f32 0.0, %v4061
    %v4063 = vpop.f32.mrf.mxu0
    %v4064 = vpop.f32.mrf.mxu0
    %v4065 = vadd.f32 0.0, %v4064
    %v4066 = vpop.f32.mrf.mxu0
    %4067 = vmatprep.mubr.bf16.mxu0 %v793
    %4068 = vmatmul.mubr.bf16.gmra.mxu0 %v792
    %v4069 = vpop.f32.mrf.mxu0
    %v4070 = vadd.f32 0.0, %v4069
    %v4071 = vpop.f32.mrf.mxu0
    %v4072 = vpop.f32.mrf.mxu0
    %v4073 = vadd.f32 0.0, %v4072
    %v4074 = vpop.f32.mrf.mxu0
    %4075 = vmatprep.mubr.bf16.mxu0 %v797
    %4076 = vmatmul.mubr.bf16.gmra.mxu0 %v796
    %v4077 = vpop.f32.mrf.mxu0
    %v4078 = vadd.f32 0.0, %v4077
    %v4079 = vpop.f32.mrf.mxu0
    %v4080 = vpop.f32.mrf.mxu0
    %v4081 = vadd.f32 0.0, %v4080
    %v4082 = vpop.f32.mrf.mxu0
    %4083 = vmatprep.mubr.bf16.mxu0 %v801
    %4084 = vmatmul.mubr.bf16.gmra.mxu0 %v800
    %v4085 = vpop.f32.mrf.mxu0
    %v4086 = vadd.f32 0.0, %v4085
    %v4087 = vpop.f32.mrf.mxu0
    %v4088 = vpop.f32.mrf.mxu0
    %v4089 = vadd.f32 0.0, %v4088
    %v4090 = vpop.f32.mrf.mxu0
    %4091 = vmatprep.mubr.bf16.mxu0 %v805
    %4092 = vmatmul.mubr.bf16.gmra.mxu0 %v804
    %v4093 = vpop.f32.mrf.mxu0
    %v4094 = vadd.f32 0.0, %v4093
    %v4095 = vpop.f32.mrf.mxu0
    %v4096 = vpop.f32.mrf.mxu0
    %v4097 = vadd.f32 0.0, %v4096
    %v4098 = vpop.f32.mrf.mxu0
    %4099 = vmatprep.mubr.bf16.mxu0 %v809
    %4100 = vmatmul.mubr.bf16.gmra.mxu0 %v808
    %v4101 = vpop.f32.mrf.mxu0
    %v4102 = vadd.f32 0.0, %v4101
    %v4103 = vpop.f32.mrf.mxu0
    %v4104 = vpop.f32.mrf.mxu0
    %v4105 = vadd.f32 0.0, %v4104
    %v4106 = vpop.f32.mrf.mxu0
    %4107 = vmatprep.mubr.bf16.mxu0 %v813
    %4108 = vmatmul.mubr.bf16.gmra.mxu0 %v812
    %v4109 = vpop.f32.mrf.mxu0
    %v4110 = vadd.f32 0.0, %v4109
    %v4111 = vpop.f32.mrf.mxu0
    %v4112 = vpop.f32.mrf.mxu0
    %v4113 = vadd.f32 0.0, %v4112
    %v4114 = vpop.f32.mrf.mxu0
    %4115 = vmatprep.mubr.bf16.mxu0 %v817
    %4116 = vmatmul.mubr.bf16.gmra.mxu0 %v816
    %v4117 = vpop.f32.mrf.mxu0
    %v4118 = vadd.f32 0.0, %v4117
    %v4119 = vpop.f32.mrf.mxu0
    %v4120 = vpop.f32.mrf.mxu0
    %v4121 = vadd.f32 0.0, %v4120
    %v4122 = vpop.f32.mrf.mxu0
    %4123 = vmatprep.mubr.bf16.mxu0 %v821
    %4124 = vmatmul.mubr.bf16.gmra.mxu0 %v820
    %v4125 = vpop.f32.mrf.mxu0
    %v4126 = vadd.f32 0.0, %v4125
    %v4127 = vpop.f32.mrf.mxu0
    %v4128 = vpop.f32.mrf.mxu0
    %v4129 = vadd.f32 0.0, %v4128
    %v4130 = vpop.f32.mrf.mxu0
    %4131 = vmatprep.mubr.bf16.mxu0 %v825
    %4132 = vmatmul.mubr.bf16.gmra.mxu0 %v824
    %v4133 = vpop.f32.mrf.mxu0
    %v4134 = vadd.f32 0.0, %v4133
    %v4135 = vpop.f32.mrf.mxu0
    %v4136 = vpop.f32.mrf.mxu0
    %v4137 = vadd.f32 0.0, %v4136
    %v4138 = vpop.f32.mrf.mxu0
    %4139 = vdwg.mxu0
    %4140 = vmatprep.subr.bf16.mxu0 0
    %4141 = vmatpush1.bf16.msra.mxu0 %v1695
    %4142 = vmatprep.subr.bf16.mxu0 0
    %4143 = vmatpush1.bf16.msra.mxu0 %v1688
    %4144 = vmatprep.subr.bf16.mxu0 0
    %4145 = vmatpush1.bf16.msra.mxu0 %v1681
    %4146 = vmatprep.subr.bf16.mxu0 0
    %4147 = vmatpush1.bf16.msra.mxu0 %v1674
    %4148 = vmatprep.subr.bf16.mxu0 0
    %4149 = vmatpush1.bf16.msra.mxu0 %v1667
    %4150 = vmatprep.subr.bf16.mxu0 0
    %4151 = vmatpush1.bf16.msra.mxu0 %v1660
    %4152 = vmatprep.subr.bf16.mxu0 0
    %4153 = vmatpush1.bf16.msra.mxu0 %v1653
    %4154 = vmatprep.subr.bf16.mxu0 0
    %4155 = vmatpush1.bf16.msra.mxu0 %v1646
    %4156 = vmatprep.subr.bf16.mxu0 0
    %4157 = vmatpush2.bf16.msra.mxu0 0
    %4158 = vmatprep.subr.bf16.mxu0 0
    %4159 = vmatpush2.bf16.msra.mxu0 0
    %4160 = vmatprep.subr.bf16.mxu0 0
    %4161 = vmatpush2.bf16.msra.mxu0 0
    %4162 = vmatprep.subr.bf16.mxu0 0
    %4163 = vmatpush2.bf16.msra.mxu0 0
    %4164 = vmatprep.subr.bf16.mxu0 0
    %4165 = vmatpush2.bf16.msra.mxu0 %v1723
    %4166 = vmatprep.subr.bf16.mxu0 0
    %4167 = vmatpush2.bf16.msra.mxu0 %v1716
    %4168 = vmatprep.subr.bf16.mxu0 0
    %4169 = vmatpush2.bf16.msra.mxu0 %v1709
    %4170 = vmatprep.subr.bf16.mxu0 0
    %4171 = vmatpush2.bf16.msra.mxu0 %v1702
    %4172 = vmatprep.mubr.bf16.mxu0 %v1922
    %4173 = vmatmul.mubr.bf16.gmra.mxu0 %v718
    %v4174 = vpop.f32.mrf.mxu0
    %v4175 = vadd.f32 %v3918, %v4174
    %v4176 = vpop.f32.mrf.mxu0
    %v4177 = vpop.f32.mrf.mxu0
    %v4178 = vadd.f32 %v3921, %v4177
    %v4179 = vpop.f32.mrf.mxu0
    %4180 = vmatprep.mubr.bf16.mxu0 %v1925
    %4181 = vmatmul.mubr.bf16.gmra.mxu0 %v722
    %v4182 = vpop.f32.mrf.mxu0
    %v4183 = vadd.f32 %v3926, %v4182
    %v4184 = vpop.f32.mrf.mxu0
    %v4185 = vpop.f32.mrf.mxu0
    %v4186 = vadd.f32 %v3929, %v4185
    %v4187 = vpop.f32.mrf.mxu0
    %4188 = vmatprep.mubr.bf16.mxu0 %v1928
    %4189 = vmatmul.mubr.bf16.gmra.mxu0 %v726
    %v4190 = vpop.f32.mrf.mxu0
    %v4191 = vadd.f32 %v3934, %v4190
    %v4192 = vpop.f32.mrf.mxu0
    %v4193 = vpop.f32.mrf.mxu0
    %v4194 = vadd.f32 %v3937, %v4193
    %v4195 = vpop.f32.mrf.mxu0
    %4196 = vmatprep.mubr.bf16.mxu0 %v1931
    %4197 = vmatmul.mubr.bf16.gmra.mxu0 %v730
    %v4198 = vpop.f32.mrf.mxu0
    %v4199 = vadd.f32 %v3942, %v4198
    %v4200 = vpop.f32.mrf.mxu0
    %v4201 = vpop.f32.mrf.mxu0
    %v4202 = vadd.f32 %v3945, %v4201
    %v4203 = vpop.f32.mrf.mxu0
    %4204 = vmatprep.mubr.bf16.mxu0 %v1934
    %4205 = vmatmul.mubr.bf16.gmra.mxu0 %v734
    %v4206 = vpop.f32.mrf.mxu0
    %v4207 = vadd.f32 %v3950, %v4206
    %v4208 = vpop.f32.mrf.mxu0
    %v4209 = vpop.f32.mrf.mxu0
    %v4210 = vadd.f32 %v3953, %v4209
    %v4211 = vpop.f32.mrf.mxu0
    %4212 = vmatprep.mubr.bf16.mxu0 %v1937
    %4213 = vmatmul.mubr.bf16.gmra.mxu0 %v738
    %v4214 = vpop.f32.mrf.mxu0
    %v4215 = vadd.f32 %v3958, %v4214
    %v4216 = vpop.f32.mrf.mxu0
    %v4217 = vpop.f32.mrf.mxu0
    %v4218 = vadd.f32 %v3961, %v4217
    %v4219 = vpop.f32.mrf.mxu0
    %4220 = vmatprep.mubr.bf16.mxu0 %v1940
    %4221 = vmatmul.mubr.bf16.gmra.mxu0 %v742
    %v4222 = vpop.f32.mrf.mxu0
    %v4223 = vadd.f32 %v3966, %v4222
    %v4224 = vpop.f32.mrf.mxu0
    %v4225 = vpop.f32.mrf.mxu0
    %v4226 = vadd.f32 %v3969, %v4225
    %v4227 = vpop.f32.mrf.mxu0
    %4228 = vmatprep.mubr.bf16.mxu0 %v1943
    %4229 = vmatmul.mubr.bf16.gmra.mxu0 %v746
    %v4230 = vpop.f32.mrf.mxu0
    %v4231 = vadd.f32 %v3974, %v4230
    %v4232 = vpop.f32.mrf.mxu0
    %v4233 = vpop.f32.mrf.mxu0
    %v4234 = vadd.f32 %v3977, %v4233
    %v4235 = vpop.f32.mrf.mxu0
    %4236 = vmatprep.mubr.bf16.mxu0 %v1946
    %4237 = vmatmul.mubr.bf16.gmra.mxu0 %v750
    %v4238 = vpop.f32.mrf.mxu0
    %v4239 = vadd.f32 %v3982, %v4238
    %v4240 = vpop.f32.mrf.mxu0
    %v4241 = vpop.f32.mrf.mxu0
    %v4242 = vadd.f32 %v3985, %v4241
    %v4243 = vpop.f32.mrf.mxu0
    %4244 = vmatprep.mubr.bf16.mxu0 %v1949
    %4245 = vmatmul.mubr.bf16.gmra.mxu0 %v754
    %v4246 = vpop.f32.mrf.mxu0
    %v4247 = vadd.f32 %v3990, %v4246
    %v4248 = vpop.f32.mrf.mxu0
    %v4249 = vpop.f32.mrf.mxu0
    %v4250 = vadd.f32 %v3993, %v4249
    %v4251 = vpop.f32.mrf.mxu0
    %4252 = vmatprep.mubr.bf16.mxu0 %v1952
    %4253 = vmatmul.mubr.bf16.gmra.mxu0 %v758
    %v4254 = vpop.f32.mrf.mxu0
    %v4255 = vadd.f32 %v3998, %v4254
    %v4256 = vpop.f32.mrf.mxu0
    %v4257 = vpop.f32.mrf.mxu0
    %v4258 = vadd.f32 %v4001, %v4257
    %v4259 = vpop.f32.mrf.mxu0
    %4260 = vmatprep.mubr.bf16.mxu0 %v1955
    %4261 = vmatmul.mubr.bf16.gmra.mxu0 %v762
    %v4262 = vpop.f32.mrf.mxu0
    %v4263 = vadd.f32 %v4006, %v4262
    %v4264 = vpop.f32.mrf.mxu0
    %v4265 = vpop.f32.mrf.mxu0
    %v4266 = vadd.f32 %v4009, %v4265
    %v4267 = vpop.f32.mrf.mxu0
    %4268 = vmatprep.mubr.bf16.mxu0 %v1958
    %4269 = vmatmul.mubr.bf16.gmra.mxu0 %v766
    %v4270 = vpop.f32.mrf.mxu0
    %v4271 = vadd.f32 %v4014, %v4270
    %v4272 = vpop.f32.mrf.mxu0
    %v4273 = vpop.f32.mrf.mxu0
    %v4274 = vadd.f32 %v4017, %v4273
    %v4275 = vpop.f32.mrf.mxu0
    %4276 = vmatprep.mubr.bf16.mxu0 %v1961
    %4277 = vmatmul.mubr.bf16.gmra.mxu0 %v770
    %v4278 = vpop.f32.mrf.mxu0
    %v4279 = vadd.f32 %v4022, %v4278
    %v4280 = vpop.f32.mrf.mxu0
    %v4281 = vpop.f32.mrf.mxu0
    %v4282 = vadd.f32 %v4025, %v4281
    %v4283 = vpop.f32.mrf.mxu0
    %4284 = vmatprep.mubr.bf16.mxu0 %v1964
    %4285 = vmatmul.mubr.bf16.gmra.mxu0 %v774
    %v4286 = vpop.f32.mrf.mxu0
    %v4287 = vadd.f32 %v4030, %v4286
    %v4288 = vpop.f32.mrf.mxu0
    %v4289 = vpop.f32.mrf.mxu0
    %v4290 = vadd.f32 %v4033, %v4289
    %v4291 = vpop.f32.mrf.mxu0
    %4292 = vmatprep.mubr.bf16.mxu0 %v1967
    %4293 = vmatmul.mubr.bf16.gmra.mxu0 %v778
    %v4294 = vpop.f32.mrf.mxu0
    %v4295 = vadd.f32 %v4038, %v4294
    %v4296 = vpop.f32.mrf.mxu0
    %v4297 = vpop.f32.mrf.mxu0
    %v4298 = vadd.f32 %v4041, %v4297
    %v4299 = vpop.f32.mrf.mxu0
    %4300 = vmatprep.mubr.bf16.mxu0 %v1970
    %4301 = vmatmul.mubr.bf16.gmra.mxu0 %v782
    %v4302 = vpop.f32.mrf.mxu0
    %v4303 = vadd.f32 %v4046, %v4302
    %v4304 = vpop.f32.mrf.mxu0
    %v4305 = vpop.f32.mrf.mxu0
    %v4306 = vadd.f32 %v4049, %v4305
    %v4307 = vpop.f32.mrf.mxu0
    %4308 = vmatprep.mubr.bf16.mxu0 %v1973
    %4309 = vmatmul.mubr.bf16.gmra.mxu0 %v786
    %v4310 = vpop.f32.mrf.mxu0
    %v4311 = vadd.f32 %v4054, %v4310
    %v4312 = vpop.f32.mrf.mxu0
    %v4313 = vpop.f32.mrf.mxu0
    %v4314 = vadd.f32 %v4057, %v4313
    %v4315 = vpop.f32.mrf.mxu0
    %4316 = vmatprep.mubr.bf16.mxu0 %v1976
    %4317 = vmatmul.mubr.bf16.gmra.mxu0 %v790
    %v4318 = vpop.f32.mrf.mxu0
    %v4319 = vadd.f32 %v4062, %v4318
    %v4320 = vpop.f32.mrf.mxu0
    %v4321 = vpop.f32.mrf.mxu0
    %v4322 = vadd.f32 %v4065, %v4321
    %v4323 = vpop.f32.mrf.mxu0
    %4324 = vmatprep.mubr.bf16.mxu0 %v1979
    %4325 = vmatmul.mubr.bf16.gmra.mxu0 %v794
    %v4326 = vpop.f32.mrf.mxu0
    %v4327 = vadd.f32 %v4070, %v4326
    %v4328 = vpop.f32.mrf.mxu0
    %v4329 = vpop.f32.mrf.mxu0
    %v4330 = vadd.f32 %v4073, %v4329
    %v4331 = vpop.f32.mrf.mxu0
    %4332 = vmatprep.mubr.bf16.mxu0 %v1982
    %4333 = vmatmul.mubr.bf16.gmra.mxu0 %v798
    %v4334 = vpop.f32.mrf.mxu0
    %v4335 = vadd.f32 %v4078, %v4334
    %v4336 = vpop.f32.mrf.mxu0
    %v4337 = vpop.f32.mrf.mxu0
    %v4338 = vadd.f32 %v4081, %v4337
    %v4339 = vpop.f32.mrf.mxu0
    %4340 = vmatprep.mubr.bf16.mxu0 %v1985
    %4341 = vmatmul.mubr.bf16.gmra.mxu0 %v802
    %v4342 = vpop.f32.mrf.mxu0
    %v4343 = vadd.f32 %v4086, %v4342
    %v4344 = vpop.f32.mrf.mxu0
    %v4345 = vpop.f32.mrf.mxu0
    %v4346 = vadd.f32 %v4089, %v4345
    %v4347 = vpop.f32.mrf.mxu0
    %4348 = vmatprep.mubr.bf16.mxu0 %v1988
    %4349 = vmatmul.mubr.bf16.gmra.mxu0 %v806
    %v4350 = vpop.f32.mrf.mxu0
    %v4351 = vadd.f32 %v4094, %v4350
    %v4352 = vpop.f32.mrf.mxu0
    %v4353 = vpop.f32.mrf.mxu0
    %v4354 = vadd.f32 %v4097, %v4353
    %v4355 = vpop.f32.mrf.mxu0
    %4356 = vmatprep.mubr.bf16.mxu0 %v1991
    %4357 = vmatmul.mubr.bf16.gmra.mxu0 %v810
    %v4358 = vpop.f32.mrf.mxu0
    %v4359 = vadd.f32 %v4102, %v4358
    %v4360 = vpop.f32.mrf.mxu0
    %v4361 = vpop.f32.mrf.mxu0
    %v4362 = vadd.f32 %v4105, %v4361
    %v4363 = vpop.f32.mrf.mxu0
    %4364 = vmatprep.mubr.bf16.mxu0 %v1994
    %4365 = vmatmul.mubr.bf16.gmra.mxu0 %v814
    %v4366 = vpop.f32.mrf.mxu0
    %v4367 = vadd.f32 %v4110, %v4366
    %v4368 = vpop.f32.mrf.mxu0
    %v4369 = vpop.f32.mrf.mxu0
    %v4370 = vadd.f32 %v4113, %v4369
    %v4371 = vpop.f32.mrf.mxu0
    %4372 = vmatprep.mubr.bf16.mxu0 %v1997
    %4373 = vmatmul.mubr.bf16.gmra.mxu0 %v818
    %v4374 = vpop.f32.mrf.mxu0
    %v4375 = vadd.f32 %v4118, %v4374
    %v4376 = vpop.f32.mrf.mxu0
    %v4377 = vpop.f32.mrf.mxu0
    %v4378 = vadd.f32 %v4121, %v4377
    %v4379 = vpop.f32.mrf.mxu0
    %4380 = vmatprep.mubr.bf16.mxu0 %v2000
    %4381 = vmatmul.mubr.bf16.gmra.mxu0 %v822
    %v4382 = vpop.f32.mrf.mxu0
    %v4383 = vadd.f32 %v4126, %v4382
    %v4384 = vpop.f32.mrf.mxu0
    %v4385 = vpop.f32.mrf.mxu0
    %v4386 = vadd.f32 %v4129, %v4385
    %v4387 = vpop.f32.mrf.mxu0
    %4388 = vmatprep.mubr.bf16.mxu0 %v2003
    %4389 = vmatmul.mubr.bf16.gmra.mxu0 %v826
    %v4390 = vpop.f32.mrf.mxu0
    %v4391 = vadd.f32 %v4134, %v4390
    %v4392 = vpop.f32.mrf.mxu0
    %v4393 = vpop.f32.mrf.mxu0
    %v4394 = vadd.f32 %v4137, %v4393
    %v4395 = vpop.f32.mrf.mxu0
    %4396 = vdwg.mxu0
    %v4397 = vadd.f32 %v2353, %v2355
    %v4398 = vadd.f32 %v4397, %v2979
    %v4399 = vadd.f32 %v4398, %v2981
    %v4400 = vadd.f32 %v4399, %v3605
    %v4401 = vadd.f32 %v4400, %v3607
    %vm4402 = vcmask 130048
    %v4403 = vsel %vm4402, %v4175, 0.0
    %v4404 = vadd.f32 %v4401, %v4403
    %4405 = vadd.xlane.f32.xlu0 %v4404
    %v4406 = vpop.xlane.xlu0 %4405
    %v4407 = vadd.f32 %v2357, %v2359
    %v4408 = vadd.f32 %v4407, %v2983
    %v4409 = vadd.f32 %v4408, %v2985
    %v4410 = vadd.f32 %v4409, %v3609
    %v4411 = vadd.f32 %v4410, %v3611
    %v4412 = vsel %vm4402, %v4178, 0.0
    %v4413 = vadd.f32 %v4411, %v4412
    %4414 = vadd.xlane.f32.xlu0 %v4413
    %v4415 = vpop.xlane.xlu0 %4414
    %v4416 = vadd.f32 %v2363, %v2365
    %v4417 = vadd.f32 %v4416, %v2989
    %v4418 = vadd.f32 %v4417, %v2991
    %v4419 = vadd.f32 %v4418, %v3615
    %v4420 = vadd.f32 %v4419, %v3617
    %v4421 = vsel %vm4402, %v4183, 0.0
    %v4422 = vadd.f32 %v4420, %v4421
    %4423 = vadd.xlane.f32.xlu0 %v4422
    %v4424 = vpop.xlane.xlu0 %4423
    %v4425 = vadd.f32 %v2367, %v2369
    %v4426 = vadd.f32 %v4425, %v2993
    %v4427 = vadd.f32 %v4426, %v2995
    %v4428 = vadd.f32 %v4427, %v3619
    %v4429 = vadd.f32 %v4428, %v3621
    %v4430 = vsel %vm4402, %v4186, 0.0
    %v4431 = vadd.f32 %v4429, %v4430
    %4432 = vadd.xlane.f32.xlu0 %v4431
    %v4433 = vpop.xlane.xlu0 %4432
    %v4434 = vadd.f32 %v2373, %v2375
    %v4435 = vadd.f32 %v4434, %v2999
    %v4436 = vadd.f32 %v4435, %v3001
    %v4437 = vadd.f32 %v4436, %v3625
    %v4438 = vadd.f32 %v4437, %v3627
    %v4439 = vsel %vm4402, %v4191, 0.0
    %v4440 = vadd.f32 %v4438, %v4439
    %4441 = vadd.xlane.f32.xlu0 %v4440
    %v4442 = vpop.xlane.xlu0 %4441
    %v4443 = vadd.f32 %v2377, %v2379
    %v4444 = vadd.f32 %v4443, %v3003
    %v4445 = vadd.f32 %v4444, %v3005
    %v4446 = vadd.f32 %v4445, %v3629
    %v4447 = vadd.f32 %v4446, %v3631
    %v4448 = vsel %vm4402, %v4194, 0.0
    %v4449 = vadd.f32 %v4447, %v4448
    %4450 = vadd.xlane.f32.xlu0 %v4449
    %v4451 = vpop.xlane.xlu0 %4450
    %v4452 = vadd.f32 %v2383, %v2385
    %v4453 = vadd.f32 %v4452, %v3009
    %v4454 = vadd.f32 %v4453, %v3011
    %v4455 = vadd.f32 %v4454, %v3635
    %v4456 = vadd.f32 %v4455, %v3637
    %v4457 = vsel %vm4402, %v4199, 0.0
    %v4458 = vadd.f32 %v4456, %v4457
    %4459 = vadd.xlane.f32.xlu0 %v4458
    %v4460 = vpop.xlane.xlu0 %4459
    %v4461 = vadd.f32 %v2387, %v2389
    %v4462 = vadd.f32 %v4461, %v3013
    %v4463 = vadd.f32 %v4462, %v3015
    %v4464 = vadd.f32 %v4463, %v3639
    %v4465 = vadd.f32 %v4464, %v3641
    %v4466 = vsel %vm4402, %v4202, 0.0
    %v4467 = vadd.f32 %v4465, %v4466
    %4468 = vadd.xlane.f32.xlu0 %v4467
    %v4469 = vpop.xlane.xlu0 %4468
    %v4470 = vadd.f32 %v2393, %v2395
    %v4471 = vadd.f32 %v4470, %v3019
    %v4472 = vadd.f32 %v4471, %v3021
    %v4473 = vadd.f32 %v4472, %v3645
    %v4474 = vadd.f32 %v4473, %v3647
    %v4475 = vsel %vm4402, %v4207, 0.0
    %v4476 = vadd.f32 %v4474, %v4475
    %4477 = vadd.xlane.f32.xlu0 %v4476
    %v4478 = vpop.xlane.xlu0 %4477
    %v4479 = vadd.f32 %v2397, %v2399
    %v4480 = vadd.f32 %v4479, %v3023
    %v4481 = vadd.f32 %v4480, %v3025
    %v4482 = vadd.f32 %v4481, %v3649
    %v4483 = vadd.f32 %v4482, %v3651
    %v4484 = vsel %vm4402, %v4210, 0.0
    %v4485 = vadd.f32 %v4483, %v4484
    %4486 = vadd.xlane.f32.xlu0 %v4485
    %v4487 = vpop.xlane.xlu0 %4486
    %v4488 = vadd.f32 %v2403, %v2405
    %v4489 = vadd.f32 %v4488, %v3029
    %v4490 = vadd.f32 %v4489, %v3031
    %v4491 = vadd.f32 %v4490, %v3655
    %v4492 = vadd.f32 %v4491, %v3657
    %v4493 = vsel %vm4402, %v4215, 0.0
    %v4494 = vadd.f32 %v4492, %v4493
    %4495 = vadd.xlane.f32.xlu0 %v4494
    %v4496 = vpop.xlane.xlu0 %4495
    %v4497 = vadd.f32 %v2407, %v2409
    %v4498 = vadd.f32 %v4497, %v3033
    %v4499 = vadd.f32 %v4498, %v3035
    %v4500 = vadd.f32 %v4499, %v3659
    %v4501 = vadd.f32 %v4500, %v3661
    %v4502 = vsel %vm4402, %v4218, 0.0
    %v4503 = vadd.f32 %v4501, %v4502
    %4504 = vadd.xlane.f32.xlu0 %v4503
    %v4505 = vpop.xlane.xlu0 %4504
    %v4506 = vadd.f32 %v2413, %v2415
    %v4507 = vadd.f32 %v4506, %v3039
    %v4508 = vadd.f32 %v4507, %v3041
    %v4509 = vadd.f32 %v4508, %v3665
    %v4510 = vadd.f32 %v4509, %v3667
    %v4511 = vsel %vm4402, %v4223, 0.0
    %v4512 = vadd.f32 %v4510, %v4511
    %4513 = vadd.xlane.f32.xlu0 %v4512
    %v4514 = vpop.xlane.xlu0 %4513
    %v4515 = vadd.f32 %v2417, %v2419
    %v4516 = vadd.f32 %v4515, %v3043
    %v4517 = vadd.f32 %v4516, %v3045
    %v4518 = vadd.f32 %v4517, %v3669
    %v4519 = vadd.f32 %v4518, %v3671
    %v4520 = vsel %vm4402, %v4226, 0.0
    %v4521 = vadd.f32 %v4519, %v4520
    %4522 = vadd.xlane.f32.xlu0 %v4521
    %v4523 = vpop.xlane.xlu0 %4522
    %v4524 = vadd.f32 %v2423, %v2425
    %v4525 = vadd.f32 %v4524, %v3049
    %v4526 = vadd.f32 %v4525, %v3051
    %v4527 = vadd.f32 %v4526, %v3675
    %v4528 = vadd.f32 %v4527, %v3677
    %v4529 = vsel %vm4402, %v4231, 0.0
    %v4530 = vadd.f32 %v4528, %v4529
    %4531 = vadd.xlane.f32.xlu0 %v4530
    %v4532 = vpop.xlane.xlu0 %4531
    %v4533 = vadd.f32 %v2427, %v2429
    %v4534 = vadd.f32 %v4533, %v3053
    %v4535 = vadd.f32 %v4534, %v3055
    %v4536 = vadd.f32 %v4535, %v3679
    %v4537 = vadd.f32 %v4536, %v3681
    %v4538 = vsel %vm4402, %v4234, 0.0
    %v4539 = vadd.f32 %v4537, %v4538
    %4540 = vadd.xlane.f32.xlu0 %v4539
    %v4541 = vpop.xlane.xlu0 %4540
    %v4542 = vadd.f32 %v2433, %v2435
    %v4543 = vadd.f32 %v4542, %v3059
    %v4544 = vadd.f32 %v4543, %v3061
    %v4545 = vadd.f32 %v4544, %v3685
    %v4546 = vadd.f32 %v4545, %v3687
    %v4547 = vsel %vm4402, %v4239, 0.0
    %v4548 = vadd.f32 %v4546, %v4547
    %4549 = vadd.xlane.f32.xlu0 %v4548
    %v4550 = vpop.xlane.xlu0 %4549
    %v4551 = vadd.f32 %v2437, %v2439
    %v4552 = vadd.f32 %v4551, %v3063
    %v4553 = vadd.f32 %v4552, %v3065
    %v4554 = vadd.f32 %v4553, %v3689
    %v4555 = vadd.f32 %v4554, %v3691
    %v4556 = vsel %vm4402, %v4242, 0.0
    %v4557 = vadd.f32 %v4555, %v4556
    %4558 = vadd.xlane.f32.xlu0 %v4557
    %v4559 = vpop.xlane.xlu0 %4558
    %v4560 = vadd.f32 %v2443, %v2445
    %v4561 = vadd.f32 %v4560, %v3069
    %v4562 = vadd.f32 %v4561, %v3071
    %v4563 = vadd.f32 %v4562, %v3695
    %v4564 = vadd.f32 %v4563, %v3697
    %v4565 = vsel %vm4402, %v4247, 0.0
    %v4566 = vadd.f32 %v4564, %v4565
    %4567 = vadd.xlane.f32.xlu0 %v4566
    %v4568 = vpop.xlane.xlu0 %4567
    %v4569 = vadd.f32 %v2447, %v2449
    %v4570 = vadd.f32 %v4569, %v3073
    %v4571 = vadd.f32 %v4570, %v3075
    %v4572 = vadd.f32 %v4571, %v3699
    %v4573 = vadd.f32 %v4572, %v3701
    %v4574 = vsel %vm4402, %v4250, 0.0
    %v4575 = vadd.f32 %v4573, %v4574
    %4576 = vadd.xlane.f32.xlu0 %v4575
    %v4577 = vpop.xlane.xlu0 %4576
    %v4578 = vadd.f32 %v2453, %v2455
    %v4579 = vadd.f32 %v4578, %v3079
    %v4580 = vadd.f32 %v4579, %v3081
    %v4581 = vadd.f32 %v4580, %v3705
    %v4582 = vadd.f32 %v4581, %v3707
    %v4583 = vsel %vm4402, %v4255, 0.0
    %v4584 = vadd.f32 %v4582, %v4583
    %4585 = vadd.xlane.f32.xlu0 %v4584
    %v4586 = vpop.xlane.xlu0 %4585
    %v4587 = vadd.f32 %v2457, %v2459
    %v4588 = vadd.f32 %v4587, %v3083
    %v4589 = vadd.f32 %v4588, %v3085
    %v4590 = vadd.f32 %v4589, %v3709
    %v4591 = vadd.f32 %v4590, %v3711
    %v4592 = vsel %vm4402, %v4258, 0.0
    %v4593 = vadd.f32 %v4591, %v4592
    %4594 = vadd.xlane.f32.xlu0 %v4593
    %v4595 = vpop.xlane.xlu0 %4594
    %v4596 = vadd.f32 %v2463, %v2465
    %v4597 = vadd.f32 %v4596, %v3089
    %v4598 = vadd.f32 %v4597, %v3091
    %v4599 = vadd.f32 %v4598, %v3715
    %v4600 = vadd.f32 %v4599, %v3717
    %v4601 = vsel %vm4402, %v4263, 0.0
    %v4602 = vadd.f32 %v4600, %v4601
    %4603 = vadd.xlane.f32.xlu0 %v4602
    %v4604 = vpop.xlane.xlu0 %4603
    %v4605 = vadd.f32 %v2467, %v2469
    %v4606 = vadd.f32 %v4605, %v3093
    %v4607 = vadd.f32 %v4606, %v3095
    %v4608 = vadd.f32 %v4607, %v3719
    %v4609 = vadd.f32 %v4608, %v3721
    %v4610 = vsel %vm4402, %v4266, 0.0
    %v4611 = vadd.f32 %v4609, %v4610
    %4612 = vadd.xlane.f32.xlu0 %v4611
    %v4613 = vpop.xlane.xlu0 %4612
    %v4614 = vadd.f32 %v2473, %v2475
    %v4615 = vadd.f32 %v4614, %v3099
    %v4616 = vadd.f32 %v4615, %v3101
    %v4617 = vadd.f32 %v4616, %v3725
    %v4618 = vadd.f32 %v4617, %v3727
    %v4619 = vsel %vm4402, %v4271, 0.0
    %v4620 = vadd.f32 %v4618, %v4619
    %4621 = vadd.xlane.f32.xlu0 %v4620
    %v4622 = vpop.xlane.xlu0 %4621
    %v4623 = vadd.f32 %v2477, %v2479
    %v4624 = vadd.f32 %v4623, %v3103
    %v4625 = vadd.f32 %v4624, %v3105
    %v4626 = vadd.f32 %v4625, %v3729
    %v4627 = vadd.f32 %v4626, %v3731
    %v4628 = vsel %vm4402, %v4274, 0.0
    %v4629 = vadd.f32 %v4627, %v4628
    %4630 = vadd.xlane.f32.xlu0 %v4629
    %v4631 = vpop.xlane.xlu0 %4630
    %v4632 = vadd.f32 %v2483, %v2485
    %v4633 = vadd.f32 %v4632, %v3109
    %v4634 = vadd.f32 %v4633, %v3111
    %v4635 = vadd.f32 %v4634, %v3735
    %v4636 = vadd.f32 %v4635, %v3737
    %v4637 = vsel %vm4402, %v4279, 0.0
    %v4638 = vadd.f32 %v4636, %v4637
    %4639 = vadd.xlane.f32.xlu0 %v4638
    %v4640 = vpop.xlane.xlu0 %4639
    %v4641 = vadd.f32 %v2487, %v2489
    %v4642 = vadd.f32 %v4641, %v3113
    %v4643 = vadd.f32 %v4642, %v3115
    %v4644 = vadd.f32 %v4643, %v3739
    %v4645 = vadd.f32 %v4644, %v3741
    %v4646 = vsel %vm4402, %v4282, 0.0
    %v4647 = vadd.f32 %v4645, %v4646
    %4648 = vadd.xlane.f32.xlu0 %v4647
    %v4649 = vpop.xlane.xlu0 %4648
    %v4650 = vadd.f32 %v2493, %v2495
    %v4651 = vadd.f32 %v4650, %v3119
    %v4652 = vadd.f32 %v4651, %v3121
    %v4653 = vadd.f32 %v4652, %v3745
    %v4654 = vadd.f32 %v4653, %v3747
    %v4655 = vsel %vm4402, %v4287, 0.0
    %v4656 = vadd.f32 %v4654, %v4655
    %4657 = vadd.xlane.f32.xlu0 %v4656
    %v4658 = vpop.xlane.xlu0 %4657
    %v4659 = vadd.f32 %v2497, %v2499
    %v4660 = vadd.f32 %v4659, %v3123
    %v4661 = vadd.f32 %v4660, %v3125
    %v4662 = vadd.f32 %v4661, %v3749
    %v4663 = vadd.f32 %v4662, %v3751
    %v4664 = vsel %vm4402, %v4290, 0.0
    %v4665 = vadd.f32 %v4663, %v4664
    %4666 = vadd.xlane.f32.xlu0 %v4665
    %v4667 = vpop.xlane.xlu0 %4666
    %v4668 = vadd.f32 %v2503, %v2505
    %v4669 = vadd.f32 %v4668, %v3129
    %v4670 = vadd.f32 %v4669, %v3131
    %v4671 = vadd.f32 %v4670, %v3755
    %v4672 = vadd.f32 %v4671, %v3757
    %v4673 = vsel %vm4402, %v4295, 0.0
    %v4674 = vadd.f32 %v4672, %v4673
    %4675 = vadd.xlane.f32.xlu0 %v4674
    %v4676 = vpop.xlane.xlu0 %4675
    %v4677 = vadd.f32 %v2507, %v2509
    %v4678 = vadd.f32 %v4677, %v3133
    %v4679 = vadd.f32 %v4678, %v3135
    %v4680 = vadd.f32 %v4679, %v3759
    %v4681 = vadd.f32 %v4680, %v3761
    %v4682 = vsel %vm4402, %v4298, 0.0
    %v4683 = vadd.f32 %v4681, %v4682
    %4684 = vadd.xlane.f32.xlu0 %v4683
    %v4685 = vpop.xlane.xlu0 %4684
    %v4686 = vadd.f32 %v2513, %v2515
    %v4687 = vadd.f32 %v4686, %v3139
    %v4688 = vadd.f32 %v4687, %v3141
    %v4689 = vadd.f32 %v4688, %v3765
    %v4690 = vadd.f32 %v4689, %v3767
    %v4691 = vsel %vm4402, %v4303, 0.0
    %v4692 = vadd.f32 %v4690, %v4691
    %4693 = vadd.xlane.f32.xlu0 %v4692
    %v4694 = vpop.xlane.xlu0 %4693
    %v4695 = vadd.f32 %v2517, %v2519
    %v4696 = vadd.f32 %v4695, %v3143
    %v4697 = vadd.f32 %v4696, %v3145
    %v4698 = vadd.f32 %v4697, %v3769
    %v4699 = vadd.f32 %v4698, %v3771
    %v4700 = vsel %vm4402, %v4306, 0.0
    %v4701 = vadd.f32 %v4699, %v4700
    %4702 = vadd.xlane.f32.xlu0 %v4701
    %v4703 = vpop.xlane.xlu0 %4702
    %v4704 = vadd.f32 %v2523, %v2525
    %v4705 = vadd.f32 %v4704, %v3149
    %v4706 = vadd.f32 %v4705, %v3151
    %v4707 = vadd.f32 %v4706, %v3775
    %v4708 = vadd.f32 %v4707, %v3777
    %v4709 = vsel %vm4402, %v4311, 0.0
    %v4710 = vadd.f32 %v4708, %v4709
    %4711 = vadd.xlane.f32.xlu0 %v4710
    %v4712 = vpop.xlane.xlu0 %4711
    %v4713 = vadd.f32 %v2527, %v2529
    %v4714 = vadd.f32 %v4713, %v3153
    %v4715 = vadd.f32 %v4714, %v3155
    %v4716 = vadd.f32 %v4715, %v3779
    %v4717 = vadd.f32 %v4716, %v3781
    %v4718 = vsel %vm4402, %v4314, 0.0
    %v4719 = vadd.f32 %v4717, %v4718
    %4720 = vadd.xlane.f32.xlu0 %v4719
    %v4721 = vpop.xlane.xlu0 %4720
    %v4722 = vadd.f32 %v2533, %v2535
    %v4723 = vadd.f32 %v4722, %v3159
    %v4724 = vadd.f32 %v4723, %v3161
    %v4725 = vadd.f32 %v4724, %v3785
    %v4726 = vadd.f32 %v4725, %v3787
    %v4727 = vsel %vm4402, %v4319, 0.0
    %v4728 = vadd.f32 %v4726, %v4727
    %4729 = vadd.xlane.f32.xlu0 %v4728
    %v4730 = vpop.xlane.xlu0 %4729
    %v4731 = vadd.f32 %v2537, %v2539
    %v4732 = vadd.f32 %v4731, %v3163
    %v4733 = vadd.f32 %v4732, %v3165
    %v4734 = vadd.f32 %v4733, %v3789
    %v4735 = vadd.f32 %v4734, %v3791
    %v4736 = vsel %vm4402, %v4322, 0.0
    %v4737 = vadd.f32 %v4735, %v4736
    %4738 = vadd.xlane.f32.xlu0 %v4737
    %v4739 = vpop.xlane.xlu0 %4738
    %v4740 = vadd.f32 %v2543, %v2545
    %v4741 = vadd.f32 %v4740, %v3169
    %v4742 = vadd.f32 %v4741, %v3171
    %v4743 = vadd.f32 %v4742, %v3795
    %v4744 = vadd.f32 %v4743, %v3797
    %v4745 = vsel %vm4402, %v4327, 0.0
    %v4746 = vadd.f32 %v4744, %v4745
    %4747 = vadd.xlane.f32.xlu0 %v4746
    %v4748 = vpop.xlane.xlu0 %4747
    %v4749 = vadd.f32 %v2547, %v2549
    %v4750 = vadd.f32 %v4749, %v3173
    %v4751 = vadd.f32 %v4750, %v3175
    %v4752 = vadd.f32 %v4751, %v3799
    %v4753 = vadd.f32 %v4752, %v3801
    %v4754 = vsel %vm4402, %v4330, 0.0
    %v4755 = vadd.f32 %v4753, %v4754
    %4756 = vadd.xlane.f32.xlu0 %v4755
    %v4757 = vpop.xlane.xlu0 %4756
    %v4758 = vadd.f32 %v2553, %v2555
    %v4759 = vadd.f32 %v4758, %v3179
    %v4760 = vadd.f32 %v4759, %v3181
    %v4761 = vadd.f32 %v4760, %v3805
    %v4762 = vadd.f32 %v4761, %v3807
    %v4763 = vsel %vm4402, %v4335, 0.0
    %v4764 = vadd.f32 %v4762, %v4763
    %4765 = vadd.xlane.f32.xlu0 %v4764
    %v4766 = vpop.xlane.xlu0 %4765
    %v4767 = vadd.f32 %v2557, %v2559
    %v4768 = vadd.f32 %v4767, %v3183
    %v4769 = vadd.f32 %v4768, %v3185
    %v4770 = vadd.f32 %v4769, %v3809
    %v4771 = vadd.f32 %v4770, %v3811
    %v4772 = vsel %vm4402, %v4338, 0.0
    %v4773 = vadd.f32 %v4771, %v4772
    %4774 = vadd.xlane.f32.xlu0 %v4773
    %v4775 = vpop.xlane.xlu0 %4774
    %v4776 = vadd.f32 %v2563, %v2565
    %v4777 = vadd.f32 %v4776, %v3189
    %v4778 = vadd.f32 %v4777, %v3191
    %v4779 = vadd.f32 %v4778, %v3815
    %v4780 = vadd.f32 %v4779, %v3817
    %v4781 = vsel %vm4402, %v4343, 0.0
    %v4782 = vadd.f32 %v4780, %v4781
    %4783 = vadd.xlane.f32.xlu0 %v4782
    %v4784 = vpop.xlane.xlu0 %4783
    %v4785 = vadd.f32 %v2567, %v2569
    %v4786 = vadd.f32 %v4785, %v3193
    %v4787 = vadd.f32 %v4786, %v3195
    %v4788 = vadd.f32 %v4787, %v3819
    %v4789 = vadd.f32 %v4788, %v3821
    %v4790 = vsel %vm4402, %v4346, 0.0
    %v4791 = vadd.f32 %v4789, %v4790
    %4792 = vadd.xlane.f32.xlu0 %v4791
    %v4793 = vpop.xlane.xlu0 %4792
    %v4794 = vadd.f32 %v2573, %v2575
    %v4795 = vadd.f32 %v4794, %v3199
    %v4796 = vadd.f32 %v4795, %v3201
    %v4797 = vadd.f32 %v4796, %v3825
    %v4798 = vadd.f32 %v4797, %v3827
    %v4799 = vsel %vm4402, %v4351, 0.0
    %v4800 = vadd.f32 %v4798, %v4799
    %4801 = vadd.xlane.f32.xlu0 %v4800
    %v4802 = vpop.xlane.xlu0 %4801
    %v4803 = vadd.f32 %v2577, %v2579
    %v4804 = vadd.f32 %v4803, %v3203
    %v4805 = vadd.f32 %v4804, %v3205
    %v4806 = vadd.f32 %v4805, %v3829
    %v4807 = vadd.f32 %v4806, %v3831
    %v4808 = vsel %vm4402, %v4354, 0.0
    %v4809 = vadd.f32 %v4807, %v4808
    %4810 = vadd.xlane.f32.xlu0 %v4809
    %v4811 = vpop.xlane.xlu0 %4810
    %v4812 = vadd.f32 %v2583, %v2585
    %v4813 = vadd.f32 %v4812, %v3209
    %v4814 = vadd.f32 %v4813, %v3211
    %v4815 = vadd.f32 %v4814, %v3835
    %v4816 = vadd.f32 %v4815, %v3837
    %v4817 = vsel %vm4402, %v4359, 0.0
    %v4818 = vadd.f32 %v4816, %v4817
    %4819 = vadd.xlane.f32.xlu0 %v4818
    %v4820 = vpop.xlane.xlu0 %4819
    %v4821 = vadd.f32 %v2587, %v2589
    %v4822 = vadd.f32 %v4821, %v3213
    %v4823 = vadd.f32 %v4822, %v3215
    %v4824 = vadd.f32 %v4823, %v3839
    %v4825 = vadd.f32 %v4824, %v3841
    %v4826 = vsel %vm4402, %v4362, 0.0
    %v4827 = vadd.f32 %v4825, %v4826
    %4828 = vadd.xlane.f32.xlu0 %v4827
    %v4829 = vpop.xlane.xlu0 %4828
    %v4830 = vadd.f32 %v2593, %v2595
    %v4831 = vadd.f32 %v4830, %v3219
    %v4832 = vadd.f32 %v4831, %v3221
    %v4833 = vadd.f32 %v4832, %v3845
    %v4834 = vadd.f32 %v4833, %v3847
    %v4835 = vsel %vm4402, %v4367, 0.0
    %v4836 = vadd.f32 %v4834, %v4835
    %4837 = vadd.xlane.f32.xlu0 %v4836
    %v4838 = vpop.xlane.xlu0 %4837
    %v4839 = vadd.f32 %v2597, %v2599
    %v4840 = vadd.f32 %v4839, %v3223
    %v4841 = vadd.f32 %v4840, %v3225
    %v4842 = vadd.f32 %v4841, %v3849
    %v4843 = vadd.f32 %v4842, %v3851
    %v4844 = vsel %vm4402, %v4370, 0.0
    %v4845 = vadd.f32 %v4843, %v4844
    %4846 = vadd.xlane.f32.xlu0 %v4845
    %v4847 = vpop.xlane.xlu0 %4846
    %v4848 = vadd.f32 %v2603, %v2605
    %v4849 = vadd.f32 %v4848, %v3229
    %v4850 = vadd.f32 %v4849, %v3231
    %v4851 = vadd.f32 %v4850, %v3855
    %v4852 = vadd.f32 %v4851, %v3857
    %v4853 = vsel %vm4402, %v4375, 0.0
    %v4854 = vadd.f32 %v4852, %v4853
    %4855 = vadd.xlane.f32.xlu0 %v4854
    %v4856 = vpop.xlane.xlu0 %4855
    %v4857 = vadd.f32 %v2607, %v2609
    %v4858 = vadd.f32 %v4857, %v3233
    %v4859 = vadd.f32 %v4858, %v3235
    %v4860 = vadd.f32 %v4859, %v3859
    %v4861 = vadd.f32 %v4860, %v3861
    %v4862 = vsel %vm4402, %v4378, 0.0
    %v4863 = vadd.f32 %v4861, %v4862
    %4864 = vadd.xlane.f32.xlu0 %v4863
    %v4865 = vpop.xlane.xlu0 %4864
    %v4866 = vadd.f32 %v2613, %v2615
    %v4867 = vadd.f32 %v4866, %v3239
    %v4868 = vadd.f32 %v4867, %v3241
    %v4869 = vadd.f32 %v4868, %v3865
    %v4870 = vadd.f32 %v4869, %v3867
    %v4871 = vsel %vm4402, %v4383, 0.0
    %v4872 = vadd.f32 %v4870, %v4871
    %4873 = vadd.xlane.f32.xlu0 %v4872
    %v4874 = vpop.xlane.xlu0 %4873
    %v4875 = vadd.f32 %v2617, %v2619
    %v4876 = vadd.f32 %v4875, %v3243
    %v4877 = vadd.f32 %v4876, %v3245
    %v4878 = vadd.f32 %v4877, %v3869
    %v4879 = vadd.f32 %v4878, %v3871
    %v4880 = vsel %vm4402, %v4386, 0.0
    %v4881 = vadd.f32 %v4879, %v4880
    %4882 = vadd.xlane.f32.xlu0 %v4881
    %v4883 = vpop.xlane.xlu0 %4882
    %v4884 = vadd.f32 %v2623, %v2625
    %v4885 = vadd.f32 %v4884, %v3249
    %v4886 = vadd.f32 %v4885, %v3251
    %v4887 = vadd.f32 %v4886, %v3875
    %v4888 = vadd.f32 %v4887, %v3877
    %v4889 = vsel %vm4402, %v4391, 0.0
    %v4890 = vadd.f32 %v4888, %v4889
    %4891 = vadd.xlane.f32.xlu0 %v4890
    %v4892 = vpop.xlane.xlu0 %4891
    %v4893 = vadd.f32 %v2627, %v2629
    %v4894 = vadd.f32 %v4893, %v3253
    %v4895 = vadd.f32 %v4894, %v3255
    %v4896 = vadd.f32 %v4895, %v3879
    %v4897 = vadd.f32 %v4896, %v3881
    %v4898 = vsel %vm4402, %v4394, 0.0
    %v4899 = vadd.f32 %v4897, %v4898
    %4900 = vadd.xlane.f32.xlu0 %v4899
    %v4901 = vpop.xlane.xlu0 %4900
    %v4902 = vmul.f32 %v4406, 0.0012755102
    %v4903 = vmul.f32 %v4415, 0.0012755102
    %v4904 = vmul.f32 %v4424, 0.0012755102
    %v4905 = vmul.f32 %v4433, 0.0012755102
    %v4906 = vmul.f32 %v4442, 0.0012755102
    %v4907 = vmul.f32 %v4451, 0.0012755102
    %v4908 = vmul.f32 %v4460, 0.0012755102
    %v4909 = vmul.f32 %v4469, 0.0012755102
    %v4910 = vmul.f32 %v4478, 0.0012755102
    %v4911 = vmul.f32 %v4487, 0.0012755102
    %v4912 = vmul.f32 %v4496, 0.0012755102
    %v4913 = vmul.f32 %v4505, 0.0012755102
    %v4914 = vmul.f32 %v4514, 0.0012755102
    %v4915 = vmul.f32 %v4523, 0.0012755102
    %v4916 = vmul.f32 %v4532, 0.0012755102
    %v4917 = vmul.f32 %v4541, 0.0012755102
    %v4918 = vmul.f32 %v4550, 0.0012755102
    %v4919 = vmul.f32 %v4559, 0.0012755102
    %v4920 = vmul.f32 %v4568, 0.0012755102
    %v4921 = vmul.f32 %v4577, 0.0012755102
    %v4922 = vmul.f32 %v4586, 0.0012755102
    %v4923 = vmul.f32 %v4595, 0.0012755102
    %v4924 = vmul.f32 %v4604, 0.0012755102
    %v4925 = vmul.f32 %v4613, 0.0012755102
    %v4926 = vmul.f32 %v4622, 0.0012755102
    %v4927 = vmul.f32 %v4631, 0.0012755102
    %v4928 = vmul.f32 %v4640, 0.0012755102
    %v4929 = vmul.f32 %v4649, 0.0012755102
    %v4930 = vmul.f32 %v4658, 0.0012755102
    %v4931 = vmul.f32 %v4667, 0.0012755102
    %v4932 = vmul.f32 %v4676, 0.0012755102
    %v4933 = vmul.f32 %v4685, 0.0012755102
    %v4934 = vmul.f32 %v4694, 0.0012755102
    %v4935 = vmul.f32 %v4703, 0.0012755102
    %v4936 = vmul.f32 %v4712, 0.0012755102
    %v4937 = vmul.f32 %v4721, 0.0012755102
    %v4938 = vmul.f32 %v4730, 0.0012755102
    %v4939 = vmul.f32 %v4739, 0.0012755102
    %v4940 = vmul.f32 %v4748, 0.0012755102
    %v4941 = vmul.f32 %v4757, 0.0012755102
    %v4942 = vmul.f32 %v4766, 0.0012755102
    %v4943 = vmul.f32 %v4775, 0.0012755102
    %v4944 = vmul.f32 %v4784, 0.0012755102
    %v4945 = vmul.f32 %v4793, 0.0012755102
    %v4946 = vmul.f32 %v4802, 0.0012755102
    %v4947 = vmul.f32 %v4811, 0.0012755102
    %v4948 = vmul.f32 %v4820, 0.0012755102
    %v4949 = vmul.f32 %v4829, 0.0012755102
    %v4950 = vmul.f32 %v4838, 0.0012755102
    %v4951 = vmul.f32 %v4847, 0.0012755102
    %v4952 = vmul.f32 %v4856, 0.0012755102
    %v4953 = vmul.f32 %v4865, 0.0012755102
    %v4954 = vmul.f32 %v4874, 0.0012755102
    %v4955 = vmul.f32 %v4883, 0.0012755102
    %v4956 = vmul.f32 %v4892, 0.0012755102
    %v4957 = vmul.f32 %v4901, 0.0012755102
    %v4958 = vmul.f32 %v2353, %v2353
    %v4959 = vmul.f32 %v2355, %v2355
    %v4960 = vmul.f32 %v2979, %v2979
    %v4961 = vmul.f32 %v2981, %v2981
    %v4962 = vmul.f32 %v3605, %v3605
    %v4963 = vmul.f32 %v3607, %v3607
    %v4964 = vmul.f32 %v4175, %v4175
    %v4965 = vmul.f32 %v2357, %v2357
    %v4966 = vmul.f32 %v2359, %v2359
    %v4967 = vmul.f32 %v2983, %v2983
    %v4968 = vmul.f32 %v2985, %v2985
    %v4969 = vmul.f32 %v3609, %v3609
    %v4970 = vmul.f32 %v3611, %v3611
    %v4971 = vmul.f32 %v4178, %v4178
    %v4972 = vmul.f32 %v2363, %v2363
    %v4973 = vmul.f32 %v2365, %v2365
    %v4974 = vmul.f32 %v2989, %v2989
    %v4975 = vmul.f32 %v2991, %v2991
    %v4976 = vmul.f32 %v3615, %v3615
    %v4977 = vmul.f32 %v3617, %v3617
    %v4978 = vmul.f32 %v4183, %v4183
    %v4979 = vmul.f32 %v2367, %v2367
    %v4980 = vmul.f32 %v2369, %v2369
    %v4981 = vmul.f32 %v2993, %v2993
    %v4982 = vmul.f32 %v2995, %v2995
    %v4983 = vmul.f32 %v3619, %v3619
    %v4984 = vmul.f32 %v3621, %v3621
    %v4985 = vmul.f32 %v4186, %v4186
    %v4986 = vmul.f32 %v2373, %v2373
    %v4987 = vmul.f32 %v2375, %v2375
    %v4988 = vmul.f32 %v2999, %v2999
    %v4989 = vmul.f32 %v3001, %v3001
    %v4990 = vmul.f32 %v3625, %v3625
    %v4991 = vmul.f32 %v3627, %v3627
    %v4992 = vmul.f32 %v4191, %v4191
    %v4993 = vmul.f32 %v2377, %v2377
    %v4994 = vmul.f32 %v2379, %v2379
    %v4995 = vmul.f32 %v3003, %v3003
    %v4996 = vmul.f32 %v3005, %v3005
    %v4997 = vmul.f32 %v3629, %v3629
    %v4998 = vmul.f32 %v3631, %v3631
    %v4999 = vmul.f32 %v4194, %v4194
    %v5000 = vmul.f32 %v2383, %v2383
    %v5001 = vmul.f32 %v2385, %v2385
    %v5002 = vmul.f32 %v3009, %v3009
    %v5003 = vmul.f32 %v3011, %v3011
    %v5004 = vmul.f32 %v3635, %v3635
    %v5005 = vmul.f32 %v3637, %v3637
    %v5006 = vmul.f32 %v4199, %v4199
    %v5007 = vmul.f32 %v2387, %v2387
    %v5008 = vmul.f32 %v2389, %v2389
    %v5009 = vmul.f32 %v3013, %v3013
    %v5010 = vmul.f32 %v3015, %v3015
    %v5011 = vmul.f32 %v3639, %v3639
    %v5012 = vmul.f32 %v3641, %v3641
    %v5013 = vmul.f32 %v4202, %v4202
    %v5014 = vmul.f32 %v2393, %v2393
    %v5015 = vmul.f32 %v2395, %v2395
    %v5016 = vmul.f32 %v3019, %v3019
    %v5017 = vmul.f32 %v3021, %v3021
    %v5018 = vmul.f32 %v3645, %v3645
    %v5019 = vmul.f32 %v3647, %v3647
    %v5020 = vmul.f32 %v4207, %v4207
    %v5021 = vmul.f32 %v2397, %v2397
    %v5022 = vmul.f32 %v2399, %v2399
    %v5023 = vmul.f32 %v3023, %v3023
    %v5024 = vmul.f32 %v3025, %v3025
    %v5025 = vmul.f32 %v3649, %v3649
    %v5026 = vmul.f32 %v3651, %v3651
    %v5027 = vmul.f32 %v4210, %v4210
    %v5028 = vmul.f32 %v2403, %v2403
    %v5029 = vmul.f32 %v2405, %v2405
    %v5030 = vmul.f32 %v3029, %v3029
    %v5031 = vmul.f32 %v3031, %v3031
    %v5032 = vmul.f32 %v3655, %v3655
    %v5033 = vmul.f32 %v3657, %v3657
    %v5034 = vmul.f32 %v4215, %v4215
    %v5035 = vmul.f32 %v2407, %v2407
    %v5036 = vmul.f32 %v2409, %v2409
    %v5037 = vmul.f32 %v3033, %v3033
    %v5038 = vmul.f32 %v3035, %v3035
    %v5039 = vmul.f32 %v3659, %v3659
    %v5040 = vmul.f32 %v3661, %v3661
    %v5041 = vmul.f32 %v4218, %v4218
    %v5042 = vmul.f32 %v2413, %v2413
    %v5043 = vmul.f32 %v2415, %v2415
    %v5044 = vmul.f32 %v3039, %v3039
    %v5045 = vmul.f32 %v3041, %v3041
    %v5046 = vmul.f32 %v3665, %v3665
    %v5047 = vmul.f32 %v3667, %v3667
    %v5048 = vmul.f32 %v4223, %v4223
    %v5049 = vmul.f32 %v2417, %v2417
    %v5050 = vmul.f32 %v2419, %v2419
    %v5051 = vmul.f32 %v3043, %v3043
    %v5052 = vmul.f32 %v3045, %v3045
    %v5053 = vmul.f32 %v3669, %v3669
    %v5054 = vmul.f32 %v3671, %v3671
    %v5055 = vmul.f32 %v4226, %v4226
    %v5056 = vmul.f32 %v2423, %v2423
    %v5057 = vmul.f32 %v2425, %v2425
    %v5058 = vmul.f32 %v3049, %v3049
    %v5059 = vmul.f32 %v3051, %v3051
    %v5060 = vmul.f32 %v3675, %v3675
    %v5061 = vmul.f32 %v3677, %v3677
    %v5062 = vmul.f32 %v4231, %v4231
    %v5063 = vmul.f32 %v2427, %v2427
    %v5064 = vmul.f32 %v2429, %v2429
    %v5065 = vmul.f32 %v3053, %v3053
    %v5066 = vmul.f32 %v3055, %v3055
    %v5067 = vmul.f32 %v3679, %v3679
    %v5068 = vmul.f32 %v3681, %v3681
    %v5069 = vmul.f32 %v4234, %v4234
    %v5070 = vmul.f32 %v2433, %v2433
    %v5071 = vmul.f32 %v2435, %v2435
    %v5072 = vmul.f32 %v3059, %v3059
    %v5073 = vmul.f32 %v3061, %v3061
    %v5074 = vmul.f32 %v3685, %v3685
    %v5075 = vmul.f32 %v3687, %v3687
    %v5076 = vmul.f32 %v4239, %v4239
    %v5077 = vmul.f32 %v2437, %v2437
    %v5078 = vmul.f32 %v2439, %v2439
    %v5079 = vmul.f32 %v3063, %v3063
    %v5080 = vmul.f32 %v3065, %v3065
    %v5081 = vmul.f32 %v3689, %v3689
    %v5082 = vmul.f32 %v3691, %v3691
    %v5083 = vmul.f32 %v4242, %v4242
    %v5084 = vmul.f32 %v2443, %v2443
    %v5085 = vmul.f32 %v2445, %v2445
    %v5086 = vmul.f32 %v3069, %v3069
    %v5087 = vmul.f32 %v3071, %v3071
    %v5088 = vmul.f32 %v3695, %v3695
    %v5089 = vmul.f32 %v3697, %v3697
    %v5090 = vmul.f32 %v4247, %v4247
    %v5091 = vmul.f32 %v2447, %v2447
    %v5092 = vmul.f32 %v2449, %v2449
    %v5093 = vmul.f32 %v3073, %v3073
    %v5094 = vmul.f32 %v3075, %v3075
    %v5095 = vmul.f32 %v3699, %v3699
    %v5096 = vmul.f32 %v3701, %v3701
    %v5097 = vmul.f32 %v4250, %v4250
    %v5098 = vmul.f32 %v2453, %v2453
    %v5099 = vmul.f32 %v2455, %v2455
    %v5100 = vmul.f32 %v3079, %v3079
    %v5101 = vmul.f32 %v3081, %v3081
    %v5102 = vmul.f32 %v3705, %v3705
    %v5103 = vmul.f32 %v3707, %v3707
    %v5104 = vmul.f32 %v4255, %v4255
    %v5105 = vmul.f32 %v2457, %v2457
    %v5106 = vmul.f32 %v2459, %v2459
    %v5107 = vmul.f32 %v3083, %v3083
    %v5108 = vmul.f32 %v3085, %v3085
    %v5109 = vmul.f32 %v3709, %v3709
    %v5110 = vmul.f32 %v3711, %v3711
    %v5111 = vmul.f32 %v4258, %v4258
    %v5112 = vmul.f32 %v2463, %v2463
    %v5113 = vmul.f32 %v2465, %v2465
    %v5114 = vmul.f32 %v3089, %v3089
    %v5115 = vmul.f32 %v3091, %v3091
    %v5116 = vmul.f32 %v3715, %v3715
    %v5117 = vmul.f32 %v3717, %v3717
    %v5118 = vmul.f32 %v4263, %v4263
    %v5119 = vmul.f32 %v2467, %v2467
    %v5120 = vmul.f32 %v2469, %v2469
    %v5121 = vmul.f32 %v3093, %v3093
    %v5122 = vmul.f32 %v3095, %v3095
    %v5123 = vmul.f32 %v3719, %v3719
    %v5124 = vmul.f32 %v3721, %v3721
    %v5125 = vmul.f32 %v4266, %v4266
    %v5126 = vmul.f32 %v2473, %v2473
    %v5127 = vmul.f32 %v2475, %v2475
    %v5128 = vmul.f32 %v3099, %v3099
    %v5129 = vmul.f32 %v3101, %v3101
    %v5130 = vmul.f32 %v3725, %v3725
    %v5131 = vmul.f32 %v3727, %v3727
    %v5132 = vmul.f32 %v4271, %v4271
    %v5133 = vmul.f32 %v2477, %v2477
    %v5134 = vmul.f32 %v2479, %v2479
    %v5135 = vmul.f32 %v3103, %v3103
    %v5136 = vmul.f32 %v3105, %v3105
    %v5137 = vmul.f32 %v3729, %v3729
    %v5138 = vmul.f32 %v3731, %v3731
    %v5139 = vmul.f32 %v4274, %v4274
    %v5140 = vmul.f32 %v2483, %v2483
    %v5141 = vmul.f32 %v2485, %v2485
    %v5142 = vmul.f32 %v3109, %v3109
    %v5143 = vmul.f32 %v3111, %v3111
    %v5144 = vmul.f32 %v3735, %v3735
    %v5145 = vmul.f32 %v3737, %v3737
    %v5146 = vmul.f32 %v4279, %v4279
    %v5147 = vmul.f32 %v2487, %v2487
    %v5148 = vmul.f32 %v2489, %v2489
    %v5149 = vmul.f32 %v3113, %v3113
    %v5150 = vmul.f32 %v3115, %v3115
    %v5151 = vmul.f32 %v3739, %v3739
    %v5152 = vmul.f32 %v3741, %v3741
    %v5153 = vmul.f32 %v4282, %v4282
    %v5154 = vmul.f32 %v2493, %v2493
    %v5155 = vmul.f32 %v2495, %v2495
    %v5156 = vmul.f32 %v3119, %v3119
    %v5157 = vmul.f32 %v3121, %v3121
    %v5158 = vmul.f32 %v3745, %v3745
    %v5159 = vmul.f32 %v3747, %v3747
    %v5160 = vmul.f32 %v4287, %v4287
    %v5161 = vmul.f32 %v2497, %v2497
    %v5162 = vmul.f32 %v2499, %v2499
    %v5163 = vmul.f32 %v3123, %v3123
    %v5164 = vmul.f32 %v3125, %v3125
    %v5165 = vmul.f32 %v3749, %v3749
    %v5166 = vmul.f32 %v3751, %v3751
    %v5167 = vmul.f32 %v4290, %v4290
    %v5168 = vmul.f32 %v2503, %v2503
    %v5169 = vmul.f32 %v2505, %v2505
    %v5170 = vmul.f32 %v3129, %v3129
    %v5171 = vmul.f32 %v3131, %v3131
    %v5172 = vmul.f32 %v3755, %v3755
    %v5173 = vmul.f32 %v3757, %v3757
    %v5174 = vmul.f32 %v4295, %v4295
    %v5175 = vmul.f32 %v2507, %v2507
    %v5176 = vmul.f32 %v2509, %v2509
    %v5177 = vmul.f32 %v3133, %v3133
    %v5178 = vmul.f32 %v3135, %v3135
    %v5179 = vmul.f32 %v3759, %v3759
    %v5180 = vmul.f32 %v3761, %v3761
    %v5181 = vmul.f32 %v4298, %v4298
    %v5182 = vmul.f32 %v2513, %v2513
    %v5183 = vmul.f32 %v2515, %v2515
    %v5184 = vmul.f32 %v3139, %v3139
    %v5185 = vmul.f32 %v3141, %v3141
    %v5186 = vmul.f32 %v3765, %v3765
    %v5187 = vmul.f32 %v3767, %v3767
    %v5188 = vmul.f32 %v4303, %v4303
    %v5189 = vmul.f32 %v2517, %v2517
    %v5190 = vmul.f32 %v2519, %v2519
    %v5191 = vmul.f32 %v3143, %v3143
    %v5192 = vmul.f32 %v3145, %v3145
    %v5193 = vmul.f32 %v3769, %v3769
    %v5194 = vmul.f32 %v3771, %v3771
    %v5195 = vmul.f32 %v4306, %v4306
    %v5196 = vmul.f32 %v2523, %v2523
    %v5197 = vmul.f32 %v2525, %v2525
    %v5198 = vmul.f32 %v3149, %v3149
    %v5199 = vmul.f32 %v3151, %v3151
    %v5200 = vmul.f32 %v3775, %v3775
    %v5201 = vmul.f32 %v3777, %v3777
    %v5202 = vmul.f32 %v4311, %v4311
    %v5203 = vmul.f32 %v2527, %v2527
    %v5204 = vmul.f32 %v2529, %v2529
    %v5205 = vmul.f32 %v3153, %v3153
    %v5206 = vmul.f32 %v3155, %v3155
    %v5207 = vmul.f32 %v3779, %v3779
    %v5208 = vmul.f32 %v3781, %v3781
    %v5209 = vmul.f32 %v4314, %v4314
    %v5210 = vmul.f32 %v2533, %v2533
    %v5211 = vmul.f32 %v2535, %v2535
    %v5212 = vmul.f32 %v3159, %v3159
    %v5213 = vmul.f32 %v3161, %v3161
    %v5214 = vmul.f32 %v3785, %v3785
    %v5215 = vmul.f32 %v3787, %v3787
    %v5216 = vmul.f32 %v4319, %v4319
    %v5217 = vmul.f32 %v2537, %v2537
    %v5218 = vmul.f32 %v2539, %v2539
    %v5219 = vmul.f32 %v3163, %v3163
    %v5220 = vmul.f32 %v3165, %v3165
    %v5221 = vmul.f32 %v3789, %v3789
    %v5222 = vmul.f32 %v3791, %v3791
    %v5223 = vmul.f32 %v4322, %v4322
    %v5224 = vmul.f32 %v2543, %v2543
    %v5225 = vmul.f32 %v2545, %v2545
    %v5226 = vmul.f32 %v3169, %v3169
    %v5227 = vmul.f32 %v3171, %v3171
    %v5228 = vmul.f32 %v3795, %v3795
    %v5229 = vmul.f32 %v3797, %v3797
    %v5230 = vmul.f32 %v4327, %v4327
    %v5231 = vmul.f32 %v2547, %v2547
    %v5232 = vmul.f32 %v2549, %v2549
    %v5233 = vmul.f32 %v3173, %v3173
    %v5234 = vmul.f32 %v3175, %v3175
    %v5235 = vmul.f32 %v3799, %v3799
    %v5236 = vmul.f32 %v3801, %v3801
    %v5237 = vmul.f32 %v4330, %v4330
    %v5238 = vmul.f32 %v2553, %v2553
    %v5239 = vmul.f32 %v2555, %v2555
    %v5240 = vmul.f32 %v3179, %v3179
    %v5241 = vmul.f32 %v3181, %v3181
    %v5242 = vmul.f32 %v3805, %v3805
    %v5243 = vmul.f32 %v3807, %v3807
    %v5244 = vmul.f32 %v4335, %v4335
    %v5245 = vmul.f32 %v2557, %v2557
    %v5246 = vmul.f32 %v2559, %v2559
    %v5247 = vmul.f32 %v3183, %v3183
    %v5248 = vmul.f32 %v3185, %v3185
    %v5249 = vmul.f32 %v3809, %v3809
    %v5250 = vmul.f32 %v3811, %v3811
    %v5251 = vmul.f32 %v4338, %v4338
    %v5252 = vmul.f32 %v2563, %v2563
    %v5253 = vmul.f32 %v2565, %v2565
    %v5254 = vmul.f32 %v3189, %v3189
    %v5255 = vmul.f32 %v3191, %v3191
    %v5256 = vmul.f32 %v3815, %v3815
    %v5257 = vmul.f32 %v3817, %v3817
    %v5258 = vmul.f32 %v4343, %v4343
    %v5259 = vmul.f32 %v2567, %v2567
    %v5260 = vmul.f32 %v2569, %v2569
    %v5261 = vmul.f32 %v3193, %v3193
    %v5262 = vmul.f32 %v3195, %v3195
    %v5263 = vmul.f32 %v3819, %v3819
    %v5264 = vmul.f32 %v3821, %v3821
    %v5265 = vmul.f32 %v4346, %v4346
    %v5266 = vmul.f32 %v2573, %v2573
    %v5267 = vmul.f32 %v2575, %v2575
    %v5268 = vmul.f32 %v3199, %v3199
    %v5269 = vmul.f32 %v3201, %v3201
    %v5270 = vmul.f32 %v3825, %v3825
    %v5271 = vmul.f32 %v3827, %v3827
    %v5272 = vmul.f32 %v4351, %v4351
    %v5273 = vmul.f32 %v2577, %v2577
    %v5274 = vmul.f32 %v2579, %v2579
    %v5275 = vmul.f32 %v3203, %v3203
    %v5276 = vmul.f32 %v3205, %v3205
    %v5277 = vmul.f32 %v3829, %v3829
    %v5278 = vmul.f32 %v3831, %v3831
    %v5279 = vmul.f32 %v4354, %v4354
    %v5280 = vmul.f32 %v2583, %v2583
    %v5281 = vmul.f32 %v2585, %v2585
    %v5282 = vmul.f32 %v3209, %v3209
    %v5283 = vmul.f32 %v3211, %v3211
    %v5284 = vmul.f32 %v3835, %v3835
    %v5285 = vmul.f32 %v3837, %v3837
    %v5286 = vmul.f32 %v4359, %v4359
    %v5287 = vmul.f32 %v2587, %v2587
    %v5288 = vmul.f32 %v2589, %v2589
    %v5289 = vmul.f32 %v3213, %v3213
    %v5290 = vmul.f32 %v3215, %v3215
    %v5291 = vmul.f32 %v3839, %v3839
    %v5292 = vmul.f32 %v3841, %v3841
    %v5293 = vmul.f32 %v4362, %v4362
    %v5294 = vmul.f32 %v2593, %v2593
    %v5295 = vmul.f32 %v2595, %v2595
    %v5296 = vmul.f32 %v3219, %v3219
    %v5297 = vmul.f32 %v3221, %v3221
    %v5298 = vmul.f32 %v3845, %v3845
    %v5299 = vmul.f32 %v3847, %v3847
    %v5300 = vmul.f32 %v4367, %v4367
    %v5301 = vmul.f32 %v2597, %v2597
    %v5302 = vmul.f32 %v2599, %v2599
    %v5303 = vmul.f32 %v3223, %v3223
    %v5304 = vmul.f32 %v3225, %v3225
    %v5305 = vmul.f32 %v3849, %v3849
    %v5306 = vmul.f32 %v3851, %v3851
    %v5307 = vmul.f32 %v4370, %v4370
    %v5308 = vmul.f32 %v2603, %v2603
    %v5309 = vmul.f32 %v2605, %v2605
    %v5310 = vmul.f32 %v3229, %v3229
    %v5311 = vmul.f32 %v3231, %v3231
    %v5312 = vmul.f32 %v3855, %v3855
    %v5313 = vmul.f32 %v3857, %v3857
    %v5314 = vmul.f32 %v4375, %v4375
    %v5315 = vmul.f32 %v2607, %v2607
    %v5316 = vmul.f32 %v2609, %v2609
    %v5317 = vmul.f32 %v3233, %v3233
    %v5318 = vmul.f32 %v3235, %v3235
    %v5319 = vmul.f32 %v3859, %v3859
    %v5320 = vmul.f32 %v3861, %v3861
    %v5321 = vmul.f32 %v4378, %v4378
    %v5322 = vmul.f32 %v2613, %v2613
    %v5323 = vmul.f32 %v2615, %v2615
    %v5324 = vmul.f32 %v3239, %v3239
    %v5325 = vmul.f32 %v3241, %v3241
    %v5326 = vmul.f32 %v3865, %v3865
    %v5327 = vmul.f32 %v3867, %v3867
    %v5328 = vmul.f32 %v4383, %v4383
    %v5329 = vmul.f32 %v2617, %v2617
    %v5330 = vmul.f32 %v2619, %v2619
    %v5331 = vmul.f32 %v3243, %v3243
    %v5332 = vmul.f32 %v3245, %v3245
    %v5333 = vmul.f32 %v3869, %v3869
    %v5334 = vmul.f32 %v3871, %v3871
    %v5335 = vmul.f32 %v4386, %v4386
    %v5336 = vmul.f32 %v2623, %v2623
    %v5337 = vmul.f32 %v2625, %v2625
    %v5338 = vmul.f32 %v3249, %v3249
    %v5339 = vmul.f32 %v3251, %v3251
    %v5340 = vmul.f32 %v3875, %v3875
    %v5341 = vmul.f32 %v3877, %v3877
    %v5342 = vmul.f32 %v4391, %v4391
    %v5343 = vmul.f32 %v2627, %v2627
    %v5344 = vmul.f32 %v2629, %v2629
    %v5345 = vmul.f32 %v3253, %v3253
    %v5346 = vmul.f32 %v3255, %v3255
    %v5347 = vmul.f32 %v3879, %v3879
    %v5348 = vmul.f32 %v3881, %v3881
    %v5349 = vmul.f32 %v4394, %v4394
    %v5350 = vadd.f32 %v4958, %v4959
    %v5351 = vadd.f32 %v5350, %v4960
    %v5352 = vadd.f32 %v5351, %v4961
    %v5353 = vadd.f32 %v5352, %v4962
    %v5354 = vadd.f32 %v5353, %v4963
    %v5355 = vsel %vm4402, %v4964, 0.0
    %v5356 = vadd.f32 %v5354, %v5355
    %5357 = vadd.xlane.f32.xlu0 %v5356
    %v5358 = vpop.xlane.xlu0 %5357
    %v5359 = vadd.f32 %v4965, %v4966
    %v5360 = vadd.f32 %v5359, %v4967
    %v5361 = vadd.f32 %v5360, %v4968
    %v5362 = vadd.f32 %v5361, %v4969
    %v5363 = vadd.f32 %v5362, %v4970
    %v5364 = vsel %vm4402, %v4971, 0.0
    %v5365 = vadd.f32 %v5363, %v5364
    %5366 = vadd.xlane.f32.xlu0 %v5365
    %v5367 = vpop.xlane.xlu0 %5366
    %v5368 = vadd.f32 %v4972, %v4973
    %v5369 = vadd.f32 %v5368, %v4974
    %v5370 = vadd.f32 %v5369, %v4975
    %v5371 = vadd.f32 %v5370, %v4976
    %v5372 = vadd.f32 %v5371, %v4977
    %v5373 = vsel %vm4402, %v4978, 0.0
    %v5374 = vadd.f32 %v5372, %v5373
    %5375 = vadd.xlane.f32.xlu0 %v5374
    %v5376 = vpop.xlane.xlu0 %5375
    %v5377 = vadd.f32 %v4979, %v4980
    %v5378 = vadd.f32 %v5377, %v4981
    %v5379 = vadd.f32 %v5378, %v4982
    %v5380 = vadd.f32 %v5379, %v4983
    %v5381 = vadd.f32 %v5380, %v4984
    %v5382 = vsel %vm4402, %v4985, 0.0
    %v5383 = vadd.f32 %v5381, %v5382
    %5384 = vadd.xlane.f32.xlu0 %v5383
    %v5385 = vpop.xlane.xlu0 %5384
    %v5386 = vadd.f32 %v4986, %v4987
    %v5387 = vadd.f32 %v5386, %v4988
    %v5388 = vadd.f32 %v5387, %v4989
    %v5389 = vadd.f32 %v5388, %v4990
    %v5390 = vadd.f32 %v5389, %v4991
    %v5391 = vsel %vm4402, %v4992, 0.0
    %v5392 = vadd.f32 %v5390, %v5391
    %5393 = vadd.xlane.f32.xlu0 %v5392
    %v5394 = vpop.xlane.xlu0 %5393
    %v5395 = vadd.f32 %v4993, %v4994
    %v5396 = vadd.f32 %v5395, %v4995
    %v5397 = vadd.f32 %v5396, %v4996
    %v5398 = vadd.f32 %v5397, %v4997
    %v5399 = vadd.f32 %v5398, %v4998
    %v5400 = vsel %vm4402, %v4999, 0.0
    %v5401 = vadd.f32 %v5399, %v5400
    %5402 = vadd.xlane.f32.xlu0 %v5401
    %v5403 = vpop.xlane.xlu0 %5402
    %v5404 = vadd.f32 %v5000, %v5001
    %v5405 = vadd.f32 %v5404, %v5002
    %v5406 = vadd.f32 %v5405, %v5003
    %v5407 = vadd.f32 %v5406, %v5004
    %v5408 = vadd.f32 %v5407, %v5005
    %v5409 = vsel %vm4402, %v5006, 0.0
    %v5410 = vadd.f32 %v5408, %v5409
    %5411 = vadd.xlane.f32.xlu0 %v5410
    %v5412 = vpop.xlane.xlu0 %5411
    %v5413 = vadd.f32 %v5007, %v5008
    %v5414 = vadd.f32 %v5413, %v5009
    %v5415 = vadd.f32 %v5414, %v5010
    %v5416 = vadd.f32 %v5415, %v5011
    %v5417 = vadd.f32 %v5416, %v5012
    %v5418 = vsel %vm4402, %v5013, 0.0
    %v5419 = vadd.f32 %v5417, %v5418
    %5420 = vadd.xlane.f32.xlu0 %v5419
    %v5421 = vpop.xlane.xlu0 %5420
    %v5422 = vadd.f32 %v5014, %v5015
    %v5423 = vadd.f32 %v5422, %v5016
    %v5424 = vadd.f32 %v5423, %v5017
    %v5425 = vadd.f32 %v5424, %v5018
    %v5426 = vadd.f32 %v5425, %v5019
    %v5427 = vsel %vm4402, %v5020, 0.0
    %v5428 = vadd.f32 %v5426, %v5427
    %5429 = vadd.xlane.f32.xlu0 %v5428
    %v5430 = vpop.xlane.xlu0 %5429
    %v5431 = vadd.f32 %v5021, %v5022
    %v5432 = vadd.f32 %v5431, %v5023
    %v5433 = vadd.f32 %v5432, %v5024
    %v5434 = vadd.f32 %v5433, %v5025
    %v5435 = vadd.f32 %v5434, %v5026
    %v5436 = vsel %vm4402, %v5027, 0.0
    %v5437 = vadd.f32 %v5435, %v5436
    %5438 = vadd.xlane.f32.xlu0 %v5437
    %v5439 = vpop.xlane.xlu0 %5438
    %v5440 = vadd.f32 %v5028, %v5029
    %v5441 = vadd.f32 %v5440, %v5030
    %v5442 = vadd.f32 %v5441, %v5031
    %v5443 = vadd.f32 %v5442, %v5032
    %v5444 = vadd.f32 %v5443, %v5033
    %v5445 = vsel %vm4402, %v5034, 0.0
    %v5446 = vadd.f32 %v5444, %v5445
    %5447 = vadd.xlane.f32.xlu0 %v5446
    %v5448 = vpop.xlane.xlu0 %5447
    %v5449 = vadd.f32 %v5035, %v5036
    %v5450 = vadd.f32 %v5449, %v5037
    %v5451 = vadd.f32 %v5450, %v5038
    %v5452 = vadd.f32 %v5451, %v5039
    %v5453 = vadd.f32 %v5452, %v5040
    %v5454 = vsel %vm4402, %v5041, 0.0
    %v5455 = vadd.f32 %v5453, %v5454
    %5456 = vadd.xlane.f32.xlu0 %v5455
    %v5457 = vpop.xlane.xlu0 %5456
    %v5458 = vadd.f32 %v5042, %v5043
    %v5459 = vadd.f32 %v5458, %v5044
    %v5460 = vadd.f32 %v5459, %v5045
    %v5461 = vadd.f32 %v5460, %v5046
    %v5462 = vadd.f32 %v5461, %v5047
    %v5463 = vsel %vm4402, %v5048, 0.0
    %v5464 = vadd.f32 %v5462, %v5463
    %5465 = vadd.xlane.f32.xlu0 %v5464
    %v5466 = vpop.xlane.xlu0 %5465
    %v5467 = vadd.f32 %v5049, %v5050
    %v5468 = vadd.f32 %v5467, %v5051
    %v5469 = vadd.f32 %v5468, %v5052
    %v5470 = vadd.f32 %v5469, %v5053
    %v5471 = vadd.f32 %v5470, %v5054
    %v5472 = vsel %vm4402, %v5055, 0.0
    %v5473 = vadd.f32 %v5471, %v5472
    %5474 = vadd.xlane.f32.xlu0 %v5473
    %v5475 = vpop.xlane.xlu0 %5474
    %v5476 = vadd.f32 %v5056, %v5057
    %v5477 = vadd.f32 %v5476, %v5058
    %v5478 = vadd.f32 %v5477, %v5059
    %v5479 = vadd.f32 %v5478, %v5060
    %v5480 = vadd.f32 %v5479, %v5061
    %v5481 = vsel %vm4402, %v5062, 0.0
    %v5482 = vadd.f32 %v5480, %v5481
    %5483 = vadd.xlane.f32.xlu0 %v5482
    %v5484 = vpop.xlane.xlu0 %5483
    %v5485 = vadd.f32 %v5063, %v5064
    %v5486 = vadd.f32 %v5485, %v5065
    %v5487 = vadd.f32 %v5486, %v5066
    %v5488 = vadd.f32 %v5487, %v5067
    %v5489 = vadd.f32 %v5488, %v5068
    %v5490 = vsel %vm4402, %v5069, 0.0
    %v5491 = vadd.f32 %v5489, %v5490
    %5492 = vadd.xlane.f32.xlu0 %v5491
    %v5493 = vpop.xlane.xlu0 %5492
    %v5494 = vadd.f32 %v5070, %v5071
    %v5495 = vadd.f32 %v5494, %v5072
    %v5496 = vadd.f32 %v5495, %v5073
    %v5497 = vadd.f32 %v5496, %v5074
    %v5498 = vadd.f32 %v5497, %v5075
    %v5499 = vsel %vm4402, %v5076, 0.0
    %v5500 = vadd.f32 %v5498, %v5499
    %5501 = vadd.xlane.f32.xlu0 %v5500
    %v5502 = vpop.xlane.xlu0 %5501
    %v5503 = vadd.f32 %v5077, %v5078
    %v5504 = vadd.f32 %v5503, %v5079
    %v5505 = vadd.f32 %v5504, %v5080
    %v5506 = vadd.f32 %v5505, %v5081
    %v5507 = vadd.f32 %v5506, %v5082
    %v5508 = vsel %vm4402, %v5083, 0.0
    %v5509 = vadd.f32 %v5507, %v5508
    %5510 = vadd.xlane.f32.xlu0 %v5509
    %v5511 = vpop.xlane.xlu0 %5510
    %v5512 = vadd.f32 %v5084, %v5085
    %v5513 = vadd.f32 %v5512, %v5086
    %v5514 = vadd.f32 %v5513, %v5087
    %v5515 = vadd.f32 %v5514, %v5088
    %v5516 = vadd.f32 %v5515, %v5089
    %v5517 = vsel %vm4402, %v5090, 0.0
    %v5518 = vadd.f32 %v5516, %v5517
    %5519 = vadd.xlane.f32.xlu0 %v5518
    %v5520 = vpop.xlane.xlu0 %5519
    %v5521 = vadd.f32 %v5091, %v5092
    %v5522 = vadd.f32 %v5521, %v5093
    %v5523 = vadd.f32 %v5522, %v5094
    %v5524 = vadd.f32 %v5523, %v5095
    %v5525 = vadd.f32 %v5524, %v5096
    %v5526 = vsel %vm4402, %v5097, 0.0
    %v5527 = vadd.f32 %v5525, %v5526
    %5528 = vadd.xlane.f32.xlu0 %v5527
    %v5529 = vpop.xlane.xlu0 %5528
    %v5530 = vadd.f32 %v5098, %v5099
    %v5531 = vadd.f32 %v5530, %v5100
    %v5532 = vadd.f32 %v5531, %v5101
    %v5533 = vadd.f32 %v5532, %v5102
    %v5534 = vadd.f32 %v5533, %v5103
    %v5535 = vsel %vm4402, %v5104, 0.0
    %v5536 = vadd.f32 %v5534, %v5535
    %5537 = vadd.xlane.f32.xlu0 %v5536
    %v5538 = vpop.xlane.xlu0 %5537
    %v5539 = vadd.f32 %v5105, %v5106
    %v5540 = vadd.f32 %v5539, %v5107
    %v5541 = vadd.f32 %v5540, %v5108
    %v5542 = vadd.f32 %v5541, %v5109
    %v5543 = vadd.f32 %v5542, %v5110
    %v5544 = vsel %vm4402, %v5111, 0.0
    %v5545 = vadd.f32 %v5543, %v5544
    %5546 = vadd.xlane.f32.xlu0 %v5545
    %v5547 = vpop.xlane.xlu0 %5546
    %v5548 = vadd.f32 %v5112, %v5113
    %v5549 = vadd.f32 %v5548, %v5114
    %v5550 = vadd.f32 %v5549, %v5115
    %v5551 = vadd.f32 %v5550, %v5116
    %v5552 = vadd.f32 %v5551, %v5117
    %v5553 = vsel %vm4402, %v5118, 0.0
    %v5554 = vadd.f32 %v5552, %v5553
    %5555 = vadd.xlane.f32.xlu0 %v5554
    %v5556 = vpop.xlane.xlu0 %5555
    %v5557 = vadd.f32 %v5119, %v5120
    %v5558 = vadd.f32 %v5557, %v5121
    %v5559 = vadd.f32 %v5558, %v5122
    %v5560 = vadd.f32 %v5559, %v5123
    %v5561 = vadd.f32 %v5560, %v5124
    %v5562 = vsel %vm4402, %v5125, 0.0
    %v5563 = vadd.f32 %v5561, %v5562
    %5564 = vadd.xlane.f32.xlu0 %v5563
    %v5565 = vpop.xlane.xlu0 %5564
    %v5566 = vadd.f32 %v5126, %v5127
    %v5567 = vadd.f32 %v5566, %v5128
    %v5568 = vadd.f32 %v5567, %v5129
    %v5569 = vadd.f32 %v5568, %v5130
    %v5570 = vadd.f32 %v5569, %v5131
    %v5571 = vsel %vm4402, %v5132, 0.0
    %v5572 = vadd.f32 %v5570, %v5571
    %5573 = vadd.xlane.f32.xlu0 %v5572
    %v5574 = vpop.xlane.xlu0 %5573
    %v5575 = vadd.f32 %v5133, %v5134
    %v5576 = vadd.f32 %v5575, %v5135
    %v5577 = vadd.f32 %v5576, %v5136
    %v5578 = vadd.f32 %v5577, %v5137
    %v5579 = vadd.f32 %v5578, %v5138
    %v5580 = vsel %vm4402, %v5139, 0.0
    %v5581 = vadd.f32 %v5579, %v5580
    %5582 = vadd.xlane.f32.xlu0 %v5581
    %v5583 = vpop.xlane.xlu0 %5582
    %v5584 = vadd.f32 %v5140, %v5141
    %v5585 = vadd.f32 %v5584, %v5142
    %v5586 = vadd.f32 %v5585, %v5143
    %v5587 = vadd.f32 %v5586, %v5144
    %v5588 = vadd.f32 %v5587, %v5145
    %v5589 = vsel %vm4402, %v5146, 0.0
    %v5590 = vadd.f32 %v5588, %v5589
    %5591 = vadd.xlane.f32.xlu0 %v5590
    %v5592 = vpop.xlane.xlu0 %5591
    %v5593 = vadd.f32 %v5147, %v5148
    %v5594 = vadd.f32 %v5593, %v5149
    %v5595 = vadd.f32 %v5594, %v5150
    %v5596 = vadd.f32 %v5595, %v5151
    %v5597 = vadd.f32 %v5596, %v5152
    %v5598 = vsel %vm4402, %v5153, 0.0
    %v5599 = vadd.f32 %v5597, %v5598
    %5600 = vadd.xlane.f32.xlu0 %v5599
    %v5601 = vpop.xlane.xlu0 %5600
    %v5602 = vadd.f32 %v5154, %v5155
    %v5603 = vadd.f32 %v5602, %v5156
    %v5604 = vadd.f32 %v5603, %v5157
    %v5605 = vadd.f32 %v5604, %v5158
    %v5606 = vadd.f32 %v5605, %v5159
    %v5607 = vsel %vm4402, %v5160, 0.0
    %v5608 = vadd.f32 %v5606, %v5607
    %5609 = vadd.xlane.f32.xlu0 %v5608
    %v5610 = vpop.xlane.xlu0 %5609
    %v5611 = vadd.f32 %v5161, %v5162
    %v5612 = vadd.f32 %v5611, %v5163
    %v5613 = vadd.f32 %v5612, %v5164
    %v5614 = vadd.f32 %v5613, %v5165
    %v5615 = vadd.f32 %v5614, %v5166
    %v5616 = vsel %vm4402, %v5167, 0.0
    %v5617 = vadd.f32 %v5615, %v5616
    %5618 = vadd.xlane.f32.xlu0 %v5617
    %v5619 = vpop.xlane.xlu0 %5618
    %v5620 = vadd.f32 %v5168, %v5169
    %v5621 = vadd.f32 %v5620, %v5170
    %v5622 = vadd.f32 %v5621, %v5171
    %v5623 = vadd.f32 %v5622, %v5172
    %v5624 = vadd.f32 %v5623, %v5173
    %v5625 = vsel %vm4402, %v5174, 0.0
    %v5626 = vadd.f32 %v5624, %v5625
    %5627 = vadd.xlane.f32.xlu0 %v5626
    %v5628 = vpop.xlane.xlu0 %5627
    %v5629 = vadd.f32 %v5175, %v5176
    %v5630 = vadd.f32 %v5629, %v5177
    %v5631 = vadd.f32 %v5630, %v5178
    %v5632 = vadd.f32 %v5631, %v5179
    %v5633 = vadd.f32 %v5632, %v5180
    %v5634 = vsel %vm4402, %v5181, 0.0
    %v5635 = vadd.f32 %v5633, %v5634
    %5636 = vadd.xlane.f32.xlu0 %v5635
    %v5637 = vpop.xlane.xlu0 %5636
    %v5638 = vadd.f32 %v5182, %v5183
    %v5639 = vadd.f32 %v5638, %v5184
    %v5640 = vadd.f32 %v5639, %v5185
    %v5641 = vadd.f32 %v5640, %v5186
    %v5642 = vadd.f32 %v5641, %v5187
    %v5643 = vsel %vm4402, %v5188, 0.0
    %v5644 = vadd.f32 %v5642, %v5643
    %5645 = vadd.xlane.f32.xlu0 %v5644
    %v5646 = vpop.xlane.xlu0 %5645
    %v5647 = vadd.f32 %v5189, %v5190
    %v5648 = vadd.f32 %v5647, %v5191
    %v5649 = vadd.f32 %v5648, %v5192
    %v5650 = vadd.f32 %v5649, %v5193
    %v5651 = vadd.f32 %v5650, %v5194
    %v5652 = vsel %vm4402, %v5195, 0.0
    %v5653 = vadd.f32 %v5651, %v5652
    %5654 = vadd.xlane.f32.xlu0 %v5653
    %v5655 = vpop.xlane.xlu0 %5654
    %v5656 = vadd.f32 %v5196, %v5197
    %v5657 = vadd.f32 %v5656, %v5198
    %v5658 = vadd.f32 %v5657, %v5199
    %v5659 = vadd.f32 %v5658, %v5200
    %v5660 = vadd.f32 %v5659, %v5201
    %v5661 = vsel %vm4402, %v5202, 0.0
    %v5662 = vadd.f32 %v5660, %v5661
    %5663 = vadd.xlane.f32.xlu0 %v5662
    %v5664 = vpop.xlane.xlu0 %5663
    %v5665 = vadd.f32 %v5203, %v5204
    %v5666 = vadd.f32 %v5665, %v5205
    %v5667 = vadd.f32 %v5666, %v5206
    %v5668 = vadd.f32 %v5667, %v5207
    %v5669 = vadd.f32 %v5668, %v5208
    %v5670 = vsel %vm4402, %v5209, 0.0
    %v5671 = vadd.f32 %v5669, %v5670
    %5672 = vadd.xlane.f32.xlu0 %v5671
    %v5673 = vpop.xlane.xlu0 %5672
    %v5674 = vadd.f32 %v5210, %v5211
    %v5675 = vadd.f32 %v5674, %v5212
    %v5676 = vadd.f32 %v5675, %v5213
    %v5677 = vadd.f32 %v5676, %v5214
    %v5678 = vadd.f32 %v5677, %v5215
    %v5679 = vsel %vm4402, %v5216, 0.0
    %v5680 = vadd.f32 %v5678, %v5679
    %5681 = vadd.xlane.f32.xlu0 %v5680
    %v5682 = vpop.xlane.xlu0 %5681
    %v5683 = vadd.f32 %v5217, %v5218
    %v5684 = vadd.f32 %v5683, %v5219
    %v5685 = vadd.f32 %v5684, %v5220
    %v5686 = vadd.f32 %v5685, %v5221
    %v5687 = vadd.f32 %v5686, %v5222
    %v5688 = vsel %vm4402, %v5223, 0.0
    %v5689 = vadd.f32 %v5687, %v5688
    %5690 = vadd.xlane.f32.xlu0 %v5689
    %v5691 = vpop.xlane.xlu0 %5690
    %v5692 = vadd.f32 %v5224, %v5225
    %v5693 = vadd.f32 %v5692, %v5226
    %v5694 = vadd.f32 %v5693, %v5227
    %v5695 = vadd.f32 %v5694, %v5228
    %v5696 = vadd.f32 %v5695, %v5229
    %v5697 = vsel %vm4402, %v5230, 0.0
    %v5698 = vadd.f32 %v5696, %v5697
    %5699 = vadd.xlane.f32.xlu0 %v5698
    %v5700 = vpop.xlane.xlu0 %5699
    %v5701 = vadd.f32 %v5231, %v5232
    %v5702 = vadd.f32 %v5701, %v5233
    %v5703 = vadd.f32 %v5702, %v5234
    %v5704 = vadd.f32 %v5703, %v5235
    %v5705 = vadd.f32 %v5704, %v5236
    %v5706 = vsel %vm4402, %v5237, 0.0
    %v5707 = vadd.f32 %v5705, %v5706
    %5708 = vadd.xlane.f32.xlu0 %v5707
    %v5709 = vpop.xlane.xlu0 %5708
    %v5710 = vadd.f32 %v5238, %v5239
    %v5711 = vadd.f32 %v5710, %v5240
    %v5712 = vadd.f32 %v5711, %v5241
    %v5713 = vadd.f32 %v5712, %v5242
    %v5714 = vadd.f32 %v5713, %v5243
    %v5715 = vsel %vm4402, %v5244, 0.0
    %v5716 = vadd.f32 %v5714, %v5715
    %5717 = vadd.xlane.f32.xlu0 %v5716
    %v5718 = vpop.xlane.xlu0 %5717
    %v5719 = vadd.f32 %v5245, %v5246
    %v5720 = vadd.f32 %v5719, %v5247
    %v5721 = vadd.f32 %v5720, %v5248
    %v5722 = vadd.f32 %v5721, %v5249
    %v5723 = vadd.f32 %v5722, %v5250
    %v5724 = vsel %vm4402, %v5251, 0.0
    %v5725 = vadd.f32 %v5723, %v5724
    %5726 = vadd.xlane.f32.xlu0 %v5725
    %v5727 = vpop.xlane.xlu0 %5726
    %v5728 = vadd.f32 %v5252, %v5253
    %v5729 = vadd.f32 %v5728, %v5254
    %v5730 = vadd.f32 %v5729, %v5255
    %v5731 = vadd.f32 %v5730, %v5256
    %v5732 = vadd.f32 %v5731, %v5257
    %v5733 = vsel %vm4402, %v5258, 0.0
    %v5734 = vadd.f32 %v5732, %v5733
    %5735 = vadd.xlane.f32.xlu0 %v5734
    %v5736 = vpop.xlane.xlu0 %5735
    %v5737 = vadd.f32 %v5259, %v5260
    %v5738 = vadd.f32 %v5737, %v5261
    %v5739 = vadd.f32 %v5738, %v5262
    %v5740 = vadd.f32 %v5739, %v5263
    %v5741 = vadd.f32 %v5740, %v5264
    %v5742 = vsel %vm4402, %v5265, 0.0
    %v5743 = vadd.f32 %v5741, %v5742
    %5744 = vadd.xlane.f32.xlu0 %v5743
    %v5745 = vpop.xlane.xlu0 %5744
    %v5746 = vadd.f32 %v5266, %v5267
    %v5747 = vadd.f32 %v5746, %v5268
    %v5748 = vadd.f32 %v5747, %v5269
    %v5749 = vadd.f32 %v5748, %v5270
    %v5750 = vadd.f32 %v5749, %v5271
    %v5751 = vsel %vm4402, %v5272, 0.0
    %v5752 = vadd.f32 %v5750, %v5751
    %5753 = vadd.xlane.f32.xlu0 %v5752
    %v5754 = vpop.xlane.xlu0 %5753
    %v5755 = vadd.f32 %v5273, %v5274
    %v5756 = vadd.f32 %v5755, %v5275
    %v5757 = vadd.f32 %v5756, %v5276
    %v5758 = vadd.f32 %v5757, %v5277
    %v5759 = vadd.f32 %v5758, %v5278
    %v5760 = vsel %vm4402, %v5279, 0.0
    %v5761 = vadd.f32 %v5759, %v5760
    %5762 = vadd.xlane.f32.xlu0 %v5761
    %v5763 = vpop.xlane.xlu0 %5762
    %v5764 = vadd.f32 %v5280, %v5281
    %v5765 = vadd.f32 %v5764, %v5282
    %v5766 = vadd.f32 %v5765, %v5283
    %v5767 = vadd.f32 %v5766, %v5284
    %v5768 = vadd.f32 %v5767, %v5285
    %v5769 = vsel %vm4402, %v5286, 0.0
    %v5770 = vadd.f32 %v5768, %v5769
    %5771 = vadd.xlane.f32.xlu0 %v5770
    %v5772 = vpop.xlane.xlu0 %5771
    %v5773 = vadd.f32 %v5287, %v5288
    %v5774 = vadd.f32 %v5773, %v5289
    %v5775 = vadd.f32 %v5774, %v5290
    %v5776 = vadd.f32 %v5775, %v5291
    %v5777 = vadd.f32 %v5776, %v5292
    %v5778 = vsel %vm4402, %v5293, 0.0
    %v5779 = vadd.f32 %v5777, %v5778
    %5780 = vadd.xlane.f32.xlu0 %v5779
    %v5781 = vpop.xlane.xlu0 %5780
    %v5782 = vadd.f32 %v5294, %v5295
    %v5783 = vadd.f32 %v5782, %v5296
    %v5784 = vadd.f32 %v5783, %v5297
    %v5785 = vadd.f32 %v5784, %v5298
    %v5786 = vadd.f32 %v5785, %v5299
    %v5787 = vsel %vm4402, %v5300, 0.0
    %v5788 = vadd.f32 %v5786, %v5787
    %5789 = vadd.xlane.f32.xlu0 %v5788
    %v5790 = vpop.xlane.xlu0 %5789
    %v5791 = vadd.f32 %v5301, %v5302
    %v5792 = vadd.f32 %v5791, %v5303
    %v5793 = vadd.f32 %v5792, %v5304
    %v5794 = vadd.f32 %v5793, %v5305
    %v5795 = vadd.f32 %v5794, %v5306
    %v5796 = vsel %vm4402, %v5307, 0.0
    %v5797 = vadd.f32 %v5795, %v5796
    %5798 = vadd.xlane.f32.xlu0 %v5797
    %v5799 = vpop.xlane.xlu0 %5798
    %v5800 = vadd.f32 %v5308, %v5309
    %v5801 = vadd.f32 %v5800, %v5310
    %v5802 = vadd.f32 %v5801, %v5311
    %v5803 = vadd.f32 %v5802, %v5312
    %v5804 = vadd.f32 %v5803, %v5313
    %v5805 = vsel %vm4402, %v5314, 0.0
    %v5806 = vadd.f32 %v5804, %v5805
    %5807 = vadd.xlane.f32.xlu0 %v5806
    %v5808 = vpop.xlane.xlu0 %5807
    %v5809 = vadd.f32 %v5315, %v5316
    %v5810 = vadd.f32 %v5809, %v5317
    %v5811 = vadd.f32 %v5810, %v5318
    %v5812 = vadd.f32 %v5811, %v5319
    %v5813 = vadd.f32 %v5812, %v5320
    %v5814 = vsel %vm4402, %v5321, 0.0
    %v5815 = vadd.f32 %v5813, %v5814
    %5816 = vadd.xlane.f32.xlu0 %v5815
    %v5817 = vpop.xlane.xlu0 %5816
    %v5818 = vadd.f32 %v5322, %v5323
    %v5819 = vadd.f32 %v5818, %v5324
    %v5820 = vadd.f32 %v5819, %v5325
    %v5821 = vadd.f32 %v5820, %v5326
    %v5822 = vadd.f32 %v5821, %v5327
    %v5823 = vsel %vm4402, %v5328, 0.0
    %v5824 = vadd.f32 %v5822, %v5823
    %5825 = vadd.xlane.f32.xlu0 %v5824
    %v5826 = vpop.xlane.xlu0 %5825
    %v5827 = vadd.f32 %v5329, %v5330
    %v5828 = vadd.f32 %v5827, %v5331
    %v5829 = vadd.f32 %v5828, %v5332
    %v5830 = vadd.f32 %v5829, %v5333
    %v5831 = vadd.f32 %v5830, %v5334
    %v5832 = vsel %vm4402, %v5335, 0.0
    %v5833 = vadd.f32 %v5831, %v5832
    %5834 = vadd.xlane.f32.xlu0 %v5833
    %v5835 = vpop.xlane.xlu0 %5834
    %v5836 = vadd.f32 %v5336, %v5337
    %v5837 = vadd.f32 %v5836, %v5338
    %v5838 = vadd.f32 %v5837, %v5339
    %v5839 = vadd.f32 %v5838, %v5340
    %v5840 = vadd.f32 %v5839, %v5341
    %v5841 = vsel %vm4402, %v5342, 0.0
    %v5842 = vadd.f32 %v5840, %v5841
    %5843 = vadd.xlane.f32.xlu0 %v5842
    %v5844 = vpop.xlane.xlu0 %5843
    %v5845 = vadd.f32 %v5343, %v5344
    %v5846 = vadd.f32 %v5845, %v5345
    %v5847 = vadd.f32 %v5846, %v5346
    %v5848 = vadd.f32 %v5847, %v5347
    %v5849 = vadd.f32 %v5848, %v5348
    %v5850 = vsel %vm4402, %v5349, 0.0
    %v5851 = vadd.f32 %v5849, %v5850
    %5852 = vadd.xlane.f32.xlu0 %v5851
    %v5853 = vpop.xlane.xlu0 %5852
    %v5854 = vmul.f32 %v5358, 0.0012755102
    %v5855 = vmul.f32 %v5367, 0.0012755102
    %v5856 = vmul.f32 %v5376, 0.0012755102
    %v5857 = vmul.f32 %v5385, 0.0012755102
    %v5858 = vmul.f32 %v5394, 0.0012755102
    %v5859 = vmul.f32 %v5403, 0.0012755102
    %v5860 = vmul.f32 %v5412, 0.0012755102
    %v5861 = vmul.f32 %v5421, 0.0012755102
    %v5862 = vmul.f32 %v5430, 0.0012755102
    %v5863 = vmul.f32 %v5439, 0.0012755102
    %v5864 = vmul.f32 %v5448, 0.0012755102
    %v5865 = vmul.f32 %v5457, 0.0012755102
    %v5866 = vmul.f32 %v5466, 0.0012755102
    %v5867 = vmul.f32 %v5475, 0.0012755102
    %v5868 = vmul.f32 %v5484, 0.0012755102
    %v5869 = vmul.f32 %v5493, 0.0012755102
    %v5870 = vmul.f32 %v5502, 0.0012755102
    %v5871 = vmul.f32 %v5511, 0.0012755102
    %v5872 = vmul.f32 %v5520, 0.0012755102
    %v5873 = vmul.f32 %v5529, 0.0012755102
    %v5874 = vmul.f32 %v5538, 0.0012755102
    %v5875 = vmul.f32 %v5547, 0.0012755102
    %v5876 = vmul.f32 %v5556, 0.0012755102
    %v5877 = vmul.f32 %v5565, 0.0012755102
    %v5878 = vmul.f32 %v5574, 0.0012755102
    %v5879 = vmul.f32 %v5583, 0.0012755102
    %v5880 = vmul.f32 %v5592, 0.0012755102
    %v5881 = vmul.f32 %v5601, 0.0012755102
    %v5882 = vmul.f32 %v5610, 0.0012755102
    %v5883 = vmul.f32 %v5619, 0.0012755102
    %v5884 = vmul.f32 %v5628, 0.0012755102
    %v5885 = vmul.f32 %v5637, 0.0012755102
    %v5886 = vmul.f32 %v5646, 0.0012755102
    %v5887 = vmul.f32 %v5655, 0.0012755102
    %v5888 = vmul.f32 %v5664, 0.0012755102
    %v5889 = vmul.f32 %v5673, 0.0012755102
    %v5890 = vmul.f32 %v5682, 0.0012755102
    %v5891 = vmul.f32 %v5691, 0.0012755102
    %v5892 = vmul.f32 %v5700, 0.0012755102
    %v5893 = vmul.f32 %v5709, 0.0012755102
    %v5894 = vmul.f32 %v5718, 0.0012755102
    %v5895 = vmul.f32 %v5727, 0.0012755102
    %v5896 = vmul.f32 %v5736, 0.0012755102
    %v5897 = vmul.f32 %v5745, 0.0012755102
    %v5898 = vmul.f32 %v5754, 0.0012755102
    %v5899 = vmul.f32 %v5763, 0.0012755102
    %v5900 = vmul.f32 %v5772, 0.0012755102
    %v5901 = vmul.f32 %v5781, 0.0012755102
    %v5902 = vmul.f32 %v5790, 0.0012755102
    %v5903 = vmul.f32 %v5799, 0.0012755102
    %v5904 = vmul.f32 %v5808, 0.0012755102
    %v5905 = vmul.f32 %v5817, 0.0012755102
    %v5906 = vmul.f32 %v5826, 0.0012755102
    %v5907 = vmul.f32 %v5835, 0.0012755102
    %v5908 = vmul.f32 %v5844, 0.0012755102
    %v5909 = vmul.f32 %v5853, 0.0012755102
    %v5910 = vmul.f32 %v4902, %v4902
    %v5911 = vmul.f32 %v4903, %v4903
    %v5912 = vmul.f32 %v4904, %v4904
    %v5913 = vmul.f32 %v4905, %v4905
    %v5914 = vmul.f32 %v4906, %v4906
    %v5915 = vmul.f32 %v4907, %v4907
    %v5916 = vmul.f32 %v4908, %v4908
    %v5917 = vmul.f32 %v4909, %v4909
    %v5918 = vmul.f32 %v4910, %v4910
    %v5919 = vmul.f32 %v4911, %v4911
    %v5920 = vmul.f32 %v4912, %v4912
    %v5921 = vmul.f32 %v4913, %v4913
    %v5922 = vmul.f32 %v4914, %v4914
    %v5923 = vmul.f32 %v4915, %v4915
    %v5924 = vmul.f32 %v4916, %v4916
    %v5925 = vmul.f32 %v4917, %v4917
    %v5926 = vmul.f32 %v4918, %v4918
    %v5927 = vmul.f32 %v4919, %v4919
    %v5928 = vmul.f32 %v4920, %v4920
    %v5929 = vmul.f32 %v4921, %v4921
    %v5930 = vmul.f32 %v4922, %v4922
    %v5931 = vmul.f32 %v4923, %v4923
    %v5932 = vmul.f32 %v4924, %v4924
    %v5933 = vmul.f32 %v4925, %v4925
    %v5934 = vmul.f32 %v4926, %v4926
    %v5935 = vmul.f32 %v4927, %v4927
    %v5936 = vmul.f32 %v4928, %v4928
    %v5937 = vmul.f32 %v4929, %v4929
    %v5938 = vmul.f32 %v4930, %v4930
    %v5939 = vmul.f32 %v4931, %v4931
    %v5940 = vmul.f32 %v4932, %v4932
    %v5941 = vmul.f32 %v4933, %v4933
    %v5942 = vmul.f32 %v4934, %v4934
    %v5943 = vmul.f32 %v4935, %v4935
    %v5944 = vmul.f32 %v4936, %v4936
    %v5945 = vmul.f32 %v4937, %v4937
    %v5946 = vmul.f32 %v4938, %v4938
    %v5947 = vmul.f32 %v4939, %v4939
    %v5948 = vmul.f32 %v4940, %v4940
    %v5949 = vmul.f32 %v4941, %v4941
    %v5950 = vmul.f32 %v4942, %v4942
    %v5951 = vmul.f32 %v4943, %v4943
    %v5952 = vmul.f32 %v4944, %v4944
    %v5953 = vmul.f32 %v4945, %v4945
    %v5954 = vmul.f32 %v4946, %v4946
    %v5955 = vmul.f32 %v4947, %v4947
    %v5956 = vmul.f32 %v4948, %v4948
    %v5957 = vmul.f32 %v4949, %v4949
    %v5958 = vmul.f32 %v4950, %v4950
    %v5959 = vmul.f32 %v4951, %v4951
    %v5960 = vmul.f32 %v4952, %v4952
    %v5961 = vmul.f32 %v4953, %v4953
    %v5962 = vmul.f32 %v4954, %v4954
    %v5963 = vmul.f32 %v4955, %v4955
    %v5964 = vmul.f32 %v4956, %v4956
    %v5965 = vmul.f32 %v4957, %v4957
    %v5966 = vsub.f32 %v5854, %v5910
    %v5967 = vsub.f32 %v5855, %v5911
    %v5968 = vsub.f32 %v5856, %v5912
    %v5969 = vsub.f32 %v5857, %v5913
    %v5970 = vsub.f32 %v5858, %v5914
    %v5971 = vsub.f32 %v5859, %v5915
    %v5972 = vsub.f32 %v5860, %v5916
    %v5973 = vsub.f32 %v5861, %v5917
    %v5974 = vsub.f32 %v5862, %v5918
    %v5975 = vsub.f32 %v5863, %v5919
    %v5976 = vsub.f32 %v5864, %v5920
    %v5977 = vsub.f32 %v5865, %v5921
    %v5978 = vsub.f32 %v5866, %v5922
    %v5979 = vsub.f32 %v5867, %v5923
    %v5980 = vsub.f32 %v5868, %v5924
    %v5981 = vsub.f32 %v5869, %v5925
    %v5982 = vsub.f32 %v5870, %v5926
    %v5983 = vsub.f32 %v5871, %v5927
    %v5984 = vsub.f32 %v5872, %v5928
    %v5985 = vsub.f32 %v5873, %v5929
    %v5986 = vsub.f32 %v5874, %v5930
    %v5987 = vsub.f32 %v5875, %v5931
    %v5988 = vsub.f32 %v5876, %v5932
    %v5989 = vsub.f32 %v5877, %v5933
    %v5990 = vsub.f32 %v5878, %v5934
    %v5991 = vsub.f32 %v5879, %v5935
    %v5992 = vsub.f32 %v5880, %v5936
    %v5993 = vsub.f32 %v5881, %v5937
    %v5994 = vsub.f32 %v5882, %v5938
    %v5995 = vsub.f32 %v5883, %v5939
    %v5996 = vsub.f32 %v5884, %v5940
    %v5997 = vsub.f32 %v5885, %v5941
    %v5998 = vsub.f32 %v5886, %v5942
    %v5999 = vsub.f32 %v5887, %v5943
    %v6000 = vsub.f32 %v5888, %v5944
    %v6001 = vsub.f32 %v5889, %v5945
    %v6002 = vsub.f32 %v5890, %v5946
    %v6003 = vsub.f32 %v5891, %v5947
    %v6004 = vsub.f32 %v5892, %v5948
    %v6005 = vsub.f32 %v5893, %v5949
    %v6006 = vsub.f32 %v5894, %v5950
    %v6007 = vsub.f32 %v5895, %v5951
    %v6008 = vsub.f32 %v5896, %v5952
    %v6009 = vsub.f32 %v5897, %v5953
    %v6010 = vsub.f32 %v5898, %v5954
    %v6011 = vsub.f32 %v5899, %v5955
    %v6012 = vsub.f32 %v5900, %v5956
    %v6013 = vsub.f32 %v5901, %v5957
    %v6014 = vsub.f32 %v5902, %v5958
    %v6015 = vsub.f32 %v5903, %v5959
    %v6016 = vsub.f32 %v5904, %v5960
    %v6017 = vsub.f32 %v5905, %v5961
    %v6018 = vsub.f32 %v5906, %v5962
    %v6019 = vsub.f32 %v5907, %v5963
    %v6020 = vsub.f32 %v5908, %v5964
    %v6021 = vsub.f32 %v5909, %v5965
    %v6022 = vadd.f32 %v5966, 1e-05
    %v6023 = vadd.f32 %v5967, 1e-05
    %v6024 = vadd.f32 %v5968, 1e-05
    %v6025 = vadd.f32 %v5969, 1e-05
    %v6026 = vadd.f32 %v5970, 1e-05
    %v6027 = vadd.f32 %v5971, 1e-05
    %v6028 = vadd.f32 %v5972, 1e-05
    %v6029 = vadd.f32 %v5973, 1e-05
    %v6030 = vadd.f32 %v5974, 1e-05
    %v6031 = vadd.f32 %v5975, 1e-05
    %v6032 = vadd.f32 %v5976, 1e-05
    %v6033 = vadd.f32 %v5977, 1e-05
    %v6034 = vadd.f32 %v5978, 1e-05
    %v6035 = vadd.f32 %v5979, 1e-05
    %v6036 = vadd.f32 %v5980, 1e-05
    %v6037 = vadd.f32 %v5981, 1e-05
    %v6038 = vadd.f32 %v5982, 1e-05
    %v6039 = vadd.f32 %v5983, 1e-05
    %v6040 = vadd.f32 %v5984, 1e-05
    %v6041 = vadd.f32 %v5985, 1e-05
    %v6042 = vadd.f32 %v5986, 1e-05
    %v6043 = vadd.f32 %v5987, 1e-05
    %v6044 = vadd.f32 %v5988, 1e-05
    %v6045 = vadd.f32 %v5989, 1e-05
    %v6046 = vadd.f32 %v5990, 1e-05
    %v6047 = vadd.f32 %v5991, 1e-05
    %v6048 = vadd.f32 %v5992, 1e-05
    %v6049 = vadd.f32 %v5993, 1e-05
    %v6050 = vadd.f32 %v5994, 1e-05
    %v6051 = vadd.f32 %v5995, 1e-05
    %v6052 = vadd.f32 %v5996, 1e-05
    %v6053 = vadd.f32 %v5997, 1e-05
    %v6054 = vadd.f32 %v5998, 1e-05
    %v6055 = vadd.f32 %v5999, 1e-05
    %v6056 = vadd.f32 %v6000, 1e-05
    %v6057 = vadd.f32 %v6001, 1e-05
    %v6058 = vadd.f32 %v6002, 1e-05
    %v6059 = vadd.f32 %v6003, 1e-05
    %v6060 = vadd.f32 %v6004, 1e-05
    %v6061 = vadd.f32 %v6005, 1e-05
    %v6062 = vadd.f32 %v6006, 1e-05
    %v6063 = vadd.f32 %v6007, 1e-05
    %v6064 = vadd.f32 %v6008, 1e-05
    %v6065 = vadd.f32 %v6009, 1e-05
    %v6066 = vadd.f32 %v6010, 1e-05
    %v6067 = vadd.f32 %v6011, 1e-05
    %v6068 = vadd.f32 %v6012, 1e-05
    %v6069 = vadd.f32 %v6013, 1e-05
    %v6070 = vadd.f32 %v6014, 1e-05
    %v6071 = vadd.f32 %v6015, 1e-05
    %v6072 = vadd.f32 %v6016, 1e-05
    %v6073 = vadd.f32 %v6017, 1e-05
    %v6074 = vadd.f32 %v6018, 1e-05
    %v6075 = vadd.f32 %v6019, 1e-05
    %v6076 = vadd.f32 %v6020, 1e-05
    %v6077 = vadd.f32 %v6021, 1e-05
    %v6078 = vrsqrt.pop %v6022
    %v6079 = vrsqrt.pop %v6023
    %v6080 = vrsqrt.pop %v6024
    %v6081 = vrsqrt.pop %v6025
    %v6082 = vrsqrt.pop %v6026
    %v6083 = vrsqrt.pop %v6027
    %v6084 = vrsqrt.pop %v6028
    %v6085 = vrsqrt.pop %v6029
    %v6086 = vrsqrt.pop %v6030
    %v6087 = vrsqrt.pop %v6031
    %v6088 = vrsqrt.pop %v6032
    %v6089 = vrsqrt.pop %v6033
    %v6090 = vrsqrt.pop %v6034
    %v6091 = vrsqrt.pop %v6035
    %v6092 = vrsqrt.pop %v6036
    %v6093 = vrsqrt.pop %v6037
    %v6094 = vrsqrt.pop %v6038
    %v6095 = vrsqrt.pop %v6039
    %v6096 = vrsqrt.pop %v6040
    %v6097 = vrsqrt.pop %v6041
    %v6098 = vrsqrt.pop %v6042
    %v6099 = vrsqrt.pop %v6043
    %v6100 = vrsqrt.pop %v6044
    %v6101 = vrsqrt.pop %v6045
    %v6102 = vrsqrt.pop %v6046
    %v6103 = vrsqrt.pop %v6047
    %v6104 = vrsqrt.pop %v6048
    %v6105 = vrsqrt.pop %v6049
    %v6106 = vrsqrt.pop %v6050
    %v6107 = vrsqrt.pop %v6051
    %v6108 = vrsqrt.pop %v6052
    %v6109 = vrsqrt.pop %v6053
    %v6110 = vrsqrt.pop %v6054
    %v6111 = vrsqrt.pop %v6055
    %v6112 = vrsqrt.pop %v6056
    %v6113 = vrsqrt.pop %v6057
    %v6114 = vrsqrt.pop %v6058
    %v6115 = vrsqrt.pop %v6059
    %v6116 = vrsqrt.pop %v6060
    %v6117 = vrsqrt.pop %v6061
    %v6118 = vrsqrt.pop %v6062
    %v6119 = vrsqrt.pop %v6063
    %v6120 = vrsqrt.pop %v6064
    %v6121 = vrsqrt.pop %v6065
    %v6122 = vrsqrt.pop %v6066
    %v6123 = vrsqrt.pop %v6067
    %v6124 = vrsqrt.pop %v6068
    %v6125 = vrsqrt.pop %v6069
    %v6126 = vrsqrt.pop %v6070
    %v6127 = vrsqrt.pop %v6071
    %v6128 = vrsqrt.pop %v6072
    %v6129 = vrsqrt.pop %v6073
    %v6130 = vrsqrt.pop %v6074
    %v6131 = vrsqrt.pop %v6075
    %v6132 = vrsqrt.pop %v6076
    %v6133 = vrsqrt.pop %v6077
    %v6134 = vld [vmem:[%s2] sm:$0xff]
    %v6135 = vld [vmem:[%s2 + $0x8] sm:$0xff]
    %v6136 = vld [vmem:[%s2 + $0x10] sm:$0xff]
    %v6137 = vld [vmem:[%s2 + $0x18] sm:$0xff]
    %v6138 = vld [vmem:[%s2 + $0x20] sm:$0xff]
    %v6139 = vld [vmem:[%s2 + $0x28] sm:$0xff]
    %v6140 = vld [vmem:[%s2 + $0x30] sm:$0xff]
    %v6141 = vld [vmem:[%s2 + $0x38] sm:$0xff]
    %v6142 = vld [vmem:[%s2 + $0x40] sm:$0xff]
    %v6143 = vld [vmem:[%s2 + $0x48] sm:$0xff]
    %v6144 = vld [vmem:[%s2 + $0x50] sm:$0xff]
    %v6145 = vld [vmem:[%s2 + $0x58] sm:$0xff]
    %v6146 = vld [vmem:[%s2 + $0x60] sm:$0xff]
    %v6147 = vld [vmem:[%s2 + $0x68] sm:$0xff]
    %v6148 = vld [vmem:[%s2 + $0x70] sm:$0xff]
    %v6149 = vld [vmem:[%s2 + $0x78] sm:$0xff]
    %v6150 = vld [vmem:[%s2 + $0x80] sm:$0xff]
    %v6151 = vld [vmem:[%s2 + $0x88] sm:$0xff]
    %v6152 = vld [vmem:[%s2 + $0x90] sm:$0xff]
    %v6153 = vld [vmem:[%s2 + $0x98] sm:$0xff]
    %v6154 = vld [vmem:[%s2 + $0xa0] sm:$0xff]
    %v6155 = vld [vmem:[%s2 + $0xa8] sm:$0xff]
    %v6156 = vld [vmem:[%s2 + $0xb0] sm:$0xff]
    %v6157 = vld [vmem:[%s2 + $0xb8] sm:$0xff]
    %v6158 = vld [vmem:[%s2 + $0xc0] sm:$0xff]
    %v6159 = vld [vmem:[%s2 + $0xc8] sm:$0xff]
    %v6160 = vld [vmem:[%s2 + $0xd0] sm:$0xff]
    %v6161 = vld [vmem:[%s2 + $0xd8] sm:$0xff]
    %v6162 = vld [vmem:[%s2 + $0xe0] sm:$0xff]
    %v6163 = vld [vmem:[%s2 + $0xe8] sm:$0xff]
    %v6164 = vld [vmem:[%s2 + $0xf0] sm:$0xff]
    %v6165 = vld [vmem:[%s2 + $0xf8] sm:$0xff]
    %v6166 = vld [vmem:[%s2 + $0x100] sm:$0xff]
    %v6167 = vld [vmem:[%s2 + $0x108] sm:$0xff]
    %v6168 = vld [vmem:[%s2 + $0x110] sm:$0xff]
    %v6169 = vld [vmem:[%s2 + $0x118] sm:$0xff]
    %v6170 = vld [vmem:[%s2 + $0x120] sm:$0xff]
    %v6171 = vld [vmem:[%s2 + $0x128] sm:$0xff]
    %v6172 = vld [vmem:[%s2 + $0x130] sm:$0xff]
    %v6173 = vld [vmem:[%s2 + $0x138] sm:$0xff]
    %v6174 = vld [vmem:[%s2 + $0x140] sm:$0xff]
    %v6175 = vld [vmem:[%s2 + $0x148] sm:$0xff]
    %v6176 = vld [vmem:[%s2 + $0x150] sm:$0xff]
    %v6177 = vld [vmem:[%s2 + $0x158] sm:$0xff]
    %v6178 = vld [vmem:[%s2 + $0x160] sm:$0xff]
    %v6179 = vld [vmem:[%s2 + $0x168] sm:$0xff]
    %v6180 = vld [vmem:[%s2 + $0x170] sm:$0xff]
    %v6181 = vld [vmem:[%s2 + $0x178] sm:$0xff]
    %v6182 = vld [vmem:[%s2 + $0x180] sm:$0xff]
    %v6183 = vld [vmem:[%s2 + $0x188] sm:$0xff]
    %v6184 = vld [vmem:[%s2 + $0x190] sm:$0xff]
    %v6185 = vld [vmem:[%s2 + $0x198] sm:$0xff]
    %v6186 = vld [vmem:[%s2 + $0x1a0] sm:$0xff]
    %v6187 = vld [vmem:[%s2 + $0x1a8] sm:$0xff]
    %v6188 = vld [vmem:[%s2 + $0x1b0] sm:$0xff]
    %v6189 = vld [vmem:[%s2 + $0x1b8] sm:$0xff]
    %v6190 = vmul.f32 %v6134, %v6078
    %v6191 = vmul.f32 %v6135, %v6079
    %v6192 = vmul.f32 %v6136, %v6080
    %v6193 = vmul.f32 %v6137, %v6081
    %v6194 = vmul.f32 %v6138, %v6082
    %v6195 = vmul.f32 %v6139, %v6083
    %v6196 = vmul.f32 %v6140, %v6084
    %v6197 = vmul.f32 %v6141, %v6085
    %v6198 = vmul.f32 %v6142, %v6086
    %v6199 = vmul.f32 %v6143, %v6087
    %v6200 = vmul.f32 %v6144, %v6088
    %v6201 = vmul.f32 %v6145, %v6089
    %v6202 = vmul.f32 %v6146, %v6090
    %v6203 = vmul.f32 %v6147, %v6091
    %v6204 = vmul.f32 %v6148, %v6092
    %v6205 = vmul.f32 %v6149, %v6093
    %v6206 = vmul.f32 %v6150, %v6094
    %v6207 = vmul.f32 %v6151, %v6095
    %v6208 = vmul.f32 %v6152, %v6096
    %v6209 = vmul.f32 %v6153, %v6097
    %v6210 = vmul.f32 %v6154, %v6098
    %v6211 = vmul.f32 %v6155, %v6099
    %v6212 = vmul.f32 %v6156, %v6100
    %v6213 = vmul.f32 %v6157, %v6101
    %v6214 = vmul.f32 %v6158, %v6102
    %v6215 = vmul.f32 %v6159, %v6103
    %v6216 = vmul.f32 %v6160, %v6104
    %v6217 = vmul.f32 %v6161, %v6105
    %v6218 = vmul.f32 %v6162, %v6106
    %v6219 = vmul.f32 %v6163, %v6107
    %v6220 = vmul.f32 %v6164, %v6108
    %v6221 = vmul.f32 %v6165, %v6109
    %v6222 = vmul.f32 %v6166, %v6110
    %v6223 = vmul.f32 %v6167, %v6111
    %v6224 = vmul.f32 %v6168, %v6112
    %v6225 = vmul.f32 %v6169, %v6113
    %v6226 = vmul.f32 %v6170, %v6114
    %v6227 = vmul.f32 %v6171, %v6115
    %v6228 = vmul.f32 %v6172, %v6116
    %v6229 = vmul.f32 %v6173, %v6117
    %v6230 = vmul.f32 %v6174, %v6118
    %v6231 = vmul.f32 %v6175, %v6119
    %v6232 = vmul.f32 %v6176, %v6120
    %v6233 = vmul.f32 %v6177, %v6121
    %v6234 = vmul.f32 %v6178, %v6122
    %v6235 = vmul.f32 %v6179, %v6123
    %v6236 = vmul.f32 %v6180, %v6124
    %v6237 = vmul.f32 %v6181, %v6125
    %v6238 = vmul.f32 %v6182, %v6126
    %v6239 = vmul.f32 %v6183, %v6127
    %v6240 = vmul.f32 %v6184, %v6128
    %v6241 = vmul.f32 %v6185, %v6129
    %v6242 = vmul.f32 %v6186, %v6130
    %v6243 = vmul.f32 %v6187, %v6131
    %v6244 = vmul.f32 %v6188, %v6132
    %v6245 = vmul.f32 %v6189, %v6133
    %v6246 = vmul.f32 %v4902, %v6190
    %v6247 = vmul.f32 %v4903, %v6191
    %v6248 = vmul.f32 %v4904, %v6192
    %v6249 = vmul.f32 %v4905, %v6193
    %v6250 = vmul.f32 %v4906, %v6194
    %v6251 = vmul.f32 %v4907, %v6195
    %v6252 = vmul.f32 %v4908, %v6196
    %v6253 = vmul.f32 %v4909, %v6197
    %v6254 = vmul.f32 %v4910, %v6198
    %v6255 = vmul.f32 %v4911, %v6199
    %v6256 = vmul.f32 %v4912, %v6200
    %v6257 = vmul.f32 %v4913, %v6201
    %v6258 = vmul.f32 %v4914, %v6202
    %v6259 = vmul.f32 %v4915, %v6203
    %v6260 = vmul.f32 %v4916, %v6204
    %v6261 = vmul.f32 %v4917, %v6205
    %v6262 = vmul.f32 %v4918, %v6206
    %v6263 = vmul.f32 %v4919, %v6207
    %v6264 = vmul.f32 %v4920, %v6208
    %v6265 = vmul.f32 %v4921, %v6209
    %v6266 = vmul.f32 %v4922, %v6210
    %v6267 = vmul.f32 %v4923, %v6211
    %v6268 = vmul.f32 %v4924, %v6212
    %v6269 = vmul.f32 %v4925, %v6213
    %v6270 = vmul.f32 %v4926, %v6214
    %v6271 = vmul.f32 %v4927, %v6215
    %v6272 = vmul.f32 %v4928, %v6216
    %v6273 = vmul.f32 %v4929, %v6217
    %v6274 = vmul.f32 %v4930, %v6218
    %v6275 = vmul.f32 %v4931, %v6219
    %v6276 = vmul.f32 %v4932, %v6220
    %v6277 = vmul.f32 %v4933, %v6221
    %v6278 = vmul.f32 %v4934, %v6222
    %v6279 = vmul.f32 %v4935, %v6223
    %v6280 = vmul.f32 %v4936, %v6224
    %v6281 = vmul.f32 %v4937, %v6225
    %v6282 = vmul.f32 %v4938, %v6226
    %v6283 = vmul.f32 %v4939, %v6227
    %v6284 = vmul.f32 %v4940, %v6228
    %v6285 = vmul.f32 %v4941, %v6229
    %v6286 = vmul.f32 %v4942, %v6230
    %v6287 = vmul.f32 %v4943, %v6231
    %v6288 = vmul.f32 %v4944, %v6232
    %v6289 = vmul.f32 %v4945, %v6233
    %v6290 = vmul.f32 %v4946, %v6234
    %v6291 = vmul.f32 %v4947, %v6235
    %v6292 = vmul.f32 %v4948, %v6236
    %v6293 = vmul.f32 %v4949, %v6237
    %v6294 = vmul.f32 %v4950, %v6238
    %v6295 = vmul.f32 %v4951, %v6239
    %v6296 = vmul.f32 %v4952, %v6240
    %v6297 = vmul.f32 %v4953, %v6241
    %v6298 = vmul.f32 %v4954, %v6242
    %v6299 = vmul.f32 %v4955, %v6243
    %v6300 = vmul.f32 %v4956, %v6244
    %v6301 = vmul.f32 %v4957, %v6245
    %6358 = vrot.lane.b32.xlu0 %v6246, 1
    %v6359 = vpop.permute.xlu0 %6358
    %6360 = vrot.lane.b32.xlu0 %v6247, 1
    %v6361 = vpop.permute.xlu0 %6360
    %6362 = vrot.lane.b32.xlu0 %v6248, 1
    %v6363 = vpop.permute.xlu0 %6362
    %6364 = vrot.lane.b32.xlu0 %v6249, 1
    %v6365 = vpop.permute.xlu0 %6364
    %6366 = vrot.lane.b32.xlu0 %v6250, 1
    %v6367 = vpop.permute.xlu0 %6366
    %6368 = vrot.lane.b32.xlu0 %v6251, 1
    %v6369 = vpop.permute.xlu0 %6368
    %6370 = vrot.lane.b32.xlu0 %v6252, 1
    %v6371 = vpop.permute.xlu0 %6370
    %6372 = vrot.lane.b32.xlu0 %v6253, 1
    %v6373 = vpop.permute.xlu0 %6372
    %6374 = vrot.lane.b32.xlu0 %v6254, 1
    %v6375 = vpop.permute.xlu0 %6374
    %6376 = vrot.lane.b32.xlu0 %v6255, 1
    %v6377 = vpop.permute.xlu0 %6376
    %6378 = vrot.lane.b32.xlu0 %v6256, 1
    %v6379 = vpop.permute.xlu0 %6378
    %6380 = vrot.lane.b32.xlu0 %v6257, 1
    %v6381 = vpop.permute.xlu0 %6380
    %6382 = vrot.lane.b32.xlu0 %v6258, 1
    %v6383 = vpop.permute.xlu0 %6382
    %6384 = vrot.lane.b32.xlu0 %v6259, 1
    %v6385 = vpop.permute.xlu0 %6384
    %6386 = vrot.lane.b32.xlu0 %v6260, 1
    %v6387 = vpop.permute.xlu0 %6386
    %6388 = vrot.lane.b32.xlu0 %v6261, 1
    %v6389 = vpop.permute.xlu0 %6388
    %6390 = vrot.lane.b32.xlu0 %v6262, 1
    %v6391 = vpop.permute.xlu0 %6390
    %6392 = vrot.lane.b32.xlu0 %v6263, 1
    %v6393 = vpop.permute.xlu0 %6392
    %6394 = vrot.lane.b32.xlu0 %v6264, 1
    %v6395 = vpop.permute.xlu0 %6394
    %6396 = vrot.lane.b32.xlu0 %v6265, 1
    %v6397 = vpop.permute.xlu0 %6396
    %6398 = vrot.lane.b32.xlu0 %v6266, 1
    %v6399 = vpop.permute.xlu0 %6398
    %6400 = vrot.lane.b32.xlu0 %v6267, 1
    %v6401 = vpop.permute.xlu0 %6400
    %6402 = vrot.lane.b32.xlu0 %v6268, 1
    %v6403 = vpop.permute.xlu0 %6402
    %6404 = vrot.lane.b32.xlu0 %v6269, 1
    %v6405 = vpop.permute.xlu0 %6404
    %6406 = vrot.lane.b32.xlu0 %v6270, 1
    %v6407 = vpop.permute.xlu0 %6406
    %6408 = vrot.lane.b32.xlu0 %v6271, 1
    %v6409 = vpop.permute.xlu0 %6408
    %6410 = vrot.lane.b32.xlu0 %v6272, 1
    %v6411 = vpop.permute.xlu0 %6410
    %6412 = vrot.lane.b32.xlu0 %v6273, 1
    %v6413 = vpop.permute.xlu0 %6412
    %6414 = vrot.lane.b32.xlu0 %v6274, 1
    %v6415 = vpop.permute.xlu0 %6414
    %6416 = vrot.lane.b32.xlu0 %v6275, 1
    %v6417 = vpop.permute.xlu0 %6416
    %6418 = vrot.lane.b32.xlu0 %v6276, 1
    %v6419 = vpop.permute.xlu0 %6418
    %6420 = vrot.lane.b32.xlu0 %v6277, 1
    %v6421 = vpop.permute.xlu0 %6420
    %6422 = vrot.lane.b32.xlu0 %v6278, 1
    %v6423 = vpop.permute.xlu0 %6422
    %6424 = vrot.lane.b32.xlu0 %v6279, 1
    %v6425 = vpop.permute.xlu0 %6424
    %6426 = vrot.lane.b32.xlu0 %v6280, 1
    %v6427 = vpop.permute.xlu0 %6426
    %6428 = vrot.lane.b32.xlu0 %v6281, 1
    %v6429 = vpop.permute.xlu0 %6428
    %6430 = vrot.lane.b32.xlu0 %v6282, 1
    %v6431 = vpop.permute.xlu0 %6430
    %6432 = vrot.lane.b32.xlu0 %v6283, 1
    %v6433 = vpop.permute.xlu0 %6432
    %6434 = vrot.lane.b32.xlu0 %v6284, 1
    %v6435 = vpop.permute.xlu0 %6434
    %6436 = vrot.lane.b32.xlu0 %v6285, 1
    %v6437 = vpop.permute.xlu0 %6436
    %6438 = vrot.lane.b32.xlu0 %v6286, 1
    %v6439 = vpop.permute.xlu0 %6438
    %6440 = vrot.lane.b32.xlu0 %v6287, 1
    %v6441 = vpop.permute.xlu0 %6440
    %6442 = vrot.lane.b32.xlu0 %v6288, 1
    %v6443 = vpop.permute.xlu0 %6442
    %6444 = vrot.lane.b32.xlu0 %v6289, 1
    %v6445 = vpop.permute.xlu0 %6444
    %6446 = vrot.lane.b32.xlu0 %v6290, 1
    %v6447 = vpop.permute.xlu0 %6446
    %6448 = vrot.lane.b32.xlu0 %v6291, 1
    %v6449 = vpop.permute.xlu0 %6448
    %6450 = vrot.lane.b32.xlu0 %v6292, 1
    %v6451 = vpop.permute.xlu0 %6450
    %6452 = vrot.lane.b32.xlu0 %v6293, 1
    %v6453 = vpop.permute.xlu0 %6452
    %6454 = vrot.lane.b32.xlu0 %v6294, 1
    %v6455 = vpop.permute.xlu0 %6454
    %6456 = vrot.lane.b32.xlu0 %v6295, 1
    %v6457 = vpop.permute.xlu0 %6456
    %6458 = vrot.lane.b32.xlu0 %v6296, 1
    %v6459 = vpop.permute.xlu0 %6458
    %6460 = vrot.lane.b32.xlu0 %v6297, 1
    %v6461 = vpop.permute.xlu0 %6460
    %6462 = vrot.lane.b32.xlu0 %v6298, 1
    %v6463 = vpop.permute.xlu0 %6462
    %6464 = vrot.lane.b32.xlu0 %v6299, 1
    %v6465 = vpop.permute.xlu0 %6464
    %6466 = vrot.lane.b32.xlu0 %v6300, 1
    %v6467 = vpop.permute.xlu0 %6466
    %6468 = vrot.lane.b32.xlu0 %v6301, 1
    %v6469 = vpop.permute.xlu0 %6468
    %v6526 = vsub.f32 %v6134, %v6359
    %v6527 = vsub.f32 %v6135, %v6361
    %v6528 = vsub.f32 %v6136, %v6363
    %v6529 = vsub.f32 %v6137, %v6365
    %v6530 = vsub.f32 %v6138, %v6367
    %v6531 = vsub.f32 %v6139, %v6369
    %v6532 = vsub.f32 %v6140, %v6371
    %v6533 = vsub.f32 %v6141, %v6373
    %v6534 = vsub.f32 %v6142, %v6375
    %v6535 = vsub.f32 %v6143, %v6377
    %v6536 = vsub.f32 %v6144, %v6379
    %v6537 = vsub.f32 %v6145, %v6381
    %v6538 = vsub.f32 %v6146, %v6383
    %v6539 = vsub.f32 %v6147, %v6385
    %v6540 = vsub.f32 %v6148, %v6387
    %v6541 = vsub.f32 %v6149, %v6389
    %v6542 = vsub.f32 %v6150, %v6391
    %v6543 = vsub.f32 %v6151, %v6393
    %v6544 = vsub.f32 %v6152, %v6395
    %v6545 = vsub.f32 %v6153, %v6397
    %v6546 = vsub.f32 %v6154, %v6399
    %v6547 = vsub.f32 %v6155, %v6401
    %v6548 = vsub.f32 %v6156, %v6403
    %v6549 = vsub.f32 %v6157, %v6405
    %v6550 = vsub.f32 %v6158, %v6407
    %v6551 = vsub.f32 %v6159, %v6409
    %v6552 = vsub.f32 %v6160, %v6411
    %v6553 = vsub.f32 %v6161, %v6413
    %v6554 = vsub.f32 %v6162, %v6415
    %v6555 = vsub.f32 %v6163, %v6417
    %v6556 = vsub.f32 %v6164, %v6419
    %v6557 = vsub.f32 %v6165, %v6421
    %v6558 = vsub.f32 %v6166, %v6423
    %v6559 = vsub.f32 %v6167, %v6425
    %v6560 = vsub.f32 %v6168, %v6427
    %v6561 = vsub.f32 %v6169, %v6429
    %v6562 = vsub.f32 %v6170, %v6431
    %v6563 = vsub.f32 %v6171, %v6433
    %v6564 = vsub.f32 %v6172, %v6435
    %v6565 = vsub.f32 %v6173, %v6437
    %v6566 = vsub.f32 %v6174, %v6439
    %v6567 = vsub.f32 %v6175, %v6441
    %v6568 = vsub.f32 %v6176, %v6443
    %v6569 = vsub.f32 %v6177, %v6445
    %v6570 = vsub.f32 %v6178, %v6447
    %v6571 = vsub.f32 %v6179, %v6449
    %v6572 = vsub.f32 %v6180, %v6451
    %v6573 = vsub.f32 %v6181, %v6453
    %v6574 = vsub.f32 %v6182, %v6455
    %v6575 = vsub.f32 %v6183, %v6457
    %v6576 = vsub.f32 %v6184, %v6459
    %v6577 = vsub.f32 %v6185, %v6461
    %v6578 = vsub.f32 %v6186, %v6463
    %v6579 = vsub.f32 %v6187, %v6465
    %v6580 = vsub.f32 %v6188, %v6467
    %v6581 = vsub.f32 %v6189, %v6469
    %6583 = vset.pattern.permute.xlu0 0
    %6584 = vperm.xlu0 %6583, %v6190
    %v6585 = vpop.permute.xlu0 %6584
    %6588 = vset.pattern.permute.xlu0 0
    %6589 = vperm.xlu0 %6588, %v6191
    %v6590 = vpop.permute.xlu0 %6589
    %6593 = vset.pattern.permute.xlu0 0
    %6594 = vperm.xlu0 %6593, %v6192
    %v6595 = vpop.permute.xlu0 %6594
    %6598 = vset.pattern.permute.xlu0 0
    %6599 = vperm.xlu0 %6598, %v6193
    %v6600 = vpop.permute.xlu0 %6599
    %6603 = vset.pattern.permute.xlu0 0
    %6604 = vperm.xlu0 %6603, %v6194
    %v6605 = vpop.permute.xlu0 %6604
    %6608 = vset.pattern.permute.xlu0 0
    %6609 = vperm.xlu0 %6608, %v6195
    %v6610 = vpop.permute.xlu0 %6609
    %6613 = vset.pattern.permute.xlu0 0
    %6614 = vperm.xlu0 %6613, %v6196
    %v6615 = vpop.permute.xlu0 %6614
    %6618 = vset.pattern.permute.xlu0 0
    %6619 = vperm.xlu0 %6618, %v6197
    %v6620 = vpop.permute.xlu0 %6619
    %6623 = vset.pattern.permute.xlu0 0
    %6624 = vperm.xlu0 %6623, %v6198
    %v6625 = vpop.permute.xlu0 %6624
    %6628 = vset.pattern.permute.xlu0 0
    %6629 = vperm.xlu0 %6628, %v6199
    %v6630 = vpop.permute.xlu0 %6629
    %6633 = vset.pattern.permute.xlu0 0
    %6634 = vperm.xlu0 %6633, %v6200
    %v6635 = vpop.permute.xlu0 %6634
    %6638 = vset.pattern.permute.xlu0 0
    %6639 = vperm.xlu0 %6638, %v6201
    %v6640 = vpop.permute.xlu0 %6639
    %6643 = vset.pattern.permute.xlu0 0
    %6644 = vperm.xlu0 %6643, %v6202
    %v6645 = vpop.permute.xlu0 %6644
    %6648 = vset.pattern.permute.xlu0 0
    %6649 = vperm.xlu0 %6648, %v6203
    %v6650 = vpop.permute.xlu0 %6649
    %6653 = vset.pattern.permute.xlu0 0
    %6654 = vperm.xlu0 %6653, %v6204
    %v6655 = vpop.permute.xlu0 %6654
    %6658 = vset.pattern.permute.xlu0 0
    %6659 = vperm.xlu0 %6658, %v6205
    %v6660 = vpop.permute.xlu0 %6659
    %6663 = vset.pattern.permute.xlu0 0
    %6664 = vperm.xlu0 %6663, %v6206
    %v6665 = vpop.permute.xlu0 %6664
    %6668 = vset.pattern.permute.xlu0 0
    %6669 = vperm.xlu0 %6668, %v6207
    %v6670 = vpop.permute.xlu0 %6669
    %6673 = vset.pattern.permute.xlu0 0
    %6674 = vperm.xlu0 %6673, %v6208
    %v6675 = vpop.permute.xlu0 %6674
    %6678 = vset.pattern.permute.xlu0 0
    %6679 = vperm.xlu0 %6678, %v6209
    %v6680 = vpop.permute.xlu0 %6679
    %6683 = vset.pattern.permute.xlu0 0
    %6684 = vperm.xlu0 %6683, %v6210
    %v6685 = vpop.permute.xlu0 %6684
    %6688 = vset.pattern.permute.xlu0 0
    %6689 = vperm.xlu0 %6688, %v6211
    %v6690 = vpop.permute.xlu0 %6689
    %6693 = vset.pattern.permute.xlu0 0
    %6694 = vperm.xlu0 %6693, %v6212
    %v6695 = vpop.permute.xlu0 %6694
    %6698 = vset.pattern.permute.xlu0 0
    %6699 = vperm.xlu0 %6698, %v6213
    %v6700 = vpop.permute.xlu0 %6699
    %6703 = vset.pattern.permute.xlu0 0
    %6704 = vperm.xlu0 %6703, %v6214
    %v6705 = vpop.permute.xlu0 %6704
    %6708 = vset.pattern.permute.xlu0 0
    %6709 = vperm.xlu0 %6708, %v6215
    %v6710 = vpop.permute.xlu0 %6709
    %6713 = vset.pattern.permute.xlu0 0
    %6714 = vperm.xlu0 %6713, %v6216
    %v6715 = vpop.permute.xlu0 %6714
    %6718 = vset.pattern.permute.xlu0 0
    %6719 = vperm.xlu0 %6718, %v6217
    %v6720 = vpop.permute.xlu0 %6719
    %6723 = vset.pattern.permute.xlu0 0
    %6724 = vperm.xlu0 %6723, %v6218
    %v6725 = vpop.permute.xlu0 %6724
    %6728 = vset.pattern.permute.xlu0 0
    %6729 = vperm.xlu0 %6728, %v6219
    %v6730 = vpop.permute.xlu0 %6729
    %6733 = vset.pattern.permute.xlu0 0
    %6734 = vperm.xlu0 %6733, %v6220
    %v6735 = vpop.permute.xlu0 %6734
    %6738 = vset.pattern.permute.xlu0 0
    %6739 = vperm.xlu0 %6738, %v6221
    %v6740 = vpop.permute.xlu0 %6739
    %6743 = vset.pattern.permute.xlu0 0
    %6744 = vperm.xlu0 %6743, %v6222
    %v6745 = vpop.permute.xlu0 %6744
    %6748 = vset.pattern.permute.xlu0 0
    %6749 = vperm.xlu0 %6748, %v6223
    %v6750 = vpop.permute.xlu0 %6749
    %6753 = vset.pattern.permute.xlu0 0
    %6754 = vperm.xlu0 %6753, %v6224
    %v6755 = vpop.permute.xlu0 %6754
    %6758 = vset.pattern.permute.xlu0 0
    %6759 = vperm.xlu0 %6758, %v6225
    %v6760 = vpop.permute.xlu0 %6759
    %6763 = vset.pattern.permute.xlu0 0
    %6764 = vperm.xlu0 %6763, %v6226
    %v6765 = vpop.permute.xlu0 %6764
    %6768 = vset.pattern.permute.xlu0 0
    %6769 = vperm.xlu0 %6768, %v6227
    %v6770 = vpop.permute.xlu0 %6769
    %6773 = vset.pattern.permute.xlu0 0
    %6774 = vperm.xlu0 %6773, %v6228
    %v6775 = vpop.permute.xlu0 %6774
    %6778 = vset.pattern.permute.xlu0 0
    %6779 = vperm.xlu0 %6778, %v6229
    %v6780 = vpop.permute.xlu0 %6779
    %6783 = vset.pattern.permute.xlu0 0
    %6784 = vperm.xlu0 %6783, %v6230
    %v6785 = vpop.permute.xlu0 %6784
    %6788 = vset.pattern.permute.xlu0 0
    %6789 = vperm.xlu0 %6788, %v6231
    %v6790 = vpop.permute.xlu0 %6789
    %6793 = vset.pattern.permute.xlu0 0
    %6794 = vperm.xlu0 %6793, %v6232
    %v6795 = vpop.permute.xlu0 %6794
    %6798 = vset.pattern.permute.xlu0 0
    %6799 = vperm.xlu0 %6798, %v6233
    %v6800 = vpop.permute.xlu0 %6799
    %6803 = vset.pattern.permute.xlu0 0
    %6804 = vperm.xlu0 %6803, %v6234
    %v6805 = vpop.permute.xlu0 %6804
    %6808 = vset.pattern.permute.xlu0 0
    %6809 = vperm.xlu0 %6808, %v6235
    %v6810 = vpop.permute.xlu0 %6809
    %6813 = vset.pattern.permute.xlu0 0
    %6814 = vperm.xlu0 %6813, %v6236
    %v6815 = vpop.permute.xlu0 %6814
    %6818 = vset.pattern.permute.xlu0 0
    %6819 = vperm.xlu0 %6818, %v6237
    %v6820 = vpop.permute.xlu0 %6819
    %6823 = vset.pattern.permute.xlu0 0
    %6824 = vperm.xlu0 %6823, %v6238
    %v6825 = vpop.permute.xlu0 %6824
    %6828 = vset.pattern.permute.xlu0 0
    %6829 = vperm.xlu0 %6828, %v6239
    %v6830 = vpop.permute.xlu0 %6829
    %6833 = vset.pattern.permute.xlu0 0
    %6834 = vperm.xlu0 %6833, %v6240
    %v6835 = vpop.permute.xlu0 %6834
    %6838 = vset.pattern.permute.xlu0 0
    %6839 = vperm.xlu0 %6838, %v6241
    %v6840 = vpop.permute.xlu0 %6839
    %6843 = vset.pattern.permute.xlu0 0
    %6844 = vperm.xlu0 %6843, %v6242
    %v6845 = vpop.permute.xlu0 %6844
    %6848 = vset.pattern.permute.xlu0 0
    %6849 = vperm.xlu0 %6848, %v6243
    %v6850 = vpop.permute.xlu0 %6849
    %6853 = vset.pattern.permute.xlu0 0
    %6854 = vperm.xlu0 %6853, %v6244
    %v6855 = vpop.permute.xlu0 %6854
    %6858 = vset.pattern.permute.xlu0 0
    %6859 = vperm.xlu0 %6858, %v6245
    %v6860 = vpop.permute.xlu0 %6859
    %v6862 = vmul.f32 %v2353, %v6585
    %v6863 = vmul.f32 %v2355, %v6585
    %v6864 = vmul.f32 %v2979, %v6585
    %v6865 = vmul.f32 %v2981, %v6585
    %v6866 = vmul.f32 %v3605, %v6585
    %v6867 = vmul.f32 %v3607, %v6585
    %v6868 = vmul.f32 %v4175, %v6585
    %v6869 = vmul.f32 %v2357, %v6590
    %v6870 = vmul.f32 %v2359, %v6590
    %v6871 = vmul.f32 %v2983, %v6590
    %v6872 = vmul.f32 %v2985, %v6590
    %v6873 = vmul.f32 %v3609, %v6590
    %v6874 = vmul.f32 %v3611, %v6590
    %v6875 = vmul.f32 %v4178, %v6590
    %v6876 = vmul.f32 %v2363, %v6595
    %v6877 = vmul.f32 %v2365, %v6595
    %v6878 = vmul.f32 %v2989, %v6595
    %v6879 = vmul.f32 %v2991, %v6595
    %v6880 = vmul.f32 %v3615, %v6595
    %v6881 = vmul.f32 %v3617, %v6595
    %v6882 = vmul.f32 %v4183, %v6595
    %v6883 = vmul.f32 %v2367, %v6600
    %v6884 = vmul.f32 %v2369, %v6600
    %v6885 = vmul.f32 %v2993, %v6600
    %v6886 = vmul.f32 %v2995, %v6600
    %v6887 = vmul.f32 %v3619, %v6600
    %v6888 = vmul.f32 %v3621, %v6600
    %v6889 = vmul.f32 %v4186, %v6600
    %v6890 = vmul.f32 %v2373, %v6605
    %v6891 = vmul.f32 %v2375, %v6605
    %v6892 = vmul.f32 %v2999, %v6605
    %v6893 = vmul.f32 %v3001, %v6605
    %v6894 = vmul.f32 %v3625, %v6605
    %v6895 = vmul.f32 %v3627, %v6605
    %v6896 = vmul.f32 %v4191, %v6605
    %v6897 = vmul.f32 %v2377, %v6610
    %v6898 = vmul.f32 %v2379, %v6610
    %v6899 = vmul.f32 %v3003, %v6610
    %v6900 = vmul.f32 %v3005, %v6610
    %v6901 = vmul.f32 %v3629, %v6610
    %v6902 = vmul.f32 %v3631, %v6610
    %v6903 = vmul.f32 %v4194, %v6610
    %v6904 = vmul.f32 %v2383, %v6615
    %v6905 = vmul.f32 %v2385, %v6615
    %v6906 = vmul.f32 %v3009, %v6615
    %v6907 = vmul.f32 %v3011, %v6615
    %v6908 = vmul.f32 %v3635, %v6615
    %v6909 = vmul.f32 %v3637, %v6615
    %v6910 = vmul.f32 %v4199, %v6615
    %v6911 = vmul.f32 %v2387, %v6620
    %v6912 = vmul.f32 %v2389, %v6620
    %v6913 = vmul.f32 %v3013, %v6620
    %v6914 = vmul.f32 %v3015, %v6620
    %v6915 = vmul.f32 %v3639, %v6620
    %v6916 = vmul.f32 %v3641, %v6620
    %v6917 = vmul.f32 %v4202, %v6620
    %v6918 = vmul.f32 %v2393, %v6625
    %v6919 = vmul.f32 %v2395, %v6625
    %v6920 = vmul.f32 %v3019, %v6625
    %v6921 = vmul.f32 %v3021, %v6625
    %v6922 = vmul.f32 %v3645, %v6625
    %v6923 = vmul.f32 %v3647, %v6625
    %v6924 = vmul.f32 %v4207, %v6625
    %v6925 = vmul.f32 %v2397, %v6630
    %v6926 = vmul.f32 %v2399, %v6630
    %v6927 = vmul.f32 %v3023, %v6630
    %v6928 = vmul.f32 %v3025, %v6630
    %v6929 = vmul.f32 %v3649, %v6630
    %v6930 = vmul.f32 %v3651, %v6630
    %v6931 = vmul.f32 %v4210, %v6630
    %v6932 = vmul.f32 %v2403, %v6635
    %v6933 = vmul.f32 %v2405, %v6635
    %v6934 = vmul.f32 %v3029, %v6635
    %v6935 = vmul.f32 %v3031, %v6635
    %v6936 = vmul.f32 %v3655, %v6635
    %v6937 = vmul.f32 %v3657, %v6635
    %v6938 = vmul.f32 %v4215, %v6635
    %v6939 = vmul.f32 %v2407, %v6640
    %v6940 = vmul.f32 %v2409, %v6640
    %v6941 = vmul.f32 %v3033, %v6640
    %v6942 = vmul.f32 %v3035, %v6640
    %v6943 = vmul.f32 %v3659, %v6640
    %v6944 = vmul.f32 %v3661, %v6640
    %v6945 = vmul.f32 %v4218, %v6640
    %v6946 = vmul.f32 %v2413, %v6645
    %v6947 = vmul.f32 %v2415, %v6645
    %v6948 = vmul.f32 %v3039, %v6645
    %v6949 = vmul.f32 %v3041, %v6645
    %v6950 = vmul.f32 %v3665, %v6645
    %v6951 = vmul.f32 %v3667, %v6645
    %v6952 = vmul.f32 %v4223, %v6645
    %v6953 = vmul.f32 %v2417, %v6650
    %v6954 = vmul.f32 %v2419, %v6650
    %v6955 = vmul.f32 %v3043, %v6650
    %v6956 = vmul.f32 %v3045, %v6650
    %v6957 = vmul.f32 %v3669, %v6650
    %v6958 = vmul.f32 %v3671, %v6650
    %v6959 = vmul.f32 %v4226, %v6650
    %v6960 = vmul.f32 %v2423, %v6655
    %v6961 = vmul.f32 %v2425, %v6655
    %v6962 = vmul.f32 %v3049, %v6655
    %v6963 = vmul.f32 %v3051, %v6655
    %v6964 = vmul.f32 %v3675, %v6655
    %v6965 = vmul.f32 %v3677, %v6655
    %v6966 = vmul.f32 %v4231, %v6655
    %v6967 = vmul.f32 %v2427, %v6660
    %v6968 = vmul.f32 %v2429, %v6660
    %v6969 = vmul.f32 %v3053, %v6660
    %v6970 = vmul.f32 %v3055, %v6660
    %v6971 = vmul.f32 %v3679, %v6660
    %v6972 = vmul.f32 %v3681, %v6660
    %v6973 = vmul.f32 %v4234, %v6660
    %v6974 = vmul.f32 %v2433, %v6665
    %v6975 = vmul.f32 %v2435, %v6665
    %v6976 = vmul.f32 %v3059, %v6665
    %v6977 = vmul.f32 %v3061, %v6665
    %v6978 = vmul.f32 %v3685, %v6665
    %v6979 = vmul.f32 %v3687, %v6665
    %v6980 = vmul.f32 %v4239, %v6665
    %v6981 = vmul.f32 %v2437, %v6670
    %v6982 = vmul.f32 %v2439, %v6670
    %v6983 = vmul.f32 %v3063, %v6670
    %v6984 = vmul.f32 %v3065, %v6670
    %v6985 = vmul.f32 %v3689, %v6670
    %v6986 = vmul.f32 %v3691, %v6670
    %v6987 = vmul.f32 %v4242, %v6670
    %v6988 = vmul.f32 %v2443, %v6675
    %v6989 = vmul.f32 %v2445, %v6675
    %v6990 = vmul.f32 %v3069, %v6675
    %v6991 = vmul.f32 %v3071, %v6675
    %v6992 = vmul.f32 %v3695, %v6675
    %v6993 = vmul.f32 %v3697, %v6675
    %v6994 = vmul.f32 %v4247, %v6675
    %v6995 = vmul.f32 %v2447, %v6680
    %v6996 = vmul.f32 %v2449, %v6680
    %v6997 = vmul.f32 %v3073, %v6680
    %v6998 = vmul.f32 %v3075, %v6680
    %v6999 = vmul.f32 %v3699, %v6680
    %v7000 = vmul.f32 %v3701, %v6680
    %v7001 = vmul.f32 %v4250, %v6680
    %v7002 = vmul.f32 %v2453, %v6685
    %v7003 = vmul.f32 %v2455, %v6685
    %v7004 = vmul.f32 %v3079, %v6685
    %v7005 = vmul.f32 %v3081, %v6685
    %v7006 = vmul.f32 %v3705, %v6685
    %v7007 = vmul.f32 %v3707, %v6685
    %v7008 = vmul.f32 %v4255, %v6685
    %v7009 = vmul.f32 %v2457, %v6690
    %v7010 = vmul.f32 %v2459, %v6690
    %v7011 = vmul.f32 %v3083, %v6690
    %v7012 = vmul.f32 %v3085, %v6690
    %v7013 = vmul.f32 %v3709, %v6690
    %v7014 = vmul.f32 %v3711, %v6690
    %v7015 = vmul.f32 %v4258, %v6690
    %v7016 = vmul.f32 %v2463, %v6695
    %v7017 = vmul.f32 %v2465, %v6695
    %v7018 = vmul.f32 %v3089, %v6695
    %v7019 = vmul.f32 %v3091, %v6695
    %v7020 = vmul.f32 %v3715, %v6695
    %v7021 = vmul.f32 %v3717, %v6695
    %v7022 = vmul.f32 %v4263, %v6695
    %v7023 = vmul.f32 %v2467, %v6700
    %v7024 = vmul.f32 %v2469, %v6700
    %v7025 = vmul.f32 %v3093, %v6700
    %v7026 = vmul.f32 %v3095, %v6700
    %v7027 = vmul.f32 %v3719, %v6700
    %v7028 = vmul.f32 %v3721, %v6700
    %v7029 = vmul.f32 %v4266, %v6700
    %v7030 = vmul.f32 %v2473, %v6705
    %v7031 = vmul.f32 %v2475, %v6705
    %v7032 = vmul.f32 %v3099, %v6705
    %v7033 = vmul.f32 %v3101, %v6705
    %v7034 = vmul.f32 %v3725, %v6705
    %v7035 = vmul.f32 %v3727, %v6705
    %v7036 = vmul.f32 %v4271, %v6705
    %v7037 = vmul.f32 %v2477, %v6710
    %v7038 = vmul.f32 %v2479, %v6710
    %v7039 = vmul.f32 %v3103, %v6710
    %v7040 = vmul.f32 %v3105, %v6710
    %v7041 = vmul.f32 %v3729, %v6710
    %v7042 = vmul.f32 %v3731, %v6710
    %v7043 = vmul.f32 %v4274, %v6710
    %v7044 = vmul.f32 %v2483, %v6715
    %v7045 = vmul.f32 %v2485, %v6715
    %v7046 = vmul.f32 %v3109, %v6715
    %v7047 = vmul.f32 %v3111, %v6715
    %v7048 = vmul.f32 %v3735, %v6715
    %v7049 = vmul.f32 %v3737, %v6715
    %v7050 = vmul.f32 %v4279, %v6715
    %v7051 = vmul.f32 %v2487, %v6720
    %v7052 = vmul.f32 %v2489, %v6720
    %v7053 = vmul.f32 %v3113, %v6720
    %v7054 = vmul.f32 %v3115, %v6720
    %v7055 = vmul.f32 %v3739, %v6720
    %v7056 = vmul.f32 %v3741, %v6720
    %v7057 = vmul.f32 %v4282, %v6720
    %v7058 = vmul.f32 %v2493, %v6725
    %v7059 = vmul.f32 %v2495, %v6725
    %v7060 = vmul.f32 %v3119, %v6725
    %v7061 = vmul.f32 %v3121, %v6725
    %v7062 = vmul.f32 %v3745, %v6725
    %v7063 = vmul.f32 %v3747, %v6725
    %v7064 = vmul.f32 %v4287, %v6725
    %v7065 = vmul.f32 %v2497, %v6730
    %v7066 = vmul.f32 %v2499, %v6730
    %v7067 = vmul.f32 %v3123, %v6730
    %v7068 = vmul.f32 %v3125, %v6730
    %v7069 = vmul.f32 %v3749, %v6730
    %v7070 = vmul.f32 %v3751, %v6730
    %v7071 = vmul.f32 %v4290, %v6730
    %v7072 = vmul.f32 %v2503, %v6735
    %v7073 = vmul.f32 %v2505, %v6735
    %v7074 = vmul.f32 %v3129, %v6735
    %v7075 = vmul.f32 %v3131, %v6735
    %v7076 = vmul.f32 %v3755, %v6735
    %v7077 = vmul.f32 %v3757, %v6735
    %v7078 = vmul.f32 %v4295, %v6735
    %v7079 = vmul.f32 %v2507, %v6740
    %v7080 = vmul.f32 %v2509, %v6740
    %v7081 = vmul.f32 %v3133, %v6740
    %v7082 = vmul.f32 %v3135, %v6740
    %v7083 = vmul.f32 %v3759, %v6740
    %v7084 = vmul.f32 %v3761, %v6740
    %v7085 = vmul.f32 %v4298, %v6740
    %v7086 = vmul.f32 %v2513, %v6745
    %v7087 = vmul.f32 %v2515, %v6745
    %v7088 = vmul.f32 %v3139, %v6745
    %v7089 = vmul.f32 %v3141, %v6745
    %v7090 = vmul.f32 %v3765, %v6745
    %v7091 = vmul.f32 %v3767, %v6745
    %v7092 = vmul.f32 %v4303, %v6745
    %v7093 = vmul.f32 %v2517, %v6750
    %v7094 = vmul.f32 %v2519, %v6750
    %v7095 = vmul.f32 %v3143, %v6750
    %v7096 = vmul.f32 %v3145, %v6750
    %v7097 = vmul.f32 %v3769, %v6750
    %v7098 = vmul.f32 %v3771, %v6750
    %v7099 = vmul.f32 %v4306, %v6750
    %v7100 = vmul.f32 %v2523, %v6755
    %v7101 = vmul.f32 %v2525, %v6755
    %v7102 = vmul.f32 %v3149, %v6755
    %v7103 = vmul.f32 %v3151, %v6755
    %v7104 = vmul.f32 %v3775, %v6755
    %v7105 = vmul.f32 %v3777, %v6755
    %v7106 = vmul.f32 %v4311, %v6755
    %v7107 = vmul.f32 %v2527, %v6760
    %v7108 = vmul.f32 %v2529, %v6760
    %v7109 = vmul.f32 %v3153, %v6760
    %v7110 = vmul.f32 %v3155, %v6760
    %v7111 = vmul.f32 %v3779, %v6760
    %v7112 = vmul.f32 %v3781, %v6760
    %v7113 = vmul.f32 %v4314, %v6760
    %v7114 = vmul.f32 %v2533, %v6765
    %v7115 = vmul.f32 %v2535, %v6765
    %v7116 = vmul.f32 %v3159, %v6765
    %v7117 = vmul.f32 %v3161, %v6765
    %v7118 = vmul.f32 %v3785, %v6765
    %v7119 = vmul.f32 %v3787, %v6765
    %v7120 = vmul.f32 %v4319, %v6765
    %v7121 = vmul.f32 %v2537, %v6770
    %v7122 = vmul.f32 %v2539, %v6770
    %v7123 = vmul.f32 %v3163, %v6770
    %v7124 = vmul.f32 %v3165, %v6770
    %v7125 = vmul.f32 %v3789, %v6770
    %v7126 = vmul.f32 %v3791, %v6770
    %v7127 = vmul.f32 %v4322, %v6770
    %v7128 = vmul.f32 %v2543, %v6775
    %v7129 = vmul.f32 %v2545, %v6775
    %v7130 = vmul.f32 %v3169, %v6775
    %v7131 = vmul.f32 %v3171, %v6775
    %v7132 = vmul.f32 %v3795, %v6775
    %v7133 = vmul.f32 %v3797, %v6775
    %v7134 = vmul.f32 %v4327, %v6775
    %v7135 = vmul.f32 %v2547, %v6780
    %v7136 = vmul.f32 %v2549, %v6780
    %v7137 = vmul.f32 %v3173, %v6780
    %v7138 = vmul.f32 %v3175, %v6780
    %v7139 = vmul.f32 %v3799, %v6780
    %v7140 = vmul.f32 %v3801, %v6780
    %v7141 = vmul.f32 %v4330, %v6780
    %v7142 = vmul.f32 %v2553, %v6785
    %v7143 = vmul.f32 %v2555, %v6785
    %v7144 = vmul.f32 %v3179, %v6785
    %v7145 = vmul.f32 %v3181, %v6785
    %v7146 = vmul.f32 %v3805, %v6785
    %v7147 = vmul.f32 %v3807, %v6785
    %v7148 = vmul.f32 %v4335, %v6785
    %v7149 = vmul.f32 %v2557, %v6790
    %v7150 = vmul.f32 %v2559, %v6790
    %v7151 = vmul.f32 %v3183, %v6790
    %v7152 = vmul.f32 %v3185, %v6790
    %v7153 = vmul.f32 %v3809, %v6790
    %v7154 = vmul.f32 %v3811, %v6790
    %v7155 = vmul.f32 %v4338, %v6790
    %v7156 = vmul.f32 %v2563, %v6795
    %v7157 = vmul.f32 %v2565, %v6795
    %v7158 = vmul.f32 %v3189, %v6795
    %v7159 = vmul.f32 %v3191, %v6795
    %v7160 = vmul.f32 %v3815, %v6795
    %v7161 = vmul.f32 %v3817, %v6795
    %v7162 = vmul.f32 %v4343, %v6795
    %v7163 = vmul.f32 %v2567, %v6800
    %v7164 = vmul.f32 %v2569, %v6800
    %v7165 = vmul.f32 %v3193, %v6800
    %v7166 = vmul.f32 %v3195, %v6800
    %v7167 = vmul.f32 %v3819, %v6800
    %v7168 = vmul.f32 %v3821, %v6800
    %v7169 = vmul.f32 %v4346, %v6800
    %v7170 = vmul.f32 %v2573, %v6805
    %v7171 = vmul.f32 %v2575, %v6805
    %v7172 = vmul.f32 %v3199, %v6805
    %v7173 = vmul.f32 %v3201, %v6805
    %v7174 = vmul.f32 %v3825, %v6805
    %v7175 = vmul.f32 %v3827, %v6805
    %v7176 = vmul.f32 %v4351, %v6805
    %v7177 = vmul.f32 %v2577, %v6810
    %v7178 = vmul.f32 %v2579, %v6810
    %v7179 = vmul.f32 %v3203, %v6810
    %v7180 = vmul.f32 %v3205, %v6810
    %v7181 = vmul.f32 %v3829, %v6810
    %v7182 = vmul.f32 %v3831, %v6810
    %v7183 = vmul.f32 %v4354, %v6810
    %v7184 = vmul.f32 %v2583, %v6815
    %v7185 = vmul.f32 %v2585, %v6815
    %v7186 = vmul.f32 %v3209, %v6815
    %v7187 = vmul.f32 %v3211, %v6815
    %v7188 = vmul.f32 %v3835, %v6815
    %v7189 = vmul.f32 %v3837, %v6815
    %v7190 = vmul.f32 %v4359, %v6815
    %v7191 = vmul.f32 %v2587, %v6820
    %v7192 = vmul.f32 %v2589, %v6820
    %v7193 = vmul.f32 %v3213, %v6820
    %v7194 = vmul.f32 %v3215, %v6820
    %v7195 = vmul.f32 %v3839, %v6820
    %v7196 = vmul.f32 %v3841, %v6820
    %v7197 = vmul.f32 %v4362, %v6820
    %v7198 = vmul.f32 %v2593, %v6825
    %v7199 = vmul.f32 %v2595, %v6825
    %v7200 = vmul.f32 %v3219, %v6825
    %v7201 = vmul.f32 %v3221, %v6825
    %v7202 = vmul.f32 %v3845, %v6825
    %v7203 = vmul.f32 %v3847, %v6825
    %v7204 = vmul.f32 %v4367, %v6825
    %v7205 = vmul.f32 %v2597, %v6830
    %v7206 = vmul.f32 %v2599, %v6830
    %v7207 = vmul.f32 %v3223, %v6830
    %v7208 = vmul.f32 %v3225, %v6830
    %v7209 = vmul.f32 %v3849, %v6830
    %v7210 = vmul.f32 %v3851, %v6830
    %v7211 = vmul.f32 %v4370, %v6830
    %v7212 = vmul.f32 %v2603, %v6835
    %v7213 = vmul.f32 %v2605, %v6835
    %v7214 = vmul.f32 %v3229, %v6835
    %v7215 = vmul.f32 %v3231, %v6835
    %v7216 = vmul.f32 %v3855, %v6835
    %v7217 = vmul.f32 %v3857, %v6835
    %v7218 = vmul.f32 %v4375, %v6835
    %v7219 = vmul.f32 %v2607, %v6840
    %v7220 = vmul.f32 %v2609, %v6840
    %v7221 = vmul.f32 %v3233, %v6840
    %v7222 = vmul.f32 %v3235, %v6840
    %v7223 = vmul.f32 %v3859, %v6840
    %v7224 = vmul.f32 %v3861, %v6840
    %v7225 = vmul.f32 %v4378, %v6840
    %v7226 = vmul.f32 %v2613, %v6845
    %v7227 = vmul.f32 %v2615, %v6845
    %v7228 = vmul.f32 %v3239, %v6845
    %v7229 = vmul.f32 %v3241, %v6845
    %v7230 = vmul.f32 %v3865, %v6845
    %v7231 = vmul.f32 %v3867, %v6845
    %v7232 = vmul.f32 %v4383, %v6845
    %v7233 = vmul.f32 %v2617, %v6850
    %v7234 = vmul.f32 %v2619, %v6850
    %v7235 = vmul.f32 %v3243, %v6850
    %v7236 = vmul.f32 %v3245, %v6850
    %v7237 = vmul.f32 %v3869, %v6850
    %v7238 = vmul.f32 %v3871, %v6850
    %v7239 = vmul.f32 %v4386, %v6850
    %v7240 = vmul.f32 %v2623, %v6855
    %v7241 = vmul.f32 %v2625, %v6855
    %v7242 = vmul.f32 %v3249, %v6855
    %v7243 = vmul.f32 %v3251, %v6855
    %v7244 = vmul.f32 %v3875, %v6855
    %v7245 = vmul.f32 %v3877, %v6855
    %v7246 = vmul.f32 %v4391, %v6855
    %v7247 = vmul.f32 %v2627, %v6860
    %v7248 = vmul.f32 %v2629, %v6860
    %v7249 = vmul.f32 %v3253, %v6860
    %v7250 = vmul.f32 %v3255, %v6860
    %v7251 = vmul.f32 %v3879, %v6860
    %v7252 = vmul.f32 %v3881, %v6860
    %v7253 = vmul.f32 %v4394, %v6860
    %7255 = vset.pattern.permute.xlu0 1
    %7256 = vperm.xlu0 %7255, %v6526
    %v7257 = vpop.permute.xlu0 %7256
    %7260 = vset.pattern.permute.xlu0 1
    %7261 = vperm.xlu0 %7260, %v6527
    %v7262 = vpop.permute.xlu0 %7261
    %7265 = vset.pattern.permute.xlu0 1
    %7266 = vperm.xlu0 %7265, %v6528
    %v7267 = vpop.permute.xlu0 %7266
    %7270 = vset.pattern.permute.xlu0 1
    %7271 = vperm.xlu0 %7270, %v6529
    %v7272 = vpop.permute.xlu0 %7271
    %7275 = vset.pattern.permute.xlu0 1
    %7276 = vperm.xlu0 %7275, %v6530
    %v7277 = vpop.permute.xlu0 %7276
    %7280 = vset.pattern.permute.xlu0 1
    %7281 = vperm.xlu0 %7280, %v6531
    %v7282 = vpop.permute.xlu0 %7281
    %7285 = vset.pattern.permute.xlu0 1
    %7286 = vperm.xlu0 %7285, %v6532
    %v7287 = vpop.permute.xlu0 %7286
    %7290 = vset.pattern.permute.xlu0 1
    %7291 = vperm.xlu0 %7290, %v6533
    %v7292 = vpop.permute.xlu0 %7291
    %7295 = vset.pattern.permute.xlu0 1
    %7296 = vperm.xlu0 %7295, %v6534
    %v7297 = vpop.permute.xlu0 %7296
    %7300 = vset.pattern.permute.xlu0 1
    %7301 = vperm.xlu0 %7300, %v6535
    %v7302 = vpop.permute.xlu0 %7301
    %7305 = vset.pattern.permute.xlu0 1
    %7306 = vperm.xlu0 %7305, %v6536
    %v7307 = vpop.permute.xlu0 %7306
    %7310 = vset.pattern.permute.xlu0 1
    %7311 = vperm.xlu0 %7310, %v6537
    %v7312 = vpop.permute.xlu0 %7311
    %7315 = vset.pattern.permute.xlu0 1
    %7316 = vperm.xlu0 %7315, %v6538
    %v7317 = vpop.permute.xlu0 %7316
    %7320 = vset.pattern.permute.xlu0 1
    %7321 = vperm.xlu0 %7320, %v6539
    %v7322 = vpop.permute.xlu0 %7321
    %7325 = vset.pattern.permute.xlu0 1
    %7326 = vperm.xlu0 %7325, %v6540
    %v7327 = vpop.permute.xlu0 %7326
    %7330 = vset.pattern.permute.xlu0 1
    %7331 = vperm.xlu0 %7330, %v6541
    %v7332 = vpop.permute.xlu0 %7331
    %7335 = vset.pattern.permute.xlu0 1
    %7336 = vperm.xlu0 %7335, %v6542
    %v7337 = vpop.permute.xlu0 %7336
    %7340 = vset.pattern.permute.xlu0 1
    %7341 = vperm.xlu0 %7340, %v6543
    %v7342 = vpop.permute.xlu0 %7341
    %7345 = vset.pattern.permute.xlu0 1
    %7346 = vperm.xlu0 %7345, %v6544
    %v7347 = vpop.permute.xlu0 %7346
    %7350 = vset.pattern.permute.xlu0 1
    %7351 = vperm.xlu0 %7350, %v6545
    %v7352 = vpop.permute.xlu0 %7351
    %7355 = vset.pattern.permute.xlu0 1
    %7356 = vperm.xlu0 %7355, %v6546
    %v7357 = vpop.permute.xlu0 %7356
    %7360 = vset.pattern.permute.xlu0 1
    %7361 = vperm.xlu0 %7360, %v6547
    %v7362 = vpop.permute.xlu0 %7361
    %7365 = vset.pattern.permute.xlu0 1
    %7366 = vperm.xlu0 %7365, %v6548
    %v7367 = vpop.permute.xlu0 %7366
    %7370 = vset.pattern.permute.xlu0 1
    %7371 = vperm.xlu0 %7370, %v6549
    %v7372 = vpop.permute.xlu0 %7371
    %7375 = vset.pattern.permute.xlu0 1
    %7376 = vperm.xlu0 %7375, %v6550
    %v7377 = vpop.permute.xlu0 %7376
    %7380 = vset.pattern.permute.xlu0 1
    %7381 = vperm.xlu0 %7380, %v6551
    %v7382 = vpop.permute.xlu0 %7381
    %7385 = vset.pattern.permute.xlu0 1
    %7386 = vperm.xlu0 %7385, %v6552
    %v7387 = vpop.permute.xlu0 %7386
    %7390 = vset.pattern.permute.xlu0 1
    %7391 = vperm.xlu0 %7390, %v6553
    %v7392 = vpop.permute.xlu0 %7391
    %7395 = vset.pattern.permute.xlu0 1
    %7396 = vperm.xlu0 %7395, %v6554
    %v7397 = vpop.permute.xlu0 %7396
    %7400 = vset.pattern.permute.xlu0 1
    %7401 = vperm.xlu0 %7400, %v6555
    %v7402 = vpop.permute.xlu0 %7401
    %7405 = vset.pattern.permute.xlu0 1
    %7406 = vperm.xlu0 %7405, %v6556
    %v7407 = vpop.permute.xlu0 %7406
    %7410 = vset.pattern.permute.xlu0 1
    %7411 = vperm.xlu0 %7410, %v6557
    %v7412 = vpop.permute.xlu0 %7411
    %7415 = vset.pattern.permute.xlu0 1
    %7416 = vperm.xlu0 %7415, %v6558
    %v7417 = vpop.permute.xlu0 %7416
    %7420 = vset.pattern.permute.xlu0 1
    %7421 = vperm.xlu0 %7420, %v6559
    %v7422 = vpop.permute.xlu0 %7421
    %7425 = vset.pattern.permute.xlu0 1
    %7426 = vperm.xlu0 %7425, %v6560
    %v7427 = vpop.permute.xlu0 %7426
    %7430 = vset.pattern.permute.xlu0 1
    %7431 = vperm.xlu0 %7430, %v6561
    %v7432 = vpop.permute.xlu0 %7431
    %7435 = vset.pattern.permute.xlu0 1
    %7436 = vperm.xlu0 %7435, %v6562
    %v7437 = vpop.permute.xlu0 %7436
    %7440 = vset.pattern.permute.xlu0 1
    %7441 = vperm.xlu0 %7440, %v6563
    %v7442 = vpop.permute.xlu0 %7441
    %7445 = vset.pattern.permute.xlu0 1
    %7446 = vperm.xlu0 %7445, %v6564
    %v7447 = vpop.permute.xlu0 %7446
    %7450 = vset.pattern.permute.xlu0 1
    %7451 = vperm.xlu0 %7450, %v6565
    %v7452 = vpop.permute.xlu0 %7451
    %7455 = vset.pattern.permute.xlu0 1
    %7456 = vperm.xlu0 %7455, %v6566
    %v7457 = vpop.permute.xlu0 %7456
    %7460 = vset.pattern.permute.xlu0 1
    %7461 = vperm.xlu0 %7460, %v6567
    %v7462 = vpop.permute.xlu0 %7461
    %7465 = vset.pattern.permute.xlu0 1
    %7466 = vperm.xlu0 %7465, %v6568
    %v7467 = vpop.permute.xlu0 %7466
    %7470 = vset.pattern.permute.xlu0 1
    %7471 = vperm.xlu0 %7470, %v6569
    %v7472 = vpop.permute.xlu0 %7471
    %7475 = vset.pattern.permute.xlu0 1
    %7476 = vperm.xlu0 %7475, %v6570
    %v7477 = vpop.permute.xlu0 %7476
    %7480 = vset.pattern.permute.xlu0 1
    %7481 = vperm.xlu0 %7480, %v6571
    %v7482 = vpop.permute.xlu0 %7481
    %7485 = vset.pattern.permute.xlu0 1
    %7486 = vperm.xlu0 %7485, %v6572
    %v7487 = vpop.permute.xlu0 %7486
    %7490 = vset.pattern.permute.xlu0 1
    %7491 = vperm.xlu0 %7490, %v6573
    %v7492 = vpop.permute.xlu0 %7491
    %7495 = vset.pattern.permute.xlu0 1
    %7496 = vperm.xlu0 %7495, %v6574
    %v7497 = vpop.permute.xlu0 %7496
    %7500 = vset.pattern.permute.xlu0 1
    %7501 = vperm.xlu0 %7500, %v6575
    %v7502 = vpop.permute.xlu0 %7501
    %7505 = vset.pattern.permute.xlu0 1
    %7506 = vperm.xlu0 %7505, %v6576
    %v7507 = vpop.permute.xlu0 %7506
    %7510 = vset.pattern.permute.xlu0 1
    %7511 = vperm.xlu0 %7510, %v6577
    %v7512 = vpop.permute.xlu0 %7511
    %7515 = vset.pattern.permute.xlu0 1
    %7516 = vperm.xlu0 %7515, %v6578
    %v7517 = vpop.permute.xlu0 %7516
    %7520 = vset.pattern.permute.xlu0 1
    %7521 = vperm.xlu0 %7520, %v6579
    %v7522 = vpop.permute.xlu0 %7521
    %7525 = vset.pattern.permute.xlu0 1
    %7526 = vperm.xlu0 %7525, %v6580
    %v7527 = vpop.permute.xlu0 %7526
    %7530 = vset.pattern.permute.xlu0 1
    %7531 = vperm.xlu0 %7530, %v6581
    %v7532 = vpop.permute.xlu0 %7531
    %v7534 = vadd.f32 %v6862, %v7257
    %v7535 = vadd.f32 %v6863, %v7257
    %v7536 = vadd.f32 %v6864, %v7257
    %v7537 = vadd.f32 %v6865, %v7257
    %v7538 = vadd.f32 %v6866, %v7257
    %v7539 = vadd.f32 %v6867, %v7257
    %v7540 = vadd.f32 %v6868, %v7257
    %v7541 = vadd.f32 %v6869, %v7262
    %v7542 = vadd.f32 %v6870, %v7262
    %v7543 = vadd.f32 %v6871, %v7262
    %v7544 = vadd.f32 %v6872, %v7262
    %v7545 = vadd.f32 %v6873, %v7262
    %v7546 = vadd.f32 %v6874, %v7262
    %v7547 = vadd.f32 %v6875, %v7262
    %v7548 = vadd.f32 %v6876, %v7267
    %v7549 = vadd.f32 %v6877, %v7267
    %v7550 = vadd.f32 %v6878, %v7267
    %v7551 = vadd.f32 %v6879, %v7267
    %v7552 = vadd.f32 %v6880, %v7267
    %v7553 = vadd.f32 %v6881, %v7267
    %v7554 = vadd.f32 %v6882, %v7267
    %v7555 = vadd.f32 %v6883, %v7272
    %v7556 = vadd.f32 %v6884, %v7272
    %v7557 = vadd.f32 %v6885, %v7272
    %v7558 = vadd.f32 %v6886, %v7272
    %v7559 = vadd.f32 %v6887, %v7272
    %v7560 = vadd.f32 %v6888, %v7272
    %v7561 = vadd.f32 %v6889, %v7272
    %v7562 = vadd.f32 %v6890, %v7277
    %v7563 = vadd.f32 %v6891, %v7277
    %v7564 = vadd.f32 %v6892, %v7277
    %v7565 = vadd.f32 %v6893, %v7277
    %v7566 = vadd.f32 %v6894, %v7277
    %v7567 = vadd.f32 %v6895, %v7277
    %v7568 = vadd.f32 %v6896, %v7277
    %v7569 = vadd.f32 %v6897, %v7282
    %v7570 = vadd.f32 %v6898, %v7282
    %v7571 = vadd.f32 %v6899, %v7282
    %v7572 = vadd.f32 %v6900, %v7282
    %v7573 = vadd.f32 %v6901, %v7282
    %v7574 = vadd.f32 %v6902, %v7282
    %v7575 = vadd.f32 %v6903, %v7282
    %v7576 = vadd.f32 %v6904, %v7287
    %v7577 = vadd.f32 %v6905, %v7287
    %v7578 = vadd.f32 %v6906, %v7287
    %v7579 = vadd.f32 %v6907, %v7287
    %v7580 = vadd.f32 %v6908, %v7287
    %v7581 = vadd.f32 %v6909, %v7287
    %v7582 = vadd.f32 %v6910, %v7287
    %v7583 = vadd.f32 %v6911, %v7292
    %v7584 = vadd.f32 %v6912, %v7292
    %v7585 = vadd.f32 %v6913, %v7292
    %v7586 = vadd.f32 %v6914, %v7292
    %v7587 = vadd.f32 %v6915, %v7292
    %v7588 = vadd.f32 %v6916, %v7292
    %v7589 = vadd.f32 %v6917, %v7292
    %v7590 = vadd.f32 %v6918, %v7297
    %v7591 = vadd.f32 %v6919, %v7297
    %v7592 = vadd.f32 %v6920, %v7297
    %v7593 = vadd.f32 %v6921, %v7297
    %v7594 = vadd.f32 %v6922, %v7297
    %v7595 = vadd.f32 %v6923, %v7297
    %v7596 = vadd.f32 %v6924, %v7297
    %v7597 = vadd.f32 %v6925, %v7302
    %v7598 = vadd.f32 %v6926, %v7302
    %v7599 = vadd.f32 %v6927, %v7302
    %v7600 = vadd.f32 %v6928, %v7302
    %v7601 = vadd.f32 %v6929, %v7302
    %v7602 = vadd.f32 %v6930, %v7302
    %v7603 = vadd.f32 %v6931, %v7302
    %v7604 = vadd.f32 %v6932, %v7307
    %v7605 = vadd.f32 %v6933, %v7307
    %v7606 = vadd.f32 %v6934, %v7307
    %v7607 = vadd.f32 %v6935, %v7307
    %v7608 = vadd.f32 %v6936, %v7307
    %v7609 = vadd.f32 %v6937, %v7307
    %v7610 = vadd.f32 %v6938, %v7307
    %v7611 = vadd.f32 %v6939, %v7312
    %v7612 = vadd.f32 %v6940, %v7312
    %v7613 = vadd.f32 %v6941, %v7312
    %v7614 = vadd.f32 %v6942, %v7312
    %v7615 = vadd.f32 %v6943, %v7312
    %v7616 = vadd.f32 %v6944, %v7312
    %v7617 = vadd.f32 %v6945, %v7312
    %v7618 = vadd.f32 %v6946, %v7317
    %v7619 = vadd.f32 %v6947, %v7317
    %v7620 = vadd.f32 %v6948, %v7317
    %v7621 = vadd.f32 %v6949, %v7317
    %v7622 = vadd.f32 %v6950, %v7317
    %v7623 = vadd.f32 %v6951, %v7317
    %v7624 = vadd.f32 %v6952, %v7317
    %v7625 = vadd.f32 %v6953, %v7322
    %v7626 = vadd.f32 %v6954, %v7322
    %v7627 = vadd.f32 %v6955, %v7322
    %v7628 = vadd.f32 %v6956, %v7322
    %v7629 = vadd.f32 %v6957, %v7322
    %v7630 = vadd.f32 %v6958, %v7322
    %v7631 = vadd.f32 %v6959, %v7322
    %v7632 = vadd.f32 %v6960, %v7327
    %v7633 = vadd.f32 %v6961, %v7327
    %v7634 = vadd.f32 %v6962, %v7327
    %v7635 = vadd.f32 %v6963, %v7327
    %v7636 = vadd.f32 %v6964, %v7327
    %v7637 = vadd.f32 %v6965, %v7327
    %v7638 = vadd.f32 %v6966, %v7327
    %v7639 = vadd.f32 %v6967, %v7332
    %v7640 = vadd.f32 %v6968, %v7332
    %v7641 = vadd.f32 %v6969, %v7332
    %v7642 = vadd.f32 %v6970, %v7332
    %v7643 = vadd.f32 %v6971, %v7332
    %v7644 = vadd.f32 %v6972, %v7332
    %v7645 = vadd.f32 %v6973, %v7332
    %v7646 = vadd.f32 %v6974, %v7337
    %v7647 = vadd.f32 %v6975, %v7337
    %v7648 = vadd.f32 %v6976, %v7337
    %v7649 = vadd.f32 %v6977, %v7337
    %v7650 = vadd.f32 %v6978, %v7337
    %v7651 = vadd.f32 %v6979, %v7337
    %v7652 = vadd.f32 %v6980, %v7337
    %v7653 = vadd.f32 %v6981, %v7342
    %v7654 = vadd.f32 %v6982, %v7342
    %v7655 = vadd.f32 %v6983, %v7342
    %v7656 = vadd.f32 %v6984, %v7342
    %v7657 = vadd.f32 %v6985, %v7342
    %v7658 = vadd.f32 %v6986, %v7342
    %v7659 = vadd.f32 %v6987, %v7342
    %v7660 = vadd.f32 %v6988, %v7347
    %v7661 = vadd.f32 %v6989, %v7347
    %v7662 = vadd.f32 %v6990, %v7347
    %v7663 = vadd.f32 %v6991, %v7347
    %v7664 = vadd.f32 %v6992, %v7347
    %v7665 = vadd.f32 %v6993, %v7347
    %v7666 = vadd.f32 %v6994, %v7347
    %v7667 = vadd.f32 %v6995, %v7352
    %v7668 = vadd.f32 %v6996, %v7352
    %v7669 = vadd.f32 %v6997, %v7352
    %v7670 = vadd.f32 %v6998, %v7352
    %v7671 = vadd.f32 %v6999, %v7352
    %v7672 = vadd.f32 %v7000, %v7352
    %v7673 = vadd.f32 %v7001, %v7352
    %v7674 = vadd.f32 %v7002, %v7357
    %v7675 = vadd.f32 %v7003, %v7357
    %v7676 = vadd.f32 %v7004, %v7357
    %v7677 = vadd.f32 %v7005, %v7357
    %v7678 = vadd.f32 %v7006, %v7357
    %v7679 = vadd.f32 %v7007, %v7357
    %v7680 = vadd.f32 %v7008, %v7357
    %v7681 = vadd.f32 %v7009, %v7362
    %v7682 = vadd.f32 %v7010, %v7362
    %v7683 = vadd.f32 %v7011, %v7362
    %v7684 = vadd.f32 %v7012, %v7362
    %v7685 = vadd.f32 %v7013, %v7362
    %v7686 = vadd.f32 %v7014, %v7362
    %v7687 = vadd.f32 %v7015, %v7362
    %v7688 = vadd.f32 %v7016, %v7367
    %v7689 = vadd.f32 %v7017, %v7367
    %v7690 = vadd.f32 %v7018, %v7367
    %v7691 = vadd.f32 %v7019, %v7367
    %v7692 = vadd.f32 %v7020, %v7367
    %v7693 = vadd.f32 %v7021, %v7367
    %v7694 = vadd.f32 %v7022, %v7367
    %v7695 = vadd.f32 %v7023, %v7372
    %v7696 = vadd.f32 %v7024, %v7372
    %v7697 = vadd.f32 %v7025, %v7372
    %v7698 = vadd.f32 %v7026, %v7372
    %v7699 = vadd.f32 %v7027, %v7372
    %v7700 = vadd.f32 %v7028, %v7372
    %v7701 = vadd.f32 %v7029, %v7372
    %v7702 = vadd.f32 %v7030, %v7377
    %v7703 = vadd.f32 %v7031, %v7377
    %v7704 = vadd.f32 %v7032, %v7377
    %v7705 = vadd.f32 %v7033, %v7377
    %v7706 = vadd.f32 %v7034, %v7377
    %v7707 = vadd.f32 %v7035, %v7377
    %v7708 = vadd.f32 %v7036, %v7377
    %v7709 = vadd.f32 %v7037, %v7382
    %v7710 = vadd.f32 %v7038, %v7382
    %v7711 = vadd.f32 %v7039, %v7382
    %v7712 = vadd.f32 %v7040, %v7382
    %v7713 = vadd.f32 %v7041, %v7382
    %v7714 = vadd.f32 %v7042, %v7382
    %v7715 = vadd.f32 %v7043, %v7382
    %v7716 = vadd.f32 %v7044, %v7387
    %v7717 = vadd.f32 %v7045, %v7387
    %v7718 = vadd.f32 %v7046, %v7387
    %v7719 = vadd.f32 %v7047, %v7387
    %v7720 = vadd.f32 %v7048, %v7387
    %v7721 = vadd.f32 %v7049, %v7387
    %v7722 = vadd.f32 %v7050, %v7387
    %v7723 = vadd.f32 %v7051, %v7392
    %v7724 = vadd.f32 %v7052, %v7392
    %v7725 = vadd.f32 %v7053, %v7392
    %v7726 = vadd.f32 %v7054, %v7392
    %v7727 = vadd.f32 %v7055, %v7392
    %v7728 = vadd.f32 %v7056, %v7392
    %v7729 = vadd.f32 %v7057, %v7392
    %v7730 = vadd.f32 %v7058, %v7397
    %v7731 = vadd.f32 %v7059, %v7397
    %v7732 = vadd.f32 %v7060, %v7397
    %v7733 = vadd.f32 %v7061, %v7397
    %v7734 = vadd.f32 %v7062, %v7397
    %v7735 = vadd.f32 %v7063, %v7397
    %v7736 = vadd.f32 %v7064, %v7397
    %v7737 = vadd.f32 %v7065, %v7402
    %v7738 = vadd.f32 %v7066, %v7402
    %v7739 = vadd.f32 %v7067, %v7402
    %v7740 = vadd.f32 %v7068, %v7402
    %v7741 = vadd.f32 %v7069, %v7402
    %v7742 = vadd.f32 %v7070, %v7402
    %v7743 = vadd.f32 %v7071, %v7402
    %v7744 = vadd.f32 %v7072, %v7407
    %v7745 = vadd.f32 %v7073, %v7407
    %v7746 = vadd.f32 %v7074, %v7407
    %v7747 = vadd.f32 %v7075, %v7407
    %v7748 = vadd.f32 %v7076, %v7407
    %v7749 = vadd.f32 %v7077, %v7407
    %v7750 = vadd.f32 %v7078, %v7407
    %v7751 = vadd.f32 %v7079, %v7412
    %v7752 = vadd.f32 %v7080, %v7412
    %v7753 = vadd.f32 %v7081, %v7412
    %v7754 = vadd.f32 %v7082, %v7412
    %v7755 = vadd.f32 %v7083, %v7412
    %v7756 = vadd.f32 %v7084, %v7412
    %v7757 = vadd.f32 %v7085, %v7412
    %v7758 = vadd.f32 %v7086, %v7417
    %v7759 = vadd.f32 %v7087, %v7417
    %v7760 = vadd.f32 %v7088, %v7417
    %v7761 = vadd.f32 %v7089, %v7417
    %v7762 = vadd.f32 %v7090, %v7417
    %v7763 = vadd.f32 %v7091, %v7417
    %v7764 = vadd.f32 %v7092, %v7417
    %v7765 = vadd.f32 %v7093, %v7422
    %v7766 = vadd.f32 %v7094, %v7422
    %v7767 = vadd.f32 %v7095, %v7422
    %v7768 = vadd.f32 %v7096, %v7422
    %v7769 = vadd.f32 %v7097, %v7422
    %v7770 = vadd.f32 %v7098, %v7422
    %v7771 = vadd.f32 %v7099, %v7422
    %v7772 = vadd.f32 %v7100, %v7427
    %v7773 = vadd.f32 %v7101, %v7427
    %v7774 = vadd.f32 %v7102, %v7427
    %v7775 = vadd.f32 %v7103, %v7427
    %v7776 = vadd.f32 %v7104, %v7427
    %v7777 = vadd.f32 %v7105, %v7427
    %v7778 = vadd.f32 %v7106, %v7427
    %v7779 = vadd.f32 %v7107, %v7432
    %v7780 = vadd.f32 %v7108, %v7432
    %v7781 = vadd.f32 %v7109, %v7432
    %v7782 = vadd.f32 %v7110, %v7432
    %v7783 = vadd.f32 %v7111, %v7432
    %v7784 = vadd.f32 %v7112, %v7432
    %v7785 = vadd.f32 %v7113, %v7432
    %v7786 = vadd.f32 %v7114, %v7437
    %v7787 = vadd.f32 %v7115, %v7437
    %v7788 = vadd.f32 %v7116, %v7437
    %v7789 = vadd.f32 %v7117, %v7437
    %v7790 = vadd.f32 %v7118, %v7437
    %v7791 = vadd.f32 %v7119, %v7437
    %v7792 = vadd.f32 %v7120, %v7437
    %v7793 = vadd.f32 %v7121, %v7442
    %v7794 = vadd.f32 %v7122, %v7442
    %v7795 = vadd.f32 %v7123, %v7442
    %v7796 = vadd.f32 %v7124, %v7442
    %v7797 = vadd.f32 %v7125, %v7442
    %v7798 = vadd.f32 %v7126, %v7442
    %v7799 = vadd.f32 %v7127, %v7442
    %v7800 = vadd.f32 %v7128, %v7447
    %v7801 = vadd.f32 %v7129, %v7447
    %v7802 = vadd.f32 %v7130, %v7447
    %v7803 = vadd.f32 %v7131, %v7447
    %v7804 = vadd.f32 %v7132, %v7447
    %v7805 = vadd.f32 %v7133, %v7447
    %v7806 = vadd.f32 %v7134, %v7447
    %v7807 = vadd.f32 %v7135, %v7452
    %v7808 = vadd.f32 %v7136, %v7452
    %v7809 = vadd.f32 %v7137, %v7452
    %v7810 = vadd.f32 %v7138, %v7452
    %v7811 = vadd.f32 %v7139, %v7452
    %v7812 = vadd.f32 %v7140, %v7452
    %v7813 = vadd.f32 %v7141, %v7452
    %v7814 = vadd.f32 %v7142, %v7457
    %v7815 = vadd.f32 %v7143, %v7457
    %v7816 = vadd.f32 %v7144, %v7457
    %v7817 = vadd.f32 %v7145, %v7457
    %v7818 = vadd.f32 %v7146, %v7457
    %v7819 = vadd.f32 %v7147, %v7457
    %v7820 = vadd.f32 %v7148, %v7457
    %v7821 = vadd.f32 %v7149, %v7462
    %v7822 = vadd.f32 %v7150, %v7462
    %v7823 = vadd.f32 %v7151, %v7462
    %v7824 = vadd.f32 %v7152, %v7462
    %v7825 = vadd.f32 %v7153, %v7462
    %v7826 = vadd.f32 %v7154, %v7462
    %v7827 = vadd.f32 %v7155, %v7462
    %v7828 = vadd.f32 %v7156, %v7467
    %v7829 = vadd.f32 %v7157, %v7467
    %v7830 = vadd.f32 %v7158, %v7467
    %v7831 = vadd.f32 %v7159, %v7467
    %v7832 = vadd.f32 %v7160, %v7467
    %v7833 = vadd.f32 %v7161, %v7467
    %v7834 = vadd.f32 %v7162, %v7467
    %v7835 = vadd.f32 %v7163, %v7472
    %v7836 = vadd.f32 %v7164, %v7472
    %v7837 = vadd.f32 %v7165, %v7472
    %v7838 = vadd.f32 %v7166, %v7472
    %v7839 = vadd.f32 %v7167, %v7472
    %v7840 = vadd.f32 %v7168, %v7472
    %v7841 = vadd.f32 %v7169, %v7472
    %v7842 = vadd.f32 %v7170, %v7477
    %v7843 = vadd.f32 %v7171, %v7477
    %v7844 = vadd.f32 %v7172, %v7477
    %v7845 = vadd.f32 %v7173, %v7477
    %v7846 = vadd.f32 %v7174, %v7477
    %v7847 = vadd.f32 %v7175, %v7477
    %v7848 = vadd.f32 %v7176, %v7477
    %v7849 = vadd.f32 %v7177, %v7482
    %v7850 = vadd.f32 %v7178, %v7482
    %v7851 = vadd.f32 %v7179, %v7482
    %v7852 = vadd.f32 %v7180, %v7482
    %v7853 = vadd.f32 %v7181, %v7482
    %v7854 = vadd.f32 %v7182, %v7482
    %v7855 = vadd.f32 %v7183, %v7482
    %v7856 = vadd.f32 %v7184, %v7487
    %v7857 = vadd.f32 %v7185, %v7487
    %v7858 = vadd.f32 %v7186, %v7487
    %v7859 = vadd.f32 %v7187, %v7487
    %v7860 = vadd.f32 %v7188, %v7487
    %v7861 = vadd.f32 %v7189, %v7487
    %v7862 = vadd.f32 %v7190, %v7487
    %v7863 = vadd.f32 %v7191, %v7492
    %v7864 = vadd.f32 %v7192, %v7492
    %v7865 = vadd.f32 %v7193, %v7492
    %v7866 = vadd.f32 %v7194, %v7492
    %v7867 = vadd.f32 %v7195, %v7492
    %v7868 = vadd.f32 %v7196, %v7492
    %v7869 = vadd.f32 %v7197, %v7492
    %v7870 = vadd.f32 %v7198, %v7497
    %v7871 = vadd.f32 %v7199, %v7497
    %v7872 = vadd.f32 %v7200, %v7497
    %v7873 = vadd.f32 %v7201, %v7497
    %v7874 = vadd.f32 %v7202, %v7497
    %v7875 = vadd.f32 %v7203, %v7497
    %v7876 = vadd.f32 %v7204, %v7497
    %v7877 = vadd.f32 %v7205, %v7502
    %v7878 = vadd.f32 %v7206, %v7502
    %v7879 = vadd.f32 %v7207, %v7502
    %v7880 = vadd.f32 %v7208, %v7502
    %v7881 = vadd.f32 %v7209, %v7502
    %v7882 = vadd.f32 %v7210, %v7502
    %v7883 = vadd.f32 %v7211, %v7502
    %v7884 = vadd.f32 %v7212, %v7507
    %v7885 = vadd.f32 %v7213, %v7507
    %v7886 = vadd.f32 %v7214, %v7507
    %v7887 = vadd.f32 %v7215, %v7507
    %v7888 = vadd.f32 %v7216, %v7507
    %v7889 = vadd.f32 %v7217, %v7507
    %v7890 = vadd.f32 %v7218, %v7507
    %v7891 = vadd.f32 %v7219, %v7512
    %v7892 = vadd.f32 %v7220, %v7512
    %v7893 = vadd.f32 %v7221, %v7512
    %v7894 = vadd.f32 %v7222, %v7512
    %v7895 = vadd.f32 %v7223, %v7512
    %v7896 = vadd.f32 %v7224, %v7512
    %v7897 = vadd.f32 %v7225, %v7512
    %v7898 = vadd.f32 %v7226, %v7517
    %v7899 = vadd.f32 %v7227, %v7517
    %v7900 = vadd.f32 %v7228, %v7517
    %v7901 = vadd.f32 %v7229, %v7517
    %v7902 = vadd.f32 %v7230, %v7517
    %v7903 = vadd.f32 %v7231, %v7517
    %v7904 = vadd.f32 %v7232, %v7517
    %v7905 = vadd.f32 %v7233, %v7522
    %v7906 = vadd.f32 %v7234, %v7522
    %v7907 = vadd.f32 %v7235, %v7522
    %v7908 = vadd.f32 %v7236, %v7522
    %v7909 = vadd.f32 %v7237, %v7522
    %v7910 = vadd.f32 %v7238, %v7522
    %v7911 = vadd.f32 %v7239, %v7522
    %v7912 = vadd.f32 %v7240, %v7527
    %v7913 = vadd.f32 %v7241, %v7527
    %v7914 = vadd.f32 %v7242, %v7527
    %v7915 = vadd.f32 %v7243, %v7527
    %v7916 = vadd.f32 %v7244, %v7527
    %v7917 = vadd.f32 %v7245, %v7527
    %v7918 = vadd.f32 %v7246, %v7527
    %v7919 = vadd.f32 %v7247, %v7532
    %v7920 = vadd.f32 %v7248, %v7532
    %v7921 = vadd.f32 %v7249, %v7532
    %v7922 = vadd.f32 %v7250, %v7532
    %v7923 = vadd.f32 %v7251, %v7532
    %v7924 = vadd.f32 %v7252, %v7532
    %v7925 = vadd.f32 %v7253, %v7532
    %v7926 = vmax.f32 %v7534, 0.0
    %v7927 = vmax.f32 %v7535, 0.0
    %v7928 = vmax.f32 %v7536, 0.0
    %v7929 = vmax.f32 %v7537, 0.0
    %v7930 = vmax.f32 %v7538, 0.0
    %v7931 = vmax.f32 %v7539, 0.0
    %v7932 = vmax.f32 %v7540, 0.0
    %v7933 = vmax.f32 %v7541, 0.0
    %v7934 = vmax.f32 %v7542, 0.0
    %v7935 = vmax.f32 %v7543, 0.0
    %v7936 = vmax.f32 %v7544, 0.0
    %v7937 = vmax.f32 %v7545, 0.0
    %v7938 = vmax.f32 %v7546, 0.0
    %v7939 = vmax.f32 %v7547, 0.0
    %v7940 = vmax.f32 %v7548, 0.0
    %v7941 = vmax.f32 %v7549, 0.0
    %v7942 = vmax.f32 %v7550, 0.0
    %v7943 = vmax.f32 %v7551, 0.0
    %v7944 = vmax.f32 %v7552, 0.0
    %v7945 = vmax.f32 %v7553, 0.0
    %v7946 = vmax.f32 %v7554, 0.0
    %v7947 = vmax.f32 %v7555, 0.0
    %v7948 = vmax.f32 %v7556, 0.0
    %v7949 = vmax.f32 %v7557, 0.0
    %v7950 = vmax.f32 %v7558, 0.0
    %v7951 = vmax.f32 %v7559, 0.0
    %v7952 = vmax.f32 %v7560, 0.0
    %v7953 = vmax.f32 %v7561, 0.0
    %v7954 = vmax.f32 %v7562, 0.0
    %v7955 = vmax.f32 %v7563, 0.0
    %v7956 = vmax.f32 %v7564, 0.0
    %v7957 = vmax.f32 %v7565, 0.0
    %v7958 = vmax.f32 %v7566, 0.0
    %v7959 = vmax.f32 %v7567, 0.0
    %v7960 = vmax.f32 %v7568, 0.0
    %v7961 = vmax.f32 %v7569, 0.0
    %v7962 = vmax.f32 %v7570, 0.0
    %v7963 = vmax.f32 %v7571, 0.0
    %v7964 = vmax.f32 %v7572, 0.0
    %v7965 = vmax.f32 %v7573, 0.0
    %v7966 = vmax.f32 %v7574, 0.0
    %v7967 = vmax.f32 %v7575, 0.0
    %v7968 = vmax.f32 %v7576, 0.0
    %v7969 = vmax.f32 %v7577, 0.0
    %v7970 = vmax.f32 %v7578, 0.0
    %v7971 = vmax.f32 %v7579, 0.0
    %v7972 = vmax.f32 %v7580, 0.0
    %v7973 = vmax.f32 %v7581, 0.0
    %v7974 = vmax.f32 %v7582, 0.0
    %v7975 = vmax.f32 %v7583, 0.0
    %v7976 = vmax.f32 %v7584, 0.0
    %v7977 = vmax.f32 %v7585, 0.0
    %v7978 = vmax.f32 %v7586, 0.0
    %v7979 = vmax.f32 %v7587, 0.0
    %v7980 = vmax.f32 %v7588, 0.0
    %v7981 = vmax.f32 %v7589, 0.0
    %v7982 = vmax.f32 %v7590, 0.0
    %v7983 = vmax.f32 %v7591, 0.0
    %v7984 = vmax.f32 %v7592, 0.0
    %v7985 = vmax.f32 %v7593, 0.0
    %v7986 = vmax.f32 %v7594, 0.0
    %v7987 = vmax.f32 %v7595, 0.0
    %v7988 = vmax.f32 %v7596, 0.0
    %v7989 = vmax.f32 %v7597, 0.0
    %v7990 = vmax.f32 %v7598, 0.0
    %v7991 = vmax.f32 %v7599, 0.0
    %v7992 = vmax.f32 %v7600, 0.0
    %v7993 = vmax.f32 %v7601, 0.0
    %v7994 = vmax.f32 %v7602, 0.0
    %v7995 = vmax.f32 %v7603, 0.0
    %v7996 = vmax.f32 %v7604, 0.0
    %v7997 = vmax.f32 %v7605, 0.0
    %v7998 = vmax.f32 %v7606, 0.0
    %v7999 = vmax.f32 %v7607, 0.0
    %v8000 = vmax.f32 %v7608, 0.0
    %v8001 = vmax.f32 %v7609, 0.0
    %v8002 = vmax.f32 %v7610, 0.0
    %v8003 = vmax.f32 %v7611, 0.0
    %v8004 = vmax.f32 %v7612, 0.0
    %v8005 = vmax.f32 %v7613, 0.0
    %v8006 = vmax.f32 %v7614, 0.0
    %v8007 = vmax.f32 %v7615, 0.0
    %v8008 = vmax.f32 %v7616, 0.0
    %v8009 = vmax.f32 %v7617, 0.0
    %v8010 = vmax.f32 %v7618, 0.0
    %v8011 = vmax.f32 %v7619, 0.0
    %v8012 = vmax.f32 %v7620, 0.0
    %v8013 = vmax.f32 %v7621, 0.0
    %v8014 = vmax.f32 %v7622, 0.0
    %v8015 = vmax.f32 %v7623, 0.0
    %v8016 = vmax.f32 %v7624, 0.0
    %v8017 = vmax.f32 %v7625, 0.0
    %v8018 = vmax.f32 %v7626, 0.0
    %v8019 = vmax.f32 %v7627, 0.0
    %v8020 = vmax.f32 %v7628, 0.0
    %v8021 = vmax.f32 %v7629, 0.0
    %v8022 = vmax.f32 %v7630, 0.0
    %v8023 = vmax.f32 %v7631, 0.0
    %v8024 = vmax.f32 %v7632, 0.0
    %v8025 = vmax.f32 %v7633, 0.0
    %v8026 = vmax.f32 %v7634, 0.0
    %v8027 = vmax.f32 %v7635, 0.0
    %v8028 = vmax.f32 %v7636, 0.0
    %v8029 = vmax.f32 %v7637, 0.0
    %v8030 = vmax.f32 %v7638, 0.0
    %v8031 = vmax.f32 %v7639, 0.0
    %v8032 = vmax.f32 %v7640, 0.0
    %v8033 = vmax.f32 %v7641, 0.0
    %v8034 = vmax.f32 %v7642, 0.0
    %v8035 = vmax.f32 %v7643, 0.0
    %v8036 = vmax.f32 %v7644, 0.0
    %v8037 = vmax.f32 %v7645, 0.0
    %v8038 = vmax.f32 %v7646, 0.0
    %v8039 = vmax.f32 %v7647, 0.0
    %v8040 = vmax.f32 %v7648, 0.0
    %v8041 = vmax.f32 %v7649, 0.0
    %v8042 = vmax.f32 %v7650, 0.0
    %v8043 = vmax.f32 %v7651, 0.0
    %v8044 = vmax.f32 %v7652, 0.0
    %v8045 = vmax.f32 %v7653, 0.0
    %v8046 = vmax.f32 %v7654, 0.0
    %v8047 = vmax.f32 %v7655, 0.0
    %v8048 = vmax.f32 %v7656, 0.0
    %v8049 = vmax.f32 %v7657, 0.0
    %v8050 = vmax.f32 %v7658, 0.0
    %v8051 = vmax.f32 %v7659, 0.0
    %v8052 = vmax.f32 %v7660, 0.0
    %v8053 = vmax.f32 %v7661, 0.0
    %v8054 = vmax.f32 %v7662, 0.0
    %v8055 = vmax.f32 %v7663, 0.0
    %v8056 = vmax.f32 %v7664, 0.0
    %v8057 = vmax.f32 %v7665, 0.0
    %v8058 = vmax.f32 %v7666, 0.0
    %v8059 = vmax.f32 %v7667, 0.0
    %v8060 = vmax.f32 %v7668, 0.0
    %v8061 = vmax.f32 %v7669, 0.0
    %v8062 = vmax.f32 %v7670, 0.0
    %v8063 = vmax.f32 %v7671, 0.0
    %v8064 = vmax.f32 %v7672, 0.0
    %v8065 = vmax.f32 %v7673, 0.0
    %v8066 = vmax.f32 %v7674, 0.0
    %v8067 = vmax.f32 %v7675, 0.0
    %v8068 = vmax.f32 %v7676, 0.0
    %v8069 = vmax.f32 %v7677, 0.0
    %v8070 = vmax.f32 %v7678, 0.0
    %v8071 = vmax.f32 %v7679, 0.0
    %v8072 = vmax.f32 %v7680, 0.0
    %v8073 = vmax.f32 %v7681, 0.0
    %v8074 = vmax.f32 %v7682, 0.0
    %v8075 = vmax.f32 %v7683, 0.0
    %v8076 = vmax.f32 %v7684, 0.0
    %v8077 = vmax.f32 %v7685, 0.0
    %v8078 = vmax.f32 %v7686, 0.0
    %v8079 = vmax.f32 %v7687, 0.0
    %v8080 = vmax.f32 %v7688, 0.0
    %v8081 = vmax.f32 %v7689, 0.0
    %v8082 = vmax.f32 %v7690, 0.0
    %v8083 = vmax.f32 %v7691, 0.0
    %v8084 = vmax.f32 %v7692, 0.0
    %v8085 = vmax.f32 %v7693, 0.0
    %v8086 = vmax.f32 %v7694, 0.0
    %v8087 = vmax.f32 %v7695, 0.0
    %v8088 = vmax.f32 %v7696, 0.0
    %v8089 = vmax.f32 %v7697, 0.0
    %v8090 = vmax.f32 %v7698, 0.0
    %v8091 = vmax.f32 %v7699, 0.0
    %v8092 = vmax.f32 %v7700, 0.0
    %v8093 = vmax.f32 %v7701, 0.0
    %v8094 = vmax.f32 %v7702, 0.0
    %v8095 = vmax.f32 %v7703, 0.0
    %v8096 = vmax.f32 %v7704, 0.0
    %v8097 = vmax.f32 %v7705, 0.0
    %v8098 = vmax.f32 %v7706, 0.0
    %v8099 = vmax.f32 %v7707, 0.0
    %v8100 = vmax.f32 %v7708, 0.0
    %v8101 = vmax.f32 %v7709, 0.0
    %v8102 = vmax.f32 %v7710, 0.0
    %v8103 = vmax.f32 %v7711, 0.0
    %v8104 = vmax.f32 %v7712, 0.0
    %v8105 = vmax.f32 %v7713, 0.0
    %v8106 = vmax.f32 %v7714, 0.0
    %v8107 = vmax.f32 %v7715, 0.0
    %v8108 = vmax.f32 %v7716, 0.0
    %v8109 = vmax.f32 %v7717, 0.0
    %v8110 = vmax.f32 %v7718, 0.0
    %v8111 = vmax.f32 %v7719, 0.0
    %v8112 = vmax.f32 %v7720, 0.0
    %v8113 = vmax.f32 %v7721, 0.0
    %v8114 = vmax.f32 %v7722, 0.0
    %v8115 = vmax.f32 %v7723, 0.0
    %v8116 = vmax.f32 %v7724, 0.0
    %v8117 = vmax.f32 %v7725, 0.0
    %v8118 = vmax.f32 %v7726, 0.0
    %v8119 = vmax.f32 %v7727, 0.0
    %v8120 = vmax.f32 %v7728, 0.0
    %v8121 = vmax.f32 %v7729, 0.0
    %v8122 = vmax.f32 %v7730, 0.0
    %v8123 = vmax.f32 %v7731, 0.0
    %v8124 = vmax.f32 %v7732, 0.0
    %v8125 = vmax.f32 %v7733, 0.0
    %v8126 = vmax.f32 %v7734, 0.0
    %v8127 = vmax.f32 %v7735, 0.0
    %v8128 = vmax.f32 %v7736, 0.0
    %v8129 = vmax.f32 %v7737, 0.0
    %v8130 = vmax.f32 %v7738, 0.0
    %v8131 = vmax.f32 %v7739, 0.0
    %v8132 = vmax.f32 %v7740, 0.0
    %v8133 = vmax.f32 %v7741, 0.0
    %v8134 = vmax.f32 %v7742, 0.0
    %v8135 = vmax.f32 %v7743, 0.0
    %v8136 = vmax.f32 %v7744, 0.0
    %v8137 = vmax.f32 %v7745, 0.0
    %v8138 = vmax.f32 %v7746, 0.0
    %v8139 = vmax.f32 %v7747, 0.0
    %v8140 = vmax.f32 %v7748, 0.0
    %v8141 = vmax.f32 %v7749, 0.0
    %v8142 = vmax.f32 %v7750, 0.0
    %v8143 = vmax.f32 %v7751, 0.0
    %v8144 = vmax.f32 %v7752, 0.0
    %v8145 = vmax.f32 %v7753, 0.0
    %v8146 = vmax.f32 %v7754, 0.0
    %v8147 = vmax.f32 %v7755, 0.0
    %v8148 = vmax.f32 %v7756, 0.0
    %v8149 = vmax.f32 %v7757, 0.0
    %v8150 = vmax.f32 %v7758, 0.0
    %v8151 = vmax.f32 %v7759, 0.0
    %v8152 = vmax.f32 %v7760, 0.0
    %v8153 = vmax.f32 %v7761, 0.0
    %v8154 = vmax.f32 %v7762, 0.0
    %v8155 = vmax.f32 %v7763, 0.0
    %v8156 = vmax.f32 %v7764, 0.0
    %v8157 = vmax.f32 %v7765, 0.0
    %v8158 = vmax.f32 %v7766, 0.0
    %v8159 = vmax.f32 %v7767, 0.0
    %v8160 = vmax.f32 %v7768, 0.0
    %v8161 = vmax.f32 %v7769, 0.0
    %v8162 = vmax.f32 %v7770, 0.0
    %v8163 = vmax.f32 %v7771, 0.0
    %v8164 = vmax.f32 %v7772, 0.0
    %v8165 = vmax.f32 %v7773, 0.0
    %v8166 = vmax.f32 %v7774, 0.0
    %v8167 = vmax.f32 %v7775, 0.0
    %v8168 = vmax.f32 %v7776, 0.0
    %v8169 = vmax.f32 %v7777, 0.0
    %v8170 = vmax.f32 %v7778, 0.0
    %v8171 = vmax.f32 %v7779, 0.0
    %v8172 = vmax.f32 %v7780, 0.0
    %v8173 = vmax.f32 %v7781, 0.0
    %v8174 = vmax.f32 %v7782, 0.0
    %v8175 = vmax.f32 %v7783, 0.0
    %v8176 = vmax.f32 %v7784, 0.0
    %v8177 = vmax.f32 %v7785, 0.0
    %v8178 = vmax.f32 %v7786, 0.0
    %v8179 = vmax.f32 %v7787, 0.0
    %v8180 = vmax.f32 %v7788, 0.0
    %v8181 = vmax.f32 %v7789, 0.0
    %v8182 = vmax.f32 %v7790, 0.0
    %v8183 = vmax.f32 %v7791, 0.0
    %v8184 = vmax.f32 %v7792, 0.0
    %v8185 = vmax.f32 %v7793, 0.0
    %v8186 = vmax.f32 %v7794, 0.0
    %v8187 = vmax.f32 %v7795, 0.0
    %v8188 = vmax.f32 %v7796, 0.0
    %v8189 = vmax.f32 %v7797, 0.0
    %v8190 = vmax.f32 %v7798, 0.0
    %v8191 = vmax.f32 %v7799, 0.0
    %v8192 = vmax.f32 %v7800, 0.0
    %v8193 = vmax.f32 %v7801, 0.0
    %v8194 = vmax.f32 %v7802, 0.0
    %v8195 = vmax.f32 %v7803, 0.0
    %v8196 = vmax.f32 %v7804, 0.0
    %v8197 = vmax.f32 %v7805, 0.0
    %v8198 = vmax.f32 %v7806, 0.0
    %v8199 = vmax.f32 %v7807, 0.0
    %v8200 = vmax.f32 %v7808, 0.0
    %v8201 = vmax.f32 %v7809, 0.0
    %v8202 = vmax.f32 %v7810, 0.0
    %v8203 = vmax.f32 %v7811, 0.0
    %v8204 = vmax.f32 %v7812, 0.0
    %v8205 = vmax.f32 %v7813, 0.0
    %v8206 = vmax.f32 %v7814, 0.0
    %v8207 = vmax.f32 %v7815, 0.0
    %v8208 = vmax.f32 %v7816, 0.0
    %v8209 = vmax.f32 %v7817, 0.0
    %v8210 = vmax.f32 %v7818, 0.0
    %v8211 = vmax.f32 %v7819, 0.0
    %v8212 = vmax.f32 %v7820, 0.0
    %v8213 = vmax.f32 %v7821, 0.0
    %v8214 = vmax.f32 %v7822, 0.0
    %v8215 = vmax.f32 %v7823, 0.0
    %v8216 = vmax.f32 %v7824, 0.0
    %v8217 = vmax.f32 %v7825, 0.0
    %v8218 = vmax.f32 %v7826, 0.0
    %v8219 = vmax.f32 %v7827, 0.0
    %v8220 = vmax.f32 %v7828, 0.0
    %v8221 = vmax.f32 %v7829, 0.0
    %v8222 = vmax.f32 %v7830, 0.0
    %v8223 = vmax.f32 %v7831, 0.0
    %v8224 = vmax.f32 %v7832, 0.0
    %v8225 = vmax.f32 %v7833, 0.0
    %v8226 = vmax.f32 %v7834, 0.0
    %v8227 = vmax.f32 %v7835, 0.0
    %v8228 = vmax.f32 %v7836, 0.0
    %v8229 = vmax.f32 %v7837, 0.0
    %v8230 = vmax.f32 %v7838, 0.0
    %v8231 = vmax.f32 %v7839, 0.0
    %v8232 = vmax.f32 %v7840, 0.0
    %v8233 = vmax.f32 %v7841, 0.0
    %v8234 = vmax.f32 %v7842, 0.0
    %v8235 = vmax.f32 %v7843, 0.0
    %v8236 = vmax.f32 %v7844, 0.0
    %v8237 = vmax.f32 %v7845, 0.0
    %v8238 = vmax.f32 %v7846, 0.0
    %v8239 = vmax.f32 %v7847, 0.0
    %v8240 = vmax.f32 %v7848, 0.0
    %v8241 = vmax.f32 %v7849, 0.0
    %v8242 = vmax.f32 %v7850, 0.0
    %v8243 = vmax.f32 %v7851, 0.0
    %v8244 = vmax.f32 %v7852, 0.0
    %v8245 = vmax.f32 %v7853, 0.0
    %v8246 = vmax.f32 %v7854, 0.0
    %v8247 = vmax.f32 %v7855, 0.0
    %v8248 = vmax.f32 %v7856, 0.0
    %v8249 = vmax.f32 %v7857, 0.0
    %v8250 = vmax.f32 %v7858, 0.0
    %v8251 = vmax.f32 %v7859, 0.0
    %v8252 = vmax.f32 %v7860, 0.0
    %v8253 = vmax.f32 %v7861, 0.0
    %v8254 = vmax.f32 %v7862, 0.0
    %v8255 = vmax.f32 %v7863, 0.0
    %v8256 = vmax.f32 %v7864, 0.0
    %v8257 = vmax.f32 %v7865, 0.0
    %v8258 = vmax.f32 %v7866, 0.0
    %v8259 = vmax.f32 %v7867, 0.0
    %v8260 = vmax.f32 %v7868, 0.0
    %v8261 = vmax.f32 %v7869, 0.0
    %v8262 = vmax.f32 %v7870, 0.0
    %v8263 = vmax.f32 %v7871, 0.0
    %v8264 = vmax.f32 %v7872, 0.0
    %v8265 = vmax.f32 %v7873, 0.0
    %v8266 = vmax.f32 %v7874, 0.0
    %v8267 = vmax.f32 %v7875, 0.0
    %v8268 = vmax.f32 %v7876, 0.0
    %v8269 = vmax.f32 %v7877, 0.0
    %v8270 = vmax.f32 %v7878, 0.0
    %v8271 = vmax.f32 %v7879, 0.0
    %v8272 = vmax.f32 %v7880, 0.0
    %v8273 = vmax.f32 %v7881, 0.0
    %v8274 = vmax.f32 %v7882, 0.0
    %v8275 = vmax.f32 %v7883, 0.0
    %v8276 = vmax.f32 %v7884, 0.0
    %v8277 = vmax.f32 %v7885, 0.0
    %v8278 = vmax.f32 %v7886, 0.0
    %v8279 = vmax.f32 %v7887, 0.0
    %v8280 = vmax.f32 %v7888, 0.0
    %v8281 = vmax.f32 %v7889, 0.0
    %v8282 = vmax.f32 %v7890, 0.0
    %v8283 = vmax.f32 %v7891, 0.0
    %v8284 = vmax.f32 %v7892, 0.0
    %v8285 = vmax.f32 %v7893, 0.0
    %v8286 = vmax.f32 %v7894, 0.0
    %v8287 = vmax.f32 %v7895, 0.0
    %v8288 = vmax.f32 %v7896, 0.0
    %v8289 = vmax.f32 %v7897, 0.0
    %v8290 = vmax.f32 %v7898, 0.0
    %v8291 = vmax.f32 %v7899, 0.0
    %v8292 = vmax.f32 %v7900, 0.0
    %v8293 = vmax.f32 %v7901, 0.0
    %v8294 = vmax.f32 %v7902, 0.0
    %v8295 = vmax.f32 %v7903, 0.0
    %v8296 = vmax.f32 %v7904, 0.0
    %v8297 = vmax.f32 %v7905, 0.0
    %v8298 = vmax.f32 %v7906, 0.0
    %v8299 = vmax.f32 %v7907, 0.0
    %v8300 = vmax.f32 %v7908, 0.0
    %v8301 = vmax.f32 %v7909, 0.0
    %v8302 = vmax.f32 %v7910, 0.0
    %v8303 = vmax.f32 %v7911, 0.0
    %v8304 = vmax.f32 %v7912, 0.0
    %v8305 = vmax.f32 %v7913, 0.0
    %v8306 = vmax.f32 %v7914, 0.0
    %v8307 = vmax.f32 %v7915, 0.0
    %v8308 = vmax.f32 %v7916, 0.0
    %v8309 = vmax.f32 %v7917, 0.0
    %v8310 = vmax.f32 %v7918, 0.0
    %v8311 = vmax.f32 %v7919, 0.0
    %v8312 = vmax.f32 %v7920, 0.0
    %v8313 = vmax.f32 %v7921, 0.0
    %v8314 = vmax.f32 %v7922, 0.0
    %v8315 = vmax.f32 %v7923, 0.0
    %v8316 = vmax.f32 %v7924, 0.0
    %v8317 = vmax.f32 %v7925, 0.0
    %8318 = vst [vmem:[#allocation7] sm:$0xff] %v7926
    %8319 = vst [vmem:[#allocation7 + $0x8] sm:$0xff] %v7927
    %8320 = vst [vmem:[#allocation7 + $0x10] sm:$0xff] %v7928
    %8321 = vst [vmem:[#allocation7 + $0x18] sm:$0xff] %v7929
    %8322 = vst [vmem:[#allocation7 + $0x20] sm:$0xff] %v7930
    %8323 = vst [vmem:[#allocation7 + $0x28] sm:$0xff] %v7931
    %8324 = vst.msk [vmem:[#allocation7 + $0x30] sm:$0xff] %vm4402, %v7932
    %8325 = vst [vmem:[#allocation7 + $0x38] sm:$0xff] %v7933
    %8326 = vst [vmem:[#allocation7 + $0x40] sm:$0xff] %v7934
    %8327 = vst [vmem:[#allocation7 + $0x48] sm:$0xff] %v7935
    %8328 = vst [vmem:[#allocation7 + $0x50] sm:$0xff] %v7936
    %8329 = vst [vmem:[#allocation7 + $0x58] sm:$0xff] %v7937
    %8330 = vst [vmem:[#allocation7 + $0x60] sm:$0xff] %v7938
    %8331 = vst.msk [vmem:[#allocation7 + $0x68] sm:$0xff] %vm4402, %v7939
    %8332 = vst [vmem:[#allocation7 + $0x70] sm:$0xff] %v7940
    %8333 = vst [vmem:[#allocation7 + $0x78] sm:$0xff] %v7941
    %8334 = vst [vmem:[#allocation7 + $0x80] sm:$0xff] %v7942
    %8335 = vst [vmem:[#allocation7 + $0x88] sm:$0xff] %v7943
    %8336 = vst [vmem:[#allocation7 + $0x90] sm:$0xff] %v7944
    %8337 = vst [vmem:[#allocation7 + $0x98] sm:$0xff] %v7945
    %8338 = vst.msk [vmem:[#allocation7 + $0xa0] sm:$0xff] %vm4402, %v7946
    %8339 = vst [vmem:[#allocation7 + $0xa8] sm:$0xff] %v7947
    %8340 = vst [vmem:[#allocation7 + $0xb0] sm:$0xff] %v7948
    %8341 = vst [vmem:[#allocation7 + $0xb8] sm:$0xff] %v7949
    %8342 = vst [vmem:[#allocation7 + $0xc0] sm:$0xff] %v7950
    %8343 = vst [vmem:[#allocation7 + $0xc8] sm:$0xff] %v7951
    %8344 = vst [vmem:[#allocation7 + $0xd0] sm:$0xff] %v7952
    %8345 = vst.msk [vmem:[#allocation7 + $0xd8] sm:$0xff] %vm4402, %v7953
    %8346 = vst [vmem:[#allocation7 + $0xe0] sm:$0xff] %v7954
    %8347 = vst [vmem:[#allocation7 + $0xe8] sm:$0xff] %v7955
    %8348 = vst [vmem:[#allocation7 + $0xf0] sm:$0xff] %v7956
    %8349 = vst [vmem:[#allocation7 + $0xf8] sm:$0xff] %v7957
    %8350 = vst [vmem:[#allocation7 + $0x100] sm:$0xff] %v7958
    %8351 = vst [vmem:[#allocation7 + $0x108] sm:$0xff] %v7959
    %8352 = vst.msk [vmem:[#allocation7 + $0x110] sm:$0xff] %vm4402, %v7960
    %8353 = vst [vmem:[#allocation7 + $0x118] sm:$0xff] %v7961
    %8354 = vst [vmem:[#allocation7 + $0x120] sm:$0xff] %v7962
    %8355 = vst [vmem:[#allocation7 + $0x128] sm:$0xff] %v7963
    %8356 = vst [vmem:[#allocation7 + $0x130] sm:$0xff] %v7964
    %8357 = vst [vmem:[#allocation7 + $0x138] sm:$0xff] %v7965
    %8358 = vst [vmem:[#allocation7 + $0x140] sm:$0xff] %v7966
    %8359 = vst.msk [vmem:[#allocation7 + $0x148] sm:$0xff] %vm4402, %v7967
    %8360 = vst [vmem:[#allocation7 + $0x150] sm:$0xff] %v7968
    %8361 = vst [vmem:[#allocation7 + $0x158] sm:$0xff] %v7969
    %8362 = vst [vmem:[#allocation7 + $0x160] sm:$0xff] %v7970
    %8363 = vst [vmem:[#allocation7 + $0x168] sm:$0xff] %v7971
    %8364 = vst [vmem:[#allocation7 + $0x170] sm:$0xff] %v7972
    %8365 = vst [vmem:[#allocation7 + $0x178] sm:$0xff] %v7973
    %8366 = vst.msk [vmem:[#allocation7 + $0x180] sm:$0xff] %vm4402, %v7974
    %8367 = vst [vmem:[#allocation7 + $0x188] sm:$0xff] %v7975
    %8368 = vst [vmem:[#allocation7 + $0x190] sm:$0xff] %v7976
    %8369 = vst [vmem:[#allocation7 + $0x198] sm:$0xff] %v7977
    %8370 = vst [vmem:[#allocation7 + $0x1a0] sm:$0xff] %v7978
    %8371 = vst [vmem:[#allocation7 + $0x1a8] sm:$0xff] %v7979
    %8372 = vst [vmem:[#allocation7 + $0x1b0] sm:$0xff] %v7980
    %8373 = vst.msk [vmem:[#allocation7 + $0x1b8] sm:$0xff] %vm4402, %v7981
    %8374 = vst [vmem:[#allocation7 + $0x1c0] sm:$0xff] %v7982
    %8375 = vst [vmem:[#allocation7 + $0x1c8] sm:$0xff] %v7983
    %8376 = vst [vmem:[#allocation7 + $0x1d0] sm:$0xff] %v7984
    %8377 = vst [vmem:[#allocation7 + $0x1d8] sm:$0xff] %v7985
    %8378 = vst [vmem:[#allocation7 + $0x1e0] sm:$0xff] %v7986
    %8379 = vst [vmem:[#allocation7 + $0x1e8] sm:$0xff] %v7987
    %8380 = vst.msk [vmem:[#allocation7 + $0x1f0] sm:$0xff] %vm4402, %v7988
    %8381 = vst [vmem:[#allocation7 + $0x1f8] sm:$0xff] %v7989
    %8382 = vst [vmem:[#allocation7 + $0x200] sm:$0xff] %v7990
    %8383 = vst [vmem:[#allocation7 + $0x208] sm:$0xff] %v7991
    %8384 = vst [vmem:[#allocation7 + $0x210] sm:$0xff] %v7992
    %8385 = vst [vmem:[#allocation7 + $0x218] sm:$0xff] %v7993
    %8386 = vst [vmem:[#allocation7 + $0x220] sm:$0xff] %v7994
    %8387 = vst.msk [vmem:[#allocation7 + $0x228] sm:$0xff] %vm4402, %v7995
    %8388 = vst [vmem:[#allocation7 + $0x230] sm:$0xff] %v7996
    %8389 = vst [vmem:[#allocation7 + $0x238] sm:$0xff] %v7997
    %8390 = vst [vmem:[#allocation7 + $0x240] sm:$0xff] %v7998
    %8391 = vst [vmem:[#allocation7 + $0x248] sm:$0xff] %v7999
    %8392 = vst [vmem:[#allocation7 + $0x250] sm:$0xff] %v8000
    %8393 = vst [vmem:[#allocation7 + $0x258] sm:$0xff] %v8001
    %8394 = vst.msk [vmem:[#allocation7 + $0x260] sm:$0xff] %vm4402, %v8002
    %8395 = vst [vmem:[#allocation7 + $0x268] sm:$0xff] %v8003
    %8396 = vst [vmem:[#allocation7 + $0x270] sm:$0xff] %v8004
    %8397 = vst [vmem:[#allocation7 + $0x278] sm:$0xff] %v8005
    %8398 = vst [vmem:[#allocation7 + $0x280] sm:$0xff] %v8006
    %8399 = vst [vmem:[#allocation7 + $0x288] sm:$0xff] %v8007
    %8400 = vst [vmem:[#allocation7 + $0x290] sm:$0xff] %v8008
    %8401 = vst.msk [vmem:[#allocation7 + $0x298] sm:$0xff] %vm4402, %v8009
    %8402 = vst [vmem:[#allocation7 + $0x2a0] sm:$0xff] %v8010
    %8403 = vst [vmem:[#allocation7 + $0x2a8] sm:$0xff] %v8011
    %8404 = vst [vmem:[#allocation7 + $0x2b0] sm:$0xff] %v8012
    %8405 = vst [vmem:[#allocation7 + $0x2b8] sm:$0xff] %v8013
    %8406 = vst [vmem:[#allocation7 + $0x2c0] sm:$0xff] %v8014
    %8407 = vst [vmem:[#allocation7 + $0x2c8] sm:$0xff] %v8015
    %8408 = vst.msk [vmem:[#allocation7 + $0x2d0] sm:$0xff] %vm4402, %v8016
    %8409 = vst [vmem:[#allocation7 + $0x2d8] sm:$0xff] %v8017
    %8410 = vst [vmem:[#allocation7 + $0x2e0] sm:$0xff] %v8018
    %8411 = vst [vmem:[#allocation7 + $0x2e8] sm:$0xff] %v8019
    %8412 = vst [vmem:[#allocation7 + $0x2f0] sm:$0xff] %v8020
    %8413 = vst [vmem:[#allocation7 + $0x2f8] sm:$0xff] %v8021
    %8414 = vst [vmem:[#allocation7 + $0x300] sm:$0xff] %v8022
    %8415 = vst.msk [vmem:[#allocation7 + $0x308] sm:$0xff] %vm4402, %v8023
    %8416 = vst [vmem:[#allocation7 + $0x310] sm:$0xff] %v8024
    %8417 = vst [vmem:[#allocation7 + $0x318] sm:$0xff] %v8025
    %8418 = vst [vmem:[#allocation7 + $0x320] sm:$0xff] %v8026
    %8419 = vst [vmem:[#allocation7 + $0x328] sm:$0xff] %v8027
    %8420 = vst [vmem:[#allocation7 + $0x330] sm:$0xff] %v8028
    %8421 = vst [vmem:[#allocation7 + $0x338] sm:$0xff] %v8029
    %8422 = vst.msk [vmem:[#allocation7 + $0x340] sm:$0xff] %vm4402, %v8030
    %8423 = vst [vmem:[#allocation7 + $0x348] sm:$0xff] %v8031
    %8424 = vst [vmem:[#allocation7 + $0x350] sm:$0xff] %v8032
    %8425 = vst [vmem:[#allocation7 + $0x358] sm:$0xff] %v8033
    %8426 = vst [vmem:[#allocation7 + $0x360] sm:$0xff] %v8034
    %8427 = vst [vmem:[#allocation7 + $0x368] sm:$0xff] %v8035
    %8428 = vst [vmem:[#allocation7 + $0x370] sm:$0xff] %v8036
    %8429 = vst.msk [vmem:[#allocation7 + $0x378] sm:$0xff] %vm4402, %v8037
    %8430 = vst [vmem:[#allocation7 + $0x380] sm:$0xff] %v8038
    %8431 = vst [vmem:[#allocation7 + $0x388] sm:$0xff] %v8039
    %8432 = vst [vmem:[#allocation7 + $0x390] sm:$0xff] %v8040
    %8433 = vst [vmem:[#allocation7 + $0x398] sm:$0xff] %v8041
    %8434 = vst [vmem:[#allocation7 + $0x3a0] sm:$0xff] %v8042
    %8435 = vst [vmem:[#allocation7 + $0x3a8] sm:$0xff] %v8043
    %8436 = vst.msk [vmem:[#allocation7 + $0x3b0] sm:$0xff] %vm4402, %v8044
    %8437 = vst [vmem:[#allocation7 + $0x3b8] sm:$0xff] %v8045
    %8438 = vst [vmem:[#allocation7 + $0x3c0] sm:$0xff] %v8046
    %8439 = vst [vmem:[#allocation7 + $0x3c8] sm:$0xff] %v8047
    %8440 = vst [vmem:[#allocation7 + $0x3d0] sm:$0xff] %v8048
    %8441 = vst [vmem:[#allocation7 + $0x3d8] sm:$0xff] %v8049
    %8442 = vst [vmem:[#allocation7 + $0x3e0] sm:$0xff] %v8050
    %8443 = vst.msk [vmem:[#allocation7 + $0x3e8] sm:$0xff] %vm4402, %v8051
    %8444 = vst [vmem:[#allocation7 + $0x3f0] sm:$0xff] %v8052
    %8445 = vst [vmem:[#allocation7 + $0x3f8] sm:$0xff] %v8053
    %8446 = vst [vmem:[#allocation7 + $0x400] sm:$0xff] %v8054
    %8447 = vst [vmem:[#allocation7 + $0x408] sm:$0xff] %v8055
    %8448 = vst [vmem:[#allocation7 + $0x410] sm:$0xff] %v8056
    %8449 = vst [vmem:[#allocation7 + $0x418] sm:$0xff] %v8057
    %8450 = vst.msk [vmem:[#allocation7 + $0x420] sm:$0xff] %vm4402, %v8058
    %8451 = vst [vmem:[#allocation7 + $0x428] sm:$0xff] %v8059
    %8452 = vst [vmem:[#allocation7 + $0x430] sm:$0xff] %v8060
    %8453 = vst [vmem:[#allocation7 + $0x438] sm:$0xff] %v8061
    %8454 = vst [vmem:[#allocation7 + $0x440] sm:$0xff] %v8062
    %8455 = vst [vmem:[#allocation7 + $0x448] sm:$0xff] %v8063
    %8456 = vst [vmem:[#allocation7 + $0x450] sm:$0xff] %v8064
    %8457 = vst.msk [vmem:[#allocation7 + $0x458] sm:$0xff] %vm4402, %v8065
    %8458 = vst [vmem:[#allocation7 + $0x460] sm:$0xff] %v8066
    %8459 = vst [vmem:[#allocation7 + $0x468] sm:$0xff] %v8067
    %8460 = vst [vmem:[#allocation7 + $0x470] sm:$0xff] %v8068
    %8461 = vst [vmem:[#allocation7 + $0x478] sm:$0xff] %v8069
    %8462 = vst [vmem:[#allocation7 + $0x480] sm:$0xff] %v8070
    %8463 = vst [vmem:[#allocation7 + $0x488] sm:$0xff] %v8071
    %8464 = vst.msk [vmem:[#allocation7 + $0x490] sm:$0xff] %vm4402, %v8072
    %8465 = vst [vmem:[#allocation7 + $0x498] sm:$0xff] %v8073
    %8466 = vst [vmem:[#allocation7 + $0x4a0] sm:$0xff] %v8074
    %8467 = vst [vmem:[#allocation7 + $0x4a8] sm:$0xff] %v8075
    %8468 = vst [vmem:[#allocation7 + $0x4b0] sm:$0xff] %v8076
    %8469 = vst [vmem:[#allocation7 + $0x4b8] sm:$0xff] %v8077
    %8470 = vst [vmem:[#allocation7 + $0x4c0] sm:$0xff] %v8078
    %8471 = vst.msk [vmem:[#allocation7 + $0x4c8] sm:$0xff] %vm4402, %v8079
    %8472 = vst [vmem:[#allocation7 + $0x4d0] sm:$0xff] %v8080
    %8473 = vst [vmem:[#allocation7 + $0x4d8] sm:$0xff] %v8081
    %8474 = vst [vmem:[#allocation7 + $0x4e0] sm:$0xff] %v8082
    %8475 = vst [vmem:[#allocation7 + $0x4e8] sm:$0xff] %v8083
    %8476 = vst [vmem:[#allocation7 + $0x4f0] sm:$0xff] %v8084
    %8477 = vst [vmem:[#allocation7 + $0x4f8] sm:$0xff] %v8085
    %8478 = vst.msk [vmem:[#allocation7 + $0x500] sm:$0xff] %vm4402, %v8086
    %8479 = vst [vmem:[#allocation7 + $0x508] sm:$0xff] %v8087
    %8480 = vst [vmem:[#allocation7 + $0x510] sm:$0xff] %v8088
    %8481 = vst [vmem:[#allocation7 + $0x518] sm:$0xff] %v8089
    %8482 = vst [vmem:[#allocation7 + $0x520] sm:$0xff] %v8090
    %8483 = vst [vmem:[#allocation7 + $0x528] sm:$0xff] %v8091
    %8484 = vst [vmem:[#allocation7 + $0x530] sm:$0xff] %v8092
    %8485 = vst.msk [vmem:[#allocation7 + $0x538] sm:$0xff] %vm4402, %v8093
    %8486 = vst [vmem:[#allocation7 + $0x540] sm:$0xff] %v8094
    %8487 = vst [vmem:[#allocation7 + $0x548] sm:$0xff] %v8095
    %8488 = vst [vmem:[#allocation7 + $0x550] sm:$0xff] %v8096
    %8489 = vst [vmem:[#allocation7 + $0x558] sm:$0xff] %v8097
    %8490 = vst [vmem:[#allocation7 + $0x560] sm:$0xff] %v8098
    %8491 = vst [vmem:[#allocation7 + $0x568] sm:$0xff] %v8099
    %8492 = vst.msk [vmem:[#allocation7 + $0x570] sm:$0xff] %vm4402, %v8100
    %8493 = vst [vmem:[#allocation7 + $0x578] sm:$0xff] %v8101
    %8494 = vst [vmem:[#allocation7 + $0x580] sm:$0xff] %v8102
    %8495 = vst [vmem:[#allocation7 + $0x588] sm:$0xff] %v8103
    %8496 = vst [vmem:[#allocation7 + $0x590] sm:$0xff] %v8104
    %8497 = vst [vmem:[#allocation7 + $0x598] sm:$0xff] %v8105
    %8498 = vst [vmem:[#allocation7 + $0x5a0] sm:$0xff] %v8106
    %8499 = vst.msk [vmem:[#allocation7 + $0x5a8] sm:$0xff] %vm4402, %v8107
    %8500 = vst [vmem:[#allocation7 + $0x5b0] sm:$0xff] %v8108
    %8501 = vst [vmem:[#allocation7 + $0x5b8] sm:$0xff] %v8109
    %8502 = vst [vmem:[#allocation7 + $0x5c0] sm:$0xff] %v8110
    %8503 = vst [vmem:[#allocation7 + $0x5c8] sm:$0xff] %v8111
    %8504 = vst [vmem:[#allocation7 + $0x5d0] sm:$0xff] %v8112
    %8505 = vst [vmem:[#allocation7 + $0x5d8] sm:$0xff] %v8113
    %8506 = vst.msk [vmem:[#allocation7 + $0x5e0] sm:$0xff] %vm4402, %v8114
    %8507 = vst [vmem:[#allocation7 + $0x5e8] sm:$0xff] %v8115
    %8508 = vst [vmem:[#allocation7 + $0x5f0] sm:$0xff] %v8116
    %8509 = vst [vmem:[#allocation7 + $0x5f8] sm:$0xff] %v8117
    %8510 = vst [vmem:[#allocation7 + $0x600] sm:$0xff] %v8118
    %8511 = vst [vmem:[#allocation7 + $0x608] sm:$0xff] %v8119
    %8512 = vst [vmem:[#allocation7 + $0x610] sm:$0xff] %v8120
    %8513 = vst.msk [vmem:[#allocation7 + $0x618] sm:$0xff] %vm4402, %v8121
    %8514 = vst [vmem:[#allocation7 + $0x620] sm:$0xff] %v8122
    %8515 = vst [vmem:[#allocation7 + $0x628] sm:$0xff] %v8123
    %8516 = vst [vmem:[#allocation7 + $0x630] sm:$0xff] %v8124
    %8517 = vst [vmem:[#allocation7 + $0x638] sm:$0xff] %v8125
    %8518 = vst [vmem:[#allocation7 + $0x640] sm:$0xff] %v8126
    %8519 = vst [vmem:[#allocation7 + $0x648] sm:$0xff] %v8127
    %8520 = vst.msk [vmem:[#allocation7 + $0x650] sm:$0xff] %vm4402, %v8128
    %8521 = vst [vmem:[#allocation7 + $0x658] sm:$0xff] %v8129
    %8522 = vst [vmem:[#allocation7 + $0x660] sm:$0xff] %v8130
    %8523 = vst [vmem:[#allocation7 + $0x668] sm:$0xff] %v8131
    %8524 = vst [vmem:[#allocation7 + $0x670] sm:$0xff] %v8132
    %8525 = vst [vmem:[#allocation7 + $0x678] sm:$0xff] %v8133
    %8526 = vst [vmem:[#allocation7 + $0x680] sm:$0xff] %v8134
    %8527 = vst.msk [vmem:[#allocation7 + $0x688] sm:$0xff] %vm4402, %v8135
    %8528 = vst [vmem:[#allocation7 + $0x690] sm:$0xff] %v8136
    %8529 = vst [vmem:[#allocation7 + $0x698] sm:$0xff] %v8137
    %8530 = vst [vmem:[#allocation7 + $0x6a0] sm:$0xff] %v8138
    %8531 = vst [vmem:[#allocation7 + $0x6a8] sm:$0xff] %v8139
    %8532 = vst [vmem:[#allocation7 + $0x6b0] sm:$0xff] %v8140
    %8533 = vst [vmem:[#allocation7 + $0x6b8] sm:$0xff] %v8141
    %8534 = vst.msk [vmem:[#allocation7 + $0x6c0] sm:$0xff] %vm4402, %v8142
    %8535 = vst [vmem:[#allocation7 + $0x6c8] sm:$0xff] %v8143
    %8536 = vst [vmem:[#allocation7 + $0x6d0] sm:$0xff] %v8144
    %8537 = vst [vmem:[#allocation7 + $0x6d8] sm:$0xff] %v8145
    %8538 = vst [vmem:[#allocation7 + $0x6e0] sm:$0xff] %v8146
    %8539 = vst [vmem:[#allocation7 + $0x6e8] sm:$0xff] %v8147
    %8540 = vst [vmem:[#allocation7 + $0x6f0] sm:$0xff] %v8148
    %8541 = vst.msk [vmem:[#allocation7 + $0x6f8] sm:$0xff] %vm4402, %v8149
    %8542 = vst [vmem:[#allocation7 + $0x700] sm:$0xff] %v8150
    %8543 = vst [vmem:[#allocation7 + $0x708] sm:$0xff] %v8151
    %8544 = vst [vmem:[#allocation7 + $0x710] sm:$0xff] %v8152
    %8545 = vst [vmem:[#allocation7 + $0x718] sm:$0xff] %v8153
    %8546 = vst [vmem:[#allocation7 + $0x720] sm:$0xff] %v8154
    %8547 = vst [vmem:[#allocation7 + $0x728] sm:$0xff] %v8155
    %8548 = vst.msk [vmem:[#allocation7 + $0x730] sm:$0xff] %vm4402, %v8156
    %8549 = vst [vmem:[#allocation7 + $0x738] sm:$0xff] %v8157
    %8550 = vst [vmem:[#allocation7 + $0x740] sm:$0xff] %v8158
    %8551 = vst [vmem:[#allocation7 + $0x748] sm:$0xff] %v8159
    %8552 = vst [vmem:[#allocation7 + $0x750] sm:$0xff] %v8160
    %8553 = vst [vmem:[#allocation7 + $0x758] sm:$0xff] %v8161
    %8554 = vst [vmem:[#allocation7 + $0x760] sm:$0xff] %v8162
    %8555 = vst.msk [vmem:[#allocation7 + $0x768] sm:$0xff] %vm4402, %v8163
    %8556 = vst [vmem:[#allocation7 + $0x770] sm:$0xff] %v8164
    %8557 = vst [vmem:[#allocation7 + $0x778] sm:$0xff] %v8165
    %8558 = vst [vmem:[#allocation7 + $0x780] sm:$0xff] %v8166
    %8559 = vst [vmem:[#allocation7 + $0x788] sm:$0xff] %v8167
    %8560 = vst [vmem:[#allocation7 + $0x790] sm:$0xff] %v8168
    %8561 = vst [vmem:[#allocation7 + $0x798] sm:$0xff] %v8169
    %8562 = vst.msk [vmem:[#allocation7 + $0x7a0] sm:$0xff] %vm4402, %v8170
    %8563 = vst [vmem:[#allocation7 + $0x7a8] sm:$0xff] %v8171
    %8564 = vst [vmem:[#allocation7 + $0x7b0] sm:$0xff] %v8172
    %8565 = vst [vmem:[#allocation7 + $0x7b8] sm:$0xff] %v8173
    %8566 = vst [vmem:[#allocation7 + $0x7c0] sm:$0xff] %v8174
    %8567 = vst [vmem:[#allocation7 + $0x7c8] sm:$0xff] %v8175
    %8568 = vst [vmem:[#allocation7 + $0x7d0] sm:$0xff] %v8176
    %8569 = vst.msk [vmem:[#allocation7 + $0x7d8] sm:$0xff] %vm4402, %v8177
    %8570 = vst [vmem:[#allocation7 + $0x7e0] sm:$0xff] %v8178
    %8571 = vst [vmem:[#allocation7 + $0x7e8] sm:$0xff] %v8179
    %8572 = vst [vmem:[#allocation7 + $0x7f0] sm:$0xff] %v8180
    %8573 = vst [vmem:[#allocation7 + $0x7f8] sm:$0xff] %v8181
    %8574 = vst [vmem:[#allocation7 + $0x800] sm:$0xff] %v8182
    %8575 = vst [vmem:[#allocation7 + $0x808] sm:$0xff] %v8183
    %8576 = vst.msk [vmem:[#allocation7 + $0x810] sm:$0xff] %vm4402, %v8184
    %8577 = vst [vmem:[#allocation7 + $0x818] sm:$0xff] %v8185
    %8578 = vst [vmem:[#allocation7 + $0x820] sm:$0xff] %v8186
    %8579 = vst [vmem:[#allocation7 + $0x828] sm:$0xff] %v8187
    %8580 = vst [vmem:[#allocation7 + $0x830] sm:$0xff] %v8188
    %8581 = vst [vmem:[#allocation7 + $0x838] sm:$0xff] %v8189
    %8582 = vst [vmem:[#allocation7 + $0x840] sm:$0xff] %v8190
    %8583 = vst.msk [vmem:[#allocation7 + $0x848] sm:$0xff] %vm4402, %v8191
    %8584 = vst [vmem:[#allocation7 + $0x850] sm:$0xff] %v8192
    %8585 = vst [vmem:[#allocation7 + $0x858] sm:$0xff] %v8193
    %8586 = vst [vmem:[#allocation7 + $0x860] sm:$0xff] %v8194
    %8587 = vst [vmem:[#allocation7 + $0x868] sm:$0xff] %v8195
    %8588 = vst [vmem:[#allocation7 + $0x870] sm:$0xff] %v8196
    %8589 = vst [vmem:[#allocation7 + $0x878] sm:$0xff] %v8197
    %8590 = vst.msk [vmem:[#allocation7 + $0x880] sm:$0xff] %vm4402, %v8198
    %8591 = vst [vmem:[#allocation7 + $0x888] sm:$0xff] %v8199
    %8592 = vst [vmem:[#allocation7 + $0x890] sm:$0xff] %v8200
    %8593 = vst [vmem:[#allocation7 + $0x898] sm:$0xff] %v8201
    %8594 = vst [vmem:[#allocation7 + $0x8a0] sm:$0xff] %v8202
    %8595 = vst [vmem:[#allocation7 + $0x8a8] sm:$0xff] %v8203
    %8596 = vst [vmem:[#allocation7 + $0x8b0] sm:$0xff] %v8204
    %8597 = vst.msk [vmem:[#allocation7 + $0x8b8] sm:$0xff] %vm4402, %v8205
    %8598 = vst [vmem:[#allocation7 + $0x8c0] sm:$0xff] %v8206
    %8599 = vst [vmem:[#allocation7 + $0x8c8] sm:$0xff] %v8207
    %8600 = vst [vmem:[#allocation7 + $0x8d0] sm:$0xff] %v8208
    %8601 = vst [vmem:[#allocation7 + $0x8d8] sm:$0xff] %v8209
    %8602 = vst [vmem:[#allocation7 + $0x8e0] sm:$0xff] %v8210
    %8603 = vst [vmem:[#allocation7 + $0x8e8] sm:$0xff] %v8211
    %8604 = vst.msk [vmem:[#allocation7 + $0x8f0] sm:$0xff] %vm4402, %v8212
    %8605 = vst [vmem:[#allocation7 + $0x8f8] sm:$0xff] %v8213
    %8606 = vst [vmem:[#allocation7 + $0x900] sm:$0xff] %v8214
    %8607 = vst [vmem:[#allocation7 + $0x908] sm:$0xff] %v8215
    %8608 = vst [vmem:[#allocation7 + $0x910] sm:$0xff] %v8216
    %8609 = vst [vmem:[#allocation7 + $0x918] sm:$0xff] %v8217
    %8610 = vst [vmem:[#allocation7 + $0x920] sm:$0xff] %v8218
    %8611 = vst.msk [vmem:[#allocation7 + $0x928] sm:$0xff] %vm4402, %v8219
    %8612 = vst [vmem:[#allocation7 + $0x930] sm:$0xff] %v8220
    %8613 = vst [vmem:[#allocation7 + $0x938] sm:$0xff] %v8221
    %8614 = vst [vmem:[#allocation7 + $0x940] sm:$0xff] %v8222
    %8615 = vst [vmem:[#allocation7 + $0x948] sm:$0xff] %v8223
    %8616 = vst [vmem:[#allocation7 + $0x950] sm:$0xff] %v8224
    %8617 = vst [vmem:[#allocation7 + $0x958] sm:$0xff] %v8225
    %8618 = vst.msk [vmem:[#allocation7 + $0x960] sm:$0xff] %vm4402, %v8226
    %8619 = vst [vmem:[#allocation7 + $0x968] sm:$0xff] %v8227
    %8620 = vst [vmem:[#allocation7 + $0x970] sm:$0xff] %v8228
    %8621 = vst [vmem:[#allocation7 + $0x978] sm:$0xff] %v8229
    %8622 = vst [vmem:[#allocation7 + $0x980] sm:$0xff] %v8230
    %8623 = vst [vmem:[#allocation7 + $0x988] sm:$0xff] %v8231
    %8624 = vst [vmem:[#allocation7 + $0x990] sm:$0xff] %v8232
    %8625 = vst.msk [vmem:[#allocation7 + $0x998] sm:$0xff] %vm4402, %v8233
    %8626 = vst [vmem:[#allocation7 + $0x9a0] sm:$0xff] %v8234
    %8627 = vst [vmem:[#allocation7 + $0x9a8] sm:$0xff] %v8235
    %8628 = vst [vmem:[#allocation7 + $0x9b0] sm:$0xff] %v8236
    %8629 = vst [vmem:[#allocation7 + $0x9b8] sm:$0xff] %v8237
    %8630 = vst [vmem:[#allocation7 + $0x9c0] sm:$0xff] %v8238
    %8631 = vst [vmem:[#allocation7 + $0x9c8] sm:$0xff] %v8239
    %8632 = vst.msk [vmem:[#allocation7 + $0x9d0] sm:$0xff] %vm4402, %v8240
    %8633 = vst [vmem:[#allocation7 + $0x9d8] sm:$0xff] %v8241
    %8634 = vst [vmem:[#allocation7 + $0x9e0] sm:$0xff] %v8242
    %8635 = vst [vmem:[#allocation7 + $0x9e8] sm:$0xff] %v8243
    %8636 = vst [vmem:[#allocation7 + $0x9f0] sm:$0xff] %v8244
    %8637 = vst [vmem:[#allocation7 + $0x9f8] sm:$0xff] %v8245
    %8638 = vst [vmem:[#allocation7 + $0xa00] sm:$0xff] %v8246
    %8639 = vst.msk [vmem:[#allocation7 + $0xa08] sm:$0xff] %vm4402, %v8247
    %8640 = vst [vmem:[#allocation7 + $0xa10] sm:$0xff] %v8248
    %8641 = vst [vmem:[#allocation7 + $0xa18] sm:$0xff] %v8249
    %8642 = vst [vmem:[#allocation7 + $0xa20] sm:$0xff] %v8250
    %8643 = vst [vmem:[#allocation7 + $0xa28] sm:$0xff] %v8251
    %8644 = vst [vmem:[#allocation7 + $0xa30] sm:$0xff] %v8252
    %8645 = vst [vmem:[#allocation7 + $0xa38] sm:$0xff] %v8253
    %8646 = vst.msk [vmem:[#allocation7 + $0xa40] sm:$0xff] %vm4402, %v8254
    %8647 = vst [vmem:[#allocation7 + $0xa48] sm:$0xff] %v8255
    %8648 = vst [vmem:[#allocation7 + $0xa50] sm:$0xff] %v8256
    %8649 = vst [vmem:[#allocation7 + $0xa58] sm:$0xff] %v8257
    %8650 = vst [vmem:[#allocation7 + $0xa60] sm:$0xff] %v8258
    %8651 = vst [vmem:[#allocation7 + $0xa68] sm:$0xff] %v8259
    %8652 = vst [vmem:[#allocation7 + $0xa70] sm:$0xff] %v8260
    %8653 = vst.msk [vmem:[#allocation7 + $0xa78] sm:$0xff] %vm4402, %v8261
    %8654 = vst [vmem:[#allocation7 + $0xa80] sm:$0xff] %v8262
    %8655 = vst [vmem:[#allocation7 + $0xa88] sm:$0xff] %v8263
    %8656 = vst [vmem:[#allocation7 + $0xa90] sm:$0xff] %v8264
    %8657 = vst [vmem:[#allocation7 + $0xa98] sm:$0xff] %v8265
    %8658 = vst [vmem:[#allocation7 + $0xaa0] sm:$0xff] %v8266
    %8659 = vst [vmem:[#allocation7 + $0xaa8] sm:$0xff] %v8267
    %8660 = vst.msk [vmem:[#allocation7 + $0xab0] sm:$0xff] %vm4402, %v8268
    %8661 = vst [vmem:[#allocation7 + $0xab8] sm:$0xff] %v8269
    %8662 = vst [vmem:[#allocation7 + $0xac0] sm:$0xff] %v8270
    %8663 = vst [vmem:[#allocation7 + $0xac8] sm:$0xff] %v8271
    %8664 = vst [vmem:[#allocation7 + $0xad0] sm:$0xff] %v8272
    %8665 = vst [vmem:[#allocation7 + $0xad8] sm:$0xff] %v8273
    %8666 = vst [vmem:[#allocation7 + $0xae0] sm:$0xff] %v8274
    %8667 = vst.msk [vmem:[#allocation7 + $0xae8] sm:$0xff] %vm4402, %v8275
    %8668 = vst [vmem:[#allocation7 + $0xaf0] sm:$0xff] %v8276
    %8669 = vst [vmem:[#allocation7 + $0xaf8] sm:$0xff] %v8277
    %8670 = vst [vmem:[#allocation7 + $0xb00] sm:$0xff] %v8278
    %8671 = vst [vmem:[#allocation7 + $0xb08] sm:$0xff] %v8279
    %8672 = vst [vmem:[#allocation7 + $0xb10] sm:$0xff] %v8280
    %8673 = vst [vmem:[#allocation7 + $0xb18] sm:$0xff] %v8281
    %8674 = vst.msk [vmem:[#allocation7 + $0xb20] sm:$0xff] %vm4402, %v8282
    %8675 = vst [vmem:[#allocation7 + $0xb28] sm:$0xff] %v8283
    %8676 = vst [vmem:[#allocation7 + $0xb30] sm:$0xff] %v8284
    %8677 = vst [vmem:[#allocation7 + $0xb38] sm:$0xff] %v8285
    %8678 = vst [vmem:[#allocation7 + $0xb40] sm:$0xff] %v8286
    %8679 = vst [vmem:[#allocation7 + $0xb48] sm:$0xff] %v8287
    %8680 = vst [vmem:[#allocation7 + $0xb50] sm:$0xff] %v8288
    %8681 = vst.msk [vmem:[#allocation7 + $0xb58] sm:$0xff] %vm4402, %v8289
    %8682 = vst [vmem:[#allocation7 + $0xb60] sm:$0xff] %v8290
    %8683 = vst [vmem:[#allocation7 + $0xb68] sm:$0xff] %v8291
    %8684 = vst [vmem:[#allocation7 + $0xb70] sm:$0xff] %v8292
    %8685 = vst [vmem:[#allocation7 + $0xb78] sm:$0xff] %v8293
    %8686 = vst [vmem:[#allocation7 + $0xb80] sm:$0xff] %v8294
    %8687 = vst [vmem:[#allocation7 + $0xb88] sm:$0xff] %v8295
    %8688 = vst.msk [vmem:[#allocation7 + $0xb90] sm:$0xff] %vm4402, %v8296
    %8689 = vst [vmem:[#allocation7 + $0xb98] sm:$0xff] %v8297
    %8690 = vst [vmem:[#allocation7 + $0xba0] sm:$0xff] %v8298
    %8691 = vst [vmem:[#allocation7 + $0xba8] sm:$0xff] %v8299
    %8692 = vst [vmem:[#allocation7 + $0xbb0] sm:$0xff] %v8300
    %8693 = vst [vmem:[#allocation7 + $0xbb8] sm:$0xff] %v8301
    %8694 = vst [vmem:[#allocation7 + $0xbc0] sm:$0xff] %v8302
    %8695 = vst.msk [vmem:[#allocation7 + $0xbc8] sm:$0xff] %vm4402, %v8303
    %8696 = vst [vmem:[#allocation7 + $0xbd0] sm:$0xff] %v8304
    %8697 = vst [vmem:[#allocation7 + $0xbd8] sm:$0xff] %v8305
    %8698 = vst [vmem:[#allocation7 + $0xbe0] sm:$0xff] %v8306
    %8699 = vst [vmem:[#allocation7 + $0xbe8] sm:$0xff] %v8307
    %8700 = vst [vmem:[#allocation7 + $0xbf0] sm:$0xff] %v8308
    %8701 = vst [vmem:[#allocation7 + $0xbf8] sm:$0xff] %v8309
    %8702 = vst.msk [vmem:[#allocation7 + $0xc00] sm:$0xff] %vm4402, %v8310
    %8703 = vst [vmem:[#allocation7 + $0xc08] sm:$0xff] %v8311
    %8704 = vst [vmem:[#allocation7 + $0xc10] sm:$0xff] %v8312
    %8705 = vst [vmem:[#allocation7 + $0xc18] sm:$0xff] %v8313
    %8706 = vst [vmem:[#allocation7 + $0xc20] sm:$0xff] %v8314
    %8707 = vst [vmem:[#allocation7 + $0xc28] sm:$0xff] %v8315
    %8708 = vst [vmem:[#allocation7 + $0xc30] sm:$0xff] %v8316
    %8709 = vst.msk [vmem:[#allocation7 + $0xc38] sm:$0xff] %vm4402, %v8317
    // Predicated region
    $region22: #{tpu_custom_call.1} parent=1 // pred_check
      _
    $region23: #{tpu_custom_call.1} parent=1 // pred_check_branch
      %8711 = sbr.rel (0) target = $region25
    $region24: #{tpu_custom_call.1} parent=1 // pred_region
      %s8713 = ssub.s32 50176, 50176
      %8714 = vsyncadd [#allocation4], %s8713
      %s8715 = sshll.u32 [#allocation7], 4
      %s8716 = int_to_ptr.vmem [resolvable:$true] %s8715
      %8721 = dma.vmem_to_hbm [thread:$0]  %s8716, 50176, %s3, [#allocation4], 896, 896, 56
    $region25: #{tpu_custom_call.1} parent=1 // pred_fallthru
      _
    // Predicated region
    $region26: #{tpu_custom_call.1} parent=1 // pred_check
      _
    $region27: #{tpu_custom_call.1} parent=1 // pred_check_branch
      %8723 = sbr.rel (0) target = $region29
    $region28: #{tpu_custom_call.1} parent=1 // pred_region
      %8724 = dma.done [#allocation4], 50176
    $region29: #{tpu_custom_call.1} parent=1 // pred_fallthru
      _
    %8725 = vsyncpa [#allocation3], 1
    %8726 = vsyncpa [#allocation6], 1
    %8727 = vsyncpa [#allocation4], 1

</llo_original>
